<compile_context>
chip_gen: v7x
topology: tpu7x:2x2x1
jax: 0.10.0
libtpu: 0.0.40
codegen_flags: <defaults>
</compile_context>

<pallas_src>
import math

import jax
import jax.numpy as jnp
from jax import lax
from jax.experimental import pallas as pl
from jax.experimental.pallas import tpu as pltpu


def _elu(x):
    # F.elu (alpha=1) in f32; clamp before exp so no inf is ever generated.
    return jnp.where(x > 0, x, jnp.exp(jnp.minimum(x, 0.0)) - 1.0)


# ----------------------------------------------------------------------------
# Fused conv + bias + ELU + 2x2 max-pool kernel
# ----------------------------------------------------------------------------
def _conv_elu_pool_kernel(p00_ref, p01_ref, p10_ref, p11_ref, w_ref, b_ref,
                          o_ref):
    """One batch element.

    p??_ref : (1, K, PQ)   bf16  im2col patches of pool-quadrant (dy, dx)
    w_ref   : (Cout, K)    bf16  conv weight flattened PyTorch-style (c,kh,kw)
    b_ref   : (Cout, 1)    f32
    o_ref   : (1, Cout, PQ) bf16 pooled activations (lane-dense last dim)
    """
    w = w_ref[...]
    acc = jnp.dot(w, p00_ref[0], preferred_element_type=jnp.float32)
    for p_ref in (p01_ref, p10_ref, p11_ref):
        acc = jnp.maximum(
            acc, jnp.dot(w, p_ref[0], preferred_element_type=jnp.float32))
    acc = acc + b_ref[...]               # bias & ELU commute with the max-pool
    o_ref[0] = _elu(acc).astype(o_ref.dtype)


def conv_elu_pool(x, w, b):
    """max_pool2d(elu(conv2d(x, w, b)), 2) in a single pallas_call.

    x: (B, Cin, H, W) bf16, w: (Cout, Cin, KH, KW) f32, b: (Cout,) f32
    returns (B, Cout, Po, Qo) bf16 with Po=(H-KH+1)//2, Qo=(W-KW+1)//2.
    """
    B, Cin, H, W = x.shape
    Cout, _, KH, KW = w.shape
    K = Cin * KH * KW
    Po, Qo = (H - KH + 1) // 2, (W - KW + 1) // 2
    PQ = Po * Qo

    # One stride-2 patch extraction per pool quadrant: quadrant (dy, dx) holds
    # the im2col columns of conv-output positions (2*po+dy, 2*qo+dx).
    quads = []
    for dy in (0, 1):
        for dx in (0, 1):
            p = lax.conv_general_dilated_patches(
                x[:, :, dy:, dx:], (KH, KW), (2, 2), "VALID")  # (B, K, Po, Qo)
            quads.append(p.reshape(B, K, PQ))

    w2 = w.reshape(Cout, K).astype(jnp.bfloat16)
    b2 = b.reshape(Cout, 1).astype(jnp.float32)

    patch_spec = pl.BlockSpec((1, K, PQ), lambda i: (i, 0, 0))
    out = pl.pallas_call(
        _conv_elu_pool_kernel,
        out_shape=jax.ShapeDtypeStruct((B, Cout, PQ), jnp.bfloat16),
        grid=(B,),
        in_specs=[patch_spec] * 4 + [
            pl.BlockSpec((Cout, K), lambda i: (0, 0)),
            pl.BlockSpec((Cout, 1), lambda i: (0, 0)),
        ],
        out_specs=pl.BlockSpec((1, Cout, PQ), lambda i: (i, 0, 0)),
        compiler_params=pltpu.CompilerParams(
            dimension_semantics=("parallel",)),
    )(*quads, w2, b2)
    return out.reshape(B, Cout, Po, Qo)


# ----------------------------------------------------------------------------
# Fused MLP head: fc1+ELU -> fc2+ELU -> fc3+softmax in one kernel
# ----------------------------------------------------------------------------
def _mlp_head_kernel(x_ref, w1_ref, b1_ref, w2_ref, b2_ref, w3_ref, b3_ref,
                     o_ref):
    h = jnp.dot(x_ref[...], w1_ref[...],
                preferred_element_type=jnp.float32) + b1_ref[...]
    h = _elu(h)
    h = jnp.dot(h, w2_ref[...],
                preferred_element_type=jnp.float32) + b2_ref[...]
    h = _elu(h)
    z = jnp.dot(h, w3_ref[...],
                preferred_element_type=jnp.float32) + b3_ref[...]
    m = jnp.max(z, axis=-1, keepdims=True)
    e = jnp.exp(z - m)
    denom = jnp.sum(e, axis=-1, keepdims=True)
    o_ref[...] = (e * pl.reciprocal(denom, approx=True)).astype(o_ref.dtype)


def mlp_head(x, w1, b1, w2, b2, w3, b3):
    """x: (B, 7056); fc weights stored as (K, N). Returns (B, A) f32."""
    B = x.shape[0]
    A = w3.shape[1]
    args = (
        x.astype(jnp.bfloat16),
        w1.astype(jnp.bfloat16),        # big weight in bf16 halves HBM traffic
        b1.reshape(1, -1).astype(jnp.float32),
        w2.astype(jnp.float32),
        b2.reshape(1, -1).astype(jnp.float32),
        w3.astype(jnp.float32),
        b3.reshape(1, -1).astype(jnp.float32),
    )
    in_specs = [pl.BlockSpec(a.shape, lambda i: (0, 0)) for a in args]
    return pl.pallas_call(
        _mlp_head_kernel,
        out_shape=jax.ShapeDtypeStruct((B, A), jnp.float32),
        grid=(1,),
        in_specs=in_specs,
        out_specs=pl.BlockSpec((B, A), lambda i: (0, 0)),
    )(*args)


# ----------------------------------------------------------------------------
# Model: deterministic parameter init + forward
# ----------------------------------------------------------------------------
def xavier_uniform(key, fan_in, fan_out):
    limit = math.sqrt(6.0 / (fan_in + fan_out))
    return jax.random.uniform(key, (fan_in, fan_out), jnp.float32, -limit, limit)


def init_params(key, history_length, num_actions):
    ks = jax.random.split(key, 10)

    def conv_init(k, shape):
        fan_in = shape[1] * shape[2] * shape[3]
        limit = 1.0 / math.sqrt(fan_in)
        return jax.random.uniform(k, shape, jnp.float32, -limit, limit)

    # fc weights stored pre-transposed as (in_features, out_features) so the
    # forward pass never materializes a weight transpose.
    return {
        "conv1_w": conv_init(ks[0], (6, history_length, 5, 5)),
        "conv1_b": jax.random.uniform(ks[1], (6,), jnp.float32, -0.1, 0.1),
        "conv2_w": conv_init(ks[2], (16, 6, 5, 5)),
        "conv2_b": jax.random.uniform(ks[3], (16,), jnp.float32, -0.1, 0.1),
        "fc1_w": xavier_uniform(ks[4], 7056, 120),
        "fc1_b": jax.random.uniform(ks[5], (120,), jnp.float32, -0.1, 0.1),
        "fc2_w": xavier_uniform(ks[6], 120, 84),
        "fc2_b": jax.random.uniform(ks[7], (84,), jnp.float32, -0.1, 0.1),
        "fc3_w": xavier_uniform(ks[8], 84, num_actions),
        "fc3_b": jax.random.uniform(ks[9], (num_actions,), jnp.float32, -0.1, 0.1),
    }


def lenet_variant_forward(params, x):
    # bf16 MXU operands end-to-end, f32 accumulation + f32 elementwise math.
    x = x.astype(jnp.bfloat16)
    out = conv_elu_pool(x, params["conv1_w"], params["conv1_b"])     # (B, 6, 46, 46)
    out = conv_elu_pool(out, params["conv2_w"], params["conv2_b"])   # (B, 16, 21, 21)
    B = out.shape[0]
    out = out.reshape(B, -1)         # NCHW flatten -> (B, 7056), matches torch .view
    return mlp_head(out, params["fc1_w"], params["fc1_b"],
                    params["fc2_w"], params["fc2_b"],
                    params["fc3_w"], params["fc3_b"])


if __name__ == "__main__":
    # fc1 expects 7056 = 16*21*21 features, which pins the input spatial size
    # to 96x96 (96 -> conv 92 -> pool 46 -> conv 42 -> pool 21).
    batch, history_length, num_actions = 2, 4, 5
    key = jax.random.PRNGKey(0)
    k_params, k_x = jax.random.split(key)
    params = init_params(k_params, history_length, num_actions)
    x = jax.random.normal(k_x, (batch, history_length, 96, 96), jnp.float32)

    forward = jax.jit(lenet_variant_forward)
    out = jax.block_until_ready(forward(params, x))

    assert out.shape == (batch, num_actions)
    assert bool(jnp.all(jnp.isfinite(out)))
    # softmax rows should sum to ~1 (approx-reciprocal in the epilogue).
    assert bool(jnp.all(jnp.abs(jnp.sum(out, axis=1) - 1.0) < 1e-2))
    print("KERNEL_OK")
</pallas_src>

<mosaic_0001>
module attributes {stable_mosaic.version = 11 : i64} {
  func.func @_conv_elu_pool_kernel(%arg0: i32, %arg1: memref<1x100x2116xbf16, #tpu.memory_space<vmem>>, %arg2: memref<1x100x2116xbf16, #tpu.memory_space<vmem>>, %arg3: memref<1x100x2116xbf16, #tpu.memory_space<vmem>>, %arg4: memref<1x100x2116xbf16, #tpu.memory_space<vmem>>, %arg5: memref<6x100xbf16, #tpu.memory_space<vmem>>, %arg6: memref<6x1xf32, #tpu.memory_space<vmem>>, %arg7: memref<1x6x2116xbf16, #tpu.memory_space<vmem>>) attributes {dimension_semantics = [#tpu.dimension_semantics<parallel>], iteration_bounds = array<i64: 2>, scalar_prefetch = 0 : i64, scratch_operands = 0 : i64, tpu.core_type = #tpu.core_type<tc>, window_params = [{transform_indices = @transform_0, window_bounds = array<i64: 1, 100, 2116>}, {transform_indices = @transform_1, window_bounds = array<i64: 1, 100, 2116>}, {transform_indices = @transform_2, window_bounds = array<i64: 1, 100, 2116>}, {transform_indices = @transform_3, window_bounds = array<i64: 1, 100, 2116>}, {pipeline_mode = #tpu.pipeline_mode<synchronous>, transform_indices = @transform_4, window_bounds = array<i64: 6, 100>}, {pipeline_mode = #tpu.pipeline_mode<synchronous>, transform_indices = @transform_5, window_bounds = array<i64: 6, 1>}, {transform_indices = @transform_6, window_bounds = array<i64: 1, 6, 2116>}]} {
    %c0 = arith.constant 0 : index
    %c0_0 = arith.constant 0 : index
    %0 = vector.load %arg5[%c0, %c0_0] : memref<6x100xbf16, #tpu.memory_space<vmem>>, vector<6x100xbf16>
    %c0_1 = arith.constant 0 : index
    %c0_2 = arith.constant 0 : index
    %c0_3 = arith.constant 0 : index
    %1 = vector.load %arg1[%c0_1, %c0_2, %c0_3] : memref<1x100x2116xbf16, #tpu.memory_space<vmem>>, vector<1x100x2116xbf16>
    %2 = vector.shape_cast %1 : vector<1x100x2116xbf16> to vector<100x2116xbf16>
    %cst = arith.constant dense<0.000000e+00> : vector<6x2116xf32>
    %3 = tpu.matmul %0, %2, %cst {dimension_numbers = #tpu.dot_dimension_numbers<[1], [0], [0], [1], [0, 0, 1, 1], [], []>} : vector<6x100xbf16>, vector<100x2116xbf16>, vector<6x2116xf32> -> vector<6x2116xf32>
    %c0_4 = arith.constant 0 : index
    %c0_5 = arith.constant 0 : index
    %c0_6 = arith.constant 0 : index
    %4 = vector.load %arg2[%c0_4, %c0_5, %c0_6] : memref<1x100x2116xbf16, #tpu.memory_space<vmem>>, vector<1x100x2116xbf16>
    %5 = vector.shape_cast %4 : vector<1x100x2116xbf16> to vector<100x2116xbf16>
    %cst_7 = arith.constant dense<0.000000e+00> : vector<6x2116xf32>
    %6 = tpu.matmul %0, %5, %cst_7 {dimension_numbers = #tpu.dot_dimension_numbers<[1], [0], [0], [1], [0, 0, 1, 1], [], []>} : vector<6x100xbf16>, vector<100x2116xbf16>, vector<6x2116xf32> -> vector<6x2116xf32>
    %7 = arith.maximumf %3, %6 : vector<6x2116xf32>
    %c0_8 = arith.constant 0 : index
    %c0_9 = arith.constant 0 : index
    %c0_10 = arith.constant 0 : index
    %8 = vector.load %arg3[%c0_8, %c0_9, %c0_10] : memref<1x100x2116xbf16, #tpu.memory_space<vmem>>, vector<1x100x2116xbf16>
    %9 = vector.shape_cast %8 : vector<1x100x2116xbf16> to vector<100x2116xbf16>
    %cst_11 = arith.constant dense<0.000000e+00> : vector<6x2116xf32>
    %10 = tpu.matmul %0, %9, %cst_11 {dimension_numbers = #tpu.dot_dimension_numbers<[1], [0], [0], [1], [0, 0, 1, 1], [], []>} : vector<6x100xbf16>, vector<100x2116xbf16>, vector<6x2116xf32> -> vector<6x2116xf32>
    %11 = arith.maximumf %7, %10 : vector<6x2116xf32>
    %c0_12 = arith.constant 0 : index
    %c0_13 = arith.constant 0 : index
    %c0_14 = arith.constant 0 : index
    %12 = vector.load %arg4[%c0_12, %c0_13, %c0_14] : memref<1x100x2116xbf16, #tpu.memory_space<vmem>>, vector<1x100x2116xbf16>
    %13 = vector.shape_cast %12 : vector<1x100x2116xbf16> to vector<100x2116xbf16>
    %cst_15 = arith.constant dense<0.000000e+00> : vector<6x2116xf32>
    %14 = tpu.matmul %0, %13, %cst_15 {dimension_numbers = #tpu.dot_dimension_numbers<[1], [0], [0], [1], [0, 0, 1, 1], [], []>} : vector<6x100xbf16>, vector<100x2116xbf16>, vector<6x2116xf32> -> vector<6x2116xf32>
    %15 = arith.maximumf %11, %14 : vector<6x2116xf32>
    %c0_16 = arith.constant 0 : index
    %c0_17 = arith.constant 0 : index
    %16 = vector.load %arg6[%c0_16, %c0_17] : memref<6x1xf32, #tpu.memory_space<vmem>>, vector<6x1xf32>
    %17 = vector.broadcast %16 : vector<6x1xf32> to vector<6x2116xf32>
    %18 = arith.addf %15, %17 : vector<6x2116xf32>
    %cst_18 = arith.constant 0.000000e+00 : f32
    %19 = vector.broadcast %cst_18 : f32 to vector<6x2116xf32>
    %20 = arith.cmpf ogt, %18, %19 : vector<6x2116xf32>
    %cst_19 = arith.constant 0.000000e+00 : f32
    %21 = vector.broadcast %cst_19 : f32 to vector<6x2116xf32>
    %22 = arith.minimumf %18, %21 : vector<6x2116xf32>
    %23 = math.exp %22 : vector<6x2116xf32>
    %cst_20 = arith.constant 1.000000e+00 : f32
    %24 = vector.broadcast %cst_20 : f32 to vector<6x2116xf32>
    %25 = arith.subf %23, %24 : vector<6x2116xf32>
    %26 = arith.select %20, %18, %25 : vector<6x2116xi1>, vector<6x2116xf32>
    %27 = arith.truncf %26 : vector<6x2116xf32> to vector<6x2116xbf16>
    %c0_21 = arith.constant 0 : index
    %c0_22 = arith.constant 0 : index
    %c0_23 = arith.constant 0 : index
    %28 = vector.load %arg7[%c0_21, %c0_22, %c0_23] : memref<1x6x2116xbf16, #tpu.memory_space<vmem>>, vector<1x6x2116xbf16>
    %29 = vector.shape_cast %28 : vector<1x6x2116xbf16> to vector<6x2116xbf16>
    %30 = vector.shape_cast %27 : vector<6x2116xbf16> to vector<1x6x2116xbf16>
    tpu.vector_store %arg7[%c0_21, %c0_22, %c0_23], %30 {strides = array<i32>} : memref<1x6x2116xbf16, #tpu.memory_space<vmem>>, vector<1x6x2116xbf16>,
    return
  }
  func.func @transform_0(%arg0: i32) -> (i32, i32, i32) {
    %c0_i32 = arith.constant 0 : i32
    %c0_i32_0 = arith.constant 0 : i32
    %c0_i32_1 = arith.constant 0 : i32
    return %arg0, %c0_i32, %c0_i32_0 : i32, i32, i32
  }
  func.func @transform_1(%arg0: i32) -> (i32, i32, i32) {
    %c0_i32 = arith.constant 0 : i32
    %c0_i32_0 = arith.constant 0 : i32
    %c0_i32_1 = arith.constant 0 : i32
    return %arg0, %c0_i32, %c0_i32_0 : i32, i32, i32
  }
  func.func @transform_2(%arg0: i32) -> (i32, i32, i32) {
    %c0_i32 = arith.constant 0 : i32
    %c0_i32_0 = arith.constant 0 : i32
    %c0_i32_1 = arith.constant 0 : i32
    return %arg0, %c0_i32, %c0_i32_0 : i32, i32, i32
  }
  func.func @transform_3(%arg0: i32) -> (i32, i32, i32) {
    %c0_i32 = arith.constant 0 : i32
    %c0_i32_0 = arith.constant 0 : i32
    %c0_i32_1 = arith.constant 0 : i32
    return %arg0, %c0_i32, %c0_i32_0 : i32, i32, i32
  }
  func.func @transform_4(%arg0: i32) -> (i32, i32) {
    %c0_i32 = arith.constant 0 : i32
    %c0_i32_0 = arith.constant 0 : i32
    %c0_i32_1 = arith.constant 0 : i32
    return %c0_i32, %c0_i32_0 : i32, i32
  }
  func.func @transform_5(%arg0: i32) -> (i32, i32) {
    %c0_i32 = arith.constant 0 : i32
    %c0_i32_0 = arith.constant 0 : i32
    %c0_i32_1 = arith.constant 0 : i32
    return %c0_i32, %c0_i32_0 : i32, i32
  }
  func.func @transform_6(%arg0: i32) -> (i32, i32, i32) {
    %c0_i32 = arith.constant 0 : i32
    %c0_i32_0 = arith.constant 0 : i32
    %c0_i32_1 = arith.constant 0 : i32
    return %arg0, %c0_i32, %c0_i32_0 : i32, i32, i32
  }
}

module attributes {stable_mosaic.version = 11 : i64} {
  func.func @_conv_elu_pool_kernel(%arg0: i32, %arg1: memref<1x150x441xbf16, #tpu.memory_space<vmem>>, %arg2: memref<1x150x441xbf16, #tpu.memory_space<vmem>>, %arg3: memref<1x150x441xbf16, #tpu.memory_space<vmem>>, %arg4: memref<1x150x441xbf16, #tpu.memory_space<vmem>>, %arg5: memref<16x150xbf16, #tpu.memory_space<vmem>>, %arg6: memref<16x1xf32, #tpu.memory_space<vmem>>, %arg7: memref<1x16x441xbf16, #tpu.memory_space<vmem>>) attributes {dimension_semantics = [#tpu.dimension_semantics<parallel>], iteration_bounds = array<i64: 2>, scalar_prefetch = 0 : i64, scratch_operands = 0 : i64, tpu.core_type = #tpu.core_type<tc>, window_params = [{transform_indices = @transform_0, window_bounds = array<i64: 1, 150, 441>}, {transform_indices = @transform_1, window_bounds = array<i64: 1, 150, 441>}, {transform_indices = @transform_2, window_bounds = array<i64: 1, 150, 441>}, {transform_indices = @transform_3, window_bounds = array<i64: 1, 150, 441>}, {pipeline_mode = #tpu.pipeline_mode<synchronous>, transform_indices = @transform_4, window_bounds = array<i64: 16, 150>}, {pipeline_mode = #tpu.pipeline_mode<synchronous>, transform_indices = @transform_5, window_bounds = array<i64: 16, 1>}, {transform_indices = @transform_6, window_bounds = array<i64: 1, 16, 441>}]} {
    %c0 = arith.constant 0 : index
    %c0_0 = arith.constant 0 : index
    %0 = vector.load %arg5[%c0, %c0_0] : memref<16x150xbf16, #tpu.memory_space<vmem>>, vector<16x150xbf16>
    %c0_1 = arith.constant 0 : index
    %c0_2 = arith.constant 0 : index
    %c0_3 = arith.constant 0 : index
    %1 = vector.load %arg1[%c0_1, %c0_2, %c0_3] : memref<1x150x441xbf16, #tpu.memory_space<vmem>>, vector<1x150x441xbf16>
    %2 = vector.shape_cast %1 : vector<1x150x441xbf16> to vector<150x441xbf16>
    %cst = arith.constant dense<0.000000e+00> : vector<16x441xf32>
    %3 = tpu.matmul %0, %2, %cst {dimension_numbers = #tpu.dot_dimension_numbers<[1], [0], [0], [1], [0, 0, 1, 1], [], []>} : vector<16x150xbf16>, vector<150x441xbf16>, vector<16x441xf32> -> vector<16x441xf32>
    %c0_4 = arith.constant 0 : index
    %c0_5 = arith.constant 0 : index
    %c0_6 = arith.constant 0 : index
    %4 = vector.load %arg2[%c0_4, %c0_5, %c0_6] : memref<1x150x441xbf16, #tpu.memory_space<vmem>>, vector<1x150x441xbf16>
    %5 = vector.shape_cast %4 : vector<1x150x441xbf16> to vector<150x441xbf16>
    %cst_7 = arith.constant dense<0.000000e+00> : vector<16x441xf32>
    %6 = tpu.matmul %0, %5, %cst_7 {dimension_numbers = #tpu.dot_dimension_numbers<[1], [0], [0], [1], [0, 0, 1, 1], [], []>} : vector<16x150xbf16>, vector<150x441xbf16>, vector<16x441xf32> -> vector<16x441xf32>
    %7 = arith.maximumf %3, %6 : vector<16x441xf32>
    %c0_8 = arith.constant 0 : index
    %c0_9 = arith.constant 0 : index
    %c0_10 = arith.constant 0 : index
    %8 = vector.load %arg3[%c0_8, %c0_9, %c0_10] : memref<1x150x441xbf16, #tpu.memory_space<vmem>>, vector<1x150x441xbf16>
    %9 = vector.shape_cast %8 : vector<1x150x441xbf16> to vector<150x441xbf16>
    %cst_11 = arith.constant dense<0.000000e+00> : vector<16x441xf32>
    %10 = tpu.matmul %0, %9, %cst_11 {dimension_numbers = #tpu.dot_dimension_numbers<[1], [0], [0], [1], [0, 0, 1, 1], [], []>} : vector<16x150xbf16>, vector<150x441xbf16>, vector<16x441xf32> -> vector<16x441xf32>
    %11 = arith.maximumf %7, %10 : vector<16x441xf32>
    %c0_12 = arith.constant 0 : index
    %c0_13 = arith.constant 0 : index
    %c0_14 = arith.constant 0 : index
    %12 = vector.load %arg4[%c0_12, %c0_13, %c0_14] : memref<1x150x441xbf16, #tpu.memory_space<vmem>>, vector<1x150x441xbf16>
    %13 = vector.shape_cast %12 : vector<1x150x441xbf16> to vector<150x441xbf16>
    %cst_15 = arith.constant dense<0.000000e+00> : vector<16x441xf32>
    %14 = tpu.matmul %0, %13, %cst_15 {dimension_numbers = #tpu.dot_dimension_numbers<[1], [0], [0], [1], [0, 0, 1, 1], [], []>} : vector<16x150xbf16>, vector<150x441xbf16>, vector<16x441xf32> -> vector<16x441xf32>
    %15 = arith.maximumf %11, %14 : vector<16x441xf32>
    %c0_16 = arith.constant 0 : index
    %c0_17 = arith.constant 0 : index
    %16 = vector.load %arg6[%c0_16, %c0_17] : memref<16x1xf32, #tpu.memory_space<vmem>>, vector<16x1xf32>
    %17 = vector.broadcast %16 : vector<16x1xf32> to vector<16x441xf32>
    %18 = arith.addf %15, %17 : vector<16x441xf32>
    %cst_18 = arith.constant 0.000000e+00 : f32
    %19 = vector.broadcast %cst_18 : f32 to vector<16x441xf32>
    %20 = arith.cmpf ogt, %18, %19 : vector<16x441xf32>
    %cst_19 = arith.constant 0.000000e+00 : f32
    %21 = vector.broadcast %cst_19 : f32 to vector<16x441xf32>
    %22 = arith.minimumf %18, %21 : vector<16x441xf32>
    %23 = math.exp %22 : vector<16x441xf32>
    %cst_20 = arith.constant 1.000000e+00 : f32
    %24 = vector.broadcast %cst_20 : f32 to vector<16x441xf32>
    %25 = arith.subf %23, %24 : vector<16x441xf32>
    %26 = arith.select %20, %18, %25 : vector<16x441xi1>, vector<16x441xf32>
    %27 = arith.truncf %26 : vector<16x441xf32> to vector<16x441xbf16>
    %c0_21 = arith.constant 0 : index
    %c0_22 = arith.constant 0 : index
    %c0_23 = arith.constant 0 : index
    %28 = vector.load %arg7[%c0_21, %c0_22, %c0_23] : memref<1x16x441xbf16, #tpu.memory_space<vmem>>, vector<1x16x441xbf16>
    %29 = vector.shape_cast %28 : vector<1x16x441xbf16> to vector<16x441xbf16>
    %30 = vector.shape_cast %27 : vector<16x441xbf16> to vector<1x16x441xbf16>
    tpu.vector_store %arg7[%c0_21, %c0_22, %c0_23], %30 {strides = array<i32>} : memref<1x16x441xbf16, #tpu.memory_space<vmem>>, vector<1x16x441xbf16>,
    return
  }
  func.func @transform_0(%arg0: i32) -> (i32, i32, i32) {
    %c0_i32 = arith.constant 0 : i32
    %c0_i32_0 = arith.constant 0 : i32
    %c0_i32_1 = arith.constant 0 : i32
    return %arg0, %c0_i32, %c0_i32_0 : i32, i32, i32
  }
  func.func @transform_1(%arg0: i32) -> (i32, i32, i32) {
    %c0_i32 = arith.constant 0 : i32
    %c0_i32_0 = arith.constant 0 : i32
    %c0_i32_1 = arith.constant 0 : i32
    return %arg0, %c0_i32, %c0_i32_0 : i32, i32, i32
  }
  func.func @transform_2(%arg0: i32) -> (i32, i32, i32) {
    %c0_i32 = arith.constant 0 : i32
    %c0_i32_0 = arith.constant 0 : i32
    %c0_i32_1 = arith.constant 0 : i32
    return %arg0, %c0_i32, %c0_i32_0 : i32, i32, i32
  }
  func.func @transform_3(%arg0: i32) -> (i32, i32, i32) {
    %c0_i32 = arith.constant 0 : i32
    %c0_i32_0 = arith.constant 0 : i32
    %c0_i32_1 = arith.constant 0 : i32
    return %arg0, %c0_i32, %c0_i32_0 : i32, i32, i32
  }
  func.func @transform_4(%arg0: i32) -> (i32, i32) {
    %c0_i32 = arith.constant 0 : i32
    %c0_i32_0 = arith.constant 0 : i32
    %c0_i32_1 = arith.constant 0 : i32
    return %c0_i32, %c0_i32_0 : i32, i32
  }
  func.func @transform_5(%arg0: i32) -> (i32, i32) {
    %c0_i32 = arith.constant 0 : i32
    %c0_i32_0 = arith.constant 0 : i32
    %c0_i32_1 = arith.constant 0 : i32
    return %c0_i32, %c0_i32_0 : i32, i32
  }
  func.func @transform_6(%arg0: i32) -> (i32, i32, i32) {
    %c0_i32 = arith.constant 0 : i32
    %c0_i32_0 = arith.constant 0 : i32
    %c0_i32_1 = arith.constant 0 : i32
    return %arg0, %c0_i32, %c0_i32_0 : i32, i32, i32
  }
}

module attributes {stable_mosaic.version = 11 : i64} {
  func.func @_mlp_head_kernel(%arg0: i32, %arg1: memref<2x7056xbf16, #tpu.memory_space<vmem>>, %arg2: memref<7056x120xbf16, #tpu.memory_space<vmem>>, %arg3: memref<1x120xf32, #tpu.memory_space<vmem>>, %arg4: memref<120x84xf32, #tpu.memory_space<vmem>>, %arg5: memref<1x84xf32, #tpu.memory_space<vmem>>, %arg6: memref<84x5xf32, #tpu.memory_space<vmem>>, %arg7: memref<1x5xf32, #tpu.memory_space<vmem>>, %arg8: memref<2x5xf32, #tpu.memory_space<vmem>>) attributes {dimension_semantics = [#tpu.dimension_semantics<arbitrary>], iteration_bounds = array<i64: 1>, scalar_prefetch = 0 : i64, scratch_operands = 0 : i64, tpu.core_type = #tpu.core_type<tc>, window_params = [{pipeline_mode = #tpu.pipeline_mode<synchronous>, transform_indices = @transform_0, window_bounds = array<i64: 2, 7056>}, {pipeline_mode = #tpu.pipeline_mode<synchronous>, transform_indices = @transform_1, window_bounds = array<i64: 7056, 120>}, {pipeline_mode = #tpu.pipeline_mode<synchronous>, transform_indices = @transform_2, window_bounds = array<i64: 1, 120>}, {pipeline_mode = #tpu.pipeline_mode<synchronous>, transform_indices = @transform_3, window_bounds = array<i64: 120, 84>}, {pipeline_mode = #tpu.pipeline_mode<synchronous>, transform_indices = @transform_4, window_bounds = array<i64: 1, 84>}, {pipeline_mode = #tpu.pipeline_mode<synchronous>, transform_indices = @transform_5, window_bounds = array<i64: 84, 5>}, {pipeline_mode = #tpu.pipeline_mode<synchronous>, transform_indices = @transform_6, window_bounds = array<i64: 1, 5>}, {pipeline_mode = #tpu.pipeline_mode<synchronous>, transform_indices = @transform_7, window_bounds = array<i64: 2, 5>}]} {
    %c0 = arith.constant 0 : index
    %c0_0 = arith.constant 0 : index
    %0 = vector.load %arg1[%c0, %c0_0] : memref<2x7056xbf16, #tpu.memory_space<vmem>>, vector<2x7056xbf16>
    %c0_1 = arith.constant 0 : index
    %c0_2 = arith.constant 0 : index
    %1 = vector.load %arg2[%c0_1, %c0_2] : memref<7056x120xbf16, #tpu.memory_space<vmem>>, vector<7056x120xbf16>
    %cst = arith.constant dense<0.000000e+00> : vector<2x120xf32>
    %2 = tpu.matmul %0, %1, %cst {dimension_numbers = #tpu.dot_dimension_numbers<[1], [0], [0], [1], [0, 0, 1, 1], [], []>} : vector<2x7056xbf16>, vector<7056x120xbf16>, vector<2x120xf32> -> vector<2x120xf32>
    %c0_3 = arith.constant 0 : index
    %c0_4 = arith.constant 0 : index
    %3 = vector.load %arg3[%c0_3, %c0_4] : memref<1x120xf32, #tpu.memory_space<vmem>>, vector<1x120xf32>
    %4 = vector.broadcast %3 : vector<1x120xf32> to vector<2x120xf32>
    %5 = arith.addf %2, %4 : vector<2x120xf32>
    %cst_5 = arith.constant 0.000000e+00 : f32
    %6 = vector.broadcast %cst_5 : f32 to vector<2x120xf32>
    %7 = arith.cmpf ogt, %5, %6 : vector<2x120xf32>
    %cst_6 = arith.constant 0.000000e+00 : f32
    %8 = vector.broadcast %cst_6 : f32 to vector<2x120xf32>
    %9 = arith.minimumf %5, %8 : vector<2x120xf32>
    %10 = math.exp %9 : vector<2x120xf32>
    %cst_7 = arith.constant 1.000000e+00 : f32
    %11 = vector.broadcast %cst_7 : f32 to vector<2x120xf32>
    %12 = arith.subf %10, %11 : vector<2x120xf32>
    %13 = arith.select %7, %5, %12 : vector<2x120xi1>, vector<2x120xf32>
    %c0_8 = arith.constant 0 : index
    %c0_9 = arith.constant 0 : index
    %14 = vector.load %arg4[%c0_8, %c0_9] : memref<120x84xf32, #tpu.memory_space<vmem>>, vector<120x84xf32>
    %cst_10 = arith.constant dense<0.000000e+00> : vector<2x84xf32>
    %15 = tpu.matmul %13, %14, %cst_10 {dimension_numbers = #tpu.dot_dimension_numbers<[1], [0], [0], [1], [0, 0, 1, 1], [], []>} : vector<2x120xf32>, vector<120x84xf32>, vector<2x84xf32> -> vector<2x84xf32>
    %c0_11 = arith.constant 0 : index
    %c0_12 = arith.constant 0 : index
    %16 = vector.load %arg5[%c0_11, %c0_12] : memref<1x84xf32, #tpu.memory_space<vmem>>, vector<1x84xf32>
    %17 = vector.broadcast %16 : vector<1x84xf32> to vector<2x84xf32>
    %18 = arith.addf %15, %17 : vector<2x84xf32>
    %cst_13 = arith.constant 0.000000e+00 : f32
    %19 = vector.broadcast %cst_13 : f32 to vector<2x84xf32>
    %20 = arith.cmpf ogt, %18, %19 : vector<2x84xf32>
    %cst_14 = arith.constant 0.000000e+00 : f32
    %21 = vector.broadcast %cst_14 : f32 to vector<2x84xf32>
    %22 = arith.minimumf %18, %21 : vector<2x84xf32>
    %23 = math.exp %22 : vector<2x84xf32>
    %cst_15 = arith.constant 1.000000e+00 : f32
    %24 = vector.broadcast %cst_15 : f32 to vector<2x84xf32>
    %25 = arith.subf %23, %24 : vector<2x84xf32>
    %26 = arith.select %20, %18, %25 : vector<2x84xi1>, vector<2x84xf32>
    %c0_16 = arith.constant 0 : index
    %c0_17 = arith.constant 0 : index
    %27 = vector.load %arg6[%c0_16, %c0_17] : memref<84x5xf32, #tpu.memory_space<vmem>>, vector<84x5xf32>
    %cst_18 = arith.constant dense<0.000000e+00> : vector<2x5xf32>
    %28 = tpu.matmul %26, %27, %cst_18 {dimension_numbers = #tpu.dot_dimension_numbers<[1], [0], [0], [1], [0, 0, 1, 1], [], []>} : vector<2x84xf32>, vector<84x5xf32>, vector<2x5xf32> -> vector<2x5xf32>
    %c0_19 = arith.constant 0 : index
    %c0_20 = arith.constant 0 : index
    %29 = vector.load %arg7[%c0_19, %c0_20] : memref<1x5xf32, #tpu.memory_space<vmem>>, vector<1x5xf32>
    %30 = vector.broadcast %29 : vector<1x5xf32> to vector<2x5xf32>
    %31 = arith.addf %28, %30 : vector<2x5xf32>
    %cst_21 = arith.constant dense<0xFF800000> : vector<2xf32>
    %32 = vector.multi_reduction <maximumf>, %31, %cst_21 [1] : vector<2x5xf32> to vector<2xf32>
    %33 = vector.shape_cast %32 : vector<2xf32> to vector<2x1xf32>
    %34 = vector.broadcast %33 : vector<2x1xf32> to vector<2x5xf32>
    %35 = arith.subf %31, %34 : vector<2x5xf32>
    %36 = math.exp %35 : vector<2x5xf32>
    %cst_22 = arith.constant dense<0.000000e+00> : vector<2xf32>
    %37 = vector.multi_reduction <add>, %36, %cst_22 [1] : vector<2x5xf32> to vector<2xf32>
    %38 = vector.shape_cast %37 : vector<2xf32> to vector<2x1xf32>
    %39 = tpu.reciprocal %38 {approx = true} : vector<2x1xf32> -> vector<2x1xf32>
    %40 = vector.broadcast %39 : vector<2x1xf32> to vector<2x5xf32>
    %41 = arith.mulf %36, %40 : vector<2x5xf32>
    %c0_23 = arith.constant 0 : index
    %c0_24 = arith.constant 0 : index
    %42 = vector.load %arg8[%c0_23, %c0_24] : memref<2x5xf32, #tpu.memory_space<vmem>>, vector<2x5xf32>
    tpu.vector_store %arg8[%c0_23, %c0_24], %41 {strides = array<i32>} : memref<2x5xf32, #tpu.memory_space<vmem>>, vector<2x5xf32>,
    return
  }
  func.func @transform_0(%arg0: i32) -> (i32, i32) {
    %c0_i32 = arith.constant 0 : i32
    %c0_i32_0 = arith.constant 0 : i32
    %c0_i32_1 = arith.constant 0 : i32
    return %c0_i32, %c0_i32_0 : i32, i32
  }
  func.func @transform_1(%arg0: i32) -> (i32, i32) {
    %c0_i32 = arith.constant 0 : i32
    %c0_i32_0 = arith.constant 0 : i32
    %c0_i32_1 = arith.constant 0 : i32
    return %c0_i32, %c0_i32_0 : i32, i32
  }
  func.func @transform_2(%arg0: i32) -> (i32, i32) {
    %c0_i32 = arith.constant 0 : i32
    %c0_i32_0 = arith.constant 0 : i32
    %c0_i32_1 = arith.constant 0 : i32
    return %c0_i32, %c0_i32_0 : i32, i32
  }
  func.func @transform_3(%arg0: i32) -> (i32, i32) {
    %c0_i32 = arith.constant 0 : i32
    %c0_i32_0 = arith.constant 0 : i32
    %c0_i32_1 = arith.constant 0 : i32
    return %c0_i32, %c0_i32_0 : i32, i32
  }
  func.func @transform_4(%arg0: i32) -> (i32, i32) {
    %c0_i32 = arith.constant 0 : i32
    %c0_i32_0 = arith.constant 0 : i32
    %c0_i32_1 = arith.constant 0 : i32
    return %c0_i32, %c0_i32_0 : i32, i32
  }
  func.func @transform_5(%arg0: i32) -> (i32, i32) {
    %c0_i32 = arith.constant 0 : i32
    %c0_i32_0 = arith.constant 0 : i32
    %c0_i32_1 = arith.constant 0 : i32
    return %c0_i32, %c0_i32_0 : i32, i32
  }
  func.func @transform_6(%arg0: i32) -> (i32, i32) {
    %c0_i32 = arith.constant 0 : i32
    %c0_i32_0 = arith.constant 0 : i32
    %c0_i32_1 = arith.constant 0 : i32
    return %c0_i32, %c0_i32_0 : i32, i32
  }
  func.func @transform_7(%arg0: i32) -> (i32, i32) {
    %c0_i32 = arith.constant 0 : i32
    %c0_i32_0 = arith.constant 0 : i32
    %c0_i32_1 = arith.constant 0 : i32
    return %c0_i32, %c0_i32_0 : i32, i32
  }
}

</mosaic_0001>

<llo_original>
// kernel: lenet_variant_forward.3
$region0: #{lenet_variant_forward.3}
  #allocation0 [shape = 'u32[]', space=smem, size = 0x4, offset = 0x4, fixed_abs, tag = 'smem constant byte address 0x4 - core index']
  #allocation1 [shape = 'u32[144,128]{1,0:T(1,128)}', space=vmem, size = 0x12000, scoped, tag = 'internal scratch']
  %s0 = inlined_call_operand.vmem [shape: bf16[2,100,2116], index: 0, kind: input, shape index: {}]
  %s1 = inlined_call_operand.vmem [shape: bf16[2,100,2116], index: 1, kind: input, shape index: {}]
  %s2 = inlined_call_operand.vmem [shape: bf16[2,100,2116], index: 2, kind: input, shape index: {}]
  %s3 = inlined_call_operand.vmem [shape: bf16[2,100,2116], index: 3, kind: input, shape index: {}]
  %s4 = inlined_call_operand.vmem [shape: bf16[6,100], index: 4, kind: input, shape index: {}]
  %s5 = inlined_call_operand.vmem [shape: f32[6,1], index: 5, kind: input, shape index: {}]
  %s6 = inlined_call_operand.vmem [shape: bf16[2,6,2116], index: 6, kind: output, shape index: {}]
  %s7 = sld [smem:[#allocation0]]
  $region57: #{lenet_variant_forward.3} parent=0
    _
  %s9 = ssub.s32 1, %s7
  %s10 = scalar_select 0, %s9, %s7
  loop: start=0, step=1, limit=4
  $region2: #{lenet_variant_forward.3} parent=0 // loop_pre_header
    _
  $region3: #{lenet_variant_forward.3} parent=0 // loop_header
    %s12 = sphi 0, %s16
    %p13 = scmp.ge.s32.totalorder %s12, 4
    %s22 = sphi 0, %s24
    %s25 = sphi 0, %s22
    %s26 = sphi 0, %s25
    %s42 = sphi 0, %s26
    %s48 = sphi 0, %s50
    %s51 = sphi 0, %s48
    %s52 = sphi 0, %s51
    %s68 = sphi 0, %s52
    %s74 = sphi 0, %s76
    %s77 = sphi 0, %s74
    %s78 = sphi 0, %s77
    %s94 = sphi 0, %s78
    %s100 = sphi 0, %s102
    %s103 = sphi 0, %s100
    %s104 = sphi 0, %s103
    %s120 = sphi 0, %s104
    %s124 = sphi 0, %s124
    %s126 = sphi 0, %s124
    %s127 = sphi 0, %s126
    %s141 = sphi 0, %s127
    %s145 = sphi 0, %s145
    %s147 = sphi 0, %s145
    %s148 = sphi 0, %s147
    %s162 = sphi 0, %s148
    %s168 = sphi 0, %s170
    %s171 = sphi 0, %s168
    %s172 = sphi 0, %s171
    %s188 = sphi 0, %s172
  $region4: #{lenet_variant_forward.3} parent=0 // loop_header_branch
    %15 = sbr.rel (%p13) target = $region8
  $region5: #{lenet_variant_forward.3} parent=0 // loop_body
    %s17 = ssub.s32 %s12, 1
    %s18 = ssub.s32 %s12, 2
    %s19 = sadd.s32 %s12, 1
    %s20 = ssub.s32 %s12, %s19
    %p21 = scmp.eq.s32.totalorder %s20, 0
    %s23 = sadd.s32 %s22, 1
    %s24 = scalar_select %p21, %s22, %s23
    %p27 = pneg %p21
    %p28 = scmp.eq.s32.totalorder %s12, 1
    %p29 = por %p27, %p28
    %p30 = scmp.ne.s32.totalorder %s22, %s25
    %p31 = scmp.eq.s32.totalorder %s12, 0
    %p32 = por %p30, %p31
    %p33 = scmp.ne.s32.totalorder %s22, %s25
    %p34 = scmp.eq.s32.totalorder %s17, 1
    %p35 = por %p33, %p34
    %p36 = scmp.ne.s32.totalorder %s25, %s26
    %p37 = scmp.eq.s32.totalorder %s17, 0
    %p38 = por %p36, %p37
    %p39 = scmp.ne.s32.totalorder %s25, %s26
    %p40 = scmp.eq.s32.totalorder %s18, 1
    %p41 = por %p39, %p40
    %p43 = scmp.ne.s32.totalorder %s26, %s42
    %p44 = scmp.eq.s32.totalorder %s18, 0
    %p45 = por %p43, %p44
    %s46 = ssub.s32 %s12, %s19
    %p47 = scmp.eq.s32.totalorder %s46, 0
    %s49 = sadd.s32 %s48, 1
    %s50 = scalar_select %p47, %s48, %s49
    %p53 = pneg %p47
    %p54 = scmp.eq.s32.totalorder %s12, 1
    %p55 = por %p53, %p54
    %p56 = scmp.ne.s32.totalorder %s48, %s51
    %p57 = scmp.eq.s32.totalorder %s12, 0
    %p58 = por %p56, %p57
    %p59 = scmp.ne.s32.totalorder %s48, %s51
    %p60 = scmp.eq.s32.totalorder %s17, 1
    %p61 = por %p59, %p60
    %p62 = scmp.ne.s32.totalorder %s51, %s52
    %p63 = scmp.eq.s32.totalorder %s17, 0
    %p64 = por %p62, %p63
    %p65 = scmp.ne.s32.totalorder %s51, %s52
    %p66 = scmp.eq.s32.totalorder %s18, 1
    %p67 = por %p65, %p66
    %p69 = scmp.ne.s32.totalorder %s52, %s68
    %p70 = scmp.eq.s32.totalorder %s18, 0
    %p71 = por %p69, %p70
    %s72 = ssub.s32 %s12, %s19
    %p73 = scmp.eq.s32.totalorder %s72, 0
    %s75 = sadd.s32 %s74, 1
    %s76 = scalar_select %p73, %s74, %s75
    %p79 = pneg %p73
    %p80 = scmp.eq.s32.totalorder %s12, 1
    %p81 = por %p79, %p80
    %p82 = scmp.ne.s32.totalorder %s74, %s77
    %p83 = scmp.eq.s32.totalorder %s12, 0
    %p84 = por %p82, %p83
    %p85 = scmp.ne.s32.totalorder %s74, %s77
    %p86 = scmp.eq.s32.totalorder %s17, 1
    %p87 = por %p85, %p86
    %p88 = scmp.ne.s32.totalorder %s77, %s78
    %p89 = scmp.eq.s32.totalorder %s17, 0
    %p90 = por %p88, %p89
    %p91 = scmp.ne.s32.totalorder %s77, %s78
    %p92 = scmp.eq.s32.totalorder %s18, 1
    %p93 = por %p91, %p92
    %p95 = scmp.ne.s32.totalorder %s78, %s94
    %p96 = scmp.eq.s32.totalorder %s18, 0
    %p97 = por %p95, %p96
    %s98 = ssub.s32 %s12, %s19
    %p99 = scmp.eq.s32.totalorder %s98, 0
    %s101 = sadd.s32 %s100, 1
    %s102 = scalar_select %p99, %s100, %s101
    %p105 = pneg %p99
    %p106 = scmp.eq.s32.totalorder %s12, 1
    %p107 = por %p105, %p106
    %p108 = scmp.ne.s32.totalorder %s100, %s103
    %p109 = scmp.eq.s32.totalorder %s12, 0
    %p110 = por %p108, %p109
    %p111 = scmp.ne.s32.totalorder %s100, %s103
    %p112 = scmp.eq.s32.totalorder %s17, 1
    %p113 = por %p111, %p112
    %p114 = scmp.ne.s32.totalorder %s103, %s104
    %p115 = scmp.eq.s32.totalorder %s17, 0
    %p116 = por %p114, %p115
    %p117 = scmp.ne.s32.totalorder %s103, %s104
    %p118 = scmp.eq.s32.totalorder %s18, 1
    %p119 = por %p117, %p118
    %p121 = scmp.ne.s32.totalorder %s104, %s120
    %p122 = scmp.eq.s32.totalorder %s18, 0
    %p123 = por %p121, %p122
    %s125 = sadd.s32 %s124, 1
    %p128 = scmp.eq.s32.totalorder %s12, 1
    %p129 = scmp.ne.s32.totalorder %s124, %s126
    %p130 = scmp.eq.s32.totalorder %s12, 0
    %p131 = por %p129, %p130
    %p132 = scmp.ne.s32.totalorder %s124, %s126
    %p133 = scmp.eq.s32.totalorder %s17, 1
    %p134 = por %p132, %p133
    %p135 = scmp.ne.s32.totalorder %s126, %s127
    %p136 = scmp.eq.s32.totalorder %s17, 0
    %p137 = por %p135, %p136
    %p138 = scmp.ne.s32.totalorder %s126, %s127
    %p139 = scmp.eq.s32.totalorder %s18, 1
    %p140 = por %p138, %p139
    %p142 = scmp.ne.s32.totalorder %s127, %s141
    %p143 = scmp.eq.s32.totalorder %s18, 0
    %p144 = por %p142, %p143
    %s146 = sadd.s32 %s145, 1
    %p149 = scmp.eq.s32.totalorder %s12, 1
    %p150 = scmp.ne.s32.totalorder %s145, %s147
    %p151 = scmp.eq.s32.totalorder %s12, 0
    %p152 = por %p150, %p151
    %p153 = scmp.ne.s32.totalorder %s145, %s147
    %p154 = scmp.eq.s32.totalorder %s17, 1
    %p155 = por %p153, %p154
    %p156 = scmp.ne.s32.totalorder %s147, %s148
    %p157 = scmp.eq.s32.totalorder %s17, 0
    %p158 = por %p156, %p157
    %p159 = scmp.ne.s32.totalorder %s147, %s148
    %p160 = scmp.eq.s32.totalorder %s18, 1
    %p161 = por %p159, %p160
    %p163 = scmp.ne.s32.totalorder %s148, %s162
    %p164 = scmp.eq.s32.totalorder %s18, 0
    %p165 = por %p163, %p164
    %s166 = ssub.s32 %s12, %s19
    %p167 = scmp.eq.s32.totalorder %s166, 0
    %s169 = sadd.s32 %s168, 1
    %s170 = scalar_select %p167, %s168, %s169
    %p173 = pneg %p167
    %p174 = scmp.eq.s32.totalorder %s12, 1
    %p175 = por %p173, %p174
    %p176 = scmp.ne.s32.totalorder %s168, %s171
    %p177 = scmp.eq.s32.totalorder %s12, 0
    %p178 = por %p176, %p177
    %p179 = scmp.ne.s32.totalorder %s168, %s171
    %p180 = scmp.eq.s32.totalorder %s17, 1
    %p181 = por %p179, %p180
    %p182 = scmp.ne.s32.totalorder %s171, %s172
    %p183 = scmp.eq.s32.totalorder %s17, 0
    %p184 = por %p182, %p183
    %p185 = scmp.ne.s32.totalorder %s171, %s172
    %p186 = scmp.eq.s32.totalorder %s18, 1
    %p187 = por %p185, %p186
    %p189 = scmp.ne.s32.totalorder %s172, %s188
    %p190 = scmp.eq.s32.totalorder %s18, 0
    %p191 = por %p189, %p190
    %p192 = scmp.le.s32.totalorder 1, %s12
    %p193 = scmp.lt.s32.totalorder %s12, 3
    %p194 = pnand %p192, %p193
    %p195 = pneg %p194
    // Predicated region
    $region9: #{lenet_variant_forward.3} parent=5 // pred_check
      _
    $region10: #{lenet_variant_forward.3} parent=5 // pred_check_branch
      %197 = sbr.rel (%p194) target = $region12
    $region11: #{lenet_variant_forward.3} parent=5 // pred_region
      %s198 = ssub.s32 %s12, 1
      // Predicated region
      $region13: #{lenet_variant_forward.3} parent=11 // pred_check
        %p199 = pneg %p137
      $region14: #{lenet_variant_forward.3} parent=11 // pred_check_branch
        %201 = sbr.rel (%p199) target = $region16
      $region15: #{lenet_variant_forward.3} parent=11 // pred_region
        _
      $region16: #{lenet_variant_forward.3} parent=11 // pred_fallthru
        _
      // Predicated region
      $region17: #{lenet_variant_forward.3} parent=11 // pred_check
        %p202 = pneg %p158
      $region18: #{lenet_variant_forward.3} parent=11 // pred_check_branch
        %204 = sbr.rel (%p202) target = $region20
      $region19: #{lenet_variant_forward.3} parent=11 // pred_region
        _
      $region20: #{lenet_variant_forward.3} parent=11 // pred_fallthru
        _
    $region12: #{lenet_variant_forward.3} parent=5 // pred_fallthru
      _
    %p205 = scmp.lt.s32.totalorder %s12, 2
    // Predicated region
    $region21: #{lenet_variant_forward.3} parent=5 // pred_check
      %p206 = pneg %p205
    $region22: #{lenet_variant_forward.3} parent=5 // pred_check_branch
      %208 = sbr.rel (%p206) target = $region24
    $region23: #{lenet_variant_forward.3} parent=5 // pred_region
      // Predicated region
      $region25: #{lenet_variant_forward.3} parent=23 // pred_check
        %p209 = pneg %p32
      $region26: #{lenet_variant_forward.3} parent=23 // pred_check_branch
        %211 = sbr.rel (%p209) target = $region28
      $region27: #{lenet_variant_forward.3} parent=23 // pred_region
        %p212 = scmp.lt.s32.totalorder %s12, 1
        %s213 = scalar_select %p212, %s12, 1
        %s214 = smul.addr %s213, 221
        %s215 = smul.addr %s214, 4
        %s216 = scalar_lea.vmem %s0, %s215
      $region28: #{lenet_variant_forward.3} parent=23 // pred_fallthru
        _
      // Predicated region
      $region29: #{lenet_variant_forward.3} parent=23 // pred_check
        %p217 = pneg %p58
      $region30: #{lenet_variant_forward.3} parent=23 // pred_check_branch
        %219 = sbr.rel (%p217) target = $region32
      $region31: #{lenet_variant_forward.3} parent=23 // pred_region
        %p220 = scmp.lt.s32.totalorder %s12, 1
        %s221 = scalar_select %p220, %s12, 1
        %s222 = smul.addr %s221, 221
        %s223 = smul.addr %s222, 4
        %s224 = scalar_lea.vmem %s1, %s223
      $region32: #{lenet_variant_forward.3} parent=23 // pred_fallthru
        _
      // Predicated region
      $region33: #{lenet_variant_forward.3} parent=23 // pred_check
        %p225 = pneg %p84
      $region34: #{lenet_variant_forward.3} parent=23 // pred_check_branch
        %227 = sbr.rel (%p225) target = $region36
      $region35: #{lenet_variant_forward.3} parent=23 // pred_region
        %p228 = scmp.lt.s32.totalorder %s12, 1
        %s229 = scalar_select %p228, %s12, 1
        %s230 = smul.addr %s229, 221
        %s231 = smul.addr %s230, 4
        %s232 = scalar_lea.vmem %s2, %s231
      $region36: #{lenet_variant_forward.3} parent=23 // pred_fallthru
        _
      // Predicated region
      $region37: #{lenet_variant_forward.3} parent=23 // pred_check
        %p233 = pneg %p110
      $region38: #{lenet_variant_forward.3} parent=23 // pred_check_branch
        %235 = sbr.rel (%p233) target = $region40
      $region39: #{lenet_variant_forward.3} parent=23 // pred_region
        %p236 = scmp.lt.s32.totalorder %s12, 1
        %s237 = scalar_select %p236, %s12, 1
        %s238 = smul.addr %s237, 221
        %s239 = smul.addr %s238, 4
        %s240 = scalar_lea.vmem %s3, %s239
      $region40: #{lenet_variant_forward.3} parent=23 // pred_fallthru
        _
    $region24: #{lenet_variant_forward.3} parent=5 // pred_fallthru
      _
    %p241 = scmp.le.s32.totalorder 1, %s12
    %p242 = scmp.lt.s32.totalorder %s12, 3
    %p243 = pnand %p241, %p242
    %p244 = pneg %p243
    // Predicated region
    $region41: #{lenet_variant_forward.3} parent=5 // pred_check
      _
    $region42: #{lenet_variant_forward.3} parent=5 // pred_check_branch
      %246 = sbr.rel (%p243) target = $region44
    $region43: #{lenet_variant_forward.3} parent=5 // pred_region
      %s247 = ssub.s32 %s12, 1
      %p248 = scmp.lt.s32.totalorder %s17, 1
      %s249 = scalar_select %p248, %s17, 1
      %s250 = smul.addr %s249, 221
      %s251 = smul.addr %s250, 4
      %s252 = scalar_lea.vmem %s0, %s251
      %p253 = pneg %p38
      %p254 = pneg %p35
      %p255 = scmp.lt.s32.totalorder %s17, 1
      %s256 = scalar_select %p255, %s17, 1
      %s257 = smul.addr %s256, 221
      %s258 = smul.addr %s257, 4
      %s259 = scalar_lea.vmem %s1, %s258
      %p260 = pneg %p64
      %p261 = pneg %p61
      %p262 = scmp.lt.s32.totalorder %s17, 1
      %s263 = scalar_select %p262, %s17, 1
      %s264 = smul.addr %s263, 221
      %s265 = smul.addr %s264, 4
      %s266 = scalar_lea.vmem %s2, %s265
      %p267 = pneg %p90
      %p268 = pneg %p87
      %p269 = scmp.lt.s32.totalorder %s17, 1
      %s270 = scalar_select %p269, %s17, 1
      %s271 = smul.addr %s270, 221
      %s272 = smul.addr %s271, 4
      %s273 = scalar_lea.vmem %s3, %s272
      %p274 = pneg %p116
      %p275 = pneg %p113
      %p276 = pneg %p137
      %p277 = pneg %p134
      %p278 = pneg %p158
      %p279 = pneg %p155
      %p280 = pneg %p184
      %p281 = pneg %p181
      %p282 = scmp.lt.s32.totalorder %s17, 1
      %s283 = scalar_select %p282, %s17, 1
      %s284 = smul.addr %s283, 17
      %s285 = smul.addr %s284, 4
      %s286 = scalar_lea.vmem %s6, %s285
      %p287 = scmp.lt.s32.totalorder %s17, 1
      %s288 = scalar_select %p287, %s17, 1
      %s289 = smul.addr %s288, 221
      %s290 = smul.addr %s289, 4
      %s291 = scalar_lea.vmem %s0, %s290
      %p292 = scmp.lt.s32.totalorder %s17, 1
      %s293 = scalar_select %p292, %s17, 1
      %s294 = smul.addr %s293, 221
      %s295 = smul.addr %s294, 4
      %s296 = scalar_lea.vmem %s1, %s295
      %p297 = scmp.lt.s32.totalorder %s17, 1
      %s298 = scalar_select %p297, %s17, 1
      %s299 = smul.addr %s298, 221
      %s300 = smul.addr %s299, 4
      %s301 = scalar_lea.vmem %s2, %s300
      %p302 = scmp.lt.s32.totalorder %s17, 1
      %s303 = scalar_select %p302, %s17, 1
      %s304 = smul.addr %s303, 221
      %s305 = smul.addr %s304, 4
      %s306 = scalar_lea.vmem %s3, %s305
      %p307 = scmp.lt.s32.totalorder %s17, 1
      %s308 = scalar_select %p307, %s17, 1
      %s309 = smul.addr %s308, 17
      %s310 = smul.addr %s309, 4
      %s311 = scalar_lea.vmem %s6, %s310
      %v313 = vld [vmem:[%s4] sm:$0x7]
      %v314 = vld [vmem:[%s291] sm:$0xff]
      %v315 = vld [vmem:[%s291 + $0x8] sm:$0xff]
      %v316 = vld [vmem:[%s291 + $0x10] sm:$0xff]
      %v317 = vld [vmem:[%s291 + $0x18] sm:$0xff]
      %v318 = vld [vmem:[%s291 + $0x20] sm:$0xff]
      %v319 = vld [vmem:[%s291 + $0x28] sm:$0xff]
      %v320 = vld [vmem:[%s291 + $0x30] sm:$0xff]
      %v321 = vld [vmem:[%s291 + $0x38] sm:$0xff]
      %v322 = vld [vmem:[%s291 + $0x40] sm:$0xf]
      %v323 = vld [vmem:[%s291 + $0x44] sm:$0xff]
      %v324 = vld [vmem:[%s291 + $0x4c] sm:$0xff]
      %v325 = vld [vmem:[%s291 + $0x54] sm:$0xff]
      %v326 = vld [vmem:[%s291 + $0x5c] sm:$0xff]
      %v327 = vld [vmem:[%s291 + $0x64] sm:$0xff]
      %v328 = vld [vmem:[%s291 + $0x6c] sm:$0xff]
      %v329 = vld [vmem:[%s291 + $0x74] sm:$0xff]
      %v330 = vld [vmem:[%s291 + $0x7c] sm:$0xff]
      %v331 = vld [vmem:[%s291 + $0x84] sm:$0xf]
      %v332 = vld [vmem:[%s291 + $0x88] sm:$0xff]
      %v333 = vld [vmem:[%s291 + $0x90] sm:$0xff]
      %v334 = vld [vmem:[%s291 + $0x98] sm:$0xff]
      %v335 = vld [vmem:[%s291 + $0xa0] sm:$0xff]
      %v336 = vld [vmem:[%s291 + $0xa8] sm:$0xff]
      %v337 = vld [vmem:[%s291 + $0xb0] sm:$0xff]
      %v338 = vld [vmem:[%s291 + $0xb8] sm:$0xff]
      %v339 = vld [vmem:[%s291 + $0xc0] sm:$0xff]
      %v340 = vld [vmem:[%s291 + $0xc8] sm:$0xf]
      %v341 = vld [vmem:[%s291 + $0xcc] sm:$0xff]
      %v342 = vld [vmem:[%s291 + $0xd4] sm:$0xff]
      %v343 = vld [vmem:[%s291 + $0xdc] sm:$0xff]
      %v344 = vld [vmem:[%s291 + $0xe4] sm:$0xff]
      %v345 = vld [vmem:[%s291 + $0xec] sm:$0xff]
      %v346 = vld [vmem:[%s291 + $0xf4] sm:$0xff]
      %v347 = vld [vmem:[%s291 + $0xfc] sm:$0xff]
      %v348 = vld [vmem:[%s291 + $0x104] sm:$0xff]
      %v349 = vld [vmem:[%s291 + $0x10c] sm:$0xf]
      %v350 = vld [vmem:[%s291 + $0x110] sm:$0xff]
      %v351 = vld [vmem:[%s291 + $0x118] sm:$0xff]
      %v352 = vld [vmem:[%s291 + $0x120] sm:$0xff]
      %v353 = vld [vmem:[%s291 + $0x128] sm:$0xff]
      %v354 = vld [vmem:[%s291 + $0x130] sm:$0xff]
      %v355 = vld [vmem:[%s291 + $0x138] sm:$0xff]
      %v356 = vld [vmem:[%s291 + $0x140] sm:$0xff]
      %v357 = vld [vmem:[%s291 + $0x148] sm:$0xff]
      %v358 = vld [vmem:[%s291 + $0x150] sm:$0xf]
      %v359 = vld [vmem:[%s291 + $0x154] sm:$0xff]
      %v360 = vld [vmem:[%s291 + $0x15c] sm:$0xff]
      %v361 = vld [vmem:[%s291 + $0x164] sm:$0xff]
      %v362 = vld [vmem:[%s291 + $0x16c] sm:$0xff]
      %v363 = vld [vmem:[%s291 + $0x174] sm:$0xff]
      %v364 = vld [vmem:[%s291 + $0x17c] sm:$0xff]
      %v365 = vld [vmem:[%s291 + $0x184] sm:$0xff]
      %v366 = vld [vmem:[%s291 + $0x18c] sm:$0xff]
      %v367 = vld [vmem:[%s291 + $0x194] sm:$0xf]
      %v368 = vld [vmem:[%s291 + $0x198] sm:$0xff]
      %v369 = vld [vmem:[%s291 + $0x1a0] sm:$0xff]
      %v370 = vld [vmem:[%s291 + $0x1a8] sm:$0xff]
      %v371 = vld [vmem:[%s291 + $0x1b0] sm:$0xff]
      %v372 = vld [vmem:[%s291 + $0x1b8] sm:$0xff]
      %v373 = vld [vmem:[%s291 + $0x1c0] sm:$0xff]
      %v374 = vld [vmem:[%s291 + $0x1c8] sm:$0xff]
      %v375 = vld [vmem:[%s291 + $0x1d0] sm:$0xff]
      %v376 = vld [vmem:[%s291 + $0x1d8] sm:$0xf]
      %v377 = vld [vmem:[%s291 + $0x1dc] sm:$0xff]
      %v378 = vld [vmem:[%s291 + $0x1e4] sm:$0xff]
      %v379 = vld [vmem:[%s291 + $0x1ec] sm:$0xff]
      %v380 = vld [vmem:[%s291 + $0x1f4] sm:$0xff]
      %v381 = vld [vmem:[%s291 + $0x1fc] sm:$0xff]
      %v382 = vld [vmem:[%s291 + $0x204] sm:$0xff]
      %v383 = vld [vmem:[%s291 + $0x20c] sm:$0xff]
      %v384 = vld [vmem:[%s291 + $0x214] sm:$0xff]
      %v385 = vld [vmem:[%s291 + $0x21c] sm:$0xf]
      %v386 = vld [vmem:[%s291 + $0x220] sm:$0xff]
      %v387 = vld [vmem:[%s291 + $0x228] sm:$0xff]
      %v388 = vld [vmem:[%s291 + $0x230] sm:$0xff]
      %v389 = vld [vmem:[%s291 + $0x238] sm:$0xff]
      %v390 = vld [vmem:[%s291 + $0x240] sm:$0xff]
      %v391 = vld [vmem:[%s291 + $0x248] sm:$0xff]
      %v392 = vld [vmem:[%s291 + $0x250] sm:$0xff]
      %v393 = vld [vmem:[%s291 + $0x258] sm:$0xff]
      %v394 = vld [vmem:[%s291 + $0x260] sm:$0xf]
      %v395 = vld [vmem:[%s291 + $0x264] sm:$0xff]
      %v396 = vld [vmem:[%s291 + $0x26c] sm:$0xff]
      %v397 = vld [vmem:[%s291 + $0x274] sm:$0xff]
      %v398 = vld [vmem:[%s291 + $0x27c] sm:$0xff]
      %v399 = vld [vmem:[%s291 + $0x284] sm:$0xff]
      %v400 = vld [vmem:[%s291 + $0x28c] sm:$0xff]
      %v401 = vld [vmem:[%s291 + $0x294] sm:$0xff]
      %v402 = vld [vmem:[%s291 + $0x29c] sm:$0xff]
      %v403 = vld [vmem:[%s291 + $0x2a4] sm:$0xf]
      %v404 = vld [vmem:[%s291 + $0x2a8] sm:$0xff]
      %v405 = vld [vmem:[%s291 + $0x2b0] sm:$0xff]
      %v406 = vld [vmem:[%s291 + $0x2b8] sm:$0xff]
      %v407 = vld [vmem:[%s291 + $0x2c0] sm:$0xff]
      %v408 = vld [vmem:[%s291 + $0x2c8] sm:$0xff]
      %v409 = vld [vmem:[%s291 + $0x2d0] sm:$0xff]
      %v410 = vld [vmem:[%s291 + $0x2d8] sm:$0xff]
      %v411 = vld [vmem:[%s291 + $0x2e0] sm:$0xff]
      %v412 = vld [vmem:[%s291 + $0x2e8] sm:$0xf]
      %v413 = vld [vmem:[%s291 + $0x2ec] sm:$0xff]
      %v414 = vld [vmem:[%s291 + $0x2f4] sm:$0xff]
      %v415 = vld [vmem:[%s291 + $0x2fc] sm:$0xff]
      %v416 = vld [vmem:[%s291 + $0x304] sm:$0xff]
      %v417 = vld [vmem:[%s291 + $0x30c] sm:$0xff]
      %v418 = vld [vmem:[%s291 + $0x314] sm:$0xff]
      %v419 = vld [vmem:[%s291 + $0x31c] sm:$0xff]
      %v420 = vld [vmem:[%s291 + $0x324] sm:$0xff]
      %v421 = vld [vmem:[%s291 + $0x32c] sm:$0xf]
      %v422 = vld [vmem:[%s291 + $0x330] sm:$0x33]
      %v423 = vld [vmem:[%s291 + $0x338] sm:$0x33]
      %v424 = vld [vmem:[%s291 + $0x340] sm:$0x33]
      %v425 = vld [vmem:[%s291 + $0x348] sm:$0x33]
      %v426 = vld [vmem:[%s291 + $0x350] sm:$0x33]
      %v427 = vld [vmem:[%s291 + $0x358] sm:$0x33]
      %v428 = vld [vmem:[%s291 + $0x360] sm:$0x33]
      %v429 = vld [vmem:[%s291 + $0x368] sm:$0x33]
      %v430 = vld [vmem:[%s291 + $0x370] sm:$0x3]
      %v548 = vunpack.c.l.b16 %v314
      %v549 = vunpack.c.h.b16 %v314
      %v550 = vunpack.c.l.b16 %v315
      %v551 = vunpack.c.h.b16 %v315
      %v552 = vunpack.c.l.b16 %v316
      %v553 = vunpack.c.h.b16 %v316
      %v554 = vunpack.c.l.b16 %v317
      %v555 = vunpack.c.h.b16 %v317
      %v556 = vunpack.c.l.b16 %v318
      %v557 = vunpack.c.h.b16 %v318
      %v558 = vunpack.c.l.b16 %v319
      %v559 = vunpack.c.h.b16 %v319
      %v560 = vunpack.c.l.b16 %v320
      %v561 = vunpack.c.h.b16 %v320
      %v562 = vunpack.c.l.b16 %v321
      %v563 = vunpack.c.h.b16 %v321
      %v564 = vunpack.c.l.b16 %v322
      %v565 = vunpack.c.l.b16 %v323
      %v566 = vunpack.c.h.b16 %v323
      %v567 = vunpack.c.l.b16 %v324
      %v568 = vunpack.c.h.b16 %v324
      %v569 = vunpack.c.l.b16 %v325
      %v570 = vunpack.c.h.b16 %v325
      %v571 = vunpack.c.l.b16 %v326
      %v572 = vunpack.c.h.b16 %v326
      %v573 = vunpack.c.l.b16 %v327
      %v574 = vunpack.c.h.b16 %v327
      %v575 = vunpack.c.l.b16 %v328
      %v576 = vunpack.c.h.b16 %v328
      %v577 = vunpack.c.l.b16 %v329
      %v578 = vunpack.c.h.b16 %v329
      %v579 = vunpack.c.l.b16 %v330
      %v580 = vunpack.c.h.b16 %v330
      %v581 = vunpack.c.l.b16 %v331
      %v582 = vunpack.c.l.b16 %v332
      %v583 = vunpack.c.h.b16 %v332
      %v584 = vunpack.c.l.b16 %v333
      %v585 = vunpack.c.h.b16 %v333
      %v586 = vunpack.c.l.b16 %v334
      %v587 = vunpack.c.h.b16 %v334
      %v588 = vunpack.c.l.b16 %v335
      %v589 = vunpack.c.h.b16 %v335
      %v590 = vunpack.c.l.b16 %v336
      %v591 = vunpack.c.h.b16 %v336
      %v592 = vunpack.c.l.b16 %v337
      %v593 = vunpack.c.h.b16 %v337
      %v594 = vunpack.c.l.b16 %v338
      %v595 = vunpack.c.h.b16 %v338
      %v596 = vunpack.c.l.b16 %v339
      %v597 = vunpack.c.h.b16 %v339
      %v598 = vunpack.c.l.b16 %v340
      %v599 = vunpack.c.l.b16 %v341
      %v600 = vunpack.c.h.b16 %v341
      %v601 = vunpack.c.l.b16 %v342
      %v602 = vunpack.c.h.b16 %v342
      %v603 = vunpack.c.l.b16 %v343
      %v604 = vunpack.c.h.b16 %v343
      %v605 = vunpack.c.l.b16 %v344
      %v606 = vunpack.c.h.b16 %v344
      %v607 = vunpack.c.l.b16 %v345
      %v608 = vunpack.c.h.b16 %v345
      %v609 = vunpack.c.l.b16 %v346
      %v610 = vunpack.c.h.b16 %v346
      %v611 = vunpack.c.l.b16 %v347
      %v612 = vunpack.c.h.b16 %v347
      %v613 = vunpack.c.l.b16 %v348
      %v614 = vunpack.c.h.b16 %v348
      %v615 = vunpack.c.l.b16 %v349
      %v616 = vunpack.c.l.b16 %v350
      %v617 = vunpack.c.h.b16 %v350
      %v618 = vunpack.c.l.b16 %v351
      %v619 = vunpack.c.h.b16 %v351
      %v620 = vunpack.c.l.b16 %v352
      %v621 = vunpack.c.h.b16 %v352
      %v622 = vunpack.c.l.b16 %v353
      %v623 = vunpack.c.h.b16 %v353
      %v624 = vunpack.c.l.b16 %v354
      %v625 = vunpack.c.h.b16 %v354
      %v626 = vunpack.c.l.b16 %v355
      %v627 = vunpack.c.h.b16 %v355
      %v628 = vunpack.c.l.b16 %v356
      %v629 = vunpack.c.h.b16 %v356
      %v630 = vunpack.c.l.b16 %v357
      %v631 = vunpack.c.h.b16 %v357
      %v632 = vunpack.c.l.b16 %v358
      %v633 = vunpack.c.l.b16 %v359
      %v634 = vunpack.c.h.b16 %v359
      %v635 = vunpack.c.l.b16 %v360
      %v636 = vunpack.c.h.b16 %v360
      %v637 = vunpack.c.l.b16 %v361
      %v638 = vunpack.c.h.b16 %v361
      %v639 = vunpack.c.l.b16 %v362
      %v640 = vunpack.c.h.b16 %v362
      %v641 = vunpack.c.l.b16 %v363
      %v642 = vunpack.c.h.b16 %v363
      %v643 = vunpack.c.l.b16 %v364
      %v644 = vunpack.c.h.b16 %v364
      %v645 = vunpack.c.l.b16 %v365
      %v646 = vunpack.c.h.b16 %v365
      %v647 = vunpack.c.l.b16 %v366
      %v648 = vunpack.c.h.b16 %v366
      %v649 = vunpack.c.l.b16 %v367
      %v650 = vunpack.c.l.b16 %v368
      %v651 = vunpack.c.h.b16 %v368
      %v652 = vunpack.c.l.b16 %v369
      %v653 = vunpack.c.h.b16 %v369
      %v654 = vunpack.c.l.b16 %v370
      %v655 = vunpack.c.h.b16 %v370
      %v656 = vunpack.c.l.b16 %v371
      %v657 = vunpack.c.h.b16 %v371
      %v658 = vunpack.c.l.b16 %v372
      %v659 = vunpack.c.h.b16 %v372
      %v660 = vunpack.c.l.b16 %v373
      %v661 = vunpack.c.h.b16 %v373
      %v662 = vunpack.c.l.b16 %v374
      %v663 = vunpack.c.h.b16 %v374
      %v664 = vunpack.c.l.b16 %v375
      %v665 = vunpack.c.h.b16 %v375
      %v666 = vunpack.c.l.b16 %v376
      %v667 = vunpack.c.l.b16 %v377
      %v668 = vunpack.c.h.b16 %v377
      %v669 = vunpack.c.l.b16 %v378
      %v670 = vunpack.c.h.b16 %v378
      %v671 = vunpack.c.l.b16 %v379
      %v672 = vunpack.c.h.b16 %v379
      %v673 = vunpack.c.l.b16 %v380
      %v674 = vunpack.c.h.b16 %v380
      %v675 = vunpack.c.l.b16 %v381
      %v676 = vunpack.c.h.b16 %v381
      %v677 = vunpack.c.l.b16 %v382
      %v678 = vunpack.c.h.b16 %v382
      %v679 = vunpack.c.l.b16 %v383
      %v680 = vunpack.c.h.b16 %v383
      %v681 = vunpack.c.l.b16 %v384
      %v682 = vunpack.c.h.b16 %v384
      %v683 = vunpack.c.l.b16 %v385
      %v684 = vunpack.c.l.b16 %v386
      %v685 = vunpack.c.h.b16 %v386
      %v686 = vunpack.c.l.b16 %v387
      %v687 = vunpack.c.h.b16 %v387
      %v688 = vunpack.c.l.b16 %v388
      %v689 = vunpack.c.h.b16 %v388
      %v690 = vunpack.c.l.b16 %v389
      %v691 = vunpack.c.h.b16 %v389
      %v692 = vunpack.c.l.b16 %v390
      %v693 = vunpack.c.h.b16 %v390
      %v694 = vunpack.c.l.b16 %v391
      %v695 = vunpack.c.h.b16 %v391
      %v696 = vunpack.c.l.b16 %v392
      %v697 = vunpack.c.h.b16 %v392
      %v698 = vunpack.c.l.b16 %v393
      %v699 = vunpack.c.h.b16 %v393
      %v700 = vunpack.c.l.b16 %v394
      %v701 = vunpack.c.l.b16 %v395
      %v702 = vunpack.c.h.b16 %v395
      %v703 = vunpack.c.l.b16 %v396
      %v704 = vunpack.c.h.b16 %v396
      %v705 = vunpack.c.l.b16 %v397
      %v706 = vunpack.c.h.b16 %v397
      %v707 = vunpack.c.l.b16 %v398
      %v708 = vunpack.c.h.b16 %v398
      %v709 = vunpack.c.l.b16 %v399
      %v710 = vunpack.c.h.b16 %v399
      %v711 = vunpack.c.l.b16 %v400
      %v712 = vunpack.c.h.b16 %v400
      %v713 = vunpack.c.l.b16 %v401
      %v714 = vunpack.c.h.b16 %v401
      %v715 = vunpack.c.l.b16 %v402
      %v716 = vunpack.c.h.b16 %v402
      %v717 = vunpack.c.l.b16 %v403
      %v718 = vunpack.c.l.b16 %v404
      %v719 = vunpack.c.h.b16 %v404
      %v720 = vunpack.c.l.b16 %v405
      %v721 = vunpack.c.h.b16 %v405
      %v722 = vunpack.c.l.b16 %v406
      %v723 = vunpack.c.h.b16 %v406
      %v724 = vunpack.c.l.b16 %v407
      %v725 = vunpack.c.h.b16 %v407
      %v726 = vunpack.c.l.b16 %v408
      %v727 = vunpack.c.h.b16 %v408
      %v728 = vunpack.c.l.b16 %v409
      %v729 = vunpack.c.h.b16 %v409
      %v730 = vunpack.c.l.b16 %v410
      %v731 = vunpack.c.h.b16 %v410
      %v732 = vunpack.c.l.b16 %v411
      %v733 = vunpack.c.h.b16 %v411
      %v734 = vunpack.c.l.b16 %v412
      %v735 = vunpack.c.l.b16 %v413
      %v736 = vunpack.c.h.b16 %v413
      %v737 = vunpack.c.l.b16 %v414
      %v738 = vunpack.c.h.b16 %v414
      %v739 = vunpack.c.l.b16 %v415
      %v740 = vunpack.c.h.b16 %v415
      %v741 = vunpack.c.l.b16 %v416
      %v742 = vunpack.c.h.b16 %v416
      %v743 = vunpack.c.l.b16 %v417
      %v744 = vunpack.c.h.b16 %v417
      %v745 = vunpack.c.l.b16 %v418
      %v746 = vunpack.c.h.b16 %v418
      %v747 = vunpack.c.l.b16 %v419
      %v748 = vunpack.c.h.b16 %v419
      %v749 = vunpack.c.l.b16 %v420
      %v750 = vunpack.c.h.b16 %v420
      %v751 = vunpack.c.l.b16 %v421
      %v752 = vunpack.c.l.b16 %v422
      %v753 = vunpack.c.h.b16 %v422
      %v754 = vunpack.c.l.b16 %v423
      %v755 = vunpack.c.h.b16 %v423
      %v756 = vunpack.c.l.b16 %v424
      %v757 = vunpack.c.h.b16 %v424
      %v758 = vunpack.c.l.b16 %v425
      %v759 = vunpack.c.h.b16 %v425
      %v760 = vunpack.c.l.b16 %v426
      %v761 = vunpack.c.h.b16 %v426
      %v762 = vunpack.c.l.b16 %v427
      %v763 = vunpack.c.h.b16 %v427
      %v764 = vunpack.c.l.b16 %v428
      %v765 = vunpack.c.h.b16 %v428
      %v766 = vunpack.c.l.b16 %v429
      %v767 = vunpack.c.h.b16 %v429
      %v768 = vunpack.c.l.b16 %v430
      %v769 = vpack.c.b16 %v565, %v548
      %v770 = vpack.c.b16 %v566, %v549
      %v771 = vpack.c.b16 %v567, %v550
      %v772 = vpack.c.b16 %v568, %v551
      %v773 = vpack.c.b16 %v569, %v552
      %v774 = vpack.c.b16 %v570, %v553
      %v775 = vpack.c.b16 %v571, %v554
      %v776 = vpack.c.b16 %v572, %v555
      %v777 = vpack.c.b16 %v573, %v556
      %v778 = vpack.c.b16 %v574, %v557
      %v779 = vpack.c.b16 %v575, %v558
      %v780 = vpack.c.b16 %v576, %v559
      %v781 = vpack.c.b16 %v577, %v560
      %v782 = vpack.c.b16 %v578, %v561
      %v783 = vpack.c.b16 %v579, %v562
      %v784 = vpack.c.b16 %v580, %v563
      %v785 = vpack.c.b16 %v581, %v564
      %v786 = vpack.c.b16 %v599, %v582
      %v787 = vpack.c.b16 %v600, %v583
      %v788 = vpack.c.b16 %v601, %v584
      %v789 = vpack.c.b16 %v602, %v585
      %v790 = vpack.c.b16 %v603, %v586
      %v791 = vpack.c.b16 %v604, %v587
      %v792 = vpack.c.b16 %v605, %v588
      %v793 = vpack.c.b16 %v606, %v589
      %v794 = vpack.c.b16 %v607, %v590
      %v795 = vpack.c.b16 %v608, %v591
      %v796 = vpack.c.b16 %v609, %v592
      %v797 = vpack.c.b16 %v610, %v593
      %v798 = vpack.c.b16 %v611, %v594
      %v799 = vpack.c.b16 %v612, %v595
      %v800 = vpack.c.b16 %v613, %v596
      %v801 = vpack.c.b16 %v614, %v597
      %v802 = vpack.c.b16 %v615, %v598
      %v803 = vpack.c.b16 %v633, %v616
      %v804 = vpack.c.b16 %v634, %v617
      %v805 = vpack.c.b16 %v635, %v618
      %v806 = vpack.c.b16 %v636, %v619
      %v807 = vpack.c.b16 %v637, %v620
      %v808 = vpack.c.b16 %v638, %v621
      %v809 = vpack.c.b16 %v639, %v622
      %v810 = vpack.c.b16 %v640, %v623
      %v811 = vpack.c.b16 %v641, %v624
      %v812 = vpack.c.b16 %v642, %v625
      %v813 = vpack.c.b16 %v643, %v626
      %v814 = vpack.c.b16 %v644, %v627
      %v815 = vpack.c.b16 %v645, %v628
      %v816 = vpack.c.b16 %v646, %v629
      %v817 = vpack.c.b16 %v647, %v630
      %v818 = vpack.c.b16 %v648, %v631
      %v819 = vpack.c.b16 %v649, %v632
      %v820 = vpack.c.b16 %v667, %v650
      %v821 = vpack.c.b16 %v668, %v651
      %v822 = vpack.c.b16 %v669, %v652
      %v823 = vpack.c.b16 %v670, %v653
      %v824 = vpack.c.b16 %v671, %v654
      %v825 = vpack.c.b16 %v672, %v655
      %v826 = vpack.c.b16 %v673, %v656
      %v827 = vpack.c.b16 %v674, %v657
      %v828 = vpack.c.b16 %v675, %v658
      %v829 = vpack.c.b16 %v676, %v659
      %v830 = vpack.c.b16 %v677, %v660
      %v831 = vpack.c.b16 %v678, %v661
      %v832 = vpack.c.b16 %v679, %v662
      %v833 = vpack.c.b16 %v680, %v663
      %v834 = vpack.c.b16 %v681, %v664
      %v835 = vpack.c.b16 %v682, %v665
      %v836 = vpack.c.b16 %v683, %v666
      %v837 = vpack.c.b16 %v701, %v684
      %v838 = vpack.c.b16 %v702, %v685
      %v839 = vpack.c.b16 %v703, %v686
      %v840 = vpack.c.b16 %v704, %v687
      %v841 = vpack.c.b16 %v705, %v688
      %v842 = vpack.c.b16 %v706, %v689
      %v843 = vpack.c.b16 %v707, %v690
      %v844 = vpack.c.b16 %v708, %v691
      %v845 = vpack.c.b16 %v709, %v692
      %v846 = vpack.c.b16 %v710, %v693
      %v847 = vpack.c.b16 %v711, %v694
      %v848 = vpack.c.b16 %v712, %v695
      %v849 = vpack.c.b16 %v713, %v696
      %v850 = vpack.c.b16 %v714, %v697
      %v851 = vpack.c.b16 %v715, %v698
      %v852 = vpack.c.b16 %v716, %v699
      %v853 = vpack.c.b16 %v717, %v700
      %v854 = vpack.c.b16 %v735, %v718
      %v855 = vpack.c.b16 %v736, %v719
      %v856 = vpack.c.b16 %v737, %v720
      %v857 = vpack.c.b16 %v738, %v721
      %v858 = vpack.c.b16 %v739, %v722
      %v859 = vpack.c.b16 %v740, %v723
      %v860 = vpack.c.b16 %v741, %v724
      %v861 = vpack.c.b16 %v742, %v725
      %v862 = vpack.c.b16 %v743, %v726
      %v863 = vpack.c.b16 %v744, %v727
      %v864 = vpack.c.b16 %v745, %v728
      %v865 = vpack.c.b16 %v746, %v729
      %v866 = vpack.c.b16 %v747, %v730
      %v867 = vpack.c.b16 %v748, %v731
      %v868 = vpack.c.b16 %v749, %v732
      %v869 = vpack.c.b16 %v750, %v733
      %v870 = vpack.c.b16 %v751, %v734
      %v871 = vpack.c.b16 %v752, %v752
      %v872 = vpack.c.b16 %v753, %v753
      %v873 = vpack.c.b16 %v754, %v754
      %v874 = vpack.c.b16 %v755, %v755
      %v875 = vpack.c.b16 %v756, %v756
      %v876 = vpack.c.b16 %v757, %v757
      %v877 = vpack.c.b16 %v758, %v758
      %v878 = vpack.c.b16 %v759, %v759
      %v879 = vpack.c.b16 %v760, %v760
      %v880 = vpack.c.b16 %v761, %v761
      %v881 = vpack.c.b16 %v762, %v762
      %v882 = vpack.c.b16 %v763, %v763
      %v883 = vpack.c.b16 %v764, %v764
      %v884 = vpack.c.b16 %v765, %v765
      %v885 = vpack.c.b16 %v766, %v766
      %v886 = vpack.c.b16 %v767, %v767
      %v887 = vpack.c.b16 %v768, %v768
      %vm990 = vcmask 818176
      %v992 = vsel %vm990, %v313, 0
      %vm994 = vcmask 1041408
      %v996 = vsel %vm994, %v871, 0
      %v999 = vsel %vm994, %v872, 0
      %v1002 = vsel %vm994, %v873, 0
      %v1005 = vsel %vm994, %v874, 0
      %v1008 = vsel %vm994, %v875, 0
      %v1011 = vsel %vm994, %v876, 0
      %v1014 = vsel %vm994, %v877, 0
      %v1017 = vsel %vm994, %v878, 0
      %v1020 = vsel %vm994, %v879, 0
      %v1023 = vsel %vm994, %v880, 0
      %v1026 = vsel %vm994, %v881, 0
      %v1029 = vsel %vm994, %v882, 0
      %v1032 = vsel %vm994, %v883, 0
      %v1035 = vsel %vm994, %v884, 0
      %v1038 = vsel %vm994, %v885, 0
      %v1041 = vsel %vm994, %v886, 0
      %v1044 = vsel %vm994, %v887, 0
      %1046 = vmatprep.subr.bf16.mxu0 %v770
      %1047 = vmatpush1.bf16.msra.mxu0 %v769
      %1048 = vmatprep.subr.bf16.mxu0 %v787
      %1049 = vmatpush1.bf16.msra.mxu0 %v786
      %1050 = vmatprep.subr.bf16.mxu0 %v804
      %1051 = vmatpush1.bf16.msra.mxu0 %v803
      %1052 = vmatprep.subr.bf16.mxu0 %v821
      %1053 = vmatpush1.bf16.msra.mxu0 %v820
      %1054 = vmatprep.subr.bf16.mxu0 %v838
      %1055 = vmatpush1.bf16.msra.mxu0 %v837
      %1056 = vmatprep.subr.bf16.mxu0 %v855
      %1057 = vmatpush1.bf16.msra.mxu0 %v854
      %1058 = vmatprep.subr.bf16.mxu0 %v999
      %1059 = vmatpush1.bf16.msra.mxu0 %v996
      %1060 = vmatprep.subr.bf16.mxu0 0
      %1061 = vmatpush1.bf16.msra.mxu0 0
      %1062 = vmatprep.subr.bf16.mxu0 0
      %1063 = vmatpush1.bf16.msra.mxu0 0
      %1064 = vmatprep.subr.bf16.mxu0 0
      %1065 = vmatpush1.bf16.msra.mxu0 0
      %1066 = vmatprep.subr.bf16.mxu0 0
      %1067 = vmatpush1.bf16.msra.mxu0 0
      %1068 = vmatprep.subr.bf16.mxu0 0
      %1069 = vmatpush1.bf16.msra.mxu0 0
      %1070 = vmatprep.subr.bf16.mxu0 0
      %1071 = vmatpush1.bf16.msra.mxu0 0
      %1072 = vmatprep.subr.bf16.mxu0 0
      %1073 = vmatpush1.bf16.msra.mxu0 0
      %1074 = vmatprep.subr.bf16.mxu0 0
      %1075 = vmatpush1.bf16.msra.mxu0 0
      %1076 = vmatprep.subr.bf16.mxu0 0
      %1077 = vmatpush1.bf16.msra.mxu0 0
      %1078 = vmatprep.mubr.bf16.mxu0 0
      %1079 = vmatmul.mubr.bf16.gmra.mrb[0].mxu0 %v992
      %v1080 = vpop.f32.mrb[0].mxu0
      %v1081 = vadd.f32 0.0, %v1080
      %v1082 = vpop.f32.mrb[0].mxu0
      %v1083 = vadd.f32 0.0, %v1082
      %v1084 = vpop.f32.mrb[0].mxu0
      %v1085 = vpop.f32.mrb[0].mxu0
      %1086 = vdwg.mxu0
      %1087 = vmatprep.subr.bf16.mxu0 %v772
      %1088 = vmatpush1.bf16.msra.mxu0 %v771
      %1089 = vmatprep.subr.bf16.mxu0 %v789
      %1090 = vmatpush1.bf16.msra.mxu0 %v788
      %1091 = vmatprep.subr.bf16.mxu0 %v806
      %1092 = vmatpush1.bf16.msra.mxu0 %v805
      %1093 = vmatprep.subr.bf16.mxu0 %v823
      %1094 = vmatpush1.bf16.msra.mxu0 %v822
      %1095 = vmatprep.subr.bf16.mxu0 %v840
      %1096 = vmatpush1.bf16.msra.mxu0 %v839
      %1097 = vmatprep.subr.bf16.mxu0 %v857
      %1098 = vmatpush1.bf16.msra.mxu0 %v856
      %1099 = vmatprep.subr.bf16.mxu0 %v1005
      %1100 = vmatpush1.bf16.msra.mxu0 %v1002
      %1101 = vmatprep.subr.bf16.mxu0 0
      %1102 = vmatpush1.bf16.msra.mxu0 0
      %1103 = vmatprep.subr.bf16.mxu0 0
      %1104 = vmatpush1.bf16.msra.mxu0 0
      %1105 = vmatprep.subr.bf16.mxu0 0
      %1106 = vmatpush1.bf16.msra.mxu0 0
      %1107 = vmatprep.subr.bf16.mxu0 0
      %1108 = vmatpush1.bf16.msra.mxu0 0
      %1109 = vmatprep.subr.bf16.mxu0 0
      %1110 = vmatpush1.bf16.msra.mxu0 0
      %1111 = vmatprep.subr.bf16.mxu0 0
      %1112 = vmatpush1.bf16.msra.mxu0 0
      %1113 = vmatprep.subr.bf16.mxu0 0
      %1114 = vmatpush1.bf16.msra.mxu0 0
      %1115 = vmatprep.subr.bf16.mxu0 0
      %1116 = vmatpush1.bf16.msra.mxu0 0
      %1117 = vmatprep.subr.bf16.mxu0 0
      %1118 = vmatpush1.bf16.msra.mxu0 0
      %1119 = vmatprep.mubr.bf16.mxu0 0
      %1120 = vmatmul.mubr.bf16.gmra.mrb[0].mxu0 %v992
      %v1121 = vpop.f32.mrb[0].mxu0
      %v1122 = vadd.f32 0.0, %v1121
      %v1123 = vpop.f32.mrb[0].mxu0
      %v1124 = vadd.f32 0.0, %v1123
      %v1125 = vpop.f32.mrb[0].mxu0
      %v1126 = vpop.f32.mrb[0].mxu0
      %1127 = vdwg.mxu0
      %1128 = vmatprep.subr.bf16.mxu0 %v774
      %1129 = vmatpush1.bf16.msra.mxu0 %v773
      %1130 = vmatprep.subr.bf16.mxu0 %v791
      %1131 = vmatpush1.bf16.msra.mxu0 %v790
      %1132 = vmatprep.subr.bf16.mxu0 %v808
      %1133 = vmatpush1.bf16.msra.mxu0 %v807
      %1134 = vmatprep.subr.bf16.mxu0 %v825
      %1135 = vmatpush1.bf16.msra.mxu0 %v824
      %1136 = vmatprep.subr.bf16.mxu0 %v842
      %1137 = vmatpush1.bf16.msra.mxu0 %v841
      %1138 = vmatprep.subr.bf16.mxu0 %v859
      %1139 = vmatpush1.bf16.msra.mxu0 %v858
      %1140 = vmatprep.subr.bf16.mxu0 %v1011
      %1141 = vmatpush1.bf16.msra.mxu0 %v1008
      %1142 = vmatprep.subr.bf16.mxu0 0
      %1143 = vmatpush1.bf16.msra.mxu0 0
      %1144 = vmatprep.subr.bf16.mxu0 0
      %1145 = vmatpush1.bf16.msra.mxu0 0
      %1146 = vmatprep.subr.bf16.mxu0 0
      %1147 = vmatpush1.bf16.msra.mxu0 0
      %1148 = vmatprep.subr.bf16.mxu0 0
      %1149 = vmatpush1.bf16.msra.mxu0 0
      %1150 = vmatprep.subr.bf16.mxu0 0
      %1151 = vmatpush1.bf16.msra.mxu0 0
      %1152 = vmatprep.subr.bf16.mxu0 0
      %1153 = vmatpush1.bf16.msra.mxu0 0
      %1154 = vmatprep.subr.bf16.mxu0 0
      %1155 = vmatpush1.bf16.msra.mxu0 0
      %1156 = vmatprep.subr.bf16.mxu0 0
      %1157 = vmatpush1.bf16.msra.mxu0 0
      %1158 = vmatprep.subr.bf16.mxu0 0
      %1159 = vmatpush1.bf16.msra.mxu0 0
      %1160 = vmatprep.mubr.bf16.mxu0 0
      %1161 = vmatmul.mubr.bf16.gmra.mrb[0].mxu0 %v992
      %v1162 = vpop.f32.mrb[0].mxu0
      %v1163 = vadd.f32 0.0, %v1162
      %v1164 = vpop.f32.mrb[0].mxu0
      %v1165 = vadd.f32 0.0, %v1164
      %v1166 = vpop.f32.mrb[0].mxu0
      %v1167 = vpop.f32.mrb[0].mxu0
      %1168 = vdwg.mxu0
      %1169 = vmatprep.subr.bf16.mxu0 %v776
      %1170 = vmatpush1.bf16.msra.mxu0 %v775
      %1171 = vmatprep.subr.bf16.mxu0 %v793
      %1172 = vmatpush1.bf16.msra.mxu0 %v792
      %1173 = vmatprep.subr.bf16.mxu0 %v810
      %1174 = vmatpush1.bf16.msra.mxu0 %v809
      %1175 = vmatprep.subr.bf16.mxu0 %v827
      %1176 = vmatpush1.bf16.msra.mxu0 %v826
      %1177 = vmatprep.subr.bf16.mxu0 %v844
      %1178 = vmatpush1.bf16.msra.mxu0 %v843
      %1179 = vmatprep.subr.bf16.mxu0 %v861
      %1180 = vmatpush1.bf16.msra.mxu0 %v860
      %1181 = vmatprep.subr.bf16.mxu0 %v1017
      %1182 = vmatpush1.bf16.msra.mxu0 %v1014
      %1183 = vmatprep.subr.bf16.mxu0 0
      %1184 = vmatpush1.bf16.msra.mxu0 0
      %1185 = vmatprep.subr.bf16.mxu0 0
      %1186 = vmatpush1.bf16.msra.mxu0 0
      %1187 = vmatprep.subr.bf16.mxu0 0
      %1188 = vmatpush1.bf16.msra.mxu0 0
      %1189 = vmatprep.subr.bf16.mxu0 0
      %1190 = vmatpush1.bf16.msra.mxu0 0
      %1191 = vmatprep.subr.bf16.mxu0 0
      %1192 = vmatpush1.bf16.msra.mxu0 0
      %1193 = vmatprep.subr.bf16.mxu0 0
      %1194 = vmatpush1.bf16.msra.mxu0 0
      %1195 = vmatprep.subr.bf16.mxu0 0
      %1196 = vmatpush1.bf16.msra.mxu0 0
      %1197 = vmatprep.subr.bf16.mxu0 0
      %1198 = vmatpush1.bf16.msra.mxu0 0
      %1199 = vmatprep.subr.bf16.mxu0 0
      %1200 = vmatpush1.bf16.msra.mxu0 0
      %1201 = vmatprep.mubr.bf16.mxu0 0
      %1202 = vmatmul.mubr.bf16.gmra.mrb[0].mxu0 %v992
      %v1203 = vpop.f32.mrb[0].mxu0
      %v1204 = vadd.f32 0.0, %v1203
      %v1205 = vpop.f32.mrb[0].mxu0
      %v1206 = vadd.f32 0.0, %v1205
      %v1207 = vpop.f32.mrb[0].mxu0
      %v1208 = vpop.f32.mrb[0].mxu0
      %1209 = vdwg.mxu0
      %1210 = vmatprep.subr.bf16.mxu0 %v778
      %1211 = vmatpush1.bf16.msra.mxu0 %v777
      %1212 = vmatprep.subr.bf16.mxu0 %v795
      %1213 = vmatpush1.bf16.msra.mxu0 %v794
      %1214 = vmatprep.subr.bf16.mxu0 %v812
      %1215 = vmatpush1.bf16.msra.mxu0 %v811
      %1216 = vmatprep.subr.bf16.mxu0 %v829
      %1217 = vmatpush1.bf16.msra.mxu0 %v828
      %1218 = vmatprep.subr.bf16.mxu0 %v846
      %1219 = vmatpush1.bf16.msra.mxu0 %v845
      %1220 = vmatprep.subr.bf16.mxu0 %v863
      %1221 = vmatpush1.bf16.msra.mxu0 %v862
      %1222 = vmatprep.subr.bf16.mxu0 %v1023
      %1223 = vmatpush1.bf16.msra.mxu0 %v1020
      %1224 = vmatprep.subr.bf16.mxu0 0
      %1225 = vmatpush1.bf16.msra.mxu0 0
      %1226 = vmatprep.subr.bf16.mxu0 0
      %1227 = vmatpush1.bf16.msra.mxu0 0
      %1228 = vmatprep.subr.bf16.mxu0 0
      %1229 = vmatpush1.bf16.msra.mxu0 0
      %1230 = vmatprep.subr.bf16.mxu0 0
      %1231 = vmatpush1.bf16.msra.mxu0 0
      %1232 = vmatprep.subr.bf16.mxu0 0
      %1233 = vmatpush1.bf16.msra.mxu0 0
      %1234 = vmatprep.subr.bf16.mxu0 0
      %1235 = vmatpush1.bf16.msra.mxu0 0
      %1236 = vmatprep.subr.bf16.mxu0 0
      %1237 = vmatpush1.bf16.msra.mxu0 0
      %1238 = vmatprep.subr.bf16.mxu0 0
      %1239 = vmatpush1.bf16.msra.mxu0 0
      %1240 = vmatprep.subr.bf16.mxu0 0
      %1241 = vmatpush1.bf16.msra.mxu0 0
      %1242 = vmatprep.mubr.bf16.mxu0 0
      %1243 = vmatmul.mubr.bf16.gmra.mrb[0].mxu0 %v992
      %v1244 = vpop.f32.mrb[0].mxu0
      %v1245 = vadd.f32 0.0, %v1244
      %v1246 = vpop.f32.mrb[0].mxu0
      %v1247 = vadd.f32 0.0, %v1246
      %v1248 = vpop.f32.mrb[0].mxu0
      %v1249 = vpop.f32.mrb[0].mxu0
      %1250 = vdwg.mxu0
      %1251 = vmatprep.subr.bf16.mxu0 %v780
      %1252 = vmatpush1.bf16.msra.mxu0 %v779
      %1253 = vmatprep.subr.bf16.mxu0 %v797
      %1254 = vmatpush1.bf16.msra.mxu0 %v796
      %1255 = vmatprep.subr.bf16.mxu0 %v814
      %1256 = vmatpush1.bf16.msra.mxu0 %v813
      %1257 = vmatprep.subr.bf16.mxu0 %v831
      %1258 = vmatpush1.bf16.msra.mxu0 %v830
      %1259 = vmatprep.subr.bf16.mxu0 %v848
      %1260 = vmatpush1.bf16.msra.mxu0 %v847
      %1261 = vmatprep.subr.bf16.mxu0 %v865
      %1262 = vmatpush1.bf16.msra.mxu0 %v864
      %1263 = vmatprep.subr.bf16.mxu0 %v1029
      %1264 = vmatpush1.bf16.msra.mxu0 %v1026
      %1265 = vmatprep.subr.bf16.mxu0 0
      %1266 = vmatpush1.bf16.msra.mxu0 0
      %1267 = vmatprep.subr.bf16.mxu0 0
      %1268 = vmatpush1.bf16.msra.mxu0 0
      %1269 = vmatprep.subr.bf16.mxu0 0
      %1270 = vmatpush1.bf16.msra.mxu0 0
      %1271 = vmatprep.subr.bf16.mxu0 0
      %1272 = vmatpush1.bf16.msra.mxu0 0
      %1273 = vmatprep.subr.bf16.mxu0 0
      %1274 = vmatpush1.bf16.msra.mxu0 0
      %1275 = vmatprep.subr.bf16.mxu0 0
      %1276 = vmatpush1.bf16.msra.mxu0 0
      %1277 = vmatprep.subr.bf16.mxu0 0
      %1278 = vmatpush1.bf16.msra.mxu0 0
      %1279 = vmatprep.subr.bf16.mxu0 0
      %1280 = vmatpush1.bf16.msra.mxu0 0
      %1281 = vmatprep.subr.bf16.mxu0 0
      %1282 = vmatpush1.bf16.msra.mxu0 0
      %1283 = vmatprep.mubr.bf16.mxu0 0
      %1284 = vmatmul.mubr.bf16.gmra.mrb[0].mxu0 %v992
      %v1285 = vpop.f32.mrb[0].mxu0
      %v1286 = vadd.f32 0.0, %v1285
      %v1287 = vpop.f32.mrb[0].mxu0
      %v1288 = vadd.f32 0.0, %v1287
      %v1289 = vpop.f32.mrb[0].mxu0
      %v1290 = vpop.f32.mrb[0].mxu0
      %1291 = vdwg.mxu0
      %1292 = vmatprep.subr.bf16.mxu0 %v782
      %1293 = vmatpush1.bf16.msra.mxu0 %v781
      %1294 = vmatprep.subr.bf16.mxu0 %v799
      %1295 = vmatpush1.bf16.msra.mxu0 %v798
      %1296 = vmatprep.subr.bf16.mxu0 %v816
      %1297 = vmatpush1.bf16.msra.mxu0 %v815
      %1298 = vmatprep.subr.bf16.mxu0 %v833
      %1299 = vmatpush1.bf16.msra.mxu0 %v832
      %1300 = vmatprep.subr.bf16.mxu0 %v850
      %1301 = vmatpush1.bf16.msra.mxu0 %v849
      %1302 = vmatprep.subr.bf16.mxu0 %v867
      %1303 = vmatpush1.bf16.msra.mxu0 %v866
      %1304 = vmatprep.subr.bf16.mxu0 %v1035
      %1305 = vmatpush1.bf16.msra.mxu0 %v1032
      %1306 = vmatprep.subr.bf16.mxu0 0
      %1307 = vmatpush1.bf16.msra.mxu0 0
      %1308 = vmatprep.subr.bf16.mxu0 0
      %1309 = vmatpush1.bf16.msra.mxu0 0
      %1310 = vmatprep.subr.bf16.mxu0 0
      %1311 = vmatpush1.bf16.msra.mxu0 0
      %1312 = vmatprep.subr.bf16.mxu0 0
      %1313 = vmatpush1.bf16.msra.mxu0 0
      %1314 = vmatprep.subr.bf16.mxu0 0
      %1315 = vmatpush1.bf16.msra.mxu0 0
      %1316 = vmatprep.subr.bf16.mxu0 0
      %1317 = vmatpush1.bf16.msra.mxu0 0
      %1318 = vmatprep.subr.bf16.mxu0 0
      %1319 = vmatpush1.bf16.msra.mxu0 0
      %1320 = vmatprep.subr.bf16.mxu0 0
      %1321 = vmatpush1.bf16.msra.mxu0 0
      %1322 = vmatprep.subr.bf16.mxu0 0
      %1323 = vmatpush1.bf16.msra.mxu0 0
      %1324 = vmatprep.mubr.bf16.mxu0 0
      %1325 = vmatmul.mubr.bf16.gmra.mrb[0].mxu0 %v992
      %v1326 = vpop.f32.mrb[0].mxu0
      %v1327 = vadd.f32 0.0, %v1326
      %v1328 = vpop.f32.mrb[0].mxu0
      %v1329 = vadd.f32 0.0, %v1328
      %v1330 = vpop.f32.mrb[0].mxu0
      %v1331 = vpop.f32.mrb[0].mxu0
      %1332 = vdwg.mxu0
      %1333 = vmatprep.subr.bf16.mxu0 %v784
      %1334 = vmatpush1.bf16.msra.mxu0 %v783
      %1335 = vmatprep.subr.bf16.mxu0 %v801
      %1336 = vmatpush1.bf16.msra.mxu0 %v800
      %1337 = vmatprep.subr.bf16.mxu0 %v818
      %1338 = vmatpush1.bf16.msra.mxu0 %v817
      %1339 = vmatprep.subr.bf16.mxu0 %v835
      %1340 = vmatpush1.bf16.msra.mxu0 %v834
      %1341 = vmatprep.subr.bf16.mxu0 %v852
      %1342 = vmatpush1.bf16.msra.mxu0 %v851
      %1343 = vmatprep.subr.bf16.mxu0 %v869
      %1344 = vmatpush1.bf16.msra.mxu0 %v868
      %1345 = vmatprep.subr.bf16.mxu0 %v1041
      %1346 = vmatpush1.bf16.msra.mxu0 %v1038
      %1347 = vmatprep.subr.bf16.mxu0 0
      %1348 = vmatpush1.bf16.msra.mxu0 0
      %1349 = vmatprep.subr.bf16.mxu0 0
      %1350 = vmatpush1.bf16.msra.mxu0 0
      %1351 = vmatprep.subr.bf16.mxu0 0
      %1352 = vmatpush1.bf16.msra.mxu0 0
      %1353 = vmatprep.subr.bf16.mxu0 0
      %1354 = vmatpush1.bf16.msra.mxu0 0
      %1355 = vmatprep.subr.bf16.mxu0 0
      %1356 = vmatpush1.bf16.msra.mxu0 0
      %1357 = vmatprep.subr.bf16.mxu0 0
      %1358 = vmatpush1.bf16.msra.mxu0 0
      %1359 = vmatprep.subr.bf16.mxu0 0
      %1360 = vmatpush1.bf16.msra.mxu0 0
      %1361 = vmatprep.subr.bf16.mxu0 0
      %1362 = vmatpush1.bf16.msra.mxu0 0
      %1363 = vmatprep.subr.bf16.mxu0 0
      %1364 = vmatpush1.bf16.msra.mxu0 0
      %1365 = vmatprep.mubr.bf16.mxu0 0
      %1366 = vmatmul.mubr.bf16.gmra.mrb[0].mxu0 %v992
      %v1367 = vpop.f32.mrb[0].mxu0
      %v1368 = vadd.f32 0.0, %v1367
      %v1369 = vpop.f32.mrb[0].mxu0
      %v1370 = vadd.f32 0.0, %v1369
      %v1371 = vpop.f32.mrb[0].mxu0
      %v1372 = vpop.f32.mrb[0].mxu0
      %1373 = vdwg.mxu0
      %1374 = vmatprep.subr.bf16.mxu0 0
      %1375 = vmatpush1.bf16.msra.mxu0 %v785
      %1376 = vmatprep.subr.bf16.mxu0 0
      %1377 = vmatpush1.bf16.msra.mxu0 %v802
      %1378 = vmatprep.subr.bf16.mxu0 0
      %1379 = vmatpush1.bf16.msra.mxu0 %v819
      %1380 = vmatprep.subr.bf16.mxu0 0
      %1381 = vmatpush1.bf16.msra.mxu0 %v836
      %1382 = vmatprep.subr.bf16.mxu0 0
      %1383 = vmatpush1.bf16.msra.mxu0 %v853
      %1384 = vmatprep.subr.bf16.mxu0 0
      %1385 = vmatpush1.bf16.msra.mxu0 %v870
      %1386 = vmatprep.subr.bf16.mxu0 0
      %1387 = vmatpush1.bf16.msra.mxu0 %v1044
      %1388 = vmatprep.subr.bf16.mxu0 0
      %1389 = vmatpush1.bf16.msra.mxu0 0
      %1390 = vmatprep.subr.bf16.mxu0 0
      %1391 = vmatpush1.bf16.msra.mxu0 0
      %1392 = vmatprep.subr.bf16.mxu0 0
      %1393 = vmatpush1.bf16.msra.mxu0 0
      %1394 = vmatprep.subr.bf16.mxu0 0
      %1395 = vmatpush1.bf16.msra.mxu0 0
      %1396 = vmatprep.subr.bf16.mxu0 0
      %1397 = vmatpush1.bf16.msra.mxu0 0
      %1398 = vmatprep.subr.bf16.mxu0 0
      %1399 = vmatpush1.bf16.msra.mxu0 0
      %1400 = vmatprep.subr.bf16.mxu0 0
      %1401 = vmatpush1.bf16.msra.mxu0 0
      %1402 = vmatprep.subr.bf16.mxu0 0
      %1403 = vmatpush1.bf16.msra.mxu0 0
      %1404 = vmatprep.subr.bf16.mxu0 0
      %1405 = vmatpush1.bf16.msra.mxu0 0
      %1406 = vmatprep.mubr.bf16.mxu0 0
      %1407 = vmatmul.mubr.bf16.gmra.mrb[0].mxu0 %v992
      %v1408 = vpop.f32.mrb[0].mxu0
      %v1409 = vadd.f32 0.0, %v1408
      %v1410 = vpop.f32.mrb[0].mxu0
      %v1411 = vpop.f32.mrb[0].mxu0
      %v1412 = vpop.f32.mrb[0].mxu0
      %1413 = vdwg.mxu0
      %v1414 = vld [vmem:[%s296] sm:$0xff]
      %v1415 = vld [vmem:[%s296 + $0x8] sm:$0xff]
      %v1416 = vld [vmem:[%s296 + $0x10] sm:$0xff]
      %v1417 = vld [vmem:[%s296 + $0x18] sm:$0xff]
      %v1418 = vld [vmem:[%s296 + $0x20] sm:$0xff]
      %v1419 = vld [vmem:[%s296 + $0x28] sm:$0xff]
      %v1420 = vld [vmem:[%s296 + $0x30] sm:$0xff]
      %v1421 = vld [vmem:[%s296 + $0x38] sm:$0xff]
      %v1422 = vld [vmem:[%s296 + $0x40] sm:$0xf]
      %v1423 = vld [vmem:[%s296 + $0x44] sm:$0xff]
      %v1424 = vld [vmem:[%s296 + $0x4c] sm:$0xff]
      %v1425 = vld [vmem:[%s296 + $0x54] sm:$0xff]
      %v1426 = vld [vmem:[%s296 + $0x5c] sm:$0xff]
      %v1427 = vld [vmem:[%s296 + $0x64] sm:$0xff]
      %v1428 = vld [vmem:[%s296 + $0x6c] sm:$0xff]
      %v1429 = vld [vmem:[%s296 + $0x74] sm:$0xff]
      %v1430 = vld [vmem:[%s296 + $0x7c] sm:$0xff]
      %v1431 = vld [vmem:[%s296 + $0x84] sm:$0xf]
      %v1432 = vld [vmem:[%s296 + $0x88] sm:$0xff]
      %v1433 = vld [vmem:[%s296 + $0x90] sm:$0xff]
      %v1434 = vld [vmem:[%s296 + $0x98] sm:$0xff]
      %v1435 = vld [vmem:[%s296 + $0xa0] sm:$0xff]
      %v1436 = vld [vmem:[%s296 + $0xa8] sm:$0xff]
      %v1437 = vld [vmem:[%s296 + $0xb0] sm:$0xff]
      %v1438 = vld [vmem:[%s296 + $0xb8] sm:$0xff]
      %v1439 = vld [vmem:[%s296 + $0xc0] sm:$0xff]
      %v1440 = vld [vmem:[%s296 + $0xc8] sm:$0xf]
      %v1441 = vld [vmem:[%s296 + $0xcc] sm:$0xff]
      %v1442 = vld [vmem:[%s296 + $0xd4] sm:$0xff]
      %v1443 = vld [vmem:[%s296 + $0xdc] sm:$0xff]
      %v1444 = vld [vmem:[%s296 + $0xe4] sm:$0xff]
      %v1445 = vld [vmem:[%s296 + $0xec] sm:$0xff]
      %v1446 = vld [vmem:[%s296 + $0xf4] sm:$0xff]
      %v1447 = vld [vmem:[%s296 + $0xfc] sm:$0xff]
      %v1448 = vld [vmem:[%s296 + $0x104] sm:$0xff]
      %v1449 = vld [vmem:[%s296 + $0x10c] sm:$0xf]
      %v1450 = vld [vmem:[%s296 + $0x110] sm:$0xff]
      %v1451 = vld [vmem:[%s296 + $0x118] sm:$0xff]
      %v1452 = vld [vmem:[%s296 + $0x120] sm:$0xff]
      %v1453 = vld [vmem:[%s296 + $0x128] sm:$0xff]
      %v1454 = vld [vmem:[%s296 + $0x130] sm:$0xff]
      %v1455 = vld [vmem:[%s296 + $0x138] sm:$0xff]
      %v1456 = vld [vmem:[%s296 + $0x140] sm:$0xff]
      %v1457 = vld [vmem:[%s296 + $0x148] sm:$0xff]
      %v1458 = vld [vmem:[%s296 + $0x150] sm:$0xf]
      %v1459 = vld [vmem:[%s296 + $0x154] sm:$0xff]
      %v1460 = vld [vmem:[%s296 + $0x15c] sm:$0xff]
      %v1461 = vld [vmem:[%s296 + $0x164] sm:$0xff]
      %v1462 = vld [vmem:[%s296 + $0x16c] sm:$0xff]
      %v1463 = vld [vmem:[%s296 + $0x174] sm:$0xff]
      %v1464 = vld [vmem:[%s296 + $0x17c] sm:$0xff]
      %v1465 = vld [vmem:[%s296 + $0x184] sm:$0xff]
      %v1466 = vld [vmem:[%s296 + $0x18c] sm:$0xff]
      %v1467 = vld [vmem:[%s296 + $0x194] sm:$0xf]
      %v1468 = vld [vmem:[%s296 + $0x198] sm:$0xff]
      %v1469 = vld [vmem:[%s296 + $0x1a0] sm:$0xff]
      %v1470 = vld [vmem:[%s296 + $0x1a8] sm:$0xff]
      %v1471 = vld [vmem:[%s296 + $0x1b0] sm:$0xff]
      %v1472 = vld [vmem:[%s296 + $0x1b8] sm:$0xff]
      %v1473 = vld [vmem:[%s296 + $0x1c0] sm:$0xff]
      %v1474 = vld [vmem:[%s296 + $0x1c8] sm:$0xff]
      %v1475 = vld [vmem:[%s296 + $0x1d0] sm:$0xff]
      %v1476 = vld [vmem:[%s296 + $0x1d8] sm:$0xf]
      %v1477 = vld [vmem:[%s296 + $0x1dc] sm:$0xff]
      %v1478 = vld [vmem:[%s296 + $0x1e4] sm:$0xff]
      %v1479 = vld [vmem:[%s296 + $0x1ec] sm:$0xff]
      %v1480 = vld [vmem:[%s296 + $0x1f4] sm:$0xff]
      %v1481 = vld [vmem:[%s296 + $0x1fc] sm:$0xff]
      %v1482 = vld [vmem:[%s296 + $0x204] sm:$0xff]
      %v1483 = vld [vmem:[%s296 + $0x20c] sm:$0xff]
      %v1484 = vld [vmem:[%s296 + $0x214] sm:$0xff]
      %v1485 = vld [vmem:[%s296 + $0x21c] sm:$0xf]
      %v1486 = vld [vmem:[%s296 + $0x220] sm:$0xff]
      %v1487 = vld [vmem:[%s296 + $0x228] sm:$0xff]
      %v1488 = vld [vmem:[%s296 + $0x230] sm:$0xff]
      %v1489 = vld [vmem:[%s296 + $0x238] sm:$0xff]
      %v1490 = vld [vmem:[%s296 + $0x240] sm:$0xff]
      %v1491 = vld [vmem:[%s296 + $0x248] sm:$0xff]
      %v1492 = vld [vmem:[%s296 + $0x250] sm:$0xff]
      %v1493 = vld [vmem:[%s296 + $0x258] sm:$0xff]
      %v1494 = vld [vmem:[%s296 + $0x260] sm:$0xf]
      %v1495 = vld [vmem:[%s296 + $0x264] sm:$0xff]
      %v1496 = vld [vmem:[%s296 + $0x26c] sm:$0xff]
      %v1497 = vld [vmem:[%s296 + $0x274] sm:$0xff]
      %v1498 = vld [vmem:[%s296 + $0x27c] sm:$0xff]
      %v1499 = vld [vmem:[%s296 + $0x284] sm:$0xff]
      %v1500 = vld [vmem:[%s296 + $0x28c] sm:$0xff]
      %v1501 = vld [vmem:[%s296 + $0x294] sm:$0xff]
      %v1502 = vld [vmem:[%s296 + $0x29c] sm:$0xff]
      %v1503 = vld [vmem:[%s296 + $0x2a4] sm:$0xf]
      %v1504 = vld [vmem:[%s296 + $0x2a8] sm:$0xff]
      %v1505 = vld [vmem:[%s296 + $0x2b0] sm:$0xff]
      %v1506 = vld [vmem:[%s296 + $0x2b8] sm:$0xff]
      %v1507 = vld [vmem:[%s296 + $0x2c0] sm:$0xff]
      %v1508 = vld [vmem:[%s296 + $0x2c8] sm:$0xff]
      %v1509 = vld [vmem:[%s296 + $0x2d0] sm:$0xff]
      %v1510 = vld [vmem:[%s296 + $0x2d8] sm:$0xff]
      %v1511 = vld [vmem:[%s296 + $0x2e0] sm:$0xff]
      %v1512 = vld [vmem:[%s296 + $0x2e8] sm:$0xf]
      %v1513 = vld [vmem:[%s296 + $0x2ec] sm:$0xff]
      %v1514 = vld [vmem:[%s296 + $0x2f4] sm:$0xff]
      %v1515 = vld [vmem:[%s296 + $0x2fc] sm:$0xff]
      %v1516 = vld [vmem:[%s296 + $0x304] sm:$0xff]
      %v1517 = vld [vmem:[%s296 + $0x30c] sm:$0xff]
      %v1518 = vld [vmem:[%s296 + $0x314] sm:$0xff]
      %v1519 = vld [vmem:[%s296 + $0x31c] sm:$0xff]
      %v1520 = vld [vmem:[%s296 + $0x324] sm:$0xff]
      %v1521 = vld [vmem:[%s296 + $0x32c] sm:$0xf]
      %v1522 = vld [vmem:[%s296 + $0x330] sm:$0x33]
      %v1523 = vld [vmem:[%s296 + $0x338] sm:$0x33]
      %v1524 = vld [vmem:[%s296 + $0x340] sm:$0x33]
      %v1525 = vld [vmem:[%s296 + $0x348] sm:$0x33]
      %v1526 = vld [vmem:[%s296 + $0x350] sm:$0x33]
      %v1527 = vld [vmem:[%s296 + $0x358] sm:$0x33]
      %v1528 = vld [vmem:[%s296 + $0x360] sm:$0x33]
      %v1529 = vld [vmem:[%s296 + $0x368] sm:$0x33]
      %v1530 = vld [vmem:[%s296 + $0x370] sm:$0x3]
      %v1648 = vunpack.c.l.b16 %v1414
      %v1649 = vunpack.c.h.b16 %v1414
      %v1650 = vunpack.c.l.b16 %v1415
      %v1651 = vunpack.c.h.b16 %v1415
      %v1652 = vunpack.c.l.b16 %v1416
      %v1653 = vunpack.c.h.b16 %v1416
      %v1654 = vunpack.c.l.b16 %v1417
      %v1655 = vunpack.c.h.b16 %v1417
      %v1656 = vunpack.c.l.b16 %v1418
      %v1657 = vunpack.c.h.b16 %v1418
      %v1658 = vunpack.c.l.b16 %v1419
      %v1659 = vunpack.c.h.b16 %v1419
      %v1660 = vunpack.c.l.b16 %v1420
      %v1661 = vunpack.c.h.b16 %v1420
      %v1662 = vunpack.c.l.b16 %v1421
      %v1663 = vunpack.c.h.b16 %v1421
      %v1664 = vunpack.c.l.b16 %v1422
      %v1665 = vunpack.c.l.b16 %v1423
      %v1666 = vunpack.c.h.b16 %v1423
      %v1667 = vunpack.c.l.b16 %v1424
      %v1668 = vunpack.c.h.b16 %v1424
      %v1669 = vunpack.c.l.b16 %v1425
      %v1670 = vunpack.c.h.b16 %v1425
      %v1671 = vunpack.c.l.b16 %v1426
      %v1672 = vunpack.c.h.b16 %v1426
      %v1673 = vunpack.c.l.b16 %v1427
      %v1674 = vunpack.c.h.b16 %v1427
      %v1675 = vunpack.c.l.b16 %v1428
      %v1676 = vunpack.c.h.b16 %v1428
      %v1677 = vunpack.c.l.b16 %v1429
      %v1678 = vunpack.c.h.b16 %v1429
      %v1679 = vunpack.c.l.b16 %v1430
      %v1680 = vunpack.c.h.b16 %v1430
      %v1681 = vunpack.c.l.b16 %v1431
      %v1682 = vunpack.c.l.b16 %v1432
      %v1683 = vunpack.c.h.b16 %v1432
      %v1684 = vunpack.c.l.b16 %v1433
      %v1685 = vunpack.c.h.b16 %v1433
      %v1686 = vunpack.c.l.b16 %v1434
      %v1687 = vunpack.c.h.b16 %v1434
      %v1688 = vunpack.c.l.b16 %v1435
      %v1689 = vunpack.c.h.b16 %v1435
      %v1690 = vunpack.c.l.b16 %v1436
      %v1691 = vunpack.c.h.b16 %v1436
      %v1692 = vunpack.c.l.b16 %v1437
      %v1693 = vunpack.c.h.b16 %v1437
      %v1694 = vunpack.c.l.b16 %v1438
      %v1695 = vunpack.c.h.b16 %v1438
      %v1696 = vunpack.c.l.b16 %v1439
      %v1697 = vunpack.c.h.b16 %v1439
      %v1698 = vunpack.c.l.b16 %v1440
      %v1699 = vunpack.c.l.b16 %v1441
      %v1700 = vunpack.c.h.b16 %v1441
      %v1701 = vunpack.c.l.b16 %v1442
      %v1702 = vunpack.c.h.b16 %v1442
      %v1703 = vunpack.c.l.b16 %v1443
      %v1704 = vunpack.c.h.b16 %v1443
      %v1705 = vunpack.c.l.b16 %v1444
      %v1706 = vunpack.c.h.b16 %v1444
      %v1707 = vunpack.c.l.b16 %v1445
      %v1708 = vunpack.c.h.b16 %v1445
      %v1709 = vunpack.c.l.b16 %v1446
      %v1710 = vunpack.c.h.b16 %v1446
      %v1711 = vunpack.c.l.b16 %v1447
      %v1712 = vunpack.c.h.b16 %v1447
      %v1713 = vunpack.c.l.b16 %v1448
      %v1714 = vunpack.c.h.b16 %v1448
      %v1715 = vunpack.c.l.b16 %v1449
      %v1716 = vunpack.c.l.b16 %v1450
      %v1717 = vunpack.c.h.b16 %v1450
      %v1718 = vunpack.c.l.b16 %v1451
      %v1719 = vunpack.c.h.b16 %v1451
      %v1720 = vunpack.c.l.b16 %v1452
      %v1721 = vunpack.c.h.b16 %v1452
      %v1722 = vunpack.c.l.b16 %v1453
      %v1723 = vunpack.c.h.b16 %v1453
      %v1724 = vunpack.c.l.b16 %v1454
      %v1725 = vunpack.c.h.b16 %v1454
      %v1726 = vunpack.c.l.b16 %v1455
      %v1727 = vunpack.c.h.b16 %v1455
      %v1728 = vunpack.c.l.b16 %v1456
      %v1729 = vunpack.c.h.b16 %v1456
      %v1730 = vunpack.c.l.b16 %v1457
      %v1731 = vunpack.c.h.b16 %v1457
      %v1732 = vunpack.c.l.b16 %v1458
      %v1733 = vunpack.c.l.b16 %v1459
      %v1734 = vunpack.c.h.b16 %v1459
      %v1735 = vunpack.c.l.b16 %v1460
      %v1736 = vunpack.c.h.b16 %v1460
      %v1737 = vunpack.c.l.b16 %v1461
      %v1738 = vunpack.c.h.b16 %v1461
      %v1739 = vunpack.c.l.b16 %v1462
      %v1740 = vunpack.c.h.b16 %v1462
      %v1741 = vunpack.c.l.b16 %v1463
      %v1742 = vunpack.c.h.b16 %v1463
      %v1743 = vunpack.c.l.b16 %v1464
      %v1744 = vunpack.c.h.b16 %v1464
      %v1745 = vunpack.c.l.b16 %v1465
      %v1746 = vunpack.c.h.b16 %v1465
      %v1747 = vunpack.c.l.b16 %v1466
      %v1748 = vunpack.c.h.b16 %v1466
      %v1749 = vunpack.c.l.b16 %v1467
      %v1750 = vunpack.c.l.b16 %v1468
      %v1751 = vunpack.c.h.b16 %v1468
      %v1752 = vunpack.c.l.b16 %v1469
      %v1753 = vunpack.c.h.b16 %v1469
      %v1754 = vunpack.c.l.b16 %v1470
      %v1755 = vunpack.c.h.b16 %v1470
      %v1756 = vunpack.c.l.b16 %v1471
      %v1757 = vunpack.c.h.b16 %v1471
      %v1758 = vunpack.c.l.b16 %v1472
      %v1759 = vunpack.c.h.b16 %v1472
      %v1760 = vunpack.c.l.b16 %v1473
      %v1761 = vunpack.c.h.b16 %v1473
      %v1762 = vunpack.c.l.b16 %v1474
      %v1763 = vunpack.c.h.b16 %v1474
      %v1764 = vunpack.c.l.b16 %v1475
      %v1765 = vunpack.c.h.b16 %v1475
      %v1766 = vunpack.c.l.b16 %v1476
      %v1767 = vunpack.c.l.b16 %v1477
      %v1768 = vunpack.c.h.b16 %v1477
      %v1769 = vunpack.c.l.b16 %v1478
      %v1770 = vunpack.c.h.b16 %v1478
      %v1771 = vunpack.c.l.b16 %v1479
      %v1772 = vunpack.c.h.b16 %v1479
      %v1773 = vunpack.c.l.b16 %v1480
      %v1774 = vunpack.c.h.b16 %v1480
      %v1775 = vunpack.c.l.b16 %v1481
      %v1776 = vunpack.c.h.b16 %v1481
      %v1777 = vunpack.c.l.b16 %v1482
      %v1778 = vunpack.c.h.b16 %v1482
      %v1779 = vunpack.c.l.b16 %v1483
      %v1780 = vunpack.c.h.b16 %v1483
      %v1781 = vunpack.c.l.b16 %v1484
      %v1782 = vunpack.c.h.b16 %v1484
      %v1783 = vunpack.c.l.b16 %v1485
      %v1784 = vunpack.c.l.b16 %v1486
      %v1785 = vunpack.c.h.b16 %v1486
      %v1786 = vunpack.c.l.b16 %v1487
      %v1787 = vunpack.c.h.b16 %v1487
      %v1788 = vunpack.c.l.b16 %v1488
      %v1789 = vunpack.c.h.b16 %v1488
      %v1790 = vunpack.c.l.b16 %v1489
      %v1791 = vunpack.c.h.b16 %v1489
      %v1792 = vunpack.c.l.b16 %v1490
      %v1793 = vunpack.c.h.b16 %v1490
      %v1794 = vunpack.c.l.b16 %v1491
      %v1795 = vunpack.c.h.b16 %v1491
      %v1796 = vunpack.c.l.b16 %v1492
      %v1797 = vunpack.c.h.b16 %v1492
      %v1798 = vunpack.c.l.b16 %v1493
      %v1799 = vunpack.c.h.b16 %v1493
      %v1800 = vunpack.c.l.b16 %v1494
      %v1801 = vunpack.c.l.b16 %v1495
      %v1802 = vunpack.c.h.b16 %v1495
      %v1803 = vunpack.c.l.b16 %v1496
      %v1804 = vunpack.c.h.b16 %v1496
      %v1805 = vunpack.c.l.b16 %v1497
      %v1806 = vunpack.c.h.b16 %v1497
      %v1807 = vunpack.c.l.b16 %v1498
      %v1808 = vunpack.c.h.b16 %v1498
      %v1809 = vunpack.c.l.b16 %v1499
      %v1810 = vunpack.c.h.b16 %v1499
      %v1811 = vunpack.c.l.b16 %v1500
      %v1812 = vunpack.c.h.b16 %v1500
      %v1813 = vunpack.c.l.b16 %v1501
      %v1814 = vunpack.c.h.b16 %v1501
      %v1815 = vunpack.c.l.b16 %v1502
      %v1816 = vunpack.c.h.b16 %v1502
      %v1817 = vunpack.c.l.b16 %v1503
      %v1818 = vunpack.c.l.b16 %v1504
      %v1819 = vunpack.c.h.b16 %v1504
      %v1820 = vunpack.c.l.b16 %v1505
      %v1821 = vunpack.c.h.b16 %v1505
      %v1822 = vunpack.c.l.b16 %v1506
      %v1823 = vunpack.c.h.b16 %v1506
      %v1824 = vunpack.c.l.b16 %v1507
      %v1825 = vunpack.c.h.b16 %v1507
      %v1826 = vunpack.c.l.b16 %v1508
      %v1827 = vunpack.c.h.b16 %v1508
      %v1828 = vunpack.c.l.b16 %v1509
      %v1829 = vunpack.c.h.b16 %v1509
      %v1830 = vunpack.c.l.b16 %v1510
      %v1831 = vunpack.c.h.b16 %v1510
      %v1832 = vunpack.c.l.b16 %v1511
      %v1833 = vunpack.c.h.b16 %v1511
      %v1834 = vunpack.c.l.b16 %v1512
      %v1835 = vunpack.c.l.b16 %v1513
      %v1836 = vunpack.c.h.b16 %v1513
      %v1837 = vunpack.c.l.b16 %v1514
      %v1838 = vunpack.c.h.b16 %v1514
      %v1839 = vunpack.c.l.b16 %v1515
      %v1840 = vunpack.c.h.b16 %v1515
      %v1841 = vunpack.c.l.b16 %v1516
      %v1842 = vunpack.c.h.b16 %v1516
      %v1843 = vunpack.c.l.b16 %v1517
      %v1844 = vunpack.c.h.b16 %v1517
      %v1845 = vunpack.c.l.b16 %v1518
      %v1846 = vunpack.c.h.b16 %v1518
      %v1847 = vunpack.c.l.b16 %v1519
      %v1848 = vunpack.c.h.b16 %v1519
      %v1849 = vunpack.c.l.b16 %v1520
      %v1850 = vunpack.c.h.b16 %v1520
      %v1851 = vunpack.c.l.b16 %v1521
      %v1852 = vunpack.c.l.b16 %v1522
      %v1853 = vunpack.c.h.b16 %v1522
      %v1854 = vunpack.c.l.b16 %v1523
      %v1855 = vunpack.c.h.b16 %v1523
      %v1856 = vunpack.c.l.b16 %v1524
      %v1857 = vunpack.c.h.b16 %v1524
      %v1858 = vunpack.c.l.b16 %v1525
      %v1859 = vunpack.c.h.b16 %v1525
      %v1860 = vunpack.c.l.b16 %v1526
      %v1861 = vunpack.c.h.b16 %v1526
      %v1862 = vunpack.c.l.b16 %v1527
      %v1863 = vunpack.c.h.b16 %v1527
      %v1864 = vunpack.c.l.b16 %v1528
      %v1865 = vunpack.c.h.b16 %v1528
      %v1866 = vunpack.c.l.b16 %v1529
      %v1867 = vunpack.c.h.b16 %v1529
      %v1868 = vunpack.c.l.b16 %v1530
      %v1869 = vpack.c.b16 %v1665, %v1648
      %v1870 = vpack.c.b16 %v1666, %v1649
      %v1871 = vpack.c.b16 %v1667, %v1650
      %v1872 = vpack.c.b16 %v1668, %v1651
      %v1873 = vpack.c.b16 %v1669, %v1652
      %v1874 = vpack.c.b16 %v1670, %v1653
      %v1875 = vpack.c.b16 %v1671, %v1654
      %v1876 = vpack.c.b16 %v1672, %v1655
      %v1877 = vpack.c.b16 %v1673, %v1656
      %v1878 = vpack.c.b16 %v1674, %v1657
      %v1879 = vpack.c.b16 %v1675, %v1658
      %v1880 = vpack.c.b16 %v1676, %v1659
      %v1881 = vpack.c.b16 %v1677, %v1660
      %v1882 = vpack.c.b16 %v1678, %v1661
      %v1883 = vpack.c.b16 %v1679, %v1662
      %v1884 = vpack.c.b16 %v1680, %v1663
      %v1885 = vpack.c.b16 %v1681, %v1664
      %v1886 = vpack.c.b16 %v1699, %v1682
      %v1887 = vpack.c.b16 %v1700, %v1683
      %v1888 = vpack.c.b16 %v1701, %v1684
      %v1889 = vpack.c.b16 %v1702, %v1685
      %v1890 = vpack.c.b16 %v1703, %v1686
      %v1891 = vpack.c.b16 %v1704, %v1687
      %v1892 = vpack.c.b16 %v1705, %v1688
      %v1893 = vpack.c.b16 %v1706, %v1689
      %v1894 = vpack.c.b16 %v1707, %v1690
      %v1895 = vpack.c.b16 %v1708, %v1691
      %v1896 = vpack.c.b16 %v1709, %v1692
      %v1897 = vpack.c.b16 %v1710, %v1693
      %v1898 = vpack.c.b16 %v1711, %v1694
      %v1899 = vpack.c.b16 %v1712, %v1695
      %v1900 = vpack.c.b16 %v1713, %v1696
      %v1901 = vpack.c.b16 %v1714, %v1697
      %v1902 = vpack.c.b16 %v1715, %v1698
      %v1903 = vpack.c.b16 %v1733, %v1716
      %v1904 = vpack.c.b16 %v1734, %v1717
      %v1905 = vpack.c.b16 %v1735, %v1718
      %v1906 = vpack.c.b16 %v1736, %v1719
      %v1907 = vpack.c.b16 %v1737, %v1720
      %v1908 = vpack.c.b16 %v1738, %v1721
      %v1909 = vpack.c.b16 %v1739, %v1722
      %v1910 = vpack.c.b16 %v1740, %v1723
      %v1911 = vpack.c.b16 %v1741, %v1724
      %v1912 = vpack.c.b16 %v1742, %v1725
      %v1913 = vpack.c.b16 %v1743, %v1726
      %v1914 = vpack.c.b16 %v1744, %v1727
      %v1915 = vpack.c.b16 %v1745, %v1728
      %v1916 = vpack.c.b16 %v1746, %v1729
      %v1917 = vpack.c.b16 %v1747, %v1730
      %v1918 = vpack.c.b16 %v1748, %v1731
      %v1919 = vpack.c.b16 %v1749, %v1732
      %v1920 = vpack.c.b16 %v1767, %v1750
      %v1921 = vpack.c.b16 %v1768, %v1751
      %v1922 = vpack.c.b16 %v1769, %v1752
      %v1923 = vpack.c.b16 %v1770, %v1753
      %v1924 = vpack.c.b16 %v1771, %v1754
      %v1925 = vpack.c.b16 %v1772, %v1755
      %v1926 = vpack.c.b16 %v1773, %v1756
      %v1927 = vpack.c.b16 %v1774, %v1757
      %v1928 = vpack.c.b16 %v1775, %v1758
      %v1929 = vpack.c.b16 %v1776, %v1759
      %v1930 = vpack.c.b16 %v1777, %v1760
      %v1931 = vpack.c.b16 %v1778, %v1761
      %v1932 = vpack.c.b16 %v1779, %v1762
      %v1933 = vpack.c.b16 %v1780, %v1763
      %v1934 = vpack.c.b16 %v1781, %v1764
      %v1935 = vpack.c.b16 %v1782, %v1765
      %v1936 = vpack.c.b16 %v1783, %v1766
      %v1937 = vpack.c.b16 %v1801, %v1784
      %v1938 = vpack.c.b16 %v1802, %v1785
      %v1939 = vpack.c.b16 %v1803, %v1786
      %v1940 = vpack.c.b16 %v1804, %v1787
      %v1941 = vpack.c.b16 %v1805, %v1788
      %v1942 = vpack.c.b16 %v1806, %v1789
      %v1943 = vpack.c.b16 %v1807, %v1790
      %v1944 = vpack.c.b16 %v1808, %v1791
      %v1945 = vpack.c.b16 %v1809, %v1792
      %v1946 = vpack.c.b16 %v1810, %v1793
      %v1947 = vpack.c.b16 %v1811, %v1794
      %v1948 = vpack.c.b16 %v1812, %v1795
      %v1949 = vpack.c.b16 %v1813, %v1796
      %v1950 = vpack.c.b16 %v1814, %v1797
      %v1951 = vpack.c.b16 %v1815, %v1798
      %v1952 = vpack.c.b16 %v1816, %v1799
      %v1953 = vpack.c.b16 %v1817, %v1800
      %v1954 = vpack.c.b16 %v1835, %v1818
      %v1955 = vpack.c.b16 %v1836, %v1819
      %v1956 = vpack.c.b16 %v1837, %v1820
      %v1957 = vpack.c.b16 %v1838, %v1821
      %v1958 = vpack.c.b16 %v1839, %v1822
      %v1959 = vpack.c.b16 %v1840, %v1823
      %v1960 = vpack.c.b16 %v1841, %v1824
      %v1961 = vpack.c.b16 %v1842, %v1825
      %v1962 = vpack.c.b16 %v1843, %v1826
      %v1963 = vpack.c.b16 %v1844, %v1827
      %v1964 = vpack.c.b16 %v1845, %v1828
      %v1965 = vpack.c.b16 %v1846, %v1829
      %v1966 = vpack.c.b16 %v1847, %v1830
      %v1967 = vpack.c.b16 %v1848, %v1831
      %v1968 = vpack.c.b16 %v1849, %v1832
      %v1969 = vpack.c.b16 %v1850, %v1833
      %v1970 = vpack.c.b16 %v1851, %v1834
      %v1971 = vpack.c.b16 %v1852, %v1852
      %v1972 = vpack.c.b16 %v1853, %v1853
      %v1973 = vpack.c.b16 %v1854, %v1854
      %v1974 = vpack.c.b16 %v1855, %v1855
      %v1975 = vpack.c.b16 %v1856, %v1856
      %v1976 = vpack.c.b16 %v1857, %v1857
      %v1977 = vpack.c.b16 %v1858, %v1858
      %v1978 = vpack.c.b16 %v1859, %v1859
      %v1979 = vpack.c.b16 %v1860, %v1860
      %v1980 = vpack.c.b16 %v1861, %v1861
      %v1981 = vpack.c.b16 %v1862, %v1862
      %v1982 = vpack.c.b16 %v1863, %v1863
      %v1983 = vpack.c.b16 %v1864, %v1864
      %v1984 = vpack.c.b16 %v1865, %v1865
      %v1985 = vpack.c.b16 %v1866, %v1866
      %v1986 = vpack.c.b16 %v1867, %v1867
      %v1987 = vpack.c.b16 %v1868, %v1868
      %v2091 = vsel %vm994, %v1971, 0
      %v2094 = vsel %vm994, %v1972, 0
      %v2097 = vsel %vm994, %v1973, 0
      %v2100 = vsel %vm994, %v1974, 0
      %v2103 = vsel %vm994, %v1975, 0
      %v2106 = vsel %vm994, %v1976, 0
      %v2109 = vsel %vm994, %v1977, 0
      %v2112 = vsel %vm994, %v1978, 0
      %v2115 = vsel %vm994, %v1979, 0
      %v2118 = vsel %vm994, %v1980, 0
      %v2121 = vsel %vm994, %v1981, 0
      %v2124 = vsel %vm994, %v1982, 0
      %v2127 = vsel %vm994, %v1983, 0
      %v2130 = vsel %vm994, %v1984, 0
      %v2133 = vsel %vm994, %v1985, 0
      %v2136 = vsel %vm994, %v1986, 0
      %v2139 = vsel %vm994, %v1987, 0
      %2141 = vmatprep.subr.bf16.mxu0 %v1870
      %2142 = vmatpush1.bf16.msra.mxu0 %v1869
      %2143 = vmatprep.subr.bf16.mxu0 %v1887
      %2144 = vmatpush1.bf16.msra.mxu0 %v1886
      %2145 = vmatprep.subr.bf16.mxu0 %v1904
      %2146 = vmatpush1.bf16.msra.mxu0 %v1903
      %2147 = vmatprep.subr.bf16.mxu0 %v1921
      %2148 = vmatpush1.bf16.msra.mxu0 %v1920
      %2149 = vmatprep.subr.bf16.mxu0 %v1938
      %2150 = vmatpush1.bf16.msra.mxu0 %v1937
      %2151 = vmatprep.subr.bf16.mxu0 %v1955
      %2152 = vmatpush1.bf16.msra.mxu0 %v1954
      %2153 = vmatprep.subr.bf16.mxu0 %v2094
      %2154 = vmatpush1.bf16.msra.mxu0 %v2091
      %2155 = vmatprep.subr.bf16.mxu0 0
      %2156 = vmatpush1.bf16.msra.mxu0 0
      %2157 = vmatprep.subr.bf16.mxu0 0
      %2158 = vmatpush1.bf16.msra.mxu0 0
      %2159 = vmatprep.subr.bf16.mxu0 0
      %2160 = vmatpush1.bf16.msra.mxu0 0
      %2161 = vmatprep.subr.bf16.mxu0 0
      %2162 = vmatpush1.bf16.msra.mxu0 0
      %2163 = vmatprep.subr.bf16.mxu0 0
      %2164 = vmatpush1.bf16.msra.mxu0 0
      %2165 = vmatprep.subr.bf16.mxu0 0
      %2166 = vmatpush1.bf16.msra.mxu0 0
      %2167 = vmatprep.subr.bf16.mxu0 0
      %2168 = vmatpush1.bf16.msra.mxu0 0
      %2169 = vmatprep.subr.bf16.mxu0 0
      %2170 = vmatpush1.bf16.msra.mxu0 0
      %2171 = vmatprep.subr.bf16.mxu0 0
      %2172 = vmatpush1.bf16.msra.mxu0 0
      %2173 = vmatprep.mubr.bf16.mxu0 0
      %2174 = vmatmul.mubr.bf16.gmra.mrb[0].mxu0 %v992
      %v2175 = vpop.f32.mrb[0].mxu0
      %v2176 = vadd.f32 0.0, %v2175
      %v2177 = vpop.f32.mrb[0].mxu0
      %v2178 = vadd.f32 0.0, %v2177
      %v2179 = vpop.f32.mrb[0].mxu0
      %v2180 = vpop.f32.mrb[0].mxu0
      %2181 = vdwg.mxu0
      %2182 = vmatprep.subr.bf16.mxu0 %v1872
      %2183 = vmatpush1.bf16.msra.mxu0 %v1871
      %2184 = vmatprep.subr.bf16.mxu0 %v1889
      %2185 = vmatpush1.bf16.msra.mxu0 %v1888
      %2186 = vmatprep.subr.bf16.mxu0 %v1906
      %2187 = vmatpush1.bf16.msra.mxu0 %v1905
      %2188 = vmatprep.subr.bf16.mxu0 %v1923
      %2189 = vmatpush1.bf16.msra.mxu0 %v1922
      %2190 = vmatprep.subr.bf16.mxu0 %v1940
      %2191 = vmatpush1.bf16.msra.mxu0 %v1939
      %2192 = vmatprep.subr.bf16.mxu0 %v1957
      %2193 = vmatpush1.bf16.msra.mxu0 %v1956
      %2194 = vmatprep.subr.bf16.mxu0 %v2100
      %2195 = vmatpush1.bf16.msra.mxu0 %v2097
      %2196 = vmatprep.subr.bf16.mxu0 0
      %2197 = vmatpush1.bf16.msra.mxu0 0
      %2198 = vmatprep.subr.bf16.mxu0 0
      %2199 = vmatpush1.bf16.msra.mxu0 0
      %2200 = vmatprep.subr.bf16.mxu0 0
      %2201 = vmatpush1.bf16.msra.mxu0 0
      %2202 = vmatprep.subr.bf16.mxu0 0
      %2203 = vmatpush1.bf16.msra.mxu0 0
      %2204 = vmatprep.subr.bf16.mxu0 0
      %2205 = vmatpush1.bf16.msra.mxu0 0
      %2206 = vmatprep.subr.bf16.mxu0 0
      %2207 = vmatpush1.bf16.msra.mxu0 0
      %2208 = vmatprep.subr.bf16.mxu0 0
      %2209 = vmatpush1.bf16.msra.mxu0 0
      %2210 = vmatprep.subr.bf16.mxu0 0
      %2211 = vmatpush1.bf16.msra.mxu0 0
      %2212 = vmatprep.subr.bf16.mxu0 0
      %2213 = vmatpush1.bf16.msra.mxu0 0
      %2214 = vmatprep.mubr.bf16.mxu0 0
      %2215 = vmatmul.mubr.bf16.gmra.mrb[0].mxu0 %v992
      %v2216 = vpop.f32.mrb[0].mxu0
      %v2217 = vadd.f32 0.0, %v2216
      %v2218 = vpop.f32.mrb[0].mxu0
      %v2219 = vadd.f32 0.0, %v2218
      %v2220 = vpop.f32.mrb[0].mxu0
      %v2221 = vpop.f32.mrb[0].mxu0
      %2222 = vdwg.mxu0
      %2223 = vmatprep.subr.bf16.mxu0 %v1874
      %2224 = vmatpush1.bf16.msra.mxu0 %v1873
      %2225 = vmatprep.subr.bf16.mxu0 %v1891
      %2226 = vmatpush1.bf16.msra.mxu0 %v1890
      %2227 = vmatprep.subr.bf16.mxu0 %v1908
      %2228 = vmatpush1.bf16.msra.mxu0 %v1907
      %2229 = vmatprep.subr.bf16.mxu0 %v1925
      %2230 = vmatpush1.bf16.msra.mxu0 %v1924
      %2231 = vmatprep.subr.bf16.mxu0 %v1942
      %2232 = vmatpush1.bf16.msra.mxu0 %v1941
      %2233 = vmatprep.subr.bf16.mxu0 %v1959
      %2234 = vmatpush1.bf16.msra.mxu0 %v1958
      %2235 = vmatprep.subr.bf16.mxu0 %v2106
      %2236 = vmatpush1.bf16.msra.mxu0 %v2103
      %2237 = vmatprep.subr.bf16.mxu0 0
      %2238 = vmatpush1.bf16.msra.mxu0 0
      %2239 = vmatprep.subr.bf16.mxu0 0
      %2240 = vmatpush1.bf16.msra.mxu0 0
      %2241 = vmatprep.subr.bf16.mxu0 0
      %2242 = vmatpush1.bf16.msra.mxu0 0
      %2243 = vmatprep.subr.bf16.mxu0 0
      %2244 = vmatpush1.bf16.msra.mxu0 0
      %2245 = vmatprep.subr.bf16.mxu0 0
      %2246 = vmatpush1.bf16.msra.mxu0 0
      %2247 = vmatprep.subr.bf16.mxu0 0
      %2248 = vmatpush1.bf16.msra.mxu0 0
      %2249 = vmatprep.subr.bf16.mxu0 0
      %2250 = vmatpush1.bf16.msra.mxu0 0
      %2251 = vmatprep.subr.bf16.mxu0 0
      %2252 = vmatpush1.bf16.msra.mxu0 0
      %2253 = vmatprep.subr.bf16.mxu0 0
      %2254 = vmatpush1.bf16.msra.mxu0 0
      %2255 = vmatprep.mubr.bf16.mxu0 0
      %2256 = vmatmul.mubr.bf16.gmra.mrb[0].mxu0 %v992
      %v2257 = vpop.f32.mrb[0].mxu0
      %v2258 = vadd.f32 0.0, %v2257
      %v2259 = vpop.f32.mrb[0].mxu0
      %v2260 = vadd.f32 0.0, %v2259
      %v2261 = vpop.f32.mrb[0].mxu0
      %v2262 = vpop.f32.mrb[0].mxu0
      %2263 = vdwg.mxu0
      %2264 = vmatprep.subr.bf16.mxu0 %v1876
      %2265 = vmatpush1.bf16.msra.mxu0 %v1875
      %2266 = vmatprep.subr.bf16.mxu0 %v1893
      %2267 = vmatpush1.bf16.msra.mxu0 %v1892
      %2268 = vmatprep.subr.bf16.mxu0 %v1910
      %2269 = vmatpush1.bf16.msra.mxu0 %v1909
      %2270 = vmatprep.subr.bf16.mxu0 %v1927
      %2271 = vmatpush1.bf16.msra.mxu0 %v1926
      %2272 = vmatprep.subr.bf16.mxu0 %v1944
      %2273 = vmatpush1.bf16.msra.mxu0 %v1943
      %2274 = vmatprep.subr.bf16.mxu0 %v1961
      %2275 = vmatpush1.bf16.msra.mxu0 %v1960
      %2276 = vmatprep.subr.bf16.mxu0 %v2112
      %2277 = vmatpush1.bf16.msra.mxu0 %v2109
      %2278 = vmatprep.subr.bf16.mxu0 0
      %2279 = vmatpush1.bf16.msra.mxu0 0
      %2280 = vmatprep.subr.bf16.mxu0 0
      %2281 = vmatpush1.bf16.msra.mxu0 0
      %2282 = vmatprep.subr.bf16.mxu0 0
      %2283 = vmatpush1.bf16.msra.mxu0 0
      %2284 = vmatprep.subr.bf16.mxu0 0
      %2285 = vmatpush1.bf16.msra.mxu0 0
      %2286 = vmatprep.subr.bf16.mxu0 0
      %2287 = vmatpush1.bf16.msra.mxu0 0
      %2288 = vmatprep.subr.bf16.mxu0 0
      %2289 = vmatpush1.bf16.msra.mxu0 0
      %2290 = vmatprep.subr.bf16.mxu0 0
      %2291 = vmatpush1.bf16.msra.mxu0 0
      %2292 = vmatprep.subr.bf16.mxu0 0
      %2293 = vmatpush1.bf16.msra.mxu0 0
      %2294 = vmatprep.subr.bf16.mxu0 0
      %2295 = vmatpush1.bf16.msra.mxu0 0
      %2296 = vmatprep.mubr.bf16.mxu0 0
      %2297 = vmatmul.mubr.bf16.gmra.mrb[0].mxu0 %v992
      %v2298 = vpop.f32.mrb[0].mxu0
      %v2299 = vadd.f32 0.0, %v2298
      %v2300 = vpop.f32.mrb[0].mxu0
      %v2301 = vadd.f32 0.0, %v2300
      %v2302 = vpop.f32.mrb[0].mxu0
      %v2303 = vpop.f32.mrb[0].mxu0
      %2304 = vdwg.mxu0
      %2305 = vmatprep.subr.bf16.mxu0 %v1878
      %2306 = vmatpush1.bf16.msra.mxu0 %v1877
      %2307 = vmatprep.subr.bf16.mxu0 %v1895
      %2308 = vmatpush1.bf16.msra.mxu0 %v1894
      %2309 = vmatprep.subr.bf16.mxu0 %v1912
      %2310 = vmatpush1.bf16.msra.mxu0 %v1911
      %2311 = vmatprep.subr.bf16.mxu0 %v1929
      %2312 = vmatpush1.bf16.msra.mxu0 %v1928
      %2313 = vmatprep.subr.bf16.mxu0 %v1946
      %2314 = vmatpush1.bf16.msra.mxu0 %v1945
      %2315 = vmatprep.subr.bf16.mxu0 %v1963
      %2316 = vmatpush1.bf16.msra.mxu0 %v1962
      %2317 = vmatprep.subr.bf16.mxu0 %v2118
      %2318 = vmatpush1.bf16.msra.mxu0 %v2115
      %2319 = vmatprep.subr.bf16.mxu0 0
      %2320 = vmatpush1.bf16.msra.mxu0 0
      %2321 = vmatprep.subr.bf16.mxu0 0
      %2322 = vmatpush1.bf16.msra.mxu0 0
      %2323 = vmatprep.subr.bf16.mxu0 0
      %2324 = vmatpush1.bf16.msra.mxu0 0
      %2325 = vmatprep.subr.bf16.mxu0 0
      %2326 = vmatpush1.bf16.msra.mxu0 0
      %2327 = vmatprep.subr.bf16.mxu0 0
      %2328 = vmatpush1.bf16.msra.mxu0 0
      %2329 = vmatprep.subr.bf16.mxu0 0
      %2330 = vmatpush1.bf16.msra.mxu0 0
      %2331 = vmatprep.subr.bf16.mxu0 0
      %2332 = vmatpush1.bf16.msra.mxu0 0
      %2333 = vmatprep.subr.bf16.mxu0 0
      %2334 = vmatpush1.bf16.msra.mxu0 0
      %2335 = vmatprep.subr.bf16.mxu0 0
      %2336 = vmatpush1.bf16.msra.mxu0 0
      %2337 = vmatprep.mubr.bf16.mxu0 0
      %2338 = vmatmul.mubr.bf16.gmra.mrb[0].mxu0 %v992
      %v2339 = vpop.f32.mrb[0].mxu0
      %v2340 = vadd.f32 0.0, %v2339
      %v2341 = vpop.f32.mrb[0].mxu0
      %v2342 = vadd.f32 0.0, %v2341
      %v2343 = vpop.f32.mrb[0].mxu0
      %v2344 = vpop.f32.mrb[0].mxu0
      %2345 = vdwg.mxu0
      %2346 = vmatprep.subr.bf16.mxu0 %v1880
      %2347 = vmatpush1.bf16.msra.mxu0 %v1879
      %2348 = vmatprep.subr.bf16.mxu0 %v1897
      %2349 = vmatpush1.bf16.msra.mxu0 %v1896
      %2350 = vmatprep.subr.bf16.mxu0 %v1914
      %2351 = vmatpush1.bf16.msra.mxu0 %v1913
      %2352 = vmatprep.subr.bf16.mxu0 %v1931
      %2353 = vmatpush1.bf16.msra.mxu0 %v1930
      %2354 = vmatprep.subr.bf16.mxu0 %v1948
      %2355 = vmatpush1.bf16.msra.mxu0 %v1947
      %2356 = vmatprep.subr.bf16.mxu0 %v1965
      %2357 = vmatpush1.bf16.msra.mxu0 %v1964
      %2358 = vmatprep.subr.bf16.mxu0 %v2124
      %2359 = vmatpush1.bf16.msra.mxu0 %v2121
      %2360 = vmatprep.subr.bf16.mxu0 0
      %2361 = vmatpush1.bf16.msra.mxu0 0
      %2362 = vmatprep.subr.bf16.mxu0 0
      %2363 = vmatpush1.bf16.msra.mxu0 0
      %2364 = vmatprep.subr.bf16.mxu0 0
      %2365 = vmatpush1.bf16.msra.mxu0 0
      %2366 = vmatprep.subr.bf16.mxu0 0
      %2367 = vmatpush1.bf16.msra.mxu0 0
      %2368 = vmatprep.subr.bf16.mxu0 0
      %2369 = vmatpush1.bf16.msra.mxu0 0
      %2370 = vmatprep.subr.bf16.mxu0 0
      %2371 = vmatpush1.bf16.msra.mxu0 0
      %2372 = vmatprep.subr.bf16.mxu0 0
      %2373 = vmatpush1.bf16.msra.mxu0 0
      %2374 = vmatprep.subr.bf16.mxu0 0
      %2375 = vmatpush1.bf16.msra.mxu0 0
      %2376 = vmatprep.subr.bf16.mxu0 0
      %2377 = vmatpush1.bf16.msra.mxu0 0
      %2378 = vmatprep.mubr.bf16.mxu0 0
      %2379 = vmatmul.mubr.bf16.gmra.mrb[0].mxu0 %v992
      %v2380 = vpop.f32.mrb[0].mxu0
      %v2381 = vadd.f32 0.0, %v2380
      %v2382 = vpop.f32.mrb[0].mxu0
      %v2383 = vadd.f32 0.0, %v2382
      %v2384 = vpop.f32.mrb[0].mxu0
      %v2385 = vpop.f32.mrb[0].mxu0
      %2386 = vdwg.mxu0
      %2387 = vmatprep.subr.bf16.mxu0 %v1882
      %2388 = vmatpush1.bf16.msra.mxu0 %v1881
      %2389 = vmatprep.subr.bf16.mxu0 %v1899
      %2390 = vmatpush1.bf16.msra.mxu0 %v1898
      %2391 = vmatprep.subr.bf16.mxu0 %v1916
      %2392 = vmatpush1.bf16.msra.mxu0 %v1915
      %2393 = vmatprep.subr.bf16.mxu0 %v1933
      %2394 = vmatpush1.bf16.msra.mxu0 %v1932
      %2395 = vmatprep.subr.bf16.mxu0 %v1950
      %2396 = vmatpush1.bf16.msra.mxu0 %v1949
      %2397 = vmatprep.subr.bf16.mxu0 %v1967
      %2398 = vmatpush1.bf16.msra.mxu0 %v1966
      %2399 = vmatprep.subr.bf16.mxu0 %v2130
      %2400 = vmatpush1.bf16.msra.mxu0 %v2127
      %2401 = vmatprep.subr.bf16.mxu0 0
      %2402 = vmatpush1.bf16.msra.mxu0 0
      %2403 = vmatprep.subr.bf16.mxu0 0
      %2404 = vmatpush1.bf16.msra.mxu0 0
      %2405 = vmatprep.subr.bf16.mxu0 0
      %2406 = vmatpush1.bf16.msra.mxu0 0
      %2407 = vmatprep.subr.bf16.mxu0 0
      %2408 = vmatpush1.bf16.msra.mxu0 0
      %2409 = vmatprep.subr.bf16.mxu0 0
      %2410 = vmatpush1.bf16.msra.mxu0 0
      %2411 = vmatprep.subr.bf16.mxu0 0
      %2412 = vmatpush1.bf16.msra.mxu0 0
      %2413 = vmatprep.subr.bf16.mxu0 0
      %2414 = vmatpush1.bf16.msra.mxu0 0
      %2415 = vmatprep.subr.bf16.mxu0 0
      %2416 = vmatpush1.bf16.msra.mxu0 0
      %2417 = vmatprep.subr.bf16.mxu0 0
      %2418 = vmatpush1.bf16.msra.mxu0 0
      %2419 = vmatprep.mubr.bf16.mxu0 0
      %2420 = vmatmul.mubr.bf16.gmra.mrb[0].mxu0 %v992
      %v2421 = vpop.f32.mrb[0].mxu0
      %v2422 = vadd.f32 0.0, %v2421
      %v2423 = vpop.f32.mrb[0].mxu0
      %v2424 = vadd.f32 0.0, %v2423
      %v2425 = vpop.f32.mrb[0].mxu0
      %v2426 = vpop.f32.mrb[0].mxu0
      %2427 = vdwg.mxu0
      %2428 = vmatprep.subr.bf16.mxu0 %v1884
      %2429 = vmatpush1.bf16.msra.mxu0 %v1883
      %2430 = vmatprep.subr.bf16.mxu0 %v1901
      %2431 = vmatpush1.bf16.msra.mxu0 %v1900
      %2432 = vmatprep.subr.bf16.mxu0 %v1918
      %2433 = vmatpush1.bf16.msra.mxu0 %v1917
      %2434 = vmatprep.subr.bf16.mxu0 %v1935
      %2435 = vmatpush1.bf16.msra.mxu0 %v1934
      %2436 = vmatprep.subr.bf16.mxu0 %v1952
      %2437 = vmatpush1.bf16.msra.mxu0 %v1951
      %2438 = vmatprep.subr.bf16.mxu0 %v1969
      %2439 = vmatpush1.bf16.msra.mxu0 %v1968
      %2440 = vmatprep.subr.bf16.mxu0 %v2136
      %2441 = vmatpush1.bf16.msra.mxu0 %v2133
      %2442 = vmatprep.subr.bf16.mxu0 0
      %2443 = vmatpush1.bf16.msra.mxu0 0
      %2444 = vmatprep.subr.bf16.mxu0 0
      %2445 = vmatpush1.bf16.msra.mxu0 0
      %2446 = vmatprep.subr.bf16.mxu0 0
      %2447 = vmatpush1.bf16.msra.mxu0 0
      %2448 = vmatprep.subr.bf16.mxu0 0
      %2449 = vmatpush1.bf16.msra.mxu0 0
      %2450 = vmatprep.subr.bf16.mxu0 0
      %2451 = vmatpush1.bf16.msra.mxu0 0
      %2452 = vmatprep.subr.bf16.mxu0 0
      %2453 = vmatpush1.bf16.msra.mxu0 0
      %2454 = vmatprep.subr.bf16.mxu0 0
      %2455 = vmatpush1.bf16.msra.mxu0 0
      %2456 = vmatprep.subr.bf16.mxu0 0
      %2457 = vmatpush1.bf16.msra.mxu0 0
      %2458 = vmatprep.subr.bf16.mxu0 0
      %2459 = vmatpush1.bf16.msra.mxu0 0
      %2460 = vmatprep.mubr.bf16.mxu0 0
      %2461 = vmatmul.mubr.bf16.gmra.mrb[0].mxu0 %v992
      %v2462 = vpop.f32.mrb[0].mxu0
      %v2463 = vadd.f32 0.0, %v2462
      %v2464 = vpop.f32.mrb[0].mxu0
      %v2465 = vadd.f32 0.0, %v2464
      %v2466 = vpop.f32.mrb[0].mxu0
      %v2467 = vpop.f32.mrb[0].mxu0
      %2468 = vdwg.mxu0
      %2469 = vmatprep.subr.bf16.mxu0 0
      %2470 = vmatpush1.bf16.msra.mxu0 %v1885
      %2471 = vmatprep.subr.bf16.mxu0 0
      %2472 = vmatpush1.bf16.msra.mxu0 %v1902
      %2473 = vmatprep.subr.bf16.mxu0 0
      %2474 = vmatpush1.bf16.msra.mxu0 %v1919
      %2475 = vmatprep.subr.bf16.mxu0 0
      %2476 = vmatpush1.bf16.msra.mxu0 %v1936
      %2477 = vmatprep.subr.bf16.mxu0 0
      %2478 = vmatpush1.bf16.msra.mxu0 %v1953
      %2479 = vmatprep.subr.bf16.mxu0 0
      %2480 = vmatpush1.bf16.msra.mxu0 %v1970
      %2481 = vmatprep.subr.bf16.mxu0 0
      %2482 = vmatpush1.bf16.msra.mxu0 %v2139
      %2483 = vmatprep.subr.bf16.mxu0 0
      %2484 = vmatpush1.bf16.msra.mxu0 0
      %2485 = vmatprep.subr.bf16.mxu0 0
      %2486 = vmatpush1.bf16.msra.mxu0 0
      %2487 = vmatprep.subr.bf16.mxu0 0
      %2488 = vmatpush1.bf16.msra.mxu0 0
      %2489 = vmatprep.subr.bf16.mxu0 0
      %2490 = vmatpush1.bf16.msra.mxu0 0
      %2491 = vmatprep.subr.bf16.mxu0 0
      %2492 = vmatpush1.bf16.msra.mxu0 0
      %2493 = vmatprep.subr.bf16.mxu0 0
      %2494 = vmatpush1.bf16.msra.mxu0 0
      %2495 = vmatprep.subr.bf16.mxu0 0
      %2496 = vmatpush1.bf16.msra.mxu0 0
      %2497 = vmatprep.subr.bf16.mxu0 0
      %2498 = vmatpush1.bf16.msra.mxu0 0
      %2499 = vmatprep.subr.bf16.mxu0 0
      %2500 = vmatpush1.bf16.msra.mxu0 0
      %2501 = vmatprep.mubr.bf16.mxu0 0
      %2502 = vmatmul.mubr.bf16.gmra.mrb[0].mxu0 %v992
      %v2503 = vpop.f32.mrb[0].mxu0
      %v2504 = vadd.f32 0.0, %v2503
      %v2505 = vpop.f32.mrb[0].mxu0
      %v2506 = vpop.f32.mrb[0].mxu0
      %v2507 = vpop.f32.mrb[0].mxu0
      %2508 = vdwg.mxu0
      %v2509 = vmax.f32 %v1081, %v2176
      %v2510 = vmax.f32 %v1083, %v2178
      %v2511 = vmax.f32 %v1122, %v2217
      %v2512 = vmax.f32 %v1124, %v2219
      %v2513 = vmax.f32 %v1163, %v2258
      %v2514 = vmax.f32 %v1165, %v2260
      %v2515 = vmax.f32 %v1204, %v2299
      %v2516 = vmax.f32 %v1206, %v2301
      %v2517 = vmax.f32 %v1245, %v2340
      %v2518 = vmax.f32 %v1247, %v2342
      %v2519 = vmax.f32 %v1286, %v2381
      %v2520 = vmax.f32 %v1288, %v2383
      %v2521 = vmax.f32 %v1327, %v2422
      %v2522 = vmax.f32 %v1329, %v2424
      %v2523 = vmax.f32 %v1368, %v2463
      %v2524 = vmax.f32 %v1370, %v2465
      %v2525 = vmax.f32 %v1409, %v2504
      %v2526 = vld [vmem:[%s301] sm:$0xff]
      %v2527 = vld [vmem:[%s301 + $0x8] sm:$0xff]
      %v2528 = vld [vmem:[%s301 + $0x10] sm:$0xff]
      %v2529 = vld [vmem:[%s301 + $0x18] sm:$0xff]
      %v2530 = vld [vmem:[%s301 + $0x20] sm:$0xff]
      %v2531 = vld [vmem:[%s301 + $0x28] sm:$0xff]
      %v2532 = vld [vmem:[%s301 + $0x30] sm:$0xff]
      %v2533 = vld [vmem:[%s301 + $0x38] sm:$0xff]
      %v2534 = vld [vmem:[%s301 + $0x40] sm:$0xf]
      %v2535 = vld [vmem:[%s301 + $0x44] sm:$0xff]
      %v2536 = vld [vmem:[%s301 + $0x4c] sm:$0xff]
      %v2537 = vld [vmem:[%s301 + $0x54] sm:$0xff]
      %v2538 = vld [vmem:[%s301 + $0x5c] sm:$0xff]
      %v2539 = vld [vmem:[%s301 + $0x64] sm:$0xff]
      %v2540 = vld [vmem:[%s301 + $0x6c] sm:$0xff]
      %v2541 = vld [vmem:[%s301 + $0x74] sm:$0xff]
      %v2542 = vld [vmem:[%s301 + $0x7c] sm:$0xff]
      %v2543 = vld [vmem:[%s301 + $0x84] sm:$0xf]
      %v2544 = vld [vmem:[%s301 + $0x88] sm:$0xff]
      %v2545 = vld [vmem:[%s301 + $0x90] sm:$0xff]
      %v2546 = vld [vmem:[%s301 + $0x98] sm:$0xff]
      %v2547 = vld [vmem:[%s301 + $0xa0] sm:$0xff]
      %v2548 = vld [vmem:[%s301 + $0xa8] sm:$0xff]
      %v2549 = vld [vmem:[%s301 + $0xb0] sm:$0xff]
      %v2550 = vld [vmem:[%s301 + $0xb8] sm:$0xff]
      %v2551 = vld [vmem:[%s301 + $0xc0] sm:$0xff]
      %v2552 = vld [vmem:[%s301 + $0xc8] sm:$0xf]
      %v2553 = vld [vmem:[%s301 + $0xcc] sm:$0xff]
      %v2554 = vld [vmem:[%s301 + $0xd4] sm:$0xff]
      %v2555 = vld [vmem:[%s301 + $0xdc] sm:$0xff]
      %v2556 = vld [vmem:[%s301 + $0xe4] sm:$0xff]
      %v2557 = vld [vmem:[%s301 + $0xec] sm:$0xff]
      %v2558 = vld [vmem:[%s301 + $0xf4] sm:$0xff]
      %v2559 = vld [vmem:[%s301 + $0xfc] sm:$0xff]
      %v2560 = vld [vmem:[%s301 + $0x104] sm:$0xff]
      %v2561 = vld [vmem:[%s301 + $0x10c] sm:$0xf]
      %v2562 = vld [vmem:[%s301 + $0x110] sm:$0xff]
      %v2563 = vld [vmem:[%s301 + $0x118] sm:$0xff]
      %v2564 = vld [vmem:[%s301 + $0x120] sm:$0xff]
      %v2565 = vld [vmem:[%s301 + $0x128] sm:$0xff]
      %v2566 = vld [vmem:[%s301 + $0x130] sm:$0xff]
      %v2567 = vld [vmem:[%s301 + $0x138] sm:$0xff]
      %v2568 = vld [vmem:[%s301 + $0x140] sm:$0xff]
      %v2569 = vld [vmem:[%s301 + $0x148] sm:$0xff]
      %v2570 = vld [vmem:[%s301 + $0x150] sm:$0xf]
      %v2571 = vld [vmem:[%s301 + $0x154] sm:$0xff]
      %v2572 = vld [vmem:[%s301 + $0x15c] sm:$0xff]
      %v2573 = vld [vmem:[%s301 + $0x164] sm:$0xff]
      %v2574 = vld [vmem:[%s301 + $0x16c] sm:$0xff]
      %v2575 = vld [vmem:[%s301 + $0x174] sm:$0xff]
      %v2576 = vld [vmem:[%s301 + $0x17c] sm:$0xff]
      %v2577 = vld [vmem:[%s301 + $0x184] sm:$0xff]
      %v2578 = vld [vmem:[%s301 + $0x18c] sm:$0xff]
      %v2579 = vld [vmem:[%s301 + $0x194] sm:$0xf]
      %v2580 = vld [vmem:[%s301 + $0x198] sm:$0xff]
      %v2581 = vld [vmem:[%s301 + $0x1a0] sm:$0xff]
      %v2582 = vld [vmem:[%s301 + $0x1a8] sm:$0xff]
      %v2583 = vld [vmem:[%s301 + $0x1b0] sm:$0xff]
      %v2584 = vld [vmem:[%s301 + $0x1b8] sm:$0xff]
      %v2585 = vld [vmem:[%s301 + $0x1c0] sm:$0xff]
      %v2586 = vld [vmem:[%s301 + $0x1c8] sm:$0xff]
      %v2587 = vld [vmem:[%s301 + $0x1d0] sm:$0xff]
      %v2588 = vld [vmem:[%s301 + $0x1d8] sm:$0xf]
      %v2589 = vld [vmem:[%s301 + $0x1dc] sm:$0xff]
      %v2590 = vld [vmem:[%s301 + $0x1e4] sm:$0xff]
      %v2591 = vld [vmem:[%s301 + $0x1ec] sm:$0xff]
      %v2592 = vld [vmem:[%s301 + $0x1f4] sm:$0xff]
      %v2593 = vld [vmem:[%s301 + $0x1fc] sm:$0xff]
      %v2594 = vld [vmem:[%s301 + $0x204] sm:$0xff]
      %v2595 = vld [vmem:[%s301 + $0x20c] sm:$0xff]
      %v2596 = vld [vmem:[%s301 + $0x214] sm:$0xff]
      %v2597 = vld [vmem:[%s301 + $0x21c] sm:$0xf]
      %v2598 = vld [vmem:[%s301 + $0x220] sm:$0xff]
      %v2599 = vld [vmem:[%s301 + $0x228] sm:$0xff]
      %v2600 = vld [vmem:[%s301 + $0x230] sm:$0xff]
      %v2601 = vld [vmem:[%s301 + $0x238] sm:$0xff]
      %v2602 = vld [vmem:[%s301 + $0x240] sm:$0xff]
      %v2603 = vld [vmem:[%s301 + $0x248] sm:$0xff]
      %v2604 = vld [vmem:[%s301 + $0x250] sm:$0xff]
      %v2605 = vld [vmem:[%s301 + $0x258] sm:$0xff]
      %v2606 = vld [vmem:[%s301 + $0x260] sm:$0xf]
      %v2607 = vld [vmem:[%s301 + $0x264] sm:$0xff]
      %v2608 = vld [vmem:[%s301 + $0x26c] sm:$0xff]
      %v2609 = vld [vmem:[%s301 + $0x274] sm:$0xff]
      %v2610 = vld [vmem:[%s301 + $0x27c] sm:$0xff]
      %v2611 = vld [vmem:[%s301 + $0x284] sm:$0xff]
      %v2612 = vld [vmem:[%s301 + $0x28c] sm:$0xff]
      %v2613 = vld [vmem:[%s301 + $0x294] sm:$0xff]
      %v2614 = vld [vmem:[%s301 + $0x29c] sm:$0xff]
      %v2615 = vld [vmem:[%s301 + $0x2a4] sm:$0xf]
      %v2616 = vld [vmem:[%s301 + $0x2a8] sm:$0xff]
      %v2617 = vld [vmem:[%s301 + $0x2b0] sm:$0xff]
      %v2618 = vld [vmem:[%s301 + $0x2b8] sm:$0xff]
      %v2619 = vld [vmem:[%s301 + $0x2c0] sm:$0xff]
      %v2620 = vld [vmem:[%s301 + $0x2c8] sm:$0xff]
      %v2621 = vld [vmem:[%s301 + $0x2d0] sm:$0xff]
      %v2622 = vld [vmem:[%s301 + $0x2d8] sm:$0xff]
      %v2623 = vld [vmem:[%s301 + $0x2e0] sm:$0xff]
      %v2624 = vld [vmem:[%s301 + $0x2e8] sm:$0xf]
      %v2625 = vld [vmem:[%s301 + $0x2ec] sm:$0xff]
      %v2626 = vld [vmem:[%s301 + $0x2f4] sm:$0xff]
      %v2627 = vld [vmem:[%s301 + $0x2fc] sm:$0xff]
      %v2628 = vld [vmem:[%s301 + $0x304] sm:$0xff]
      %v2629 = vld [vmem:[%s301 + $0x30c] sm:$0xff]
      %v2630 = vld [vmem:[%s301 + $0x314] sm:$0xff]
      %v2631 = vld [vmem:[%s301 + $0x31c] sm:$0xff]
      %v2632 = vld [vmem:[%s301 + $0x324] sm:$0xff]
      %v2633 = vld [vmem:[%s301 + $0x32c] sm:$0xf]
      %v2634 = vld [vmem:[%s301 + $0x330] sm:$0x33]
      %v2635 = vld [vmem:[%s301 + $0x338] sm:$0x33]
      %v2636 = vld [vmem:[%s301 + $0x340] sm:$0x33]
      %v2637 = vld [vmem:[%s301 + $0x348] sm:$0x33]
      %v2638 = vld [vmem:[%s301 + $0x350] sm:$0x33]
      %v2639 = vld [vmem:[%s301 + $0x358] sm:$0x33]
      %v2640 = vld [vmem:[%s301 + $0x360] sm:$0x33]
      %v2641 = vld [vmem:[%s301 + $0x368] sm:$0x33]
      %v2642 = vld [vmem:[%s301 + $0x370] sm:$0x3]
      %v2760 = vunpack.c.l.b16 %v2526
      %v2761 = vunpack.c.h.b16 %v2526
      %v2762 = vunpack.c.l.b16 %v2527
      %v2763 = vunpack.c.h.b16 %v2527
      %v2764 = vunpack.c.l.b16 %v2528
      %v2765 = vunpack.c.h.b16 %v2528
      %v2766 = vunpack.c.l.b16 %v2529
      %v2767 = vunpack.c.h.b16 %v2529
      %v2768 = vunpack.c.l.b16 %v2530
      %v2769 = vunpack.c.h.b16 %v2530
      %v2770 = vunpack.c.l.b16 %v2531
      %v2771 = vunpack.c.h.b16 %v2531
      %v2772 = vunpack.c.l.b16 %v2532
      %v2773 = vunpack.c.h.b16 %v2532
      %v2774 = vunpack.c.l.b16 %v2533
      %v2775 = vunpack.c.h.b16 %v2533
      %v2776 = vunpack.c.l.b16 %v2534
      %v2777 = vunpack.c.l.b16 %v2535
      %v2778 = vunpack.c.h.b16 %v2535
      %v2779 = vunpack.c.l.b16 %v2536
      %v2780 = vunpack.c.h.b16 %v2536
      %v2781 = vunpack.c.l.b16 %v2537
      %v2782 = vunpack.c.h.b16 %v2537
      %v2783 = vunpack.c.l.b16 %v2538
      %v2784 = vunpack.c.h.b16 %v2538
      %v2785 = vunpack.c.l.b16 %v2539
      %v2786 = vunpack.c.h.b16 %v2539
      %v2787 = vunpack.c.l.b16 %v2540
      %v2788 = vunpack.c.h.b16 %v2540
      %v2789 = vunpack.c.l.b16 %v2541
      %v2790 = vunpack.c.h.b16 %v2541
      %v2791 = vunpack.c.l.b16 %v2542
      %v2792 = vunpack.c.h.b16 %v2542
      %v2793 = vunpack.c.l.b16 %v2543
      %v2794 = vunpack.c.l.b16 %v2544
      %v2795 = vunpack.c.h.b16 %v2544
      %v2796 = vunpack.c.l.b16 %v2545
      %v2797 = vunpack.c.h.b16 %v2545
      %v2798 = vunpack.c.l.b16 %v2546
      %v2799 = vunpack.c.h.b16 %v2546
      %v2800 = vunpack.c.l.b16 %v2547
      %v2801 = vunpack.c.h.b16 %v2547
      %v2802 = vunpack.c.l.b16 %v2548
      %v2803 = vunpack.c.h.b16 %v2548
      %v2804 = vunpack.c.l.b16 %v2549
      %v2805 = vunpack.c.h.b16 %v2549
      %v2806 = vunpack.c.l.b16 %v2550
      %v2807 = vunpack.c.h.b16 %v2550
      %v2808 = vunpack.c.l.b16 %v2551
      %v2809 = vunpack.c.h.b16 %v2551
      %v2810 = vunpack.c.l.b16 %v2552
      %v2811 = vunpack.c.l.b16 %v2553
      %v2812 = vunpack.c.h.b16 %v2553
      %v2813 = vunpack.c.l.b16 %v2554
      %v2814 = vunpack.c.h.b16 %v2554
      %v2815 = vunpack.c.l.b16 %v2555
      %v2816 = vunpack.c.h.b16 %v2555
      %v2817 = vunpack.c.l.b16 %v2556
      %v2818 = vunpack.c.h.b16 %v2556
      %v2819 = vunpack.c.l.b16 %v2557
      %v2820 = vunpack.c.h.b16 %v2557
      %v2821 = vunpack.c.l.b16 %v2558
      %v2822 = vunpack.c.h.b16 %v2558
      %v2823 = vunpack.c.l.b16 %v2559
      %v2824 = vunpack.c.h.b16 %v2559
      %v2825 = vunpack.c.l.b16 %v2560
      %v2826 = vunpack.c.h.b16 %v2560
      %v2827 = vunpack.c.l.b16 %v2561
      %v2828 = vunpack.c.l.b16 %v2562
      %v2829 = vunpack.c.h.b16 %v2562
      %v2830 = vunpack.c.l.b16 %v2563
      %v2831 = vunpack.c.h.b16 %v2563
      %v2832 = vunpack.c.l.b16 %v2564
      %v2833 = vunpack.c.h.b16 %v2564
      %v2834 = vunpack.c.l.b16 %v2565
      %v2835 = vunpack.c.h.b16 %v2565
      %v2836 = vunpack.c.l.b16 %v2566
      %v2837 = vunpack.c.h.b16 %v2566
      %v2838 = vunpack.c.l.b16 %v2567
      %v2839 = vunpack.c.h.b16 %v2567
      %v2840 = vunpack.c.l.b16 %v2568
      %v2841 = vunpack.c.h.b16 %v2568
      %v2842 = vunpack.c.l.b16 %v2569
      %v2843 = vunpack.c.h.b16 %v2569
      %v2844 = vunpack.c.l.b16 %v2570
      %v2845 = vunpack.c.l.b16 %v2571
      %v2846 = vunpack.c.h.b16 %v2571
      %v2847 = vunpack.c.l.b16 %v2572
      %v2848 = vunpack.c.h.b16 %v2572
      %v2849 = vunpack.c.l.b16 %v2573
      %v2850 = vunpack.c.h.b16 %v2573
      %v2851 = vunpack.c.l.b16 %v2574
      %v2852 = vunpack.c.h.b16 %v2574
      %v2853 = vunpack.c.l.b16 %v2575
      %v2854 = vunpack.c.h.b16 %v2575
      %v2855 = vunpack.c.l.b16 %v2576
      %v2856 = vunpack.c.h.b16 %v2576
      %v2857 = vunpack.c.l.b16 %v2577
      %v2858 = vunpack.c.h.b16 %v2577
      %v2859 = vunpack.c.l.b16 %v2578
      %v2860 = vunpack.c.h.b16 %v2578
      %v2861 = vunpack.c.l.b16 %v2579
      %v2862 = vunpack.c.l.b16 %v2580
      %v2863 = vunpack.c.h.b16 %v2580
      %v2864 = vunpack.c.l.b16 %v2581
      %v2865 = vunpack.c.h.b16 %v2581
      %v2866 = vunpack.c.l.b16 %v2582
      %v2867 = vunpack.c.h.b16 %v2582
      %v2868 = vunpack.c.l.b16 %v2583
      %v2869 = vunpack.c.h.b16 %v2583
      %v2870 = vunpack.c.l.b16 %v2584
      %v2871 = vunpack.c.h.b16 %v2584
      %v2872 = vunpack.c.l.b16 %v2585
      %v2873 = vunpack.c.h.b16 %v2585
      %v2874 = vunpack.c.l.b16 %v2586
      %v2875 = vunpack.c.h.b16 %v2586
      %v2876 = vunpack.c.l.b16 %v2587
      %v2877 = vunpack.c.h.b16 %v2587
      %v2878 = vunpack.c.l.b16 %v2588
      %v2879 = vunpack.c.l.b16 %v2589
      %v2880 = vunpack.c.h.b16 %v2589
      %v2881 = vunpack.c.l.b16 %v2590
      %v2882 = vunpack.c.h.b16 %v2590
      %v2883 = vunpack.c.l.b16 %v2591
      %v2884 = vunpack.c.h.b16 %v2591
      %v2885 = vunpack.c.l.b16 %v2592
      %v2886 = vunpack.c.h.b16 %v2592
      %v2887 = vunpack.c.l.b16 %v2593
      %v2888 = vunpack.c.h.b16 %v2593
      %v2889 = vunpack.c.l.b16 %v2594
      %v2890 = vunpack.c.h.b16 %v2594
      %v2891 = vunpack.c.l.b16 %v2595
      %v2892 = vunpack.c.h.b16 %v2595
      %v2893 = vunpack.c.l.b16 %v2596
      %v2894 = vunpack.c.h.b16 %v2596
      %v2895 = vunpack.c.l.b16 %v2597
      %v2896 = vunpack.c.l.b16 %v2598
      %v2897 = vunpack.c.h.b16 %v2598
      %v2898 = vunpack.c.l.b16 %v2599
      %v2899 = vunpack.c.h.b16 %v2599
      %v2900 = vunpack.c.l.b16 %v2600
      %v2901 = vunpack.c.h.b16 %v2600
      %v2902 = vunpack.c.l.b16 %v2601
      %v2903 = vunpack.c.h.b16 %v2601
      %v2904 = vunpack.c.l.b16 %v2602
      %v2905 = vunpack.c.h.b16 %v2602
      %v2906 = vunpack.c.l.b16 %v2603
      %v2907 = vunpack.c.h.b16 %v2603
      %v2908 = vunpack.c.l.b16 %v2604
      %v2909 = vunpack.c.h.b16 %v2604
      %v2910 = vunpack.c.l.b16 %v2605
      %v2911 = vunpack.c.h.b16 %v2605
      %v2912 = vunpack.c.l.b16 %v2606
      %v2913 = vunpack.c.l.b16 %v2607
      %v2914 = vunpack.c.h.b16 %v2607
      %v2915 = vunpack.c.l.b16 %v2608
      %v2916 = vunpack.c.h.b16 %v2608
      %v2917 = vunpack.c.l.b16 %v2609
      %v2918 = vunpack.c.h.b16 %v2609
      %v2919 = vunpack.c.l.b16 %v2610
      %v2920 = vunpack.c.h.b16 %v2610
      %v2921 = vunpack.c.l.b16 %v2611
      %v2922 = vunpack.c.h.b16 %v2611
      %v2923 = vunpack.c.l.b16 %v2612
      %v2924 = vunpack.c.h.b16 %v2612
      %v2925 = vunpack.c.l.b16 %v2613
      %v2926 = vunpack.c.h.b16 %v2613
      %v2927 = vunpack.c.l.b16 %v2614
      %v2928 = vunpack.c.h.b16 %v2614
      %v2929 = vunpack.c.l.b16 %v2615
      %v2930 = vunpack.c.l.b16 %v2616
      %v2931 = vunpack.c.h.b16 %v2616
      %v2932 = vunpack.c.l.b16 %v2617
      %v2933 = vunpack.c.h.b16 %v2617
      %v2934 = vunpack.c.l.b16 %v2618
      %v2935 = vunpack.c.h.b16 %v2618
      %v2936 = vunpack.c.l.b16 %v2619
      %v2937 = vunpack.c.h.b16 %v2619
      %v2938 = vunpack.c.l.b16 %v2620
      %v2939 = vunpack.c.h.b16 %v2620
      %v2940 = vunpack.c.l.b16 %v2621
      %v2941 = vunpack.c.h.b16 %v2621
      %v2942 = vunpack.c.l.b16 %v2622
      %v2943 = vunpack.c.h.b16 %v2622
      %v2944 = vunpack.c.l.b16 %v2623
      %v2945 = vunpack.c.h.b16 %v2623
      %v2946 = vunpack.c.l.b16 %v2624
      %v2947 = vunpack.c.l.b16 %v2625
      %v2948 = vunpack.c.h.b16 %v2625
      %v2949 = vunpack.c.l.b16 %v2626
      %v2950 = vunpack.c.h.b16 %v2626
      %v2951 = vunpack.c.l.b16 %v2627
      %v2952 = vunpack.c.h.b16 %v2627
      %v2953 = vunpack.c.l.b16 %v2628
      %v2954 = vunpack.c.h.b16 %v2628
      %v2955 = vunpack.c.l.b16 %v2629
      %v2956 = vunpack.c.h.b16 %v2629
      %v2957 = vunpack.c.l.b16 %v2630
      %v2958 = vunpack.c.h.b16 %v2630
      %v2959 = vunpack.c.l.b16 %v2631
      %v2960 = vunpack.c.h.b16 %v2631
      %v2961 = vunpack.c.l.b16 %v2632
      %v2962 = vunpack.c.h.b16 %v2632
      %v2963 = vunpack.c.l.b16 %v2633
      %v2964 = vunpack.c.l.b16 %v2634
      %v2965 = vunpack.c.h.b16 %v2634
      %v2966 = vunpack.c.l.b16 %v2635
      %v2967 = vunpack.c.h.b16 %v2635
      %v2968 = vunpack.c.l.b16 %v2636
      %v2969 = vunpack.c.h.b16 %v2636
      %v2970 = vunpack.c.l.b16 %v2637
      %v2971 = vunpack.c.h.b16 %v2637
      %v2972 = vunpack.c.l.b16 %v2638
      %v2973 = vunpack.c.h.b16 %v2638
      %v2974 = vunpack.c.l.b16 %v2639
      %v2975 = vunpack.c.h.b16 %v2639
      %v2976 = vunpack.c.l.b16 %v2640
      %v2977 = vunpack.c.h.b16 %v2640
      %v2978 = vunpack.c.l.b16 %v2641
      %v2979 = vunpack.c.h.b16 %v2641
      %v2980 = vunpack.c.l.b16 %v2642
      %v2981 = vpack.c.b16 %v2777, %v2760
      %v2982 = vpack.c.b16 %v2778, %v2761
      %v2983 = vpack.c.b16 %v2779, %v2762
      %v2984 = vpack.c.b16 %v2780, %v2763
      %v2985 = vpack.c.b16 %v2781, %v2764
      %v2986 = vpack.c.b16 %v2782, %v2765
      %v2987 = vpack.c.b16 %v2783, %v2766
      %v2988 = vpack.c.b16 %v2784, %v2767
      %v2989 = vpack.c.b16 %v2785, %v2768
      %v2990 = vpack.c.b16 %v2786, %v2769
      %v2991 = vpack.c.b16 %v2787, %v2770
      %v2992 = vpack.c.b16 %v2788, %v2771
      %v2993 = vpack.c.b16 %v2789, %v2772
      %v2994 = vpack.c.b16 %v2790, %v2773
      %v2995 = vpack.c.b16 %v2791, %v2774
      %v2996 = vpack.c.b16 %v2792, %v2775
      %v2997 = vpack.c.b16 %v2793, %v2776
      %v2998 = vpack.c.b16 %v2811, %v2794
      %v2999 = vpack.c.b16 %v2812, %v2795
      %v3000 = vpack.c.b16 %v2813, %v2796
      %v3001 = vpack.c.b16 %v2814, %v2797
      %v3002 = vpack.c.b16 %v2815, %v2798
      %v3003 = vpack.c.b16 %v2816, %v2799
      %v3004 = vpack.c.b16 %v2817, %v2800
      %v3005 = vpack.c.b16 %v2818, %v2801
      %v3006 = vpack.c.b16 %v2819, %v2802
      %v3007 = vpack.c.b16 %v2820, %v2803
      %v3008 = vpack.c.b16 %v2821, %v2804
      %v3009 = vpack.c.b16 %v2822, %v2805
      %v3010 = vpack.c.b16 %v2823, %v2806
      %v3011 = vpack.c.b16 %v2824, %v2807
      %v3012 = vpack.c.b16 %v2825, %v2808
      %v3013 = vpack.c.b16 %v2826, %v2809
      %v3014 = vpack.c.b16 %v2827, %v2810
      %v3015 = vpack.c.b16 %v2845, %v2828
      %v3016 = vpack.c.b16 %v2846, %v2829
      %v3017 = vpack.c.b16 %v2847, %v2830
      %v3018 = vpack.c.b16 %v2848, %v2831
      %v3019 = vpack.c.b16 %v2849, %v2832
      %v3020 = vpack.c.b16 %v2850, %v2833
      %v3021 = vpack.c.b16 %v2851, %v2834
      %v3022 = vpack.c.b16 %v2852, %v2835
      %v3023 = vpack.c.b16 %v2853, %v2836
      %v3024 = vpack.c.b16 %v2854, %v2837
      %v3025 = vpack.c.b16 %v2855, %v2838
      %v3026 = vpack.c.b16 %v2856, %v2839
      %v3027 = vpack.c.b16 %v2857, %v2840
      %v3028 = vpack.c.b16 %v2858, %v2841
      %v3029 = vpack.c.b16 %v2859, %v2842
      %v3030 = vpack.c.b16 %v2860, %v2843
      %v3031 = vpack.c.b16 %v2861, %v2844
      %v3032 = vpack.c.b16 %v2879, %v2862
      %v3033 = vpack.c.b16 %v2880, %v2863
      %v3034 = vpack.c.b16 %v2881, %v2864
      %v3035 = vpack.c.b16 %v2882, %v2865
      %v3036 = vpack.c.b16 %v2883, %v2866
      %v3037 = vpack.c.b16 %v2884, %v2867
      %v3038 = vpack.c.b16 %v2885, %v2868
      %v3039 = vpack.c.b16 %v2886, %v2869
      %v3040 = vpack.c.b16 %v2887, %v2870
      %v3041 = vpack.c.b16 %v2888, %v2871
      %v3042 = vpack.c.b16 %v2889, %v2872
      %v3043 = vpack.c.b16 %v2890, %v2873
      %v3044 = vpack.c.b16 %v2891, %v2874
      %v3045 = vpack.c.b16 %v2892, %v2875
      %v3046 = vpack.c.b16 %v2893, %v2876
      %v3047 = vpack.c.b16 %v2894, %v2877
      %v3048 = vpack.c.b16 %v2895, %v2878
      %v3049 = vpack.c.b16 %v2913, %v2896
      %v3050 = vpack.c.b16 %v2914, %v2897
      %v3051 = vpack.c.b16 %v2915, %v2898
      %v3052 = vpack.c.b16 %v2916, %v2899
      %v3053 = vpack.c.b16 %v2917, %v2900
      %v3054 = vpack.c.b16 %v2918, %v2901
      %v3055 = vpack.c.b16 %v2919, %v2902
      %v3056 = vpack.c.b16 %v2920, %v2903
      %v3057 = vpack.c.b16 %v2921, %v2904
      %v3058 = vpack.c.b16 %v2922, %v2905
      %v3059 = vpack.c.b16 %v2923, %v2906
      %v3060 = vpack.c.b16 %v2924, %v2907
      %v3061 = vpack.c.b16 %v2925, %v2908
      %v3062 = vpack.c.b16 %v2926, %v2909
      %v3063 = vpack.c.b16 %v2927, %v2910
      %v3064 = vpack.c.b16 %v2928, %v2911
      %v3065 = vpack.c.b16 %v2929, %v2912
      %v3066 = vpack.c.b16 %v2947, %v2930
      %v3067 = vpack.c.b16 %v2948, %v2931
      %v3068 = vpack.c.b16 %v2949, %v2932
      %v3069 = vpack.c.b16 %v2950, %v2933
      %v3070 = vpack.c.b16 %v2951, %v2934
      %v3071 = vpack.c.b16 %v2952, %v2935
      %v3072 = vpack.c.b16 %v2953, %v2936
      %v3073 = vpack.c.b16 %v2954, %v2937
      %v3074 = vpack.c.b16 %v2955, %v2938
      %v3075 = vpack.c.b16 %v2956, %v2939
      %v3076 = vpack.c.b16 %v2957, %v2940
      %v3077 = vpack.c.b16 %v2958, %v2941
      %v3078 = vpack.c.b16 %v2959, %v2942
      %v3079 = vpack.c.b16 %v2960, %v2943
      %v3080 = vpack.c.b16 %v2961, %v2944
      %v3081 = vpack.c.b16 %v2962, %v2945
      %v3082 = vpack.c.b16 %v2963, %v2946
      %v3083 = vpack.c.b16 %v2964, %v2964
      %v3084 = vpack.c.b16 %v2965, %v2965
      %v3085 = vpack.c.b16 %v2966, %v2966
      %v3086 = vpack.c.b16 %v2967, %v2967
      %v3087 = vpack.c.b16 %v2968, %v2968
      %v3088 = vpack.c.b16 %v2969, %v2969
      %v3089 = vpack.c.b16 %v2970, %v2970
      %v3090 = vpack.c.b16 %v2971, %v2971
      %v3091 = vpack.c.b16 %v2972, %v2972
      %v3092 = vpack.c.b16 %v2973, %v2973
      %v3093 = vpack.c.b16 %v2974, %v2974
      %v3094 = vpack.c.b16 %v2975, %v2975
      %v3095 = vpack.c.b16 %v2976, %v2976
      %v3096 = vpack.c.b16 %v2977, %v2977
      %v3097 = vpack.c.b16 %v2978, %v2978
      %v3098 = vpack.c.b16 %v2979, %v2979
      %v3099 = vpack.c.b16 %v2980, %v2980
      %v3203 = vsel %vm994, %v3083, 0
      %v3206 = vsel %vm994, %v3084, 0
      %v3209 = vsel %vm994, %v3085, 0
      %v3212 = vsel %vm994, %v3086, 0
      %v3215 = vsel %vm994, %v3087, 0
      %v3218 = vsel %vm994, %v3088, 0
      %v3221 = vsel %vm994, %v3089, 0
      %v3224 = vsel %vm994, %v3090, 0
      %v3227 = vsel %vm994, %v3091, 0
      %v3230 = vsel %vm994, %v3092, 0
      %v3233 = vsel %vm994, %v3093, 0
      %v3236 = vsel %vm994, %v3094, 0
      %v3239 = vsel %vm994, %v3095, 0
      %v3242 = vsel %vm994, %v3096, 0
      %v3245 = vsel %vm994, %v3097, 0
      %v3248 = vsel %vm994, %v3098, 0
      %v3251 = vsel %vm994, %v3099, 0
      %3253 = vmatprep.subr.bf16.mxu0 %v2982
      %3254 = vmatpush1.bf16.msra.mxu0 %v2981
      %3255 = vmatprep.subr.bf16.mxu0 %v2999
      %3256 = vmatpush1.bf16.msra.mxu0 %v2998
      %3257 = vmatprep.subr.bf16.mxu0 %v3016
      %3258 = vmatpush1.bf16.msra.mxu0 %v3015
      %3259 = vmatprep.subr.bf16.mxu0 %v3033
      %3260 = vmatpush1.bf16.msra.mxu0 %v3032
      %3261 = vmatprep.subr.bf16.mxu0 %v3050
      %3262 = vmatpush1.bf16.msra.mxu0 %v3049
      %3263 = vmatprep.subr.bf16.mxu0 %v3067
      %3264 = vmatpush1.bf16.msra.mxu0 %v3066
      %3265 = vmatprep.subr.bf16.mxu0 %v3206
      %3266 = vmatpush1.bf16.msra.mxu0 %v3203
      %3267 = vmatprep.subr.bf16.mxu0 0
      %3268 = vmatpush1.bf16.msra.mxu0 0
      %3269 = vmatprep.subr.bf16.mxu0 0
      %3270 = vmatpush1.bf16.msra.mxu0 0
      %3271 = vmatprep.subr.bf16.mxu0 0
      %3272 = vmatpush1.bf16.msra.mxu0 0
      %3273 = vmatprep.subr.bf16.mxu0 0
      %3274 = vmatpush1.bf16.msra.mxu0 0
      %3275 = vmatprep.subr.bf16.mxu0 0
      %3276 = vmatpush1.bf16.msra.mxu0 0
      %3277 = vmatprep.subr.bf16.mxu0 0
      %3278 = vmatpush1.bf16.msra.mxu0 0
      %3279 = vmatprep.subr.bf16.mxu0 0
      %3280 = vmatpush1.bf16.msra.mxu0 0
      %3281 = vmatprep.subr.bf16.mxu0 0
      %3282 = vmatpush1.bf16.msra.mxu0 0
      %3283 = vmatprep.subr.bf16.mxu0 0
      %3284 = vmatpush1.bf16.msra.mxu0 0
      %3285 = vmatprep.mubr.bf16.mxu0 0
      %3286 = vmatmul.mubr.bf16.gmra.mrb[0].mxu0 %v992
      %v3287 = vpop.f32.mrb[0].mxu0
      %v3288 = vadd.f32 0.0, %v3287
      %v3289 = vpop.f32.mrb[0].mxu0
      %v3290 = vadd.f32 0.0, %v3289
      %v3291 = vpop.f32.mrb[0].mxu0
      %v3292 = vpop.f32.mrb[0].mxu0
      %3293 = vdwg.mxu0
      %3294 = vmatprep.subr.bf16.mxu0 %v2984
      %3295 = vmatpush1.bf16.msra.mxu0 %v2983
      %3296 = vmatprep.subr.bf16.mxu0 %v3001
      %3297 = vmatpush1.bf16.msra.mxu0 %v3000
      %3298 = vmatprep.subr.bf16.mxu0 %v3018
      %3299 = vmatpush1.bf16.msra.mxu0 %v3017
      %3300 = vmatprep.subr.bf16.mxu0 %v3035
      %3301 = vmatpush1.bf16.msra.mxu0 %v3034
      %3302 = vmatprep.subr.bf16.mxu0 %v3052
      %3303 = vmatpush1.bf16.msra.mxu0 %v3051
      %3304 = vmatprep.subr.bf16.mxu0 %v3069
      %3305 = vmatpush1.bf16.msra.mxu0 %v3068
      %3306 = vmatprep.subr.bf16.mxu0 %v3212
      %3307 = vmatpush1.bf16.msra.mxu0 %v3209
      %3308 = vmatprep.subr.bf16.mxu0 0
      %3309 = vmatpush1.bf16.msra.mxu0 0
      %3310 = vmatprep.subr.bf16.mxu0 0
      %3311 = vmatpush1.bf16.msra.mxu0 0
      %3312 = vmatprep.subr.bf16.mxu0 0
      %3313 = vmatpush1.bf16.msra.mxu0 0
      %3314 = vmatprep.subr.bf16.mxu0 0
      %3315 = vmatpush1.bf16.msra.mxu0 0
      %3316 = vmatprep.subr.bf16.mxu0 0
      %3317 = vmatpush1.bf16.msra.mxu0 0
      %3318 = vmatprep.subr.bf16.mxu0 0
      %3319 = vmatpush1.bf16.msra.mxu0 0
      %3320 = vmatprep.subr.bf16.mxu0 0
      %3321 = vmatpush1.bf16.msra.mxu0 0
      %3322 = vmatprep.subr.bf16.mxu0 0
      %3323 = vmatpush1.bf16.msra.mxu0 0
      %3324 = vmatprep.subr.bf16.mxu0 0
      %3325 = vmatpush1.bf16.msra.mxu0 0
      %3326 = vmatprep.mubr.bf16.mxu0 0
      %3327 = vmatmul.mubr.bf16.gmra.mrb[0].mxu0 %v992
      %v3328 = vpop.f32.mrb[0].mxu0
      %v3329 = vadd.f32 0.0, %v3328
      %v3330 = vpop.f32.mrb[0].mxu0
      %v3331 = vadd.f32 0.0, %v3330
      %v3332 = vpop.f32.mrb[0].mxu0
      %v3333 = vpop.f32.mrb[0].mxu0
      %3334 = vdwg.mxu0
      %3335 = vmatprep.subr.bf16.mxu0 %v2986
      %3336 = vmatpush1.bf16.msra.mxu0 %v2985
      %3337 = vmatprep.subr.bf16.mxu0 %v3003
      %3338 = vmatpush1.bf16.msra.mxu0 %v3002
      %3339 = vmatprep.subr.bf16.mxu0 %v3020
      %3340 = vmatpush1.bf16.msra.mxu0 %v3019
      %3341 = vmatprep.subr.bf16.mxu0 %v3037
      %3342 = vmatpush1.bf16.msra.mxu0 %v3036
      %3343 = vmatprep.subr.bf16.mxu0 %v3054
      %3344 = vmatpush1.bf16.msra.mxu0 %v3053
      %3345 = vmatprep.subr.bf16.mxu0 %v3071
      %3346 = vmatpush1.bf16.msra.mxu0 %v3070
      %3347 = vmatprep.subr.bf16.mxu0 %v3218
      %3348 = vmatpush1.bf16.msra.mxu0 %v3215
      %3349 = vmatprep.subr.bf16.mxu0 0
      %3350 = vmatpush1.bf16.msra.mxu0 0
      %3351 = vmatprep.subr.bf16.mxu0 0
      %3352 = vmatpush1.bf16.msra.mxu0 0
      %3353 = vmatprep.subr.bf16.mxu0 0
      %3354 = vmatpush1.bf16.msra.mxu0 0
      %3355 = vmatprep.subr.bf16.mxu0 0
      %3356 = vmatpush1.bf16.msra.mxu0 0
      %3357 = vmatprep.subr.bf16.mxu0 0
      %3358 = vmatpush1.bf16.msra.mxu0 0
      %3359 = vmatprep.subr.bf16.mxu0 0
      %3360 = vmatpush1.bf16.msra.mxu0 0
      %3361 = vmatprep.subr.bf16.mxu0 0
      %3362 = vmatpush1.bf16.msra.mxu0 0
      %3363 = vmatprep.subr.bf16.mxu0 0
      %3364 = vmatpush1.bf16.msra.mxu0 0
      %3365 = vmatprep.subr.bf16.mxu0 0
      %3366 = vmatpush1.bf16.msra.mxu0 0
      %3367 = vmatprep.mubr.bf16.mxu0 0
      %3368 = vmatmul.mubr.bf16.gmra.mrb[0].mxu0 %v992
      %v3369 = vpop.f32.mrb[0].mxu0
      %v3370 = vadd.f32 0.0, %v3369
      %v3371 = vpop.f32.mrb[0].mxu0
      %v3372 = vadd.f32 0.0, %v3371
      %v3373 = vpop.f32.mrb[0].mxu0
      %v3374 = vpop.f32.mrb[0].mxu0
      %3375 = vdwg.mxu0
      %3376 = vmatprep.subr.bf16.mxu0 %v2988
      %3377 = vmatpush1.bf16.msra.mxu0 %v2987
      %3378 = vmatprep.subr.bf16.mxu0 %v3005
      %3379 = vmatpush1.bf16.msra.mxu0 %v3004
      %3380 = vmatprep.subr.bf16.mxu0 %v3022
      %3381 = vmatpush1.bf16.msra.mxu0 %v3021
      %3382 = vmatprep.subr.bf16.mxu0 %v3039
      %3383 = vmatpush1.bf16.msra.mxu0 %v3038
      %3384 = vmatprep.subr.bf16.mxu0 %v3056
      %3385 = vmatpush1.bf16.msra.mxu0 %v3055
      %3386 = vmatprep.subr.bf16.mxu0 %v3073
      %3387 = vmatpush1.bf16.msra.mxu0 %v3072
      %3388 = vmatprep.subr.bf16.mxu0 %v3224
      %3389 = vmatpush1.bf16.msra.mxu0 %v3221
      %3390 = vmatprep.subr.bf16.mxu0 0
      %3391 = vmatpush1.bf16.msra.mxu0 0
      %3392 = vmatprep.subr.bf16.mxu0 0
      %3393 = vmatpush1.bf16.msra.mxu0 0
      %3394 = vmatprep.subr.bf16.mxu0 0
      %3395 = vmatpush1.bf16.msra.mxu0 0
      %3396 = vmatprep.subr.bf16.mxu0 0
      %3397 = vmatpush1.bf16.msra.mxu0 0
      %3398 = vmatprep.subr.bf16.mxu0 0
      %3399 = vmatpush1.bf16.msra.mxu0 0
      %3400 = vmatprep.subr.bf16.mxu0 0
      %3401 = vmatpush1.bf16.msra.mxu0 0
      %3402 = vmatprep.subr.bf16.mxu0 0
      %3403 = vmatpush1.bf16.msra.mxu0 0
      %3404 = vmatprep.subr.bf16.mxu0 0
      %3405 = vmatpush1.bf16.msra.mxu0 0
      %3406 = vmatprep.subr.bf16.mxu0 0
      %3407 = vmatpush1.bf16.msra.mxu0 0
      %3408 = vmatprep.mubr.bf16.mxu0 0
      %3409 = vmatmul.mubr.bf16.gmra.mrb[0].mxu0 %v992
      %v3410 = vpop.f32.mrb[0].mxu0
      %v3411 = vadd.f32 0.0, %v3410
      %v3412 = vpop.f32.mrb[0].mxu0
      %v3413 = vadd.f32 0.0, %v3412
      %v3414 = vpop.f32.mrb[0].mxu0
      %v3415 = vpop.f32.mrb[0].mxu0
      %3416 = vdwg.mxu0
      %3417 = vmatprep.subr.bf16.mxu0 %v2990
      %3418 = vmatpush1.bf16.msra.mxu0 %v2989
      %3419 = vmatprep.subr.bf16.mxu0 %v3007
      %3420 = vmatpush1.bf16.msra.mxu0 %v3006
      %3421 = vmatprep.subr.bf16.mxu0 %v3024
      %3422 = vmatpush1.bf16.msra.mxu0 %v3023
      %3423 = vmatprep.subr.bf16.mxu0 %v3041
      %3424 = vmatpush1.bf16.msra.mxu0 %v3040
      %3425 = vmatprep.subr.bf16.mxu0 %v3058
      %3426 = vmatpush1.bf16.msra.mxu0 %v3057
      %3427 = vmatprep.subr.bf16.mxu0 %v3075
      %3428 = vmatpush1.bf16.msra.mxu0 %v3074
      %3429 = vmatprep.subr.bf16.mxu0 %v3230
      %3430 = vmatpush1.bf16.msra.mxu0 %v3227
      %3431 = vmatprep.subr.bf16.mxu0 0
      %3432 = vmatpush1.bf16.msra.mxu0 0
      %3433 = vmatprep.subr.bf16.mxu0 0
      %3434 = vmatpush1.bf16.msra.mxu0 0
      %3435 = vmatprep.subr.bf16.mxu0 0
      %3436 = vmatpush1.bf16.msra.mxu0 0
      %3437 = vmatprep.subr.bf16.mxu0 0
      %3438 = vmatpush1.bf16.msra.mxu0 0
      %3439 = vmatprep.subr.bf16.mxu0 0
      %3440 = vmatpush1.bf16.msra.mxu0 0
      %3441 = vmatprep.subr.bf16.mxu0 0
      %3442 = vmatpush1.bf16.msra.mxu0 0
      %3443 = vmatprep.subr.bf16.mxu0 0
      %3444 = vmatpush1.bf16.msra.mxu0 0
      %3445 = vmatprep.subr.bf16.mxu0 0
      %3446 = vmatpush1.bf16.msra.mxu0 0
      %3447 = vmatprep.subr.bf16.mxu0 0
      %3448 = vmatpush1.bf16.msra.mxu0 0
      %3449 = vmatprep.mubr.bf16.mxu0 0
      %3450 = vmatmul.mubr.bf16.gmra.mrb[0].mxu0 %v992
      %v3451 = vpop.f32.mrb[0].mxu0
      %v3452 = vadd.f32 0.0, %v3451
      %v3453 = vpop.f32.mrb[0].mxu0
      %v3454 = vadd.f32 0.0, %v3453
      %v3455 = vpop.f32.mrb[0].mxu0
      %v3456 = vpop.f32.mrb[0].mxu0
      %3457 = vdwg.mxu0
      %3458 = vmatprep.subr.bf16.mxu0 %v2992
      %3459 = vmatpush1.bf16.msra.mxu0 %v2991
      %3460 = vmatprep.subr.bf16.mxu0 %v3009
      %3461 = vmatpush1.bf16.msra.mxu0 %v3008
      %3462 = vmatprep.subr.bf16.mxu0 %v3026
      %3463 = vmatpush1.bf16.msra.mxu0 %v3025
      %3464 = vmatprep.subr.bf16.mxu0 %v3043
      %3465 = vmatpush1.bf16.msra.mxu0 %v3042
      %3466 = vmatprep.subr.bf16.mxu0 %v3060
      %3467 = vmatpush1.bf16.msra.mxu0 %v3059
      %3468 = vmatprep.subr.bf16.mxu0 %v3077
      %3469 = vmatpush1.bf16.msra.mxu0 %v3076
      %3470 = vmatprep.subr.bf16.mxu0 %v3236
      %3471 = vmatpush1.bf16.msra.mxu0 %v3233
      %3472 = vmatprep.subr.bf16.mxu0 0
      %3473 = vmatpush1.bf16.msra.mxu0 0
      %3474 = vmatprep.subr.bf16.mxu0 0
      %3475 = vmatpush1.bf16.msra.mxu0 0
      %3476 = vmatprep.subr.bf16.mxu0 0
      %3477 = vmatpush1.bf16.msra.mxu0 0
      %3478 = vmatprep.subr.bf16.mxu0 0
      %3479 = vmatpush1.bf16.msra.mxu0 0
      %3480 = vmatprep.subr.bf16.mxu0 0
      %3481 = vmatpush1.bf16.msra.mxu0 0
      %3482 = vmatprep.subr.bf16.mxu0 0
      %3483 = vmatpush1.bf16.msra.mxu0 0
      %3484 = vmatprep.subr.bf16.mxu0 0
      %3485 = vmatpush1.bf16.msra.mxu0 0
      %3486 = vmatprep.subr.bf16.mxu0 0
      %3487 = vmatpush1.bf16.msra.mxu0 0
      %3488 = vmatprep.subr.bf16.mxu0 0
      %3489 = vmatpush1.bf16.msra.mxu0 0
      %3490 = vmatprep.mubr.bf16.mxu0 0
      %3491 = vmatmul.mubr.bf16.gmra.mrb[0].mxu0 %v992
      %v3492 = vpop.f32.mrb[0].mxu0
      %v3493 = vadd.f32 0.0, %v3492
      %v3494 = vpop.f32.mrb[0].mxu0
      %v3495 = vadd.f32 0.0, %v3494
      %v3496 = vpop.f32.mrb[0].mxu0
      %v3497 = vpop.f32.mrb[0].mxu0
      %3498 = vdwg.mxu0
      %3499 = vmatprep.subr.bf16.mxu0 %v2994
      %3500 = vmatpush1.bf16.msra.mxu0 %v2993
      %3501 = vmatprep.subr.bf16.mxu0 %v3011
      %3502 = vmatpush1.bf16.msra.mxu0 %v3010
      %3503 = vmatprep.subr.bf16.mxu0 %v3028
      %3504 = vmatpush1.bf16.msra.mxu0 %v3027
      %3505 = vmatprep.subr.bf16.mxu0 %v3045
      %3506 = vmatpush1.bf16.msra.mxu0 %v3044
      %3507 = vmatprep.subr.bf16.mxu0 %v3062
      %3508 = vmatpush1.bf16.msra.mxu0 %v3061
      %3509 = vmatprep.subr.bf16.mxu0 %v3079
      %3510 = vmatpush1.bf16.msra.mxu0 %v3078
      %3511 = vmatprep.subr.bf16.mxu0 %v3242
      %3512 = vmatpush1.bf16.msra.mxu0 %v3239
      %3513 = vmatprep.subr.bf16.mxu0 0
      %3514 = vmatpush1.bf16.msra.mxu0 0
      %3515 = vmatprep.subr.bf16.mxu0 0
      %3516 = vmatpush1.bf16.msra.mxu0 0
      %3517 = vmatprep.subr.bf16.mxu0 0
      %3518 = vmatpush1.bf16.msra.mxu0 0
      %3519 = vmatprep.subr.bf16.mxu0 0
      %3520 = vmatpush1.bf16.msra.mxu0 0
      %3521 = vmatprep.subr.bf16.mxu0 0
      %3522 = vmatpush1.bf16.msra.mxu0 0
      %3523 = vmatprep.subr.bf16.mxu0 0
      %3524 = vmatpush1.bf16.msra.mxu0 0
      %3525 = vmatprep.subr.bf16.mxu0 0
      %3526 = vmatpush1.bf16.msra.mxu0 0
      %3527 = vmatprep.subr.bf16.mxu0 0
      %3528 = vmatpush1.bf16.msra.mxu0 0
      %3529 = vmatprep.subr.bf16.mxu0 0
      %3530 = vmatpush1.bf16.msra.mxu0 0
      %3531 = vmatprep.mubr.bf16.mxu0 0
      %3532 = vmatmul.mubr.bf16.gmra.mrb[0].mxu0 %v992
      %v3533 = vpop.f32.mrb[0].mxu0
      %v3534 = vadd.f32 0.0, %v3533
      %v3535 = vpop.f32.mrb[0].mxu0
      %v3536 = vadd.f32 0.0, %v3535
      %v3537 = vpop.f32.mrb[0].mxu0
      %v3538 = vpop.f32.mrb[0].mxu0
      %3539 = vdwg.mxu0
      %3540 = vmatprep.subr.bf16.mxu0 %v2996
      %3541 = vmatpush1.bf16.msra.mxu0 %v2995
      %3542 = vmatprep.subr.bf16.mxu0 %v3013
      %3543 = vmatpush1.bf16.msra.mxu0 %v3012
      %3544 = vmatprep.subr.bf16.mxu0 %v3030
      %3545 = vmatpush1.bf16.msra.mxu0 %v3029
      %3546 = vmatprep.subr.bf16.mxu0 %v3047
      %3547 = vmatpush1.bf16.msra.mxu0 %v3046
      %3548 = vmatprep.subr.bf16.mxu0 %v3064
      %3549 = vmatpush1.bf16.msra.mxu0 %v3063
      %3550 = vmatprep.subr.bf16.mxu0 %v3081
      %3551 = vmatpush1.bf16.msra.mxu0 %v3080
      %3552 = vmatprep.subr.bf16.mxu0 %v3248
      %3553 = vmatpush1.bf16.msra.mxu0 %v3245
      %3554 = vmatprep.subr.bf16.mxu0 0
      %3555 = vmatpush1.bf16.msra.mxu0 0
      %3556 = vmatprep.subr.bf16.mxu0 0
      %3557 = vmatpush1.bf16.msra.mxu0 0
      %3558 = vmatprep.subr.bf16.mxu0 0
      %3559 = vmatpush1.bf16.msra.mxu0 0
      %3560 = vmatprep.subr.bf16.mxu0 0
      %3561 = vmatpush1.bf16.msra.mxu0 0
      %3562 = vmatprep.subr.bf16.mxu0 0
      %3563 = vmatpush1.bf16.msra.mxu0 0
      %3564 = vmatprep.subr.bf16.mxu0 0
      %3565 = vmatpush1.bf16.msra.mxu0 0
      %3566 = vmatprep.subr.bf16.mxu0 0
      %3567 = vmatpush1.bf16.msra.mxu0 0
      %3568 = vmatprep.subr.bf16.mxu0 0
      %3569 = vmatpush1.bf16.msra.mxu0 0
      %3570 = vmatprep.subr.bf16.mxu0 0
      %3571 = vmatpush1.bf16.msra.mxu0 0
      %3572 = vmatprep.mubr.bf16.mxu0 0
      %3573 = vmatmul.mubr.bf16.gmra.mrb[0].mxu0 %v992
      %v3574 = vpop.f32.mrb[0].mxu0
      %v3575 = vadd.f32 0.0, %v3574
      %v3576 = vpop.f32.mrb[0].mxu0
      %v3577 = vadd.f32 0.0, %v3576
      %v3578 = vpop.f32.mrb[0].mxu0
      %v3579 = vpop.f32.mrb[0].mxu0
      %3580 = vdwg.mxu0
      %3581 = vmatprep.subr.bf16.mxu0 0
      %3582 = vmatpush1.bf16.msra.mxu0 %v2997
      %3583 = vmatprep.subr.bf16.mxu0 0
      %3584 = vmatpush1.bf16.msra.mxu0 %v3014
      %3585 = vmatprep.subr.bf16.mxu0 0
      %3586 = vmatpush1.bf16.msra.mxu0 %v3031
      %3587 = vmatprep.subr.bf16.mxu0 0
      %3588 = vmatpush1.bf16.msra.mxu0 %v3048
      %3589 = vmatprep.subr.bf16.mxu0 0
      %3590 = vmatpush1.bf16.msra.mxu0 %v3065
      %3591 = vmatprep.subr.bf16.mxu0 0
      %3592 = vmatpush1.bf16.msra.mxu0 %v3082
      %3593 = vmatprep.subr.bf16.mxu0 0
      %3594 = vmatpush1.bf16.msra.mxu0 %v3251
      %3595 = vmatprep.subr.bf16.mxu0 0
      %3596 = vmatpush1.bf16.msra.mxu0 0
      %3597 = vmatprep.subr.bf16.mxu0 0
      %3598 = vmatpush1.bf16.msra.mxu0 0
      %3599 = vmatprep.subr.bf16.mxu0 0
      %3600 = vmatpush1.bf16.msra.mxu0 0
      %3601 = vmatprep.subr.bf16.mxu0 0
      %3602 = vmatpush1.bf16.msra.mxu0 0
      %3603 = vmatprep.subr.bf16.mxu0 0
      %3604 = vmatpush1.bf16.msra.mxu0 0
      %3605 = vmatprep.subr.bf16.mxu0 0
      %3606 = vmatpush1.bf16.msra.mxu0 0
      %3607 = vmatprep.subr.bf16.mxu0 0
      %3608 = vmatpush1.bf16.msra.mxu0 0
      %3609 = vmatprep.subr.bf16.mxu0 0
      %3610 = vmatpush1.bf16.msra.mxu0 0
      %3611 = vmatprep.subr.bf16.mxu0 0
      %3612 = vmatpush1.bf16.msra.mxu0 0
      %3613 = vmatprep.mubr.bf16.mxu0 0
      %3614 = vmatmul.mubr.bf16.gmra.mrb[0].mxu0 %v992
      %v3615 = vpop.f32.mrb[0].mxu0
      %v3616 = vadd.f32 0.0, %v3615
      %v3617 = vpop.f32.mrb[0].mxu0
      %v3618 = vpop.f32.mrb[0].mxu0
      %v3619 = vpop.f32.mrb[0].mxu0
      %3620 = vdwg.mxu0
      %v3621 = vmax.f32 %v2509, %v3288
      %v3622 = vmax.f32 %v2510, %v3290
      %v3623 = vmax.f32 %v2511, %v3329
      %v3624 = vmax.f32 %v2512, %v3331
      %v3625 = vmax.f32 %v2513, %v3370
      %v3626 = vmax.f32 %v2514, %v3372
      %v3627 = vmax.f32 %v2515, %v3411
      %v3628 = vmax.f32 %v2516, %v3413
      %v3629 = vmax.f32 %v2517, %v3452
      %v3630 = vmax.f32 %v2518, %v3454
      %v3631 = vmax.f32 %v2519, %v3493
      %v3632 = vmax.f32 %v2520, %v3495
      %v3633 = vmax.f32 %v2521, %v3534
      %v3634 = vmax.f32 %v2522, %v3536
      %v3635 = vmax.f32 %v2523, %v3575
      %v3636 = vmax.f32 %v2524, %v3577
      %v3637 = vmax.f32 %v2525, %v3616
      %v3638 = vld [vmem:[%s306] sm:$0xff]
      %v3639 = vld [vmem:[%s306 + $0x8] sm:$0xff]
      %v3640 = vld [vmem:[%s306 + $0x10] sm:$0xff]
      %v3641 = vld [vmem:[%s306 + $0x18] sm:$0xff]
      %v3642 = vld [vmem:[%s306 + $0x20] sm:$0xff]
      %v3643 = vld [vmem:[%s306 + $0x28] sm:$0xff]
      %v3644 = vld [vmem:[%s306 + $0x30] sm:$0xff]
      %v3645 = vld [vmem:[%s306 + $0x38] sm:$0xff]
      %v3646 = vld [vmem:[%s306 + $0x40] sm:$0xf]
      %v3647 = vld [vmem:[%s306 + $0x44] sm:$0xff]
      %v3648 = vld [vmem:[%s306 + $0x4c] sm:$0xff]
      %v3649 = vld [vmem:[%s306 + $0x54] sm:$0xff]
      %v3650 = vld [vmem:[%s306 + $0x5c] sm:$0xff]
      %v3651 = vld [vmem:[%s306 + $0x64] sm:$0xff]
      %v3652 = vld [vmem:[%s306 + $0x6c] sm:$0xff]
      %v3653 = vld [vmem:[%s306 + $0x74] sm:$0xff]
      %v3654 = vld [vmem:[%s306 + $0x7c] sm:$0xff]
      %v3655 = vld [vmem:[%s306 + $0x84] sm:$0xf]
      %v3656 = vld [vmem:[%s306 + $0x88] sm:$0xff]
      %v3657 = vld [vmem:[%s306 + $0x90] sm:$0xff]
      %v3658 = vld [vmem:[%s306 + $0x98] sm:$0xff]
      %v3659 = vld [vmem:[%s306 + $0xa0] sm:$0xff]
      %v3660 = vld [vmem:[%s306 + $0xa8] sm:$0xff]
      %v3661 = vld [vmem:[%s306 + $0xb0] sm:$0xff]
      %v3662 = vld [vmem:[%s306 + $0xb8] sm:$0xff]
      %v3663 = vld [vmem:[%s306 + $0xc0] sm:$0xff]
      %v3664 = vld [vmem:[%s306 + $0xc8] sm:$0xf]
      %v3665 = vld [vmem:[%s306 + $0xcc] sm:$0xff]
      %v3666 = vld [vmem:[%s306 + $0xd4] sm:$0xff]
      %v3667 = vld [vmem:[%s306 + $0xdc] sm:$0xff]
      %v3668 = vld [vmem:[%s306 + $0xe4] sm:$0xff]
      %v3669 = vld [vmem:[%s306 + $0xec] sm:$0xff]
      %v3670 = vld [vmem:[%s306 + $0xf4] sm:$0xff]
      %v3671 = vld [vmem:[%s306 + $0xfc] sm:$0xff]
      %v3672 = vld [vmem:[%s306 + $0x104] sm:$0xff]
      %v3673 = vld [vmem:[%s306 + $0x10c] sm:$0xf]
      %v3674 = vld [vmem:[%s306 + $0x110] sm:$0xff]
      %v3675 = vld [vmem:[%s306 + $0x118] sm:$0xff]
      %v3676 = vld [vmem:[%s306 + $0x120] sm:$0xff]
      %v3677 = vld [vmem:[%s306 + $0x128] sm:$0xff]
      %v3678 = vld [vmem:[%s306 + $0x130] sm:$0xff]
      %v3679 = vld [vmem:[%s306 + $0x138] sm:$0xff]
      %v3680 = vld [vmem:[%s306 + $0x140] sm:$0xff]
      %v3681 = vld [vmem:[%s306 + $0x148] sm:$0xff]
      %v3682 = vld [vmem:[%s306 + $0x150] sm:$0xf]
      %v3683 = vld [vmem:[%s306 + $0x154] sm:$0xff]
      %v3684 = vld [vmem:[%s306 + $0x15c] sm:$0xff]
      %v3685 = vld [vmem:[%s306 + $0x164] sm:$0xff]
      %v3686 = vld [vmem:[%s306 + $0x16c] sm:$0xff]
      %v3687 = vld [vmem:[%s306 + $0x174] sm:$0xff]
      %v3688 = vld [vmem:[%s306 + $0x17c] sm:$0xff]
      %v3689 = vld [vmem:[%s306 + $0x184] sm:$0xff]
      %v3690 = vld [vmem:[%s306 + $0x18c] sm:$0xff]
      %v3691 = vld [vmem:[%s306 + $0x194] sm:$0xf]
      %v3692 = vld [vmem:[%s306 + $0x198] sm:$0xff]
      %v3693 = vld [vmem:[%s306 + $0x1a0] sm:$0xff]
      %v3694 = vld [vmem:[%s306 + $0x1a8] sm:$0xff]
      %v3695 = vld [vmem:[%s306 + $0x1b0] sm:$0xff]
      %v3696 = vld [vmem:[%s306 + $0x1b8] sm:$0xff]
      %v3697 = vld [vmem:[%s306 + $0x1c0] sm:$0xff]
      %v3698 = vld [vmem:[%s306 + $0x1c8] sm:$0xff]
      %v3699 = vld [vmem:[%s306 + $0x1d0] sm:$0xff]
      %v3700 = vld [vmem:[%s306 + $0x1d8] sm:$0xf]
      %v3701 = vld [vmem:[%s306 + $0x1dc] sm:$0xff]
      %v3702 = vld [vmem:[%s306 + $0x1e4] sm:$0xff]
      %v3703 = vld [vmem:[%s306 + $0x1ec] sm:$0xff]
      %v3704 = vld [vmem:[%s306 + $0x1f4] sm:$0xff]
      %v3705 = vld [vmem:[%s306 + $0x1fc] sm:$0xff]
      %v3706 = vld [vmem:[%s306 + $0x204] sm:$0xff]
      %v3707 = vld [vmem:[%s306 + $0x20c] sm:$0xff]
      %v3708 = vld [vmem:[%s306 + $0x214] sm:$0xff]
      %v3709 = vld [vmem:[%s306 + $0x21c] sm:$0xf]
      %v3710 = vld [vmem:[%s306 + $0x220] sm:$0xff]
      %v3711 = vld [vmem:[%s306 + $0x228] sm:$0xff]
      %v3712 = vld [vmem:[%s306 + $0x230] sm:$0xff]
      %v3713 = vld [vmem:[%s306 + $0x238] sm:$0xff]
      %v3714 = vld [vmem:[%s306 + $0x240] sm:$0xff]
      %v3715 = vld [vmem:[%s306 + $0x248] sm:$0xff]
      %v3716 = vld [vmem:[%s306 + $0x250] sm:$0xff]
      %v3717 = vld [vmem:[%s306 + $0x258] sm:$0xff]
      %v3718 = vld [vmem:[%s306 + $0x260] sm:$0xf]
      %v3719 = vld [vmem:[%s306 + $0x264] sm:$0xff]
      %v3720 = vld [vmem:[%s306 + $0x26c] sm:$0xff]
      %v3721 = vld [vmem:[%s306 + $0x274] sm:$0xff]
      %v3722 = vld [vmem:[%s306 + $0x27c] sm:$0xff]
      %v3723 = vld [vmem:[%s306 + $0x284] sm:$0xff]
      %v3724 = vld [vmem:[%s306 + $0x28c] sm:$0xff]
      %v3725 = vld [vmem:[%s306 + $0x294] sm:$0xff]
      %v3726 = vld [vmem:[%s306 + $0x29c] sm:$0xff]
      %v3727 = vld [vmem:[%s306 + $0x2a4] sm:$0xf]
      %v3728 = vld [vmem:[%s306 + $0x2a8] sm:$0xff]
      %v3729 = vld [vmem:[%s306 + $0x2b0] sm:$0xff]
      %v3730 = vld [vmem:[%s306 + $0x2b8] sm:$0xff]
      %v3731 = vld [vmem:[%s306 + $0x2c0] sm:$0xff]
      %v3732 = vld [vmem:[%s306 + $0x2c8] sm:$0xff]
      %v3733 = vld [vmem:[%s306 + $0x2d0] sm:$0xff]
      %v3734 = vld [vmem:[%s306 + $0x2d8] sm:$0xff]
      %v3735 = vld [vmem:[%s306 + $0x2e0] sm:$0xff]
      %v3736 = vld [vmem:[%s306 + $0x2e8] sm:$0xf]
      %v3737 = vld [vmem:[%s306 + $0x2ec] sm:$0xff]
      %v3738 = vld [vmem:[%s306 + $0x2f4] sm:$0xff]
      %v3739 = vld [vmem:[%s306 + $0x2fc] sm:$0xff]
      %v3740 = vld [vmem:[%s306 + $0x304] sm:$0xff]
      %v3741 = vld [vmem:[%s306 + $0x30c] sm:$0xff]
      %v3742 = vld [vmem:[%s306 + $0x314] sm:$0xff]
      %v3743 = vld [vmem:[%s306 + $0x31c] sm:$0xff]
      %v3744 = vld [vmem:[%s306 + $0x324] sm:$0xff]
      %v3745 = vld [vmem:[%s306 + $0x32c] sm:$0xf]
      %v3746 = vld [vmem:[%s306 + $0x330] sm:$0x33]
      %v3747 = vld [vmem:[%s306 + $0x338] sm:$0x33]
      %v3748 = vld [vmem:[%s306 + $0x340] sm:$0x33]
      %v3749 = vld [vmem:[%s306 + $0x348] sm:$0x33]
      %v3750 = vld [vmem:[%s306 + $0x350] sm:$0x33]
      %v3751 = vld [vmem:[%s306 + $0x358] sm:$0x33]
      %v3752 = vld [vmem:[%s306 + $0x360] sm:$0x33]
      %v3753 = vld [vmem:[%s306 + $0x368] sm:$0x33]
      %v3754 = vld [vmem:[%s306 + $0x370] sm:$0x3]
      %v3872 = vunpack.c.l.b16 %v3638
      %v3873 = vunpack.c.h.b16 %v3638
      %v3874 = vunpack.c.l.b16 %v3639
      %v3875 = vunpack.c.h.b16 %v3639
      %v3876 = vunpack.c.l.b16 %v3640
      %v3877 = vunpack.c.h.b16 %v3640
      %v3878 = vunpack.c.l.b16 %v3641
      %v3879 = vunpack.c.h.b16 %v3641
      %v3880 = vunpack.c.l.b16 %v3642
      %v3881 = vunpack.c.h.b16 %v3642
      %v3882 = vunpack.c.l.b16 %v3643
      %v3883 = vunpack.c.h.b16 %v3643
      %v3884 = vunpack.c.l.b16 %v3644
      %v3885 = vunpack.c.h.b16 %v3644
      %v3886 = vunpack.c.l.b16 %v3645
      %v3887 = vunpack.c.h.b16 %v3645
      %v3888 = vunpack.c.l.b16 %v3646
      %v3889 = vunpack.c.l.b16 %v3647
      %v3890 = vunpack.c.h.b16 %v3647
      %v3891 = vunpack.c.l.b16 %v3648
      %v3892 = vunpack.c.h.b16 %v3648
      %v3893 = vunpack.c.l.b16 %v3649
      %v3894 = vunpack.c.h.b16 %v3649
      %v3895 = vunpack.c.l.b16 %v3650
      %v3896 = vunpack.c.h.b16 %v3650
      %v3897 = vunpack.c.l.b16 %v3651
      %v3898 = vunpack.c.h.b16 %v3651
      %v3899 = vunpack.c.l.b16 %v3652
      %v3900 = vunpack.c.h.b16 %v3652
      %v3901 = vunpack.c.l.b16 %v3653
      %v3902 = vunpack.c.h.b16 %v3653
      %v3903 = vunpack.c.l.b16 %v3654
      %v3904 = vunpack.c.h.b16 %v3654
      %v3905 = vunpack.c.l.b16 %v3655
      %v3906 = vunpack.c.l.b16 %v3656
      %v3907 = vunpack.c.h.b16 %v3656
      %v3908 = vunpack.c.l.b16 %v3657
      %v3909 = vunpack.c.h.b16 %v3657
      %v3910 = vunpack.c.l.b16 %v3658
      %v3911 = vunpack.c.h.b16 %v3658
      %v3912 = vunpack.c.l.b16 %v3659
      %v3913 = vunpack.c.h.b16 %v3659
      %v3914 = vunpack.c.l.b16 %v3660
      %v3915 = vunpack.c.h.b16 %v3660
      %v3916 = vunpack.c.l.b16 %v3661
      %v3917 = vunpack.c.h.b16 %v3661
      %v3918 = vunpack.c.l.b16 %v3662
      %v3919 = vunpack.c.h.b16 %v3662
      %v3920 = vunpack.c.l.b16 %v3663
      %v3921 = vunpack.c.h.b16 %v3663
      %v3922 = vunpack.c.l.b16 %v3664
      %v3923 = vunpack.c.l.b16 %v3665
      %v3924 = vunpack.c.h.b16 %v3665
      %v3925 = vunpack.c.l.b16 %v3666
      %v3926 = vunpack.c.h.b16 %v3666
      %v3927 = vunpack.c.l.b16 %v3667
      %v3928 = vunpack.c.h.b16 %v3667
      %v3929 = vunpack.c.l.b16 %v3668
      %v3930 = vunpack.c.h.b16 %v3668
      %v3931 = vunpack.c.l.b16 %v3669
      %v3932 = vunpack.c.h.b16 %v3669
      %v3933 = vunpack.c.l.b16 %v3670
      %v3934 = vunpack.c.h.b16 %v3670
      %v3935 = vunpack.c.l.b16 %v3671
      %v3936 = vunpack.c.h.b16 %v3671
      %v3937 = vunpack.c.l.b16 %v3672
      %v3938 = vunpack.c.h.b16 %v3672
      %v3939 = vunpack.c.l.b16 %v3673
      %v3940 = vunpack.c.l.b16 %v3674
      %v3941 = vunpack.c.h.b16 %v3674
      %v3942 = vunpack.c.l.b16 %v3675
      %v3943 = vunpack.c.h.b16 %v3675
      %v3944 = vunpack.c.l.b16 %v3676
      %v3945 = vunpack.c.h.b16 %v3676
      %v3946 = vunpack.c.l.b16 %v3677
      %v3947 = vunpack.c.h.b16 %v3677
      %v3948 = vunpack.c.l.b16 %v3678
      %v3949 = vunpack.c.h.b16 %v3678
      %v3950 = vunpack.c.l.b16 %v3679
      %v3951 = vunpack.c.h.b16 %v3679
      %v3952 = vunpack.c.l.b16 %v3680
      %v3953 = vunpack.c.h.b16 %v3680
      %v3954 = vunpack.c.l.b16 %v3681
      %v3955 = vunpack.c.h.b16 %v3681
      %v3956 = vunpack.c.l.b16 %v3682
      %v3957 = vunpack.c.l.b16 %v3683
      %v3958 = vunpack.c.h.b16 %v3683
      %v3959 = vunpack.c.l.b16 %v3684
      %v3960 = vunpack.c.h.b16 %v3684
      %v3961 = vunpack.c.l.b16 %v3685
      %v3962 = vunpack.c.h.b16 %v3685
      %v3963 = vunpack.c.l.b16 %v3686
      %v3964 = vunpack.c.h.b16 %v3686
      %v3965 = vunpack.c.l.b16 %v3687
      %v3966 = vunpack.c.h.b16 %v3687
      %v3967 = vunpack.c.l.b16 %v3688
      %v3968 = vunpack.c.h.b16 %v3688
      %v3969 = vunpack.c.l.b16 %v3689
      %v3970 = vunpack.c.h.b16 %v3689
      %v3971 = vunpack.c.l.b16 %v3690
      %v3972 = vunpack.c.h.b16 %v3690
      %v3973 = vunpack.c.l.b16 %v3691
      %v3974 = vunpack.c.l.b16 %v3692
      %v3975 = vunpack.c.h.b16 %v3692
      %v3976 = vunpack.c.l.b16 %v3693
      %v3977 = vunpack.c.h.b16 %v3693
      %v3978 = vunpack.c.l.b16 %v3694
      %v3979 = vunpack.c.h.b16 %v3694
      %v3980 = vunpack.c.l.b16 %v3695
      %v3981 = vunpack.c.h.b16 %v3695
      %v3982 = vunpack.c.l.b16 %v3696
      %v3983 = vunpack.c.h.b16 %v3696
      %v3984 = vunpack.c.l.b16 %v3697
      %v3985 = vunpack.c.h.b16 %v3697
      %v3986 = vunpack.c.l.b16 %v3698
      %v3987 = vunpack.c.h.b16 %v3698
      %v3988 = vunpack.c.l.b16 %v3699
      %v3989 = vunpack.c.h.b16 %v3699
      %v3990 = vunpack.c.l.b16 %v3700
      %v3991 = vunpack.c.l.b16 %v3701
      %v3992 = vunpack.c.h.b16 %v3701
      %v3993 = vunpack.c.l.b16 %v3702
      %v3994 = vunpack.c.h.b16 %v3702
      %v3995 = vunpack.c.l.b16 %v3703
      %v3996 = vunpack.c.h.b16 %v3703
      %v3997 = vunpack.c.l.b16 %v3704
      %v3998 = vunpack.c.h.b16 %v3704
      %v3999 = vunpack.c.l.b16 %v3705
      %v4000 = vunpack.c.h.b16 %v3705
      %v4001 = vunpack.c.l.b16 %v3706
      %v4002 = vunpack.c.h.b16 %v3706
      %v4003 = vunpack.c.l.b16 %v3707
      %v4004 = vunpack.c.h.b16 %v3707
      %v4005 = vunpack.c.l.b16 %v3708
      %v4006 = vunpack.c.h.b16 %v3708
      %v4007 = vunpack.c.l.b16 %v3709
      %v4008 = vunpack.c.l.b16 %v3710
      %v4009 = vunpack.c.h.b16 %v3710
      %v4010 = vunpack.c.l.b16 %v3711
      %v4011 = vunpack.c.h.b16 %v3711
      %v4012 = vunpack.c.l.b16 %v3712
      %v4013 = vunpack.c.h.b16 %v3712
      %v4014 = vunpack.c.l.b16 %v3713
      %v4015 = vunpack.c.h.b16 %v3713
      %v4016 = vunpack.c.l.b16 %v3714
      %v4017 = vunpack.c.h.b16 %v3714
      %v4018 = vunpack.c.l.b16 %v3715
      %v4019 = vunpack.c.h.b16 %v3715
      %v4020 = vunpack.c.l.b16 %v3716
      %v4021 = vunpack.c.h.b16 %v3716
      %v4022 = vunpack.c.l.b16 %v3717
      %v4023 = vunpack.c.h.b16 %v3717
      %v4024 = vunpack.c.l.b16 %v3718
      %v4025 = vunpack.c.l.b16 %v3719
      %v4026 = vunpack.c.h.b16 %v3719
      %v4027 = vunpack.c.l.b16 %v3720
      %v4028 = vunpack.c.h.b16 %v3720
      %v4029 = vunpack.c.l.b16 %v3721
      %v4030 = vunpack.c.h.b16 %v3721
      %v4031 = vunpack.c.l.b16 %v3722
      %v4032 = vunpack.c.h.b16 %v3722
      %v4033 = vunpack.c.l.b16 %v3723
      %v4034 = vunpack.c.h.b16 %v3723
      %v4035 = vunpack.c.l.b16 %v3724
      %v4036 = vunpack.c.h.b16 %v3724
      %v4037 = vunpack.c.l.b16 %v3725
      %v4038 = vunpack.c.h.b16 %v3725
      %v4039 = vunpack.c.l.b16 %v3726
      %v4040 = vunpack.c.h.b16 %v3726
      %v4041 = vunpack.c.l.b16 %v3727
      %v4042 = vunpack.c.l.b16 %v3728
      %v4043 = vunpack.c.h.b16 %v3728
      %v4044 = vunpack.c.l.b16 %v3729
      %v4045 = vunpack.c.h.b16 %v3729
      %v4046 = vunpack.c.l.b16 %v3730
      %v4047 = vunpack.c.h.b16 %v3730
      %v4048 = vunpack.c.l.b16 %v3731
      %v4049 = vunpack.c.h.b16 %v3731
      %v4050 = vunpack.c.l.b16 %v3732
      %v4051 = vunpack.c.h.b16 %v3732
      %v4052 = vunpack.c.l.b16 %v3733
      %v4053 = vunpack.c.h.b16 %v3733
      %v4054 = vunpack.c.l.b16 %v3734
      %v4055 = vunpack.c.h.b16 %v3734
      %v4056 = vunpack.c.l.b16 %v3735
      %v4057 = vunpack.c.h.b16 %v3735
      %v4058 = vunpack.c.l.b16 %v3736
      %v4059 = vunpack.c.l.b16 %v3737
      %v4060 = vunpack.c.h.b16 %v3737
      %v4061 = vunpack.c.l.b16 %v3738
      %v4062 = vunpack.c.h.b16 %v3738
      %v4063 = vunpack.c.l.b16 %v3739
      %v4064 = vunpack.c.h.b16 %v3739
      %v4065 = vunpack.c.l.b16 %v3740
      %v4066 = vunpack.c.h.b16 %v3740
      %v4067 = vunpack.c.l.b16 %v3741
      %v4068 = vunpack.c.h.b16 %v3741
      %v4069 = vunpack.c.l.b16 %v3742
      %v4070 = vunpack.c.h.b16 %v3742
      %v4071 = vunpack.c.l.b16 %v3743
      %v4072 = vunpack.c.h.b16 %v3743
      %v4073 = vunpack.c.l.b16 %v3744
      %v4074 = vunpack.c.h.b16 %v3744
      %v4075 = vunpack.c.l.b16 %v3745
      %v4076 = vunpack.c.l.b16 %v3746
      %v4077 = vunpack.c.h.b16 %v3746
      %v4078 = vunpack.c.l.b16 %v3747
      %v4079 = vunpack.c.h.b16 %v3747
      %v4080 = vunpack.c.l.b16 %v3748
      %v4081 = vunpack.c.h.b16 %v3748
      %v4082 = vunpack.c.l.b16 %v3749
      %v4083 = vunpack.c.h.b16 %v3749
      %v4084 = vunpack.c.l.b16 %v3750
      %v4085 = vunpack.c.h.b16 %v3750
      %v4086 = vunpack.c.l.b16 %v3751
      %v4087 = vunpack.c.h.b16 %v3751
      %v4088 = vunpack.c.l.b16 %v3752
      %v4089 = vunpack.c.h.b16 %v3752
      %v4090 = vunpack.c.l.b16 %v3753
      %v4091 = vunpack.c.h.b16 %v3753
      %v4092 = vunpack.c.l.b16 %v3754
      %v4093 = vpack.c.b16 %v3889, %v3872
      %v4094 = vpack.c.b16 %v3890, %v3873
      %v4095 = vpack.c.b16 %v3891, %v3874
      %v4096 = vpack.c.b16 %v3892, %v3875
      %v4097 = vpack.c.b16 %v3893, %v3876
      %v4098 = vpack.c.b16 %v3894, %v3877
      %v4099 = vpack.c.b16 %v3895, %v3878
      %v4100 = vpack.c.b16 %v3896, %v3879
      %v4101 = vpack.c.b16 %v3897, %v3880
      %v4102 = vpack.c.b16 %v3898, %v3881
      %v4103 = vpack.c.b16 %v3899, %v3882
      %v4104 = vpack.c.b16 %v3900, %v3883
      %v4105 = vpack.c.b16 %v3901, %v3884
      %v4106 = vpack.c.b16 %v3902, %v3885
      %v4107 = vpack.c.b16 %v3903, %v3886
      %v4108 = vpack.c.b16 %v3904, %v3887
      %v4109 = vpack.c.b16 %v3905, %v3888
      %v4110 = vpack.c.b16 %v3923, %v3906
      %v4111 = vpack.c.b16 %v3924, %v3907
      %v4112 = vpack.c.b16 %v3925, %v3908
      %v4113 = vpack.c.b16 %v3926, %v3909
      %v4114 = vpack.c.b16 %v3927, %v3910
      %v4115 = vpack.c.b16 %v3928, %v3911
      %v4116 = vpack.c.b16 %v3929, %v3912
      %v4117 = vpack.c.b16 %v3930, %v3913
      %v4118 = vpack.c.b16 %v3931, %v3914
      %v4119 = vpack.c.b16 %v3932, %v3915
      %v4120 = vpack.c.b16 %v3933, %v3916
      %v4121 = vpack.c.b16 %v3934, %v3917
      %v4122 = vpack.c.b16 %v3935, %v3918
      %v4123 = vpack.c.b16 %v3936, %v3919
      %v4124 = vpack.c.b16 %v3937, %v3920
      %v4125 = vpack.c.b16 %v3938, %v3921
      %v4126 = vpack.c.b16 %v3939, %v3922
      %v4127 = vpack.c.b16 %v3957, %v3940
      %v4128 = vpack.c.b16 %v3958, %v3941
      %v4129 = vpack.c.b16 %v3959, %v3942
      %v4130 = vpack.c.b16 %v3960, %v3943
      %v4131 = vpack.c.b16 %v3961, %v3944
      %v4132 = vpack.c.b16 %v3962, %v3945
      %v4133 = vpack.c.b16 %v3963, %v3946
      %v4134 = vpack.c.b16 %v3964, %v3947
      %v4135 = vpack.c.b16 %v3965, %v3948
      %v4136 = vpack.c.b16 %v3966, %v3949
      %v4137 = vpack.c.b16 %v3967, %v3950
      %v4138 = vpack.c.b16 %v3968, %v3951
      %v4139 = vpack.c.b16 %v3969, %v3952
      %v4140 = vpack.c.b16 %v3970, %v3953
      %v4141 = vpack.c.b16 %v3971, %v3954
      %v4142 = vpack.c.b16 %v3972, %v3955
      %v4143 = vpack.c.b16 %v3973, %v3956
      %v4144 = vpack.c.b16 %v3991, %v3974
      %v4145 = vpack.c.b16 %v3992, %v3975
      %v4146 = vpack.c.b16 %v3993, %v3976
      %v4147 = vpack.c.b16 %v3994, %v3977
      %v4148 = vpack.c.b16 %v3995, %v3978
      %v4149 = vpack.c.b16 %v3996, %v3979
      %v4150 = vpack.c.b16 %v3997, %v3980
      %v4151 = vpack.c.b16 %v3998, %v3981
      %v4152 = vpack.c.b16 %v3999, %v3982
      %v4153 = vpack.c.b16 %v4000, %v3983
      %v4154 = vpack.c.b16 %v4001, %v3984
      %v4155 = vpack.c.b16 %v4002, %v3985
      %v4156 = vpack.c.b16 %v4003, %v3986
      %v4157 = vpack.c.b16 %v4004, %v3987
      %v4158 = vpack.c.b16 %v4005, %v3988
      %v4159 = vpack.c.b16 %v4006, %v3989
      %v4160 = vpack.c.b16 %v4007, %v3990
      %v4161 = vpack.c.b16 %v4025, %v4008
      %v4162 = vpack.c.b16 %v4026, %v4009
      %v4163 = vpack.c.b16 %v4027, %v4010
      %v4164 = vpack.c.b16 %v4028, %v4011
      %v4165 = vpack.c.b16 %v4029, %v4012
      %v4166 = vpack.c.b16 %v4030, %v4013
      %v4167 = vpack.c.b16 %v4031, %v4014
      %v4168 = vpack.c.b16 %v4032, %v4015
      %v4169 = vpack.c.b16 %v4033, %v4016
      %v4170 = vpack.c.b16 %v4034, %v4017
      %v4171 = vpack.c.b16 %v4035, %v4018
      %v4172 = vpack.c.b16 %v4036, %v4019
      %v4173 = vpack.c.b16 %v4037, %v4020
      %v4174 = vpack.c.b16 %v4038, %v4021
      %v4175 = vpack.c.b16 %v4039, %v4022
      %v4176 = vpack.c.b16 %v4040, %v4023
      %v4177 = vpack.c.b16 %v4041, %v4024
      %v4178 = vpack.c.b16 %v4059, %v4042
      %v4179 = vpack.c.b16 %v4060, %v4043
      %v4180 = vpack.c.b16 %v4061, %v4044
      %v4181 = vpack.c.b16 %v4062, %v4045
      %v4182 = vpack.c.b16 %v4063, %v4046
      %v4183 = vpack.c.b16 %v4064, %v4047
      %v4184 = vpack.c.b16 %v4065, %v4048
      %v4185 = vpack.c.b16 %v4066, %v4049
      %v4186 = vpack.c.b16 %v4067, %v4050
      %v4187 = vpack.c.b16 %v4068, %v4051
      %v4188 = vpack.c.b16 %v4069, %v4052
      %v4189 = vpack.c.b16 %v4070, %v4053
      %v4190 = vpack.c.b16 %v4071, %v4054
      %v4191 = vpack.c.b16 %v4072, %v4055
      %v4192 = vpack.c.b16 %v4073, %v4056
      %v4193 = vpack.c.b16 %v4074, %v4057
      %v4194 = vpack.c.b16 %v4075, %v4058
      %v4195 = vpack.c.b16 %v4076, %v4076
      %v4196 = vpack.c.b16 %v4077, %v4077
      %v4197 = vpack.c.b16 %v4078, %v4078
      %v4198 = vpack.c.b16 %v4079, %v4079
      %v4199 = vpack.c.b16 %v4080, %v4080
      %v4200 = vpack.c.b16 %v4081, %v4081
      %v4201 = vpack.c.b16 %v4082, %v4082
      %v4202 = vpack.c.b16 %v4083, %v4083
      %v4203 = vpack.c.b16 %v4084, %v4084
      %v4204 = vpack.c.b16 %v4085, %v4085
      %v4205 = vpack.c.b16 %v4086, %v4086
      %v4206 = vpack.c.b16 %v4087, %v4087
      %v4207 = vpack.c.b16 %v4088, %v4088
      %v4208 = vpack.c.b16 %v4089, %v4089
      %v4209 = vpack.c.b16 %v4090, %v4090
      %v4210 = vpack.c.b16 %v4091, %v4091
      %v4211 = vpack.c.b16 %v4092, %v4092
      %v4315 = vsel %vm994, %v4195, 0
      %v4318 = vsel %vm994, %v4196, 0
      %v4321 = vsel %vm994, %v4197, 0
      %v4324 = vsel %vm994, %v4198, 0
      %v4327 = vsel %vm994, %v4199, 0
      %v4330 = vsel %vm994, %v4200, 0
      %v4333 = vsel %vm994, %v4201, 0
      %v4336 = vsel %vm994, %v4202, 0
      %v4339 = vsel %vm994, %v4203, 0
      %v4342 = vsel %vm994, %v4204, 0
      %v4345 = vsel %vm994, %v4205, 0
      %v4348 = vsel %vm994, %v4206, 0
      %v4351 = vsel %vm994, %v4207, 0
      %v4354 = vsel %vm994, %v4208, 0
      %v4357 = vsel %vm994, %v4209, 0
      %v4360 = vsel %vm994, %v4210, 0
      %v4363 = vsel %vm994, %v4211, 0
      %4365 = vmatprep.subr.bf16.mxu0 %v4094
      %4366 = vmatpush1.bf16.msra.mxu0 %v4093
      %4367 = vmatprep.subr.bf16.mxu0 %v4111
      %4368 = vmatpush1.bf16.msra.mxu0 %v4110
      %4369 = vmatprep.subr.bf16.mxu0 %v4128
      %4370 = vmatpush1.bf16.msra.mxu0 %v4127
      %4371 = vmatprep.subr.bf16.mxu0 %v4145
      %4372 = vmatpush1.bf16.msra.mxu0 %v4144
      %4373 = vmatprep.subr.bf16.mxu0 %v4162
      %4374 = vmatpush1.bf16.msra.mxu0 %v4161
      %4375 = vmatprep.subr.bf16.mxu0 %v4179
      %4376 = vmatpush1.bf16.msra.mxu0 %v4178
      %4377 = vmatprep.subr.bf16.mxu0 %v4318
      %4378 = vmatpush1.bf16.msra.mxu0 %v4315
      %4379 = vmatprep.subr.bf16.mxu0 0
      %4380 = vmatpush1.bf16.msra.mxu0 0
      %4381 = vmatprep.subr.bf16.mxu0 0
      %4382 = vmatpush1.bf16.msra.mxu0 0
      %4383 = vmatprep.subr.bf16.mxu0 0
      %4384 = vmatpush1.bf16.msra.mxu0 0
      %4385 = vmatprep.subr.bf16.mxu0 0
      %4386 = vmatpush1.bf16.msra.mxu0 0
      %4387 = vmatprep.subr.bf16.mxu0 0
      %4388 = vmatpush1.bf16.msra.mxu0 0
      %4389 = vmatprep.subr.bf16.mxu0 0
      %4390 = vmatpush1.bf16.msra.mxu0 0
      %4391 = vmatprep.subr.bf16.mxu0 0
      %4392 = vmatpush1.bf16.msra.mxu0 0
      %4393 = vmatprep.subr.bf16.mxu0 0
      %4394 = vmatpush1.bf16.msra.mxu0 0
      %4395 = vmatprep.subr.bf16.mxu0 0
      %4396 = vmatpush1.bf16.msra.mxu0 0
      %4397 = vmatprep.mubr.bf16.mxu0 0
      %4398 = vmatmul.mubr.bf16.gmra.mrb[0].mxu0 %v992
      %v4399 = vpop.f32.mrb[0].mxu0
      %v4400 = vadd.f32 0.0, %v4399
      %v4401 = vpop.f32.mrb[0].mxu0
      %v4402 = vadd.f32 0.0, %v4401
      %v4403 = vpop.f32.mrb[0].mxu0
      %v4404 = vpop.f32.mrb[0].mxu0
      %4405 = vdwg.mxu0
      %4406 = vmatprep.subr.bf16.mxu0 %v4096
      %4407 = vmatpush1.bf16.msra.mxu0 %v4095
      %4408 = vmatprep.subr.bf16.mxu0 %v4113
      %4409 = vmatpush1.bf16.msra.mxu0 %v4112
      %4410 = vmatprep.subr.bf16.mxu0 %v4130
      %4411 = vmatpush1.bf16.msra.mxu0 %v4129
      %4412 = vmatprep.subr.bf16.mxu0 %v4147
      %4413 = vmatpush1.bf16.msra.mxu0 %v4146
      %4414 = vmatprep.subr.bf16.mxu0 %v4164
      %4415 = vmatpush1.bf16.msra.mxu0 %v4163
      %4416 = vmatprep.subr.bf16.mxu0 %v4181
      %4417 = vmatpush1.bf16.msra.mxu0 %v4180
      %4418 = vmatprep.subr.bf16.mxu0 %v4324
      %4419 = vmatpush1.bf16.msra.mxu0 %v4321
      %4420 = vmatprep.subr.bf16.mxu0 0
      %4421 = vmatpush1.bf16.msra.mxu0 0
      %4422 = vmatprep.subr.bf16.mxu0 0
      %4423 = vmatpush1.bf16.msra.mxu0 0
      %4424 = vmatprep.subr.bf16.mxu0 0
      %4425 = vmatpush1.bf16.msra.mxu0 0
      %4426 = vmatprep.subr.bf16.mxu0 0
      %4427 = vmatpush1.bf16.msra.mxu0 0
      %4428 = vmatprep.subr.bf16.mxu0 0
      %4429 = vmatpush1.bf16.msra.mxu0 0
      %4430 = vmatprep.subr.bf16.mxu0 0
      %4431 = vmatpush1.bf16.msra.mxu0 0
      %4432 = vmatprep.subr.bf16.mxu0 0
      %4433 = vmatpush1.bf16.msra.mxu0 0
      %4434 = vmatprep.subr.bf16.mxu0 0
      %4435 = vmatpush1.bf16.msra.mxu0 0
      %4436 = vmatprep.subr.bf16.mxu0 0
      %4437 = vmatpush1.bf16.msra.mxu0 0
      %4438 = vmatprep.mubr.bf16.mxu0 0
      %4439 = vmatmul.mubr.bf16.gmra.mrb[0].mxu0 %v992
      %v4440 = vpop.f32.mrb[0].mxu0
      %v4441 = vadd.f32 0.0, %v4440
      %v4442 = vpop.f32.mrb[0].mxu0
      %v4443 = vadd.f32 0.0, %v4442
      %v4444 = vpop.f32.mrb[0].mxu0
      %v4445 = vpop.f32.mrb[0].mxu0
      %4446 = vdwg.mxu0
      %4447 = vmatprep.subr.bf16.mxu0 %v4098
      %4448 = vmatpush1.bf16.msra.mxu0 %v4097
      %4449 = vmatprep.subr.bf16.mxu0 %v4115
      %4450 = vmatpush1.bf16.msra.mxu0 %v4114
      %4451 = vmatprep.subr.bf16.mxu0 %v4132
      %4452 = vmatpush1.bf16.msra.mxu0 %v4131
      %4453 = vmatprep.subr.bf16.mxu0 %v4149
      %4454 = vmatpush1.bf16.msra.mxu0 %v4148
      %4455 = vmatprep.subr.bf16.mxu0 %v4166
      %4456 = vmatpush1.bf16.msra.mxu0 %v4165
      %4457 = vmatprep.subr.bf16.mxu0 %v4183
      %4458 = vmatpush1.bf16.msra.mxu0 %v4182
      %4459 = vmatprep.subr.bf16.mxu0 %v4330
      %4460 = vmatpush1.bf16.msra.mxu0 %v4327
      %4461 = vmatprep.subr.bf16.mxu0 0
      %4462 = vmatpush1.bf16.msra.mxu0 0
      %4463 = vmatprep.subr.bf16.mxu0 0
      %4464 = vmatpush1.bf16.msra.mxu0 0
      %4465 = vmatprep.subr.bf16.mxu0 0
      %4466 = vmatpush1.bf16.msra.mxu0 0
      %4467 = vmatprep.subr.bf16.mxu0 0
      %4468 = vmatpush1.bf16.msra.mxu0 0
      %4469 = vmatprep.subr.bf16.mxu0 0
      %4470 = vmatpush1.bf16.msra.mxu0 0
      %4471 = vmatprep.subr.bf16.mxu0 0
      %4472 = vmatpush1.bf16.msra.mxu0 0
      %4473 = vmatprep.subr.bf16.mxu0 0
      %4474 = vmatpush1.bf16.msra.mxu0 0
      %4475 = vmatprep.subr.bf16.mxu0 0
      %4476 = vmatpush1.bf16.msra.mxu0 0
      %4477 = vmatprep.subr.bf16.mxu0 0
      %4478 = vmatpush1.bf16.msra.mxu0 0
      %4479 = vmatprep.mubr.bf16.mxu0 0
      %4480 = vmatmul.mubr.bf16.gmra.mrb[0].mxu0 %v992
      %v4481 = vpop.f32.mrb[0].mxu0
      %v4482 = vadd.f32 0.0, %v4481
      %v4483 = vpop.f32.mrb[0].mxu0
      %v4484 = vadd.f32 0.0, %v4483
      %v4485 = vpop.f32.mrb[0].mxu0
      %v4486 = vpop.f32.mrb[0].mxu0
      %4487 = vdwg.mxu0
      %4488 = vmatprep.subr.bf16.mxu0 %v4100
      %4489 = vmatpush1.bf16.msra.mxu0 %v4099
      %4490 = vmatprep.subr.bf16.mxu0 %v4117
      %4491 = vmatpush1.bf16.msra.mxu0 %v4116
      %4492 = vmatprep.subr.bf16.mxu0 %v4134
      %4493 = vmatpush1.bf16.msra.mxu0 %v4133
      %4494 = vmatprep.subr.bf16.mxu0 %v4151
      %4495 = vmatpush1.bf16.msra.mxu0 %v4150
      %4496 = vmatprep.subr.bf16.mxu0 %v4168
      %4497 = vmatpush1.bf16.msra.mxu0 %v4167
      %4498 = vmatprep.subr.bf16.mxu0 %v4185
      %4499 = vmatpush1.bf16.msra.mxu0 %v4184
      %4500 = vmatprep.subr.bf16.mxu0 %v4336
      %4501 = vmatpush1.bf16.msra.mxu0 %v4333
      %4502 = vmatprep.subr.bf16.mxu0 0
      %4503 = vmatpush1.bf16.msra.mxu0 0
      %4504 = vmatprep.subr.bf16.mxu0 0
      %4505 = vmatpush1.bf16.msra.mxu0 0
      %4506 = vmatprep.subr.bf16.mxu0 0
      %4507 = vmatpush1.bf16.msra.mxu0 0
      %4508 = vmatprep.subr.bf16.mxu0 0
      %4509 = vmatpush1.bf16.msra.mxu0 0
      %4510 = vmatprep.subr.bf16.mxu0 0
      %4511 = vmatpush1.bf16.msra.mxu0 0
      %4512 = vmatprep.subr.bf16.mxu0 0
      %4513 = vmatpush1.bf16.msra.mxu0 0
      %4514 = vmatprep.subr.bf16.mxu0 0
      %4515 = vmatpush1.bf16.msra.mxu0 0
      %4516 = vmatprep.subr.bf16.mxu0 0
      %4517 = vmatpush1.bf16.msra.mxu0 0
      %4518 = vmatprep.subr.bf16.mxu0 0
      %4519 = vmatpush1.bf16.msra.mxu0 0
      %4520 = vmatprep.mubr.bf16.mxu0 0
      %4521 = vmatmul.mubr.bf16.gmra.mrb[0].mxu0 %v992
      %v4522 = vpop.f32.mrb[0].mxu0
      %v4523 = vadd.f32 0.0, %v4522
      %v4524 = vpop.f32.mrb[0].mxu0
      %v4525 = vadd.f32 0.0, %v4524
      %v4526 = vpop.f32.mrb[0].mxu0
      %v4527 = vpop.f32.mrb[0].mxu0
      %4528 = vdwg.mxu0
      %4529 = vmatprep.subr.bf16.mxu0 %v4102
      %4530 = vmatpush1.bf16.msra.mxu0 %v4101
      %4531 = vmatprep.subr.bf16.mxu0 %v4119
      %4532 = vmatpush1.bf16.msra.mxu0 %v4118
      %4533 = vmatprep.subr.bf16.mxu0 %v4136
      %4534 = vmatpush1.bf16.msra.mxu0 %v4135
      %4535 = vmatprep.subr.bf16.mxu0 %v4153
      %4536 = vmatpush1.bf16.msra.mxu0 %v4152
      %4537 = vmatprep.subr.bf16.mxu0 %v4170
      %4538 = vmatpush1.bf16.msra.mxu0 %v4169
      %4539 = vmatprep.subr.bf16.mxu0 %v4187
      %4540 = vmatpush1.bf16.msra.mxu0 %v4186
      %4541 = vmatprep.subr.bf16.mxu0 %v4342
      %4542 = vmatpush1.bf16.msra.mxu0 %v4339
      %4543 = vmatprep.subr.bf16.mxu0 0
      %4544 = vmatpush1.bf16.msra.mxu0 0
      %4545 = vmatprep.subr.bf16.mxu0 0
      %4546 = vmatpush1.bf16.msra.mxu0 0
      %4547 = vmatprep.subr.bf16.mxu0 0
      %4548 = vmatpush1.bf16.msra.mxu0 0
      %4549 = vmatprep.subr.bf16.mxu0 0
      %4550 = vmatpush1.bf16.msra.mxu0 0
      %4551 = vmatprep.subr.bf16.mxu0 0
      %4552 = vmatpush1.bf16.msra.mxu0 0
      %4553 = vmatprep.subr.bf16.mxu0 0
      %4554 = vmatpush1.bf16.msra.mxu0 0
      %4555 = vmatprep.subr.bf16.mxu0 0
      %4556 = vmatpush1.bf16.msra.mxu0 0
      %4557 = vmatprep.subr.bf16.mxu0 0
      %4558 = vmatpush1.bf16.msra.mxu0 0
      %4559 = vmatprep.subr.bf16.mxu0 0
      %4560 = vmatpush1.bf16.msra.mxu0 0
      %4561 = vmatprep.mubr.bf16.mxu0 0
      %4562 = vmatmul.mubr.bf16.gmra.mrb[0].mxu0 %v992
      %v4563 = vpop.f32.mrb[0].mxu0
      %v4564 = vadd.f32 0.0, %v4563
      %v4565 = vpop.f32.mrb[0].mxu0
      %v4566 = vadd.f32 0.0, %v4565
      %v4567 = vpop.f32.mrb[0].mxu0
      %v4568 = vpop.f32.mrb[0].mxu0
      %4569 = vdwg.mxu0
      %4570 = vmatprep.subr.bf16.mxu0 %v4104
      %4571 = vmatpush1.bf16.msra.mxu0 %v4103
      %4572 = vmatprep.subr.bf16.mxu0 %v4121
      %4573 = vmatpush1.bf16.msra.mxu0 %v4120
      %4574 = vmatprep.subr.bf16.mxu0 %v4138
      %4575 = vmatpush1.bf16.msra.mxu0 %v4137
      %4576 = vmatprep.subr.bf16.mxu0 %v4155
      %4577 = vmatpush1.bf16.msra.mxu0 %v4154
      %4578 = vmatprep.subr.bf16.mxu0 %v4172
      %4579 = vmatpush1.bf16.msra.mxu0 %v4171
      %4580 = vmatprep.subr.bf16.mxu0 %v4189
      %4581 = vmatpush1.bf16.msra.mxu0 %v4188
      %4582 = vmatprep.subr.bf16.mxu0 %v4348
      %4583 = vmatpush1.bf16.msra.mxu0 %v4345
      %4584 = vmatprep.subr.bf16.mxu0 0
      %4585 = vmatpush1.bf16.msra.mxu0 0
      %4586 = vmatprep.subr.bf16.mxu0 0
      %4587 = vmatpush1.bf16.msra.mxu0 0
      %4588 = vmatprep.subr.bf16.mxu0 0
      %4589 = vmatpush1.bf16.msra.mxu0 0
      %4590 = vmatprep.subr.bf16.mxu0 0
      %4591 = vmatpush1.bf16.msra.mxu0 0
      %4592 = vmatprep.subr.bf16.mxu0 0
      %4593 = vmatpush1.bf16.msra.mxu0 0
      %4594 = vmatprep.subr.bf16.mxu0 0
      %4595 = vmatpush1.bf16.msra.mxu0 0
      %4596 = vmatprep.subr.bf16.mxu0 0
      %4597 = vmatpush1.bf16.msra.mxu0 0
      %4598 = vmatprep.subr.bf16.mxu0 0
      %4599 = vmatpush1.bf16.msra.mxu0 0
      %4600 = vmatprep.subr.bf16.mxu0 0
      %4601 = vmatpush1.bf16.msra.mxu0 0
      %4602 = vmatprep.mubr.bf16.mxu0 0
      %4603 = vmatmul.mubr.bf16.gmra.mrb[0].mxu0 %v992
      %v4604 = vpop.f32.mrb[0].mxu0
      %v4605 = vadd.f32 0.0, %v4604
      %v4606 = vpop.f32.mrb[0].mxu0
      %v4607 = vadd.f32 0.0, %v4606
      %v4608 = vpop.f32.mrb[0].mxu0
      %v4609 = vpop.f32.mrb[0].mxu0
      %4610 = vdwg.mxu0
      %4611 = vmatprep.subr.bf16.mxu0 %v4106
      %4612 = vmatpush1.bf16.msra.mxu0 %v4105
      %4613 = vmatprep.subr.bf16.mxu0 %v4123
      %4614 = vmatpush1.bf16.msra.mxu0 %v4122
      %4615 = vmatprep.subr.bf16.mxu0 %v4140
      %4616 = vmatpush1.bf16.msra.mxu0 %v4139
      %4617 = vmatprep.subr.bf16.mxu0 %v4157
      %4618 = vmatpush1.bf16.msra.mxu0 %v4156
      %4619 = vmatprep.subr.bf16.mxu0 %v4174
      %4620 = vmatpush1.bf16.msra.mxu0 %v4173
      %4621 = vmatprep.subr.bf16.mxu0 %v4191
      %4622 = vmatpush1.bf16.msra.mxu0 %v4190
      %4623 = vmatprep.subr.bf16.mxu0 %v4354
      %4624 = vmatpush1.bf16.msra.mxu0 %v4351
      %4625 = vmatprep.subr.bf16.mxu0 0
      %4626 = vmatpush1.bf16.msra.mxu0 0
      %4627 = vmatprep.subr.bf16.mxu0 0
      %4628 = vmatpush1.bf16.msra.mxu0 0
      %4629 = vmatprep.subr.bf16.mxu0 0
      %4630 = vmatpush1.bf16.msra.mxu0 0
      %4631 = vmatprep.subr.bf16.mxu0 0
      %4632 = vmatpush1.bf16.msra.mxu0 0
      %4633 = vmatprep.subr.bf16.mxu0 0
      %4634 = vmatpush1.bf16.msra.mxu0 0
      %4635 = vmatprep.subr.bf16.mxu0 0
      %4636 = vmatpush1.bf16.msra.mxu0 0
      %4637 = vmatprep.subr.bf16.mxu0 0
      %4638 = vmatpush1.bf16.msra.mxu0 0
      %4639 = vmatprep.subr.bf16.mxu0 0
      %4640 = vmatpush1.bf16.msra.mxu0 0
      %4641 = vmatprep.subr.bf16.mxu0 0
      %4642 = vmatpush1.bf16.msra.mxu0 0
      %4643 = vmatprep.mubr.bf16.mxu0 0
      %4644 = vmatmul.mubr.bf16.gmra.mrb[0].mxu0 %v992
      %v4645 = vpop.f32.mrb[0].mxu0
      %v4646 = vadd.f32 0.0, %v4645
      %v4647 = vpop.f32.mrb[0].mxu0
      %v4648 = vadd.f32 0.0, %v4647
      %v4649 = vpop.f32.mrb[0].mxu0
      %v4650 = vpop.f32.mrb[0].mxu0
      %4651 = vdwg.mxu0
      %4652 = vmatprep.subr.bf16.mxu0 %v4108
      %4653 = vmatpush1.bf16.msra.mxu0 %v4107
      %4654 = vmatprep.subr.bf16.mxu0 %v4125
      %4655 = vmatpush1.bf16.msra.mxu0 %v4124
      %4656 = vmatprep.subr.bf16.mxu0 %v4142
      %4657 = vmatpush1.bf16.msra.mxu0 %v4141
      %4658 = vmatprep.subr.bf16.mxu0 %v4159
      %4659 = vmatpush1.bf16.msra.mxu0 %v4158
      %4660 = vmatprep.subr.bf16.mxu0 %v4176
      %4661 = vmatpush1.bf16.msra.mxu0 %v4175
      %4662 = vmatprep.subr.bf16.mxu0 %v4193
      %4663 = vmatpush1.bf16.msra.mxu0 %v4192
      %4664 = vmatprep.subr.bf16.mxu0 %v4360
      %4665 = vmatpush1.bf16.msra.mxu0 %v4357
      %4666 = vmatprep.subr.bf16.mxu0 0
      %4667 = vmatpush1.bf16.msra.mxu0 0
      %4668 = vmatprep.subr.bf16.mxu0 0
      %4669 = vmatpush1.bf16.msra.mxu0 0
      %4670 = vmatprep.subr.bf16.mxu0 0
      %4671 = vmatpush1.bf16.msra.mxu0 0
      %4672 = vmatprep.subr.bf16.mxu0 0
      %4673 = vmatpush1.bf16.msra.mxu0 0
      %4674 = vmatprep.subr.bf16.mxu0 0
      %4675 = vmatpush1.bf16.msra.mxu0 0
      %4676 = vmatprep.subr.bf16.mxu0 0
      %4677 = vmatpush1.bf16.msra.mxu0 0
      %4678 = vmatprep.subr.bf16.mxu0 0
      %4679 = vmatpush1.bf16.msra.mxu0 0
      %4680 = vmatprep.subr.bf16.mxu0 0
      %4681 = vmatpush1.bf16.msra.mxu0 0
      %4682 = vmatprep.subr.bf16.mxu0 0
      %4683 = vmatpush1.bf16.msra.mxu0 0
      %4684 = vmatprep.mubr.bf16.mxu0 0
      %4685 = vmatmul.mubr.bf16.gmra.mrb[0].mxu0 %v992
      %v4686 = vpop.f32.mrb[0].mxu0
      %v4687 = vadd.f32 0.0, %v4686
      %v4688 = vpop.f32.mrb[0].mxu0
      %v4689 = vadd.f32 0.0, %v4688
      %v4690 = vpop.f32.mrb[0].mxu0
      %v4691 = vpop.f32.mrb[0].mxu0
      %4692 = vdwg.mxu0
      %4693 = vmatprep.subr.bf16.mxu0 0
      %4694 = vmatpush1.bf16.msra.mxu0 %v4109
      %4695 = vmatprep.subr.bf16.mxu0 0
      %4696 = vmatpush1.bf16.msra.mxu0 %v4126
      %4697 = vmatprep.subr.bf16.mxu0 0
      %4698 = vmatpush1.bf16.msra.mxu0 %v4143
      %4699 = vmatprep.subr.bf16.mxu0 0
      %4700 = vmatpush1.bf16.msra.mxu0 %v4160
      %4701 = vmatprep.subr.bf16.mxu0 0
      %4702 = vmatpush1.bf16.msra.mxu0 %v4177
      %4703 = vmatprep.subr.bf16.mxu0 0
      %4704 = vmatpush1.bf16.msra.mxu0 %v4194
      %4705 = vmatprep.subr.bf16.mxu0 0
      %4706 = vmatpush1.bf16.msra.mxu0 %v4363
      %4707 = vmatprep.subr.bf16.mxu0 0
      %4708 = vmatpush1.bf16.msra.mxu0 0
      %4709 = vmatprep.subr.bf16.mxu0 0
      %4710 = vmatpush1.bf16.msra.mxu0 0
      %4711 = vmatprep.subr.bf16.mxu0 0
      %4712 = vmatpush1.bf16.msra.mxu0 0
      %4713 = vmatprep.subr.bf16.mxu0 0
      %4714 = vmatpush1.bf16.msra.mxu0 0
      %4715 = vmatprep.subr.bf16.mxu0 0
      %4716 = vmatpush1.bf16.msra.mxu0 0
      %4717 = vmatprep.subr.bf16.mxu0 0
      %4718 = vmatpush1.bf16.msra.mxu0 0
      %4719 = vmatprep.subr.bf16.mxu0 0
      %4720 = vmatpush1.bf16.msra.mxu0 0
      %4721 = vmatprep.subr.bf16.mxu0 0
      %4722 = vmatpush1.bf16.msra.mxu0 0
      %4723 = vmatprep.subr.bf16.mxu0 0
      %4724 = vmatpush1.bf16.msra.mxu0 0
      %4725 = vmatprep.mubr.bf16.mxu0 0
      %4726 = vmatmul.mubr.bf16.gmra.mrb[0].mxu0 %v992
      %v4727 = vpop.f32.mrb[0].mxu0
      %v4728 = vadd.f32 0.0, %v4727
      %v4729 = vpop.f32.mrb[0].mxu0
      %v4730 = vpop.f32.mrb[0].mxu0
      %v4731 = vpop.f32.mrb[0].mxu0
      %4732 = vdwg.mxu0
      %v4733 = vmax.f32 %v3621, %v4400
      %v4734 = vmax.f32 %v3622, %v4402
      %v4735 = vmax.f32 %v3623, %v4441
      %v4736 = vmax.f32 %v3624, %v4443
      %v4737 = vmax.f32 %v3625, %v4482
      %v4738 = vmax.f32 %v3626, %v4484
      %v4739 = vmax.f32 %v3627, %v4523
      %v4740 = vmax.f32 %v3628, %v4525
      %v4741 = vmax.f32 %v3629, %v4564
      %v4742 = vmax.f32 %v3630, %v4566
      %v4743 = vmax.f32 %v3631, %v4605
      %v4744 = vmax.f32 %v3632, %v4607
      %v4745 = vmax.f32 %v3633, %v4646
      %v4746 = vmax.f32 %v3634, %v4648
      %v4747 = vmax.f32 %v3635, %v4687
      %v4748 = vmax.f32 %v3636, %v4689
      %v4749 = vmax.f32 %v3637, %v4728
      %v4750 = vld [vmem:[%s5] sm:$0x3f]
      %4752 = vset.pattern.permute.xlu0 0
      %4753 = vperm.xlu0 %4752, %v4750
      %v4754 = vpop.permute.xlu0 %4753
      %v4756 = vadd.f32 %v4733, %v4754
      %v4757 = vadd.f32 %v4734, %v4754
      %v4758 = vadd.f32 %v4735, %v4754
      %v4759 = vadd.f32 %v4736, %v4754
      %v4760 = vadd.f32 %v4737, %v4754
      %v4761 = vadd.f32 %v4738, %v4754
      %v4762 = vadd.f32 %v4739, %v4754
      %v4763 = vadd.f32 %v4740, %v4754
      %v4764 = vadd.f32 %v4741, %v4754
      %v4765 = vadd.f32 %v4742, %v4754
      %v4766 = vadd.f32 %v4743, %v4754
      %v4767 = vadd.f32 %v4744, %v4754
      %v4768 = vadd.f32 %v4745, %v4754
      %v4769 = vadd.f32 %v4746, %v4754
      %v4770 = vadd.f32 %v4747, %v4754
      %v4771 = vadd.f32 %v4748, %v4754
      %v4772 = vadd.f32 %v4749, %v4754
      %vm4773 = vcmp.gt.f32.partialorder %v4756, 0.0
      %vm4774 = vcmp.gt.f32.partialorder %v4757, 0.0
      %vm4775 = vcmp.gt.f32.partialorder %v4758, 0.0
      %vm4776 = vcmp.gt.f32.partialorder %v4759, 0.0
      %vm4777 = vcmp.gt.f32.partialorder %v4760, 0.0
      %vm4778 = vcmp.gt.f32.partialorder %v4761, 0.0
      %vm4779 = vcmp.gt.f32.partialorder %v4762, 0.0
      %vm4780 = vcmp.gt.f32.partialorder %v4763, 0.0
      %vm4781 = vcmp.gt.f32.partialorder %v4764, 0.0
      %vm4782 = vcmp.gt.f32.partialorder %v4765, 0.0
      %vm4783 = vcmp.gt.f32.partialorder %v4766, 0.0
      %vm4784 = vcmp.gt.f32.partialorder %v4767, 0.0
      %vm4785 = vcmp.gt.f32.partialorder %v4768, 0.0
      %vm4786 = vcmp.gt.f32.partialorder %v4769, 0.0
      %vm4787 = vcmp.gt.f32.partialorder %v4770, 0.0
      %vm4788 = vcmp.gt.f32.partialorder %v4771, 0.0
      %vm4789 = vcmp.gt.f32.partialorder %v4772, 0.0
      %v4790 = vmin.f32 %v4756, 0.0
      %v4791 = vmin.f32 %v4757, 0.0
      %v4792 = vmin.f32 %v4758, 0.0
      %v4793 = vmin.f32 %v4759, 0.0
      %v4794 = vmin.f32 %v4760, 0.0
      %v4795 = vmin.f32 %v4761, 0.0
      %v4796 = vmin.f32 %v4762, 0.0
      %v4797 = vmin.f32 %v4763, 0.0
      %v4798 = vmin.f32 %v4764, 0.0
      %v4799 = vmin.f32 %v4765, 0.0
      %v4800 = vmin.f32 %v4766, 0.0
      %v4801 = vmin.f32 %v4767, 0.0
      %v4802 = vmin.f32 %v4768, 0.0
      %v4803 = vmin.f32 %v4769, 0.0
      %v4804 = vmin.f32 %v4770, 0.0
      %v4805 = vmin.f32 %v4771, 0.0
      %v4806 = vmin.f32 %v4772, 0.0
      %v4807 = vmul.f32 %v4790, 1.442695
      %v4808 = vpow.pop %v4807
      %v4809 = vmul.f32 %v4791, 1.442695
      %v4810 = vpow.pop %v4809
      %v4811 = vmul.f32 %v4792, 1.442695
      %v4812 = vpow.pop %v4811
      %v4813 = vmul.f32 %v4793, 1.442695
      %v4814 = vpow.pop %v4813
      %v4815 = vmul.f32 %v4794, 1.442695
      %v4816 = vpow.pop %v4815
      %v4817 = vmul.f32 %v4795, 1.442695
      %v4818 = vpow.pop %v4817
      %v4819 = vmul.f32 %v4796, 1.442695
      %v4820 = vpow.pop %v4819
      %v4821 = vmul.f32 %v4797, 1.442695
      %v4822 = vpow.pop %v4821
      %v4823 = vmul.f32 %v4798, 1.442695
      %v4824 = vpow.pop %v4823
      %v4825 = vmul.f32 %v4799, 1.442695
      %v4826 = vpow.pop %v4825
      %v4827 = vmul.f32 %v4800, 1.442695
      %v4828 = vpow.pop %v4827
      %v4829 = vmul.f32 %v4801, 1.442695
      %v4830 = vpow.pop %v4829
      %v4831 = vmul.f32 %v4802, 1.442695
      %v4832 = vpow.pop %v4831
      %v4833 = vmul.f32 %v4803, 1.442695
      %v4834 = vpow.pop %v4833
      %v4835 = vmul.f32 %v4804, 1.442695
      %v4836 = vpow.pop %v4835
      %v4837 = vmul.f32 %v4805, 1.442695
      %v4838 = vpow.pop %v4837
      %v4839 = vmul.f32 %v4806, 1.442695
      %v4840 = vpow.pop %v4839
      %v4841 = vsub.f32 %v4808, 1.0
      %v4842 = vsub.f32 %v4810, 1.0
      %v4843 = vsub.f32 %v4812, 1.0
      %v4844 = vsub.f32 %v4814, 1.0
      %v4845 = vsub.f32 %v4816, 1.0
      %v4846 = vsub.f32 %v4818, 1.0
      %v4847 = vsub.f32 %v4820, 1.0
      %v4848 = vsub.f32 %v4822, 1.0
      %v4849 = vsub.f32 %v4824, 1.0
      %v4850 = vsub.f32 %v4826, 1.0
      %v4851 = vsub.f32 %v4828, 1.0
      %v4852 = vsub.f32 %v4830, 1.0
      %v4853 = vsub.f32 %v4832, 1.0
      %v4854 = vsub.f32 %v4834, 1.0
      %v4855 = vsub.f32 %v4836, 1.0
      %v4856 = vsub.f32 %v4838, 1.0
      %v4857 = vsub.f32 %v4840, 1.0
      %v4858 = vsel %vm4773, %v4756, %v4841
      %v4859 = vsel %vm4774, %v4757, %v4842
      %v4860 = vsel %vm4775, %v4758, %v4843
      %v4861 = vsel %vm4776, %v4759, %v4844
      %v4862 = vsel %vm4777, %v4760, %v4845
      %v4863 = vsel %vm4778, %v4761, %v4846
      %v4864 = vsel %vm4779, %v4762, %v4847
      %v4865 = vsel %vm4780, %v4763, %v4848
      %v4866 = vsel %vm4781, %v4764, %v4849
      %v4867 = vsel %vm4782, %v4765, %v4850
      %v4868 = vsel %vm4783, %v4766, %v4851
      %v4869 = vsel %vm4784, %v4767, %v4852
      %v4870 = vsel %vm4785, %v4768, %v4853
      %v4871 = vsel %vm4786, %v4769, %v4854
      %v4872 = vsel %vm4787, %v4770, %v4855
      %v4873 = vsel %vm4788, %v4771, %v4856
      %v4874 = vsel %vm4789, %v4772, %v4857
      %v4875 = vpack.c.bf16 %v4858, %v4858
      %v4876 = vpack.c.bf16 %v4859, %v4859
      %v4877 = vpack.c.bf16 %v4860, %v4860
      %v4878 = vpack.c.bf16 %v4861, %v4861
      %v4879 = vpack.c.bf16 %v4862, %v4862
      %v4880 = vpack.c.bf16 %v4863, %v4863
      %v4881 = vpack.c.bf16 %v4864, %v4864
      %v4882 = vpack.c.bf16 %v4865, %v4865
      %v4883 = vpack.c.bf16 %v4866, %v4866
      %v4884 = vpack.c.bf16 %v4867, %v4867
      %v4885 = vpack.c.bf16 %v4868, %v4868
      %v4886 = vpack.c.bf16 %v4869, %v4869
      %v4887 = vpack.c.bf16 %v4870, %v4870
      %v4888 = vpack.c.bf16 %v4871, %v4871
      %v4889 = vpack.c.bf16 %v4872, %v4872
      %v4890 = vpack.c.bf16 %v4873, %v4873
      %v4891 = vpack.c.bf16 %v4874, %v4874
      %v4909 = vunpack.c.l.b16 %v4875
      %v4910 = vunpack.c.l.b16 %v4876
      %v4911 = vunpack.c.l.b16 %v4877
      %v4912 = vunpack.c.l.b16 %v4878
      %v4913 = vunpack.c.l.b16 %v4879
      %v4914 = vunpack.c.l.b16 %v4880
      %v4915 = vunpack.c.l.b16 %v4881
      %v4916 = vunpack.c.l.b16 %v4882
      %v4917 = vunpack.c.l.b16 %v4883
      %v4918 = vunpack.c.l.b16 %v4884
      %v4919 = vunpack.c.l.b16 %v4885
      %v4920 = vunpack.c.l.b16 %v4886
      %v4921 = vunpack.c.l.b16 %v4887
      %v4922 = vunpack.c.l.b16 %v4888
      %v4923 = vunpack.c.l.b16 %v4889
      %v4924 = vunpack.c.l.b16 %v4890
      %v4925 = vunpack.c.l.b16 %v4891
      %v4926 = vpack.c.b16 %v4910, %v4909
      %v4927 = vpack.c.b16 %v4912, %v4911
      %v4928 = vpack.c.b16 %v4914, %v4913
      %v4929 = vpack.c.b16 %v4916, %v4915
      %v4930 = vpack.c.b16 %v4918, %v4917
      %v4931 = vpack.c.b16 %v4920, %v4919
      %v4932 = vpack.c.b16 %v4922, %v4921
      %v4933 = vpack.c.b16 %v4924, %v4923
      %v4934 = vpack.c.b16 %v4925, %v4925
      %4944 = vst [vmem:[%s311] sm:$0x77] %v4926
      %4945 = vst [vmem:[%s311 + $0x8] sm:$0x77] %v4927
      %4946 = vst [vmem:[%s311 + $0x10] sm:$0x77] %v4928
      %4947 = vst [vmem:[%s311 + $0x18] sm:$0x77] %v4929
      %4948 = vst [vmem:[%s311 + $0x20] sm:$0x77] %v4930
      %4949 = vst [vmem:[%s311 + $0x28] sm:$0x77] %v4931
      %4950 = vst [vmem:[%s311 + $0x30] sm:$0x77] %v4932
      %4951 = vst [vmem:[%s311 + $0x38] sm:$0x77] %v4933
      %vm4952 = vcmask 550912
      %4953 = vst.msk [vmem:[%s311 + $0x40] sm:$0x7] %vm4952, %v4934
      %p4954 = scmp.lt.s32.totalorder %s17, 1
      %s4955 = scalar_select %p4954, %s17, 1
      %s4956 = smul.addr %s4955, 17
      %s4957 = smul.addr %s4956, 4
      %s4958 = scalar_lea.vmem %s6, %s4957
      // Predicated region
      $region45: #{lenet_variant_forward.3} parent=43 // pred_check
        %p4959 = pneg %p181
      $region46: #{lenet_variant_forward.3} parent=43 // pred_check_branch
        %4961 = sbr.rel (%p4959) target = $region48
      $region47: #{lenet_variant_forward.3} parent=43 // pred_region
        _
      $region48: #{lenet_variant_forward.3} parent=43 // pred_fallthru
        _
    $region44: #{lenet_variant_forward.3} parent=5 // pred_fallthru
      _
    %p4962 = scmp.le.s32.totalorder 2, %s12
    // Predicated region
    $region49: #{lenet_variant_forward.3} parent=5 // pred_check
      %p4963 = pneg %p4962
    $region50: #{lenet_variant_forward.3} parent=5 // pred_check_branch
      %4965 = sbr.rel (%p4963) target = $region52
    $region51: #{lenet_variant_forward.3} parent=5 // pred_region
      %s4966 = ssub.s32 %s12, 2
      // Predicated region
      $region53: #{lenet_variant_forward.3} parent=51 // pred_check
        %p4967 = pneg %p187
      $region54: #{lenet_variant_forward.3} parent=51 // pred_check_branch
        %4969 = sbr.rel (%p4967) target = $region56
      $region55: #{lenet_variant_forward.3} parent=51 // pred_region
        %p4970 = scmp.lt.s32.totalorder %s18, 1
        %s4971 = scalar_select %p4970, %s18, 1
        %s4972 = smul.addr %s4971, 17
        %s4973 = smul.addr %s4972, 4
        %s4974 = scalar_lea.vmem %s6, %s4973
      $region56: #{lenet_variant_forward.3} parent=51 // pred_fallthru
        _
    $region52: #{lenet_variant_forward.3} parent=5 // pred_fallthru
      _
  $region6: #{lenet_variant_forward.3} parent=0 // loop_footer
    %s16 = sadd.s32 1, %s12
  $region7: #{lenet_variant_forward.3} parent=0 // loop_footer_branch
    %11 = sbr.rel target = $region3
  $region8: #{lenet_variant_forward.3} parent=0 // loop_exit
    _

// kernel: lenet_variant_forward.4
$region0: #{lenet_variant_forward.4}
  #allocation0 [shape = 'u32[]', space=smem, size = 0x4, offset = 0x4, fixed_abs, tag = 'smem constant byte address 0x4 - core index']
  #allocation1 [shape = 'u32[144,128]{1,0:T(1,128)}', space=vmem, size = 0x12000, scoped, tag = 'internal scratch']
  %s0 = inlined_call_operand.vmem [shape: bf16[2,150,441], index: 0, kind: input, shape index: {}]
  %s1 = inlined_call_operand.vmem [shape: bf16[2,150,441], index: 1, kind: input, shape index: {}]
  %s2 = inlined_call_operand.vmem [shape: bf16[2,150,441], index: 2, kind: input, shape index: {}]
  %s3 = inlined_call_operand.vmem [shape: bf16[2,150,441], index: 3, kind: input, shape index: {}]
  %s4 = inlined_call_operand.vmem [shape: bf16[16,150], index: 4, kind: input, shape index: {}]
  %s5 = inlined_call_operand.vmem [shape: f32[16,1], index: 5, kind: input, shape index: {}]
  %s6 = inlined_call_operand.vmem [shape: bf16[2,16,441], index: 6, kind: output, shape index: {}]
  %s7 = sld [smem:[#allocation0]]
  $region57: #{lenet_variant_forward.4} parent=0
    _
  %s9 = ssub.s32 1, %s7
  %s10 = scalar_select 0, %s9, %s7
  loop: start=0, step=1, limit=4
  $region2: #{lenet_variant_forward.4} parent=0 // loop_pre_header
    _
  $region3: #{lenet_variant_forward.4} parent=0 // loop_header
    %s12 = sphi 0, %s16
    %p13 = scmp.ge.s32.totalorder %s12, 4
    %s22 = sphi 0, %s24
    %s25 = sphi 0, %s22
    %s26 = sphi 0, %s25
    %s42 = sphi 0, %s26
    %s48 = sphi 0, %s50
    %s51 = sphi 0, %s48
    %s52 = sphi 0, %s51
    %s68 = sphi 0, %s52
    %s74 = sphi 0, %s76
    %s77 = sphi 0, %s74
    %s78 = sphi 0, %s77
    %s94 = sphi 0, %s78
    %s100 = sphi 0, %s102
    %s103 = sphi 0, %s100
    %s104 = sphi 0, %s103
    %s120 = sphi 0, %s104
    %s124 = sphi 0, %s124
    %s126 = sphi 0, %s124
    %s127 = sphi 0, %s126
    %s141 = sphi 0, %s127
    %s145 = sphi 0, %s145
    %s147 = sphi 0, %s145
    %s148 = sphi 0, %s147
    %s162 = sphi 0, %s148
    %s168 = sphi 0, %s170
    %s171 = sphi 0, %s168
    %s172 = sphi 0, %s171
    %s188 = sphi 0, %s172
  $region4: #{lenet_variant_forward.4} parent=0 // loop_header_branch
    %15 = sbr.rel (%p13) target = $region8
  $region5: #{lenet_variant_forward.4} parent=0 // loop_body
    %s17 = ssub.s32 %s12, 1
    %s18 = ssub.s32 %s12, 2
    %s19 = sadd.s32 %s12, 1
    %s20 = ssub.s32 %s12, %s19
    %p21 = scmp.eq.s32.totalorder %s20, 0
    %s23 = sadd.s32 %s22, 1
    %s24 = scalar_select %p21, %s22, %s23
    %p27 = pneg %p21
    %p28 = scmp.eq.s32.totalorder %s12, 1
    %p29 = por %p27, %p28
    %p30 = scmp.ne.s32.totalorder %s22, %s25
    %p31 = scmp.eq.s32.totalorder %s12, 0
    %p32 = por %p30, %p31
    %p33 = scmp.ne.s32.totalorder %s22, %s25
    %p34 = scmp.eq.s32.totalorder %s17, 1
    %p35 = por %p33, %p34
    %p36 = scmp.ne.s32.totalorder %s25, %s26
    %p37 = scmp.eq.s32.totalorder %s17, 0
    %p38 = por %p36, %p37
    %p39 = scmp.ne.s32.totalorder %s25, %s26
    %p40 = scmp.eq.s32.totalorder %s18, 1
    %p41 = por %p39, %p40
    %p43 = scmp.ne.s32.totalorder %s26, %s42
    %p44 = scmp.eq.s32.totalorder %s18, 0
    %p45 = por %p43, %p44
    %s46 = ssub.s32 %s12, %s19
    %p47 = scmp.eq.s32.totalorder %s46, 0
    %s49 = sadd.s32 %s48, 1
    %s50 = scalar_select %p47, %s48, %s49
    %p53 = pneg %p47
    %p54 = scmp.eq.s32.totalorder %s12, 1
    %p55 = por %p53, %p54
    %p56 = scmp.ne.s32.totalorder %s48, %s51
    %p57 = scmp.eq.s32.totalorder %s12, 0
    %p58 = por %p56, %p57
    %p59 = scmp.ne.s32.totalorder %s48, %s51
    %p60 = scmp.eq.s32.totalorder %s17, 1
    %p61 = por %p59, %p60
    %p62 = scmp.ne.s32.totalorder %s51, %s52
    %p63 = scmp.eq.s32.totalorder %s17, 0
    %p64 = por %p62, %p63
    %p65 = scmp.ne.s32.totalorder %s51, %s52
    %p66 = scmp.eq.s32.totalorder %s18, 1
    %p67 = por %p65, %p66
    %p69 = scmp.ne.s32.totalorder %s52, %s68
    %p70 = scmp.eq.s32.totalorder %s18, 0
    %p71 = por %p69, %p70
    %s72 = ssub.s32 %s12, %s19
    %p73 = scmp.eq.s32.totalorder %s72, 0
    %s75 = sadd.s32 %s74, 1
    %s76 = scalar_select %p73, %s74, %s75
    %p79 = pneg %p73
    %p80 = scmp.eq.s32.totalorder %s12, 1
    %p81 = por %p79, %p80
    %p82 = scmp.ne.s32.totalorder %s74, %s77
    %p83 = scmp.eq.s32.totalorder %s12, 0
    %p84 = por %p82, %p83
    %p85 = scmp.ne.s32.totalorder %s74, %s77
    %p86 = scmp.eq.s32.totalorder %s17, 1
    %p87 = por %p85, %p86
    %p88 = scmp.ne.s32.totalorder %s77, %s78
    %p89 = scmp.eq.s32.totalorder %s17, 0
    %p90 = por %p88, %p89
    %p91 = scmp.ne.s32.totalorder %s77, %s78
    %p92 = scmp.eq.s32.totalorder %s18, 1
    %p93 = por %p91, %p92
    %p95 = scmp.ne.s32.totalorder %s78, %s94
    %p96 = scmp.eq.s32.totalorder %s18, 0
    %p97 = por %p95, %p96
    %s98 = ssub.s32 %s12, %s19
    %p99 = scmp.eq.s32.totalorder %s98, 0
    %s101 = sadd.s32 %s100, 1
    %s102 = scalar_select %p99, %s100, %s101
    %p105 = pneg %p99
    %p106 = scmp.eq.s32.totalorder %s12, 1
    %p107 = por %p105, %p106
    %p108 = scmp.ne.s32.totalorder %s100, %s103
    %p109 = scmp.eq.s32.totalorder %s12, 0
    %p110 = por %p108, %p109
    %p111 = scmp.ne.s32.totalorder %s100, %s103
    %p112 = scmp.eq.s32.totalorder %s17, 1
    %p113 = por %p111, %p112
    %p114 = scmp.ne.s32.totalorder %s103, %s104
    %p115 = scmp.eq.s32.totalorder %s17, 0
    %p116 = por %p114, %p115
    %p117 = scmp.ne.s32.totalorder %s103, %s104
    %p118 = scmp.eq.s32.totalorder %s18, 1
    %p119 = por %p117, %p118
    %p121 = scmp.ne.s32.totalorder %s104, %s120
    %p122 = scmp.eq.s32.totalorder %s18, 0
    %p123 = por %p121, %p122
    %s125 = sadd.s32 %s124, 1
    %p128 = scmp.eq.s32.totalorder %s12, 1
    %p129 = scmp.ne.s32.totalorder %s124, %s126
    %p130 = scmp.eq.s32.totalorder %s12, 0
    %p131 = por %p129, %p130
    %p132 = scmp.ne.s32.totalorder %s124, %s126
    %p133 = scmp.eq.s32.totalorder %s17, 1
    %p134 = por %p132, %p133
    %p135 = scmp.ne.s32.totalorder %s126, %s127
    %p136 = scmp.eq.s32.totalorder %s17, 0
    %p137 = por %p135, %p136
    %p138 = scmp.ne.s32.totalorder %s126, %s127
    %p139 = scmp.eq.s32.totalorder %s18, 1
    %p140 = por %p138, %p139
    %p142 = scmp.ne.s32.totalorder %s127, %s141
    %p143 = scmp.eq.s32.totalorder %s18, 0
    %p144 = por %p142, %p143
    %s146 = sadd.s32 %s145, 1
    %p149 = scmp.eq.s32.totalorder %s12, 1
    %p150 = scmp.ne.s32.totalorder %s145, %s147
    %p151 = scmp.eq.s32.totalorder %s12, 0
    %p152 = por %p150, %p151
    %p153 = scmp.ne.s32.totalorder %s145, %s147
    %p154 = scmp.eq.s32.totalorder %s17, 1
    %p155 = por %p153, %p154
    %p156 = scmp.ne.s32.totalorder %s147, %s148
    %p157 = scmp.eq.s32.totalorder %s17, 0
    %p158 = por %p156, %p157
    %p159 = scmp.ne.s32.totalorder %s147, %s148
    %p160 = scmp.eq.s32.totalorder %s18, 1
    %p161 = por %p159, %p160
    %p163 = scmp.ne.s32.totalorder %s148, %s162
    %p164 = scmp.eq.s32.totalorder %s18, 0
    %p165 = por %p163, %p164
    %s166 = ssub.s32 %s12, %s19
    %p167 = scmp.eq.s32.totalorder %s166, 0
    %s169 = sadd.s32 %s168, 1
    %s170 = scalar_select %p167, %s168, %s169
    %p173 = pneg %p167
    %p174 = scmp.eq.s32.totalorder %s12, 1
    %p175 = por %p173, %p174
    %p176 = scmp.ne.s32.totalorder %s168, %s171
    %p177 = scmp.eq.s32.totalorder %s12, 0
    %p178 = por %p176, %p177
    %p179 = scmp.ne.s32.totalorder %s168, %s171
    %p180 = scmp.eq.s32.totalorder %s17, 1
    %p181 = por %p179, %p180
    %p182 = scmp.ne.s32.totalorder %s171, %s172
    %p183 = scmp.eq.s32.totalorder %s17, 0
    %p184 = por %p182, %p183
    %p185 = scmp.ne.s32.totalorder %s171, %s172
    %p186 = scmp.eq.s32.totalorder %s18, 1
    %p187 = por %p185, %p186
    %p189 = scmp.ne.s32.totalorder %s172, %s188
    %p190 = scmp.eq.s32.totalorder %s18, 0
    %p191 = por %p189, %p190
    %p192 = scmp.le.s32.totalorder 1, %s12
    %p193 = scmp.lt.s32.totalorder %s12, 3
    %p194 = pnand %p192, %p193
    %p195 = pneg %p194
    // Predicated region
    $region9: #{lenet_variant_forward.4} parent=5 // pred_check
      _
    $region10: #{lenet_variant_forward.4} parent=5 // pred_check_branch
      %197 = sbr.rel (%p194) target = $region12
    $region11: #{lenet_variant_forward.4} parent=5 // pred_region
      %s198 = ssub.s32 %s12, 1
      // Predicated region
      $region13: #{lenet_variant_forward.4} parent=11 // pred_check
        %p199 = pneg %p137
      $region14: #{lenet_variant_forward.4} parent=11 // pred_check_branch
        %201 = sbr.rel (%p199) target = $region16
      $region15: #{lenet_variant_forward.4} parent=11 // pred_region
        _
      $region16: #{lenet_variant_forward.4} parent=11 // pred_fallthru
        _
      // Predicated region
      $region17: #{lenet_variant_forward.4} parent=11 // pred_check
        %p202 = pneg %p158
      $region18: #{lenet_variant_forward.4} parent=11 // pred_check_branch
        %204 = sbr.rel (%p202) target = $region20
      $region19: #{lenet_variant_forward.4} parent=11 // pred_region
        _
      $region20: #{lenet_variant_forward.4} parent=11 // pred_fallthru
        _
    $region12: #{lenet_variant_forward.4} parent=5 // pred_fallthru
      _
    %p205 = scmp.lt.s32.totalorder %s12, 2
    // Predicated region
    $region21: #{lenet_variant_forward.4} parent=5 // pred_check
      %p206 = pneg %p205
    $region22: #{lenet_variant_forward.4} parent=5 // pred_check_branch
      %208 = sbr.rel (%p206) target = $region24
    $region23: #{lenet_variant_forward.4} parent=5 // pred_region
      // Predicated region
      $region25: #{lenet_variant_forward.4} parent=23 // pred_check
        %p209 = pneg %p32
      $region26: #{lenet_variant_forward.4} parent=23 // pred_check_branch
        %211 = sbr.rel (%p209) target = $region28
      $region27: #{lenet_variant_forward.4} parent=23 // pred_region
        %p212 = scmp.lt.s32.totalorder %s12, 1
        %s213 = scalar_select %p212, %s12, 1
        %s214 = smul.addr %s213, 76
        %s215 = smul.addr %s214, 4
        %s216 = scalar_lea.vmem %s0, %s215
      $region28: #{lenet_variant_forward.4} parent=23 // pred_fallthru
        _
      // Predicated region
      $region29: #{lenet_variant_forward.4} parent=23 // pred_check
        %p217 = pneg %p58
      $region30: #{lenet_variant_forward.4} parent=23 // pred_check_branch
        %219 = sbr.rel (%p217) target = $region32
      $region31: #{lenet_variant_forward.4} parent=23 // pred_region
        %p220 = scmp.lt.s32.totalorder %s12, 1
        %s221 = scalar_select %p220, %s12, 1
        %s222 = smul.addr %s221, 76
        %s223 = smul.addr %s222, 4
        %s224 = scalar_lea.vmem %s1, %s223
      $region32: #{lenet_variant_forward.4} parent=23 // pred_fallthru
        _
      // Predicated region
      $region33: #{lenet_variant_forward.4} parent=23 // pred_check
        %p225 = pneg %p84
      $region34: #{lenet_variant_forward.4} parent=23 // pred_check_branch
        %227 = sbr.rel (%p225) target = $region36
      $region35: #{lenet_variant_forward.4} parent=23 // pred_region
        %p228 = scmp.lt.s32.totalorder %s12, 1
        %s229 = scalar_select %p228, %s12, 1
        %s230 = smul.addr %s229, 76
        %s231 = smul.addr %s230, 4
        %s232 = scalar_lea.vmem %s2, %s231
      $region36: #{lenet_variant_forward.4} parent=23 // pred_fallthru
        _
      // Predicated region
      $region37: #{lenet_variant_forward.4} parent=23 // pred_check
        %p233 = pneg %p110
      $region38: #{lenet_variant_forward.4} parent=23 // pred_check_branch
        %235 = sbr.rel (%p233) target = $region40
      $region39: #{lenet_variant_forward.4} parent=23 // pred_region
        %p236 = scmp.lt.s32.totalorder %s12, 1
        %s237 = scalar_select %p236, %s12, 1
        %s238 = smul.addr %s237, 76
        %s239 = smul.addr %s238, 4
        %s240 = scalar_lea.vmem %s3, %s239
      $region40: #{lenet_variant_forward.4} parent=23 // pred_fallthru
        _
    $region24: #{lenet_variant_forward.4} parent=5 // pred_fallthru
      _
    %p241 = scmp.le.s32.totalorder 1, %s12
    %p242 = scmp.lt.s32.totalorder %s12, 3
    %p243 = pnand %p241, %p242
    %p244 = pneg %p243
    // Predicated region
    $region41: #{lenet_variant_forward.4} parent=5 // pred_check
      _
    $region42: #{lenet_variant_forward.4} parent=5 // pred_check_branch
      %246 = sbr.rel (%p243) target = $region44
    $region43: #{lenet_variant_forward.4} parent=5 // pred_region
      %s247 = ssub.s32 %s12, 1
      %p248 = scmp.lt.s32.totalorder %s17, 1
      %s249 = scalar_select %p248, %s17, 1
      %s250 = smul.addr %s249, 76
      %s251 = smul.addr %s250, 4
      %s252 = scalar_lea.vmem %s0, %s251
      %p253 = pneg %p38
      %p254 = pneg %p35
      %p255 = scmp.lt.s32.totalorder %s17, 1
      %s256 = scalar_select %p255, %s17, 1
      %s257 = smul.addr %s256, 76
      %s258 = smul.addr %s257, 4
      %s259 = scalar_lea.vmem %s1, %s258
      %p260 = pneg %p64
      %p261 = pneg %p61
      %p262 = scmp.lt.s32.totalorder %s17, 1
      %s263 = scalar_select %p262, %s17, 1
      %s264 = smul.addr %s263, 76
      %s265 = smul.addr %s264, 4
      %s266 = scalar_lea.vmem %s2, %s265
      %p267 = pneg %p90
      %p268 = pneg %p87
      %p269 = scmp.lt.s32.totalorder %s17, 1
      %s270 = scalar_select %p269, %s17, 1
      %s271 = smul.addr %s270, 76
      %s272 = smul.addr %s271, 4
      %s273 = scalar_lea.vmem %s3, %s272
      %p274 = pneg %p116
      %p275 = pneg %p113
      %p276 = pneg %p137
      %p277 = pneg %p134
      %p278 = pneg %p158
      %p279 = pneg %p155
      %p280 = pneg %p184
      %p281 = pneg %p181
      %p282 = scmp.lt.s32.totalorder %s17, 1
      %s283 = scalar_select %p282, %s17, 1
      %s284 = smul.addr %s283, 8
      %s285 = smul.addr %s284, 4
      %s286 = scalar_lea.vmem %s6, %s285
      %p287 = scmp.lt.s32.totalorder %s17, 1
      %s288 = scalar_select %p287, %s17, 1
      %s289 = smul.addr %s288, 76
      %s290 = smul.addr %s289, 4
      %s291 = scalar_lea.vmem %s0, %s290
      %p292 = scmp.lt.s32.totalorder %s17, 1
      %s293 = scalar_select %p292, %s17, 1
      %s294 = smul.addr %s293, 76
      %s295 = smul.addr %s294, 4
      %s296 = scalar_lea.vmem %s1, %s295
      %p297 = scmp.lt.s32.totalorder %s17, 1
      %s298 = scalar_select %p297, %s17, 1
      %s299 = smul.addr %s298, 76
      %s300 = smul.addr %s299, 4
      %s301 = scalar_lea.vmem %s2, %s300
      %p302 = scmp.lt.s32.totalorder %s17, 1
      %s303 = scalar_select %p302, %s17, 1
      %s304 = smul.addr %s303, 76
      %s305 = smul.addr %s304, 4
      %s306 = scalar_lea.vmem %s3, %s305
      %p307 = scmp.lt.s32.totalorder %s17, 1
      %s308 = scalar_select %p307, %s17, 1
      %s309 = smul.addr %s308, 8
      %s310 = smul.addr %s309, 4
      %s311 = scalar_lea.vmem %s6, %s310
      %v313 = vld [vmem:[%s4] sm:$0xff]
      %v314 = vld [vmem:[%s4 + $0x8] sm:$0xff]
      %v315 = vld [vmem:[%s291] sm:$0xff]
      %v316 = vld [vmem:[%s291 + $0x8] sm:$0xff]
      %v317 = vld [vmem:[%s291 + $0x10] sm:$0xff]
      %v318 = vld [vmem:[%s291 + $0x18] sm:$0xff]
      %v319 = vld [vmem:[%s291 + $0x20] sm:$0xff]
      %v320 = vld [vmem:[%s291 + $0x28] sm:$0xff]
      %v321 = vld [vmem:[%s291 + $0x30] sm:$0xff]
      %v322 = vld [vmem:[%s291 + $0x38] sm:$0xff]
      %v323 = vld [vmem:[%s291 + $0x40] sm:$0xff]
      %v324 = vld [vmem:[%s291 + $0x48] sm:$0xff]
      %v325 = vld [vmem:[%s291 + $0x50] sm:$0xff]
      %v326 = vld [vmem:[%s291 + $0x58] sm:$0xff]
      %v327 = vld [vmem:[%s291 + $0x60] sm:$0xff]
      %v328 = vld [vmem:[%s291 + $0x68] sm:$0xff]
      %v329 = vld [vmem:[%s291 + $0x70] sm:$0xff]
      %v330 = vld [vmem:[%s291 + $0x78] sm:$0xff]
      %v331 = vld [vmem:[%s291 + $0x80] sm:$0xff]
      %v332 = vld [vmem:[%s291 + $0x88] sm:$0xff]
      %v333 = vld [vmem:[%s291 + $0x90] sm:$0xff]
      %v334 = vld [vmem:[%s291 + $0x98] sm:$0xff]
      %v335 = vld [vmem:[%s291 + $0xa0] sm:$0xff]
      %v336 = vld [vmem:[%s291 + $0xa8] sm:$0xff]
      %v337 = vld [vmem:[%s291 + $0xb0] sm:$0xff]
      %v338 = vld [vmem:[%s291 + $0xb8] sm:$0xff]
      %v339 = vld [vmem:[%s291 + $0xc0] sm:$0xff]
      %v340 = vld [vmem:[%s291 + $0xc8] sm:$0xff]
      %v341 = vld [vmem:[%s291 + $0xd0] sm:$0xff]
      %v342 = vld [vmem:[%s291 + $0xd8] sm:$0xff]
      %v343 = vld [vmem:[%s291 + $0xe0] sm:$0xff]
      %v344 = vld [vmem:[%s291 + $0xe8] sm:$0xff]
      %v345 = vld [vmem:[%s291 + $0xf0] sm:$0xff]
      %v346 = vld [vmem:[%s291 + $0xf8] sm:$0xff]
      %v347 = vld [vmem:[%s291 + $0x100] sm:$0xff]
      %v348 = vld [vmem:[%s291 + $0x108] sm:$0xff]
      %v349 = vld [vmem:[%s291 + $0x110] sm:$0xff]
      %v350 = vld [vmem:[%s291 + $0x118] sm:$0xff]
      %v351 = vld [vmem:[%s291 + $0x120] sm:$0x77]
      %v352 = vld [vmem:[%s291 + $0x128] sm:$0x77]
      %v355 = vunpack.c.l.b16 %v313
      %v356 = vunpack.c.h.b16 %v313
      %v357 = vunpack.c.l.b16 %v314
      %v358 = vunpack.c.h.b16 %v314
      %v359 = vpack.c.b16 %v357, %v355
      %v360 = vpack.c.b16 %v358, %v356
      %v400 = vunpack.c.l.b16 %v315
      %v401 = vunpack.c.h.b16 %v315
      %v402 = vunpack.c.l.b16 %v316
      %v403 = vunpack.c.h.b16 %v316
      %v404 = vunpack.c.l.b16 %v317
      %v405 = vunpack.c.h.b16 %v317
      %v406 = vunpack.c.l.b16 %v318
      %v407 = vunpack.c.h.b16 %v318
      %v408 = vunpack.c.l.b16 %v319
      %v409 = vunpack.c.h.b16 %v319
      %v410 = vunpack.c.l.b16 %v320
      %v411 = vunpack.c.h.b16 %v320
      %v412 = vunpack.c.l.b16 %v321
      %v413 = vunpack.c.h.b16 %v321
      %v414 = vunpack.c.l.b16 %v322
      %v415 = vunpack.c.h.b16 %v322
      %v416 = vunpack.c.l.b16 %v323
      %v417 = vunpack.c.h.b16 %v323
      %v418 = vunpack.c.l.b16 %v324
      %v419 = vunpack.c.h.b16 %v324
      %v420 = vunpack.c.l.b16 %v325
      %v421 = vunpack.c.h.b16 %v325
      %v422 = vunpack.c.l.b16 %v326
      %v423 = vunpack.c.h.b16 %v326
      %v424 = vunpack.c.l.b16 %v327
      %v425 = vunpack.c.h.b16 %v327
      %v426 = vunpack.c.l.b16 %v328
      %v427 = vunpack.c.h.b16 %v328
      %v428 = vunpack.c.l.b16 %v329
      %v429 = vunpack.c.h.b16 %v329
      %v430 = vunpack.c.l.b16 %v330
      %v431 = vunpack.c.h.b16 %v330
      %v432 = vunpack.c.l.b16 %v331
      %v433 = vunpack.c.h.b16 %v331
      %v434 = vunpack.c.l.b16 %v332
      %v435 = vunpack.c.h.b16 %v332
      %v436 = vunpack.c.l.b16 %v333
      %v437 = vunpack.c.h.b16 %v333
      %v438 = vunpack.c.l.b16 %v334
      %v439 = vunpack.c.h.b16 %v334
      %v440 = vunpack.c.l.b16 %v335
      %v441 = vunpack.c.h.b16 %v335
      %v442 = vunpack.c.l.b16 %v336
      %v443 = vunpack.c.h.b16 %v336
      %v444 = vunpack.c.l.b16 %v337
      %v445 = vunpack.c.h.b16 %v337
      %v446 = vunpack.c.l.b16 %v338
      %v447 = vunpack.c.h.b16 %v338
      %v448 = vunpack.c.l.b16 %v339
      %v449 = vunpack.c.h.b16 %v339
      %v450 = vunpack.c.l.b16 %v340
      %v451 = vunpack.c.h.b16 %v340
      %v452 = vunpack.c.l.b16 %v341
      %v453 = vunpack.c.h.b16 %v341
      %v454 = vunpack.c.l.b16 %v342
      %v455 = vunpack.c.h.b16 %v342
      %v456 = vunpack.c.l.b16 %v343
      %v457 = vunpack.c.h.b16 %v343
      %v458 = vunpack.c.l.b16 %v344
      %v459 = vunpack.c.h.b16 %v344
      %v460 = vunpack.c.l.b16 %v345
      %v461 = vunpack.c.h.b16 %v345
      %v462 = vunpack.c.l.b16 %v346
      %v463 = vunpack.c.h.b16 %v346
      %v464 = vunpack.c.l.b16 %v347
      %v465 = vunpack.c.h.b16 %v347
      %v466 = vunpack.c.l.b16 %v348
      %v467 = vunpack.c.h.b16 %v348
      %v468 = vunpack.c.l.b16 %v349
      %v469 = vunpack.c.h.b16 %v349
      %v470 = vunpack.c.l.b16 %v350
      %v471 = vunpack.c.h.b16 %v350
      %v472 = vunpack.c.l.b16 %v351
      %v473 = vunpack.c.h.b16 %v351
      %v474 = vunpack.c.l.b16 %v352
      %v475 = vunpack.c.h.b16 %v352
      %v476 = vpack.c.b16 %v404, %v400
      %v477 = vpack.c.b16 %v405, %v401
      %v478 = vpack.c.b16 %v406, %v402
      %v479 = vpack.c.b16 %v407, %v403
      %v480 = vpack.c.b16 %v412, %v408
      %v481 = vpack.c.b16 %v413, %v409
      %v482 = vpack.c.b16 %v414, %v410
      %v483 = vpack.c.b16 %v415, %v411
      %v484 = vpack.c.b16 %v420, %v416
      %v485 = vpack.c.b16 %v421, %v417
      %v486 = vpack.c.b16 %v422, %v418
      %v487 = vpack.c.b16 %v423, %v419
      %v488 = vpack.c.b16 %v428, %v424
      %v489 = vpack.c.b16 %v429, %v425
      %v490 = vpack.c.b16 %v430, %v426
      %v491 = vpack.c.b16 %v431, %v427
      %v492 = vpack.c.b16 %v436, %v432
      %v493 = vpack.c.b16 %v437, %v433
      %v494 = vpack.c.b16 %v438, %v434
      %v495 = vpack.c.b16 %v439, %v435
      %v496 = vpack.c.b16 %v444, %v440
      %v497 = vpack.c.b16 %v445, %v441
      %v498 = vpack.c.b16 %v446, %v442
      %v499 = vpack.c.b16 %v447, %v443
      %v500 = vpack.c.b16 %v452, %v448
      %v501 = vpack.c.b16 %v453, %v449
      %v502 = vpack.c.b16 %v454, %v450
      %v503 = vpack.c.b16 %v455, %v451
      %v504 = vpack.c.b16 %v460, %v456
      %v505 = vpack.c.b16 %v461, %v457
      %v506 = vpack.c.b16 %v462, %v458
      %v507 = vpack.c.b16 %v463, %v459
      %v508 = vpack.c.b16 %v468, %v464
      %v509 = vpack.c.b16 %v469, %v465
      %v510 = vpack.c.b16 %v470, %v466
      %v511 = vpack.c.b16 %v471, %v467
      %v512 = vpack.c.b16 %v472, %v472
      %v513 = vpack.c.b16 %v473, %v473
      %v514 = vpack.c.b16 %v474, %v474
      %v515 = vpack.c.b16 %v475, %v475
      %vm552 = vcmask 179200
      %v554 = vsel %vm552, %v360, 0
      %vm556 = vcmask 1042432
      %v558 = vsel %vm556, %v512, 0
      %v561 = vsel %vm556, %v513, 0
      %v564 = vsel %vm556, %v514, 0
      %v567 = vsel %vm556, %v515, 0
      %569 = vmatprep.subr.bf16.mxu0 %v477
      %570 = vmatpush1.bf16.msra.mxu0 %v476
      %571 = vmatprep.subr.bf16.mxu0 %v481
      %572 = vmatpush1.bf16.msra.mxu0 %v480
      %573 = vmatprep.subr.bf16.mxu0 %v485
      %574 = vmatpush1.bf16.msra.mxu0 %v484
      %575 = vmatprep.subr.bf16.mxu0 %v489
      %576 = vmatpush1.bf16.msra.mxu0 %v488
      %577 = vmatprep.subr.bf16.mxu0 %v493
      %578 = vmatpush1.bf16.msra.mxu0 %v492
      %579 = vmatprep.subr.bf16.mxu0 %v497
      %580 = vmatpush1.bf16.msra.mxu0 %v496
      %581 = vmatprep.subr.bf16.mxu0 %v501
      %582 = vmatpush1.bf16.msra.mxu0 %v500
      %583 = vmatprep.subr.bf16.mxu0 %v505
      %584 = vmatpush1.bf16.msra.mxu0 %v504
      %585 = vmatprep.subr.bf16.mxu0 %v509
      %586 = vmatpush1.bf16.msra.mxu0 %v508
      %587 = vmatprep.subr.bf16.mxu0 %v561
      %588 = vmatpush1.bf16.msra.mxu0 %v558
      %589 = vmatprep.subr.bf16.mxu0 0
      %590 = vmatpush1.bf16.msra.mxu0 0
      %591 = vmatprep.subr.bf16.mxu0 0
      %592 = vmatpush1.bf16.msra.mxu0 0
      %593 = vmatprep.subr.bf16.mxu0 0
      %594 = vmatpush1.bf16.msra.mxu0 0
      %595 = vmatprep.subr.bf16.mxu0 0
      %596 = vmatpush1.bf16.msra.mxu0 0
      %597 = vmatprep.subr.bf16.mxu0 0
      %598 = vmatpush1.bf16.msra.mxu0 0
      %599 = vmatprep.subr.bf16.mxu0 0
      %600 = vmatpush1.bf16.msra.mxu0 0
      %601 = vmatprep.mubr.bf16.mxu0 %v554
      %602 = vmatmul.mubr.bf16.gmra.mrb[0].mxu0 %v359
      %v603 = vpop.f32.mrb[0].mxu0
      %v604 = vadd.f32 0.0, %v603
      %v605 = vpop.f32.mrb[0].mxu0
      %v606 = vadd.f32 0.0, %v605
      %v607 = vpop.f32.mrb[0].mxu0
      %v608 = vadd.f32 0.0, %v607
      %v609 = vpop.f32.mrb[0].mxu0
      %v610 = vadd.f32 0.0, %v609
      %611 = vdwg.mxu0
      %612 = vmatprep.subr.bf16.mxu0 %v479
      %613 = vmatpush1.bf16.msra.mxu0 %v478
      %614 = vmatprep.subr.bf16.mxu0 %v483
      %615 = vmatpush1.bf16.msra.mxu0 %v482
      %616 = vmatprep.subr.bf16.mxu0 %v487
      %617 = vmatpush1.bf16.msra.mxu0 %v486
      %618 = vmatprep.subr.bf16.mxu0 %v491
      %619 = vmatpush1.bf16.msra.mxu0 %v490
      %620 = vmatprep.subr.bf16.mxu0 %v495
      %621 = vmatpush1.bf16.msra.mxu0 %v494
      %622 = vmatprep.subr.bf16.mxu0 %v499
      %623 = vmatpush1.bf16.msra.mxu0 %v498
      %624 = vmatprep.subr.bf16.mxu0 %v503
      %625 = vmatpush1.bf16.msra.mxu0 %v502
      %626 = vmatprep.subr.bf16.mxu0 %v507
      %627 = vmatpush1.bf16.msra.mxu0 %v506
      %628 = vmatprep.subr.bf16.mxu0 %v511
      %629 = vmatpush1.bf16.msra.mxu0 %v510
      %630 = vmatprep.subr.bf16.mxu0 %v567
      %631 = vmatpush1.bf16.msra.mxu0 %v564
      %632 = vmatprep.subr.bf16.mxu0 0
      %633 = vmatpush1.bf16.msra.mxu0 0
      %634 = vmatprep.subr.bf16.mxu0 0
      %635 = vmatpush1.bf16.msra.mxu0 0
      %636 = vmatprep.subr.bf16.mxu0 0
      %637 = vmatpush1.bf16.msra.mxu0 0
      %638 = vmatprep.subr.bf16.mxu0 0
      %639 = vmatpush1.bf16.msra.mxu0 0
      %640 = vmatprep.subr.bf16.mxu0 0
      %641 = vmatpush1.bf16.msra.mxu0 0
      %642 = vmatprep.subr.bf16.mxu0 0
      %643 = vmatpush1.bf16.msra.mxu0 0
      %644 = vmatprep.mubr.bf16.mxu0 %v554
      %645 = vmatmul.mubr.bf16.gmra.mrb[0].mxu0 %v359
      %v646 = vpop.f32.mrb[0].mxu0
      %v647 = vadd.f32 0.0, %v646
      %v648 = vpop.f32.mrb[0].mxu0
      %v649 = vadd.f32 0.0, %v648
      %v650 = vpop.f32.mrb[0].mxu0
      %v651 = vadd.f32 0.0, %v650
      %v652 = vpop.f32.mrb[0].mxu0
      %v653 = vadd.f32 0.0, %v652
      %654 = vdwg.mxu0
      %v655 = vld [vmem:[%s296] sm:$0xff]
      %v656 = vld [vmem:[%s296 + $0x8] sm:$0xff]
      %v657 = vld [vmem:[%s296 + $0x10] sm:$0xff]
      %v658 = vld [vmem:[%s296 + $0x18] sm:$0xff]
      %v659 = vld [vmem:[%s296 + $0x20] sm:$0xff]
      %v660 = vld [vmem:[%s296 + $0x28] sm:$0xff]
      %v661 = vld [vmem:[%s296 + $0x30] sm:$0xff]
      %v662 = vld [vmem:[%s296 + $0x38] sm:$0xff]
      %v663 = vld [vmem:[%s296 + $0x40] sm:$0xff]
      %v664 = vld [vmem:[%s296 + $0x48] sm:$0xff]
      %v665 = vld [vmem:[%s296 + $0x50] sm:$0xff]
      %v666 = vld [vmem:[%s296 + $0x58] sm:$0xff]
      %v667 = vld [vmem:[%s296 + $0x60] sm:$0xff]
      %v668 = vld [vmem:[%s296 + $0x68] sm:$0xff]
      %v669 = vld [vmem:[%s296 + $0x70] sm:$0xff]
      %v670 = vld [vmem:[%s296 + $0x78] sm:$0xff]
      %v671 = vld [vmem:[%s296 + $0x80] sm:$0xff]
      %v672 = vld [vmem:[%s296 + $0x88] sm:$0xff]
      %v673 = vld [vmem:[%s296 + $0x90] sm:$0xff]
      %v674 = vld [vmem:[%s296 + $0x98] sm:$0xff]
      %v675 = vld [vmem:[%s296 + $0xa0] sm:$0xff]
      %v676 = vld [vmem:[%s296 + $0xa8] sm:$0xff]
      %v677 = vld [vmem:[%s296 + $0xb0] sm:$0xff]
      %v678 = vld [vmem:[%s296 + $0xb8] sm:$0xff]
      %v679 = vld [vmem:[%s296 + $0xc0] sm:$0xff]
      %v680 = vld [vmem:[%s296 + $0xc8] sm:$0xff]
      %v681 = vld [vmem:[%s296 + $0xd0] sm:$0xff]
      %v682 = vld [vmem:[%s296 + $0xd8] sm:$0xff]
      %v683 = vld [vmem:[%s296 + $0xe0] sm:$0xff]
      %v684 = vld [vmem:[%s296 + $0xe8] sm:$0xff]
      %v685 = vld [vmem:[%s296 + $0xf0] sm:$0xff]
      %v686 = vld [vmem:[%s296 + $0xf8] sm:$0xff]
      %v687 = vld [vmem:[%s296 + $0x100] sm:$0xff]
      %v688 = vld [vmem:[%s296 + $0x108] sm:$0xff]
      %v689 = vld [vmem:[%s296 + $0x110] sm:$0xff]
      %v690 = vld [vmem:[%s296 + $0x118] sm:$0xff]
      %v691 = vld [vmem:[%s296 + $0x120] sm:$0x77]
      %v692 = vld [vmem:[%s296 + $0x128] sm:$0x77]
      %v731 = vunpack.c.l.b16 %v655
      %v732 = vunpack.c.h.b16 %v655
      %v733 = vunpack.c.l.b16 %v656
      %v734 = vunpack.c.h.b16 %v656
      %v735 = vunpack.c.l.b16 %v657
      %v736 = vunpack.c.h.b16 %v657
      %v737 = vunpack.c.l.b16 %v658
      %v738 = vunpack.c.h.b16 %v658
      %v739 = vunpack.c.l.b16 %v659
      %v740 = vunpack.c.h.b16 %v659
      %v741 = vunpack.c.l.b16 %v660
      %v742 = vunpack.c.h.b16 %v660
      %v743 = vunpack.c.l.b16 %v661
      %v744 = vunpack.c.h.b16 %v661
      %v745 = vunpack.c.l.b16 %v662
      %v746 = vunpack.c.h.b16 %v662
      %v747 = vunpack.c.l.b16 %v663
      %v748 = vunpack.c.h.b16 %v663
      %v749 = vunpack.c.l.b16 %v664
      %v750 = vunpack.c.h.b16 %v664
      %v751 = vunpack.c.l.b16 %v665
      %v752 = vunpack.c.h.b16 %v665
      %v753 = vunpack.c.l.b16 %v666
      %v754 = vunpack.c.h.b16 %v666
      %v755 = vunpack.c.l.b16 %v667
      %v756 = vunpack.c.h.b16 %v667
      %v757 = vunpack.c.l.b16 %v668
      %v758 = vunpack.c.h.b16 %v668
      %v759 = vunpack.c.l.b16 %v669
      %v760 = vunpack.c.h.b16 %v669
      %v761 = vunpack.c.l.b16 %v670
      %v762 = vunpack.c.h.b16 %v670
      %v763 = vunpack.c.l.b16 %v671
      %v764 = vunpack.c.h.b16 %v671
      %v765 = vunpack.c.l.b16 %v672
      %v766 = vunpack.c.h.b16 %v672
      %v767 = vunpack.c.l.b16 %v673
      %v768 = vunpack.c.h.b16 %v673
      %v769 = vunpack.c.l.b16 %v674
      %v770 = vunpack.c.h.b16 %v674
      %v771 = vunpack.c.l.b16 %v675
      %v772 = vunpack.c.h.b16 %v675
      %v773 = vunpack.c.l.b16 %v676
      %v774 = vunpack.c.h.b16 %v676
      %v775 = vunpack.c.l.b16 %v677
      %v776 = vunpack.c.h.b16 %v677
      %v777 = vunpack.c.l.b16 %v678
      %v778 = vunpack.c.h.b16 %v678
      %v779 = vunpack.c.l.b16 %v679
      %v780 = vunpack.c.h.b16 %v679
      %v781 = vunpack.c.l.b16 %v680
      %v782 = vunpack.c.h.b16 %v680
      %v783 = vunpack.c.l.b16 %v681
      %v784 = vunpack.c.h.b16 %v681
      %v785 = vunpack.c.l.b16 %v682
      %v786 = vunpack.c.h.b16 %v682
      %v787 = vunpack.c.l.b16 %v683
      %v788 = vunpack.c.h.b16 %v683
      %v789 = vunpack.c.l.b16 %v684
      %v790 = vunpack.c.h.b16 %v684
      %v791 = vunpack.c.l.b16 %v685
      %v792 = vunpack.c.h.b16 %v685
      %v793 = vunpack.c.l.b16 %v686
      %v794 = vunpack.c.h.b16 %v686
      %v795 = vunpack.c.l.b16 %v687
      %v796 = vunpack.c.h.b16 %v687
      %v797 = vunpack.c.l.b16 %v688
      %v798 = vunpack.c.h.b16 %v688
      %v799 = vunpack.c.l.b16 %v689
      %v800 = vunpack.c.h.b16 %v689
      %v801 = vunpack.c.l.b16 %v690
      %v802 = vunpack.c.h.b16 %v690
      %v803 = vunpack.c.l.b16 %v691
      %v804 = vunpack.c.h.b16 %v691
      %v805 = vunpack.c.l.b16 %v692
      %v806 = vunpack.c.h.b16 %v692
      %v807 = vpack.c.b16 %v735, %v731
      %v808 = vpack.c.b16 %v736, %v732
      %v809 = vpack.c.b16 %v737, %v733
      %v810 = vpack.c.b16 %v738, %v734
      %v811 = vpack.c.b16 %v743, %v739
      %v812 = vpack.c.b16 %v744, %v740
      %v813 = vpack.c.b16 %v745, %v741
      %v814 = vpack.c.b16 %v746, %v742
      %v815 = vpack.c.b16 %v751, %v747
      %v816 = vpack.c.b16 %v752, %v748
      %v817 = vpack.c.b16 %v753, %v749
      %v818 = vpack.c.b16 %v754, %v750
      %v819 = vpack.c.b16 %v759, %v755
      %v820 = vpack.c.b16 %v760, %v756
      %v821 = vpack.c.b16 %v761, %v757
      %v822 = vpack.c.b16 %v762, %v758
      %v823 = vpack.c.b16 %v767, %v763
      %v824 = vpack.c.b16 %v768, %v764
      %v825 = vpack.c.b16 %v769, %v765
      %v826 = vpack.c.b16 %v770, %v766
      %v827 = vpack.c.b16 %v775, %v771
      %v828 = vpack.c.b16 %v776, %v772
      %v829 = vpack.c.b16 %v777, %v773
      %v830 = vpack.c.b16 %v778, %v774
      %v831 = vpack.c.b16 %v783, %v779
      %v832 = vpack.c.b16 %v784, %v780
      %v833 = vpack.c.b16 %v785, %v781
      %v834 = vpack.c.b16 %v786, %v782
      %v835 = vpack.c.b16 %v791, %v787
      %v836 = vpack.c.b16 %v792, %v788
      %v837 = vpack.c.b16 %v793, %v789
      %v838 = vpack.c.b16 %v794, %v790
      %v839 = vpack.c.b16 %v799, %v795
      %v840 = vpack.c.b16 %v800, %v796
      %v841 = vpack.c.b16 %v801, %v797
      %v842 = vpack.c.b16 %v802, %v798
      %v843 = vpack.c.b16 %v803, %v803
      %v844 = vpack.c.b16 %v804, %v804
      %v845 = vpack.c.b16 %v805, %v805
      %v846 = vpack.c.b16 %v806, %v806
      %v884 = vsel %vm556, %v843, 0
      %v887 = vsel %vm556, %v844, 0
      %v890 = vsel %vm556, %v845, 0
      %v893 = vsel %vm556, %v846, 0
      %895 = vmatprep.subr.bf16.mxu0 %v808
      %896 = vmatpush1.bf16.msra.mxu0 %v807
      %897 = vmatprep.subr.bf16.mxu0 %v812
      %898 = vmatpush1.bf16.msra.mxu0 %v811
      %899 = vmatprep.subr.bf16.mxu0 %v816
      %900 = vmatpush1.bf16.msra.mxu0 %v815
      %901 = vmatprep.subr.bf16.mxu0 %v820
      %902 = vmatpush1.bf16.msra.mxu0 %v819
      %903 = vmatprep.subr.bf16.mxu0 %v824
      %904 = vmatpush1.bf16.msra.mxu0 %v823
      %905 = vmatprep.subr.bf16.mxu0 %v828
      %906 = vmatpush1.bf16.msra.mxu0 %v827
      %907 = vmatprep.subr.bf16.mxu0 %v832
      %908 = vmatpush1.bf16.msra.mxu0 %v831
      %909 = vmatprep.subr.bf16.mxu0 %v836
      %910 = vmatpush1.bf16.msra.mxu0 %v835
      %911 = vmatprep.subr.bf16.mxu0 %v840
      %912 = vmatpush1.bf16.msra.mxu0 %v839
      %913 = vmatprep.subr.bf16.mxu0 %v887
      %914 = vmatpush1.bf16.msra.mxu0 %v884
      %915 = vmatprep.subr.bf16.mxu0 0
      %916 = vmatpush1.bf16.msra.mxu0 0
      %917 = vmatprep.subr.bf16.mxu0 0
      %918 = vmatpush1.bf16.msra.mxu0 0
      %919 = vmatprep.subr.bf16.mxu0 0
      %920 = vmatpush1.bf16.msra.mxu0 0
      %921 = vmatprep.subr.bf16.mxu0 0
      %922 = vmatpush1.bf16.msra.mxu0 0
      %923 = vmatprep.subr.bf16.mxu0 0
      %924 = vmatpush1.bf16.msra.mxu0 0
      %925 = vmatprep.subr.bf16.mxu0 0
      %926 = vmatpush1.bf16.msra.mxu0 0
      %927 = vmatprep.mubr.bf16.mxu0 %v554
      %928 = vmatmul.mubr.bf16.gmra.mrb[0].mxu0 %v359
      %v929 = vpop.f32.mrb[0].mxu0
      %v930 = vadd.f32 0.0, %v929
      %v931 = vpop.f32.mrb[0].mxu0
      %v932 = vadd.f32 0.0, %v931
      %v933 = vpop.f32.mrb[0].mxu0
      %v934 = vadd.f32 0.0, %v933
      %v935 = vpop.f32.mrb[0].mxu0
      %v936 = vadd.f32 0.0, %v935
      %937 = vdwg.mxu0
      %938 = vmatprep.subr.bf16.mxu0 %v810
      %939 = vmatpush1.bf16.msra.mxu0 %v809
      %940 = vmatprep.subr.bf16.mxu0 %v814
      %941 = vmatpush1.bf16.msra.mxu0 %v813
      %942 = vmatprep.subr.bf16.mxu0 %v818
      %943 = vmatpush1.bf16.msra.mxu0 %v817
      %944 = vmatprep.subr.bf16.mxu0 %v822
      %945 = vmatpush1.bf16.msra.mxu0 %v821
      %946 = vmatprep.subr.bf16.mxu0 %v826
      %947 = vmatpush1.bf16.msra.mxu0 %v825
      %948 = vmatprep.subr.bf16.mxu0 %v830
      %949 = vmatpush1.bf16.msra.mxu0 %v829
      %950 = vmatprep.subr.bf16.mxu0 %v834
      %951 = vmatpush1.bf16.msra.mxu0 %v833
      %952 = vmatprep.subr.bf16.mxu0 %v838
      %953 = vmatpush1.bf16.msra.mxu0 %v837
      %954 = vmatprep.subr.bf16.mxu0 %v842
      %955 = vmatpush1.bf16.msra.mxu0 %v841
      %956 = vmatprep.subr.bf16.mxu0 %v893
      %957 = vmatpush1.bf16.msra.mxu0 %v890
      %958 = vmatprep.subr.bf16.mxu0 0
      %959 = vmatpush1.bf16.msra.mxu0 0
      %960 = vmatprep.subr.bf16.mxu0 0
      %961 = vmatpush1.bf16.msra.mxu0 0
      %962 = vmatprep.subr.bf16.mxu0 0
      %963 = vmatpush1.bf16.msra.mxu0 0
      %964 = vmatprep.subr.bf16.mxu0 0
      %965 = vmatpush1.bf16.msra.mxu0 0
      %966 = vmatprep.subr.bf16.mxu0 0
      %967 = vmatpush1.bf16.msra.mxu0 0
      %968 = vmatprep.subr.bf16.mxu0 0
      %969 = vmatpush1.bf16.msra.mxu0 0
      %970 = vmatprep.mubr.bf16.mxu0 %v554
      %971 = vmatmul.mubr.bf16.gmra.mrb[0].mxu0 %v359
      %v972 = vpop.f32.mrb[0].mxu0
      %v973 = vadd.f32 0.0, %v972
      %v974 = vpop.f32.mrb[0].mxu0
      %v975 = vadd.f32 0.0, %v974
      %v976 = vpop.f32.mrb[0].mxu0
      %v977 = vadd.f32 0.0, %v976
      %v978 = vpop.f32.mrb[0].mxu0
      %v979 = vadd.f32 0.0, %v978
      %980 = vdwg.mxu0
      %v981 = vmax.f32 %v604, %v930
      %v982 = vmax.f32 %v606, %v932
      %v983 = vmax.f32 %v647, %v973
      %v984 = vmax.f32 %v649, %v975
      %v985 = vmax.f32 %v608, %v934
      %v986 = vmax.f32 %v610, %v936
      %v987 = vmax.f32 %v651, %v977
      %v988 = vmax.f32 %v653, %v979
      %v989 = vld [vmem:[%s301] sm:$0xff]
      %v990 = vld [vmem:[%s301 + $0x8] sm:$0xff]
      %v991 = vld [vmem:[%s301 + $0x10] sm:$0xff]
      %v992 = vld [vmem:[%s301 + $0x18] sm:$0xff]
      %v993 = vld [vmem:[%s301 + $0x20] sm:$0xff]
      %v994 = vld [vmem:[%s301 + $0x28] sm:$0xff]
      %v995 = vld [vmem:[%s301 + $0x30] sm:$0xff]
      %v996 = vld [vmem:[%s301 + $0x38] sm:$0xff]
      %v997 = vld [vmem:[%s301 + $0x40] sm:$0xff]
      %v998 = vld [vmem:[%s301 + $0x48] sm:$0xff]
      %v999 = vld [vmem:[%s301 + $0x50] sm:$0xff]
      %v1000 = vld [vmem:[%s301 + $0x58] sm:$0xff]
      %v1001 = vld [vmem:[%s301 + $0x60] sm:$0xff]
      %v1002 = vld [vmem:[%s301 + $0x68] sm:$0xff]
      %v1003 = vld [vmem:[%s301 + $0x70] sm:$0xff]
      %v1004 = vld [vmem:[%s301 + $0x78] sm:$0xff]
      %v1005 = vld [vmem:[%s301 + $0x80] sm:$0xff]
      %v1006 = vld [vmem:[%s301 + $0x88] sm:$0xff]
      %v1007 = vld [vmem:[%s301 + $0x90] sm:$0xff]
      %v1008 = vld [vmem:[%s301 + $0x98] sm:$0xff]
      %v1009 = vld [vmem:[%s301 + $0xa0] sm:$0xff]
      %v1010 = vld [vmem:[%s301 + $0xa8] sm:$0xff]
      %v1011 = vld [vmem:[%s301 + $0xb0] sm:$0xff]
      %v1012 = vld [vmem:[%s301 + $0xb8] sm:$0xff]
      %v1013 = vld [vmem:[%s301 + $0xc0] sm:$0xff]
      %v1014 = vld [vmem:[%s301 + $0xc8] sm:$0xff]
      %v1015 = vld [vmem:[%s301 + $0xd0] sm:$0xff]
      %v1016 = vld [vmem:[%s301 + $0xd8] sm:$0xff]
      %v1017 = vld [vmem:[%s301 + $0xe0] sm:$0xff]
      %v1018 = vld [vmem:[%s301 + $0xe8] sm:$0xff]
      %v1019 = vld [vmem:[%s301 + $0xf0] sm:$0xff]
      %v1020 = vld [vmem:[%s301 + $0xf8] sm:$0xff]
      %v1021 = vld [vmem:[%s301 + $0x100] sm:$0xff]
      %v1022 = vld [vmem:[%s301 + $0x108] sm:$0xff]
      %v1023 = vld [vmem:[%s301 + $0x110] sm:$0xff]
      %v1024 = vld [vmem:[%s301 + $0x118] sm:$0xff]
      %v1025 = vld [vmem:[%s301 + $0x120] sm:$0x77]
      %v1026 = vld [vmem:[%s301 + $0x128] sm:$0x77]
      %v1065 = vunpack.c.l.b16 %v989
      %v1066 = vunpack.c.h.b16 %v989
      %v1067 = vunpack.c.l.b16 %v990
      %v1068 = vunpack.c.h.b16 %v990
      %v1069 = vunpack.c.l.b16 %v991
      %v1070 = vunpack.c.h.b16 %v991
      %v1071 = vunpack.c.l.b16 %v992
      %v1072 = vunpack.c.h.b16 %v992
      %v1073 = vunpack.c.l.b16 %v993
      %v1074 = vunpack.c.h.b16 %v993
      %v1075 = vunpack.c.l.b16 %v994
      %v1076 = vunpack.c.h.b16 %v994
      %v1077 = vunpack.c.l.b16 %v995
      %v1078 = vunpack.c.h.b16 %v995
      %v1079 = vunpack.c.l.b16 %v996
      %v1080 = vunpack.c.h.b16 %v996
      %v1081 = vunpack.c.l.b16 %v997
      %v1082 = vunpack.c.h.b16 %v997
      %v1083 = vunpack.c.l.b16 %v998
      %v1084 = vunpack.c.h.b16 %v998
      %v1085 = vunpack.c.l.b16 %v999
      %v1086 = vunpack.c.h.b16 %v999
      %v1087 = vunpack.c.l.b16 %v1000
      %v1088 = vunpack.c.h.b16 %v1000
      %v1089 = vunpack.c.l.b16 %v1001
      %v1090 = vunpack.c.h.b16 %v1001
      %v1091 = vunpack.c.l.b16 %v1002
      %v1092 = vunpack.c.h.b16 %v1002
      %v1093 = vunpack.c.l.b16 %v1003
      %v1094 = vunpack.c.h.b16 %v1003
      %v1095 = vunpack.c.l.b16 %v1004
      %v1096 = vunpack.c.h.b16 %v1004
      %v1097 = vunpack.c.l.b16 %v1005
      %v1098 = vunpack.c.h.b16 %v1005
      %v1099 = vunpack.c.l.b16 %v1006
      %v1100 = vunpack.c.h.b16 %v1006
      %v1101 = vunpack.c.l.b16 %v1007
      %v1102 = vunpack.c.h.b16 %v1007
      %v1103 = vunpack.c.l.b16 %v1008
      %v1104 = vunpack.c.h.b16 %v1008
      %v1105 = vunpack.c.l.b16 %v1009
      %v1106 = vunpack.c.h.b16 %v1009
      %v1107 = vunpack.c.l.b16 %v1010
      %v1108 = vunpack.c.h.b16 %v1010
      %v1109 = vunpack.c.l.b16 %v1011
      %v1110 = vunpack.c.h.b16 %v1011
      %v1111 = vunpack.c.l.b16 %v1012
      %v1112 = vunpack.c.h.b16 %v1012
      %v1113 = vunpack.c.l.b16 %v1013
      %v1114 = vunpack.c.h.b16 %v1013
      %v1115 = vunpack.c.l.b16 %v1014
      %v1116 = vunpack.c.h.b16 %v1014
      %v1117 = vunpack.c.l.b16 %v1015
      %v1118 = vunpack.c.h.b16 %v1015
      %v1119 = vunpack.c.l.b16 %v1016
      %v1120 = vunpack.c.h.b16 %v1016
      %v1121 = vunpack.c.l.b16 %v1017
      %v1122 = vunpack.c.h.b16 %v1017
      %v1123 = vunpack.c.l.b16 %v1018
      %v1124 = vunpack.c.h.b16 %v1018
      %v1125 = vunpack.c.l.b16 %v1019
      %v1126 = vunpack.c.h.b16 %v1019
      %v1127 = vunpack.c.l.b16 %v1020
      %v1128 = vunpack.c.h.b16 %v1020
      %v1129 = vunpack.c.l.b16 %v1021
      %v1130 = vunpack.c.h.b16 %v1021
      %v1131 = vunpack.c.l.b16 %v1022
      %v1132 = vunpack.c.h.b16 %v1022
      %v1133 = vunpack.c.l.b16 %v1023
      %v1134 = vunpack.c.h.b16 %v1023
      %v1135 = vunpack.c.l.b16 %v1024
      %v1136 = vunpack.c.h.b16 %v1024
      %v1137 = vunpack.c.l.b16 %v1025
      %v1138 = vunpack.c.h.b16 %v1025
      %v1139 = vunpack.c.l.b16 %v1026
      %v1140 = vunpack.c.h.b16 %v1026
      %v1141 = vpack.c.b16 %v1069, %v1065
      %v1142 = vpack.c.b16 %v1070, %v1066
      %v1143 = vpack.c.b16 %v1071, %v1067
      %v1144 = vpack.c.b16 %v1072, %v1068
      %v1145 = vpack.c.b16 %v1077, %v1073
      %v1146 = vpack.c.b16 %v1078, %v1074
      %v1147 = vpack.c.b16 %v1079, %v1075
      %v1148 = vpack.c.b16 %v1080, %v1076
      %v1149 = vpack.c.b16 %v1085, %v1081
      %v1150 = vpack.c.b16 %v1086, %v1082
      %v1151 = vpack.c.b16 %v1087, %v1083
      %v1152 = vpack.c.b16 %v1088, %v1084
      %v1153 = vpack.c.b16 %v1093, %v1089
      %v1154 = vpack.c.b16 %v1094, %v1090
      %v1155 = vpack.c.b16 %v1095, %v1091
      %v1156 = vpack.c.b16 %v1096, %v1092
      %v1157 = vpack.c.b16 %v1101, %v1097
      %v1158 = vpack.c.b16 %v1102, %v1098
      %v1159 = vpack.c.b16 %v1103, %v1099
      %v1160 = vpack.c.b16 %v1104, %v1100
      %v1161 = vpack.c.b16 %v1109, %v1105
      %v1162 = vpack.c.b16 %v1110, %v1106
      %v1163 = vpack.c.b16 %v1111, %v1107
      %v1164 = vpack.c.b16 %v1112, %v1108
      %v1165 = vpack.c.b16 %v1117, %v1113
      %v1166 = vpack.c.b16 %v1118, %v1114
      %v1167 = vpack.c.b16 %v1119, %v1115
      %v1168 = vpack.c.b16 %v1120, %v1116
      %v1169 = vpack.c.b16 %v1125, %v1121
      %v1170 = vpack.c.b16 %v1126, %v1122
      %v1171 = vpack.c.b16 %v1127, %v1123
      %v1172 = vpack.c.b16 %v1128, %v1124
      %v1173 = vpack.c.b16 %v1133, %v1129
      %v1174 = vpack.c.b16 %v1134, %v1130
      %v1175 = vpack.c.b16 %v1135, %v1131
      %v1176 = vpack.c.b16 %v1136, %v1132
      %v1177 = vpack.c.b16 %v1137, %v1137
      %v1178 = vpack.c.b16 %v1138, %v1138
      %v1179 = vpack.c.b16 %v1139, %v1139
      %v1180 = vpack.c.b16 %v1140, %v1140
      %v1218 = vsel %vm556, %v1177, 0
      %v1221 = vsel %vm556, %v1178, 0
      %v1224 = vsel %vm556, %v1179, 0
      %v1227 = vsel %vm556, %v1180, 0
      %1229 = vmatprep.subr.bf16.mxu0 %v1142
      %1230 = vmatpush1.bf16.msra.mxu0 %v1141
      %1231 = vmatprep.subr.bf16.mxu0 %v1146
      %1232 = vmatpush1.bf16.msra.mxu0 %v1145
      %1233 = vmatprep.subr.bf16.mxu0 %v1150
      %1234 = vmatpush1.bf16.msra.mxu0 %v1149
      %1235 = vmatprep.subr.bf16.mxu0 %v1154
      %1236 = vmatpush1.bf16.msra.mxu0 %v1153
      %1237 = vmatprep.subr.bf16.mxu0 %v1158
      %1238 = vmatpush1.bf16.msra.mxu0 %v1157
      %1239 = vmatprep.subr.bf16.mxu0 %v1162
      %1240 = vmatpush1.bf16.msra.mxu0 %v1161
      %1241 = vmatprep.subr.bf16.mxu0 %v1166
      %1242 = vmatpush1.bf16.msra.mxu0 %v1165
      %1243 = vmatprep.subr.bf16.mxu0 %v1170
      %1244 = vmatpush1.bf16.msra.mxu0 %v1169
      %1245 = vmatprep.subr.bf16.mxu0 %v1174
      %1246 = vmatpush1.bf16.msra.mxu0 %v1173
      %1247 = vmatprep.subr.bf16.mxu0 %v1221
      %1248 = vmatpush1.bf16.msra.mxu0 %v1218
      %1249 = vmatprep.subr.bf16.mxu0 0
      %1250 = vmatpush1.bf16.msra.mxu0 0
      %1251 = vmatprep.subr.bf16.mxu0 0
      %1252 = vmatpush1.bf16.msra.mxu0 0
      %1253 = vmatprep.subr.bf16.mxu0 0
      %1254 = vmatpush1.bf16.msra.mxu0 0
      %1255 = vmatprep.subr.bf16.mxu0 0
      %1256 = vmatpush1.bf16.msra.mxu0 0
      %1257 = vmatprep.subr.bf16.mxu0 0
      %1258 = vmatpush1.bf16.msra.mxu0 0
      %1259 = vmatprep.subr.bf16.mxu0 0
      %1260 = vmatpush1.bf16.msra.mxu0 0
      %1261 = vmatprep.mubr.bf16.mxu0 %v554
      %1262 = vmatmul.mubr.bf16.gmra.mrb[0].mxu0 %v359
      %v1263 = vpop.f32.mrb[0].mxu0
      %v1264 = vadd.f32 0.0, %v1263
      %v1265 = vpop.f32.mrb[0].mxu0
      %v1266 = vadd.f32 0.0, %v1265
      %v1267 = vpop.f32.mrb[0].mxu0
      %v1268 = vadd.f32 0.0, %v1267
      %v1269 = vpop.f32.mrb[0].mxu0
      %v1270 = vadd.f32 0.0, %v1269
      %1271 = vdwg.mxu0
      %1272 = vmatprep.subr.bf16.mxu0 %v1144
      %1273 = vmatpush1.bf16.msra.mxu0 %v1143
      %1274 = vmatprep.subr.bf16.mxu0 %v1148
      %1275 = vmatpush1.bf16.msra.mxu0 %v1147
      %1276 = vmatprep.subr.bf16.mxu0 %v1152
      %1277 = vmatpush1.bf16.msra.mxu0 %v1151
      %1278 = vmatprep.subr.bf16.mxu0 %v1156
      %1279 = vmatpush1.bf16.msra.mxu0 %v1155
      %1280 = vmatprep.subr.bf16.mxu0 %v1160
      %1281 = vmatpush1.bf16.msra.mxu0 %v1159
      %1282 = vmatprep.subr.bf16.mxu0 %v1164
      %1283 = vmatpush1.bf16.msra.mxu0 %v1163
      %1284 = vmatprep.subr.bf16.mxu0 %v1168
      %1285 = vmatpush1.bf16.msra.mxu0 %v1167
      %1286 = vmatprep.subr.bf16.mxu0 %v1172
      %1287 = vmatpush1.bf16.msra.mxu0 %v1171
      %1288 = vmatprep.subr.bf16.mxu0 %v1176
      %1289 = vmatpush1.bf16.msra.mxu0 %v1175
      %1290 = vmatprep.subr.bf16.mxu0 %v1227
      %1291 = vmatpush1.bf16.msra.mxu0 %v1224
      %1292 = vmatprep.subr.bf16.mxu0 0
      %1293 = vmatpush1.bf16.msra.mxu0 0
      %1294 = vmatprep.subr.bf16.mxu0 0
      %1295 = vmatpush1.bf16.msra.mxu0 0
      %1296 = vmatprep.subr.bf16.mxu0 0
      %1297 = vmatpush1.bf16.msra.mxu0 0
      %1298 = vmatprep.subr.bf16.mxu0 0
      %1299 = vmatpush1.bf16.msra.mxu0 0
      %1300 = vmatprep.subr.bf16.mxu0 0
      %1301 = vmatpush1.bf16.msra.mxu0 0
      %1302 = vmatprep.subr.bf16.mxu0 0
      %1303 = vmatpush1.bf16.msra.mxu0 0
      %1304 = vmatprep.mubr.bf16.mxu0 %v554
      %1305 = vmatmul.mubr.bf16.gmra.mrb[0].mxu0 %v359
      %v1306 = vpop.f32.mrb[0].mxu0
      %v1307 = vadd.f32 0.0, %v1306
      %v1308 = vpop.f32.mrb[0].mxu0
      %v1309 = vadd.f32 0.0, %v1308
      %v1310 = vpop.f32.mrb[0].mxu0
      %v1311 = vadd.f32 0.0, %v1310
      %v1312 = vpop.f32.mrb[0].mxu0
      %v1313 = vadd.f32 0.0, %v1312
      %1314 = vdwg.mxu0
      %v1315 = vmax.f32 %v981, %v1264
      %v1316 = vmax.f32 %v982, %v1266
      %v1317 = vmax.f32 %v983, %v1307
      %v1318 = vmax.f32 %v984, %v1309
      %v1319 = vmax.f32 %v985, %v1268
      %v1320 = vmax.f32 %v986, %v1270
      %v1321 = vmax.f32 %v987, %v1311
      %v1322 = vmax.f32 %v988, %v1313
      %v1323 = vld [vmem:[%s306] sm:$0xff]
      %v1324 = vld [vmem:[%s306 + $0x8] sm:$0xff]
      %v1325 = vld [vmem:[%s306 + $0x10] sm:$0xff]
      %v1326 = vld [vmem:[%s306 + $0x18] sm:$0xff]
      %v1327 = vld [vmem:[%s306 + $0x20] sm:$0xff]
      %v1328 = vld [vmem:[%s306 + $0x28] sm:$0xff]
      %v1329 = vld [vmem:[%s306 + $0x30] sm:$0xff]
      %v1330 = vld [vmem:[%s306 + $0x38] sm:$0xff]
      %v1331 = vld [vmem:[%s306 + $0x40] sm:$0xff]
      %v1332 = vld [vmem:[%s306 + $0x48] sm:$0xff]
      %v1333 = vld [vmem:[%s306 + $0x50] sm:$0xff]
      %v1334 = vld [vmem:[%s306 + $0x58] sm:$0xff]
      %v1335 = vld [vmem:[%s306 + $0x60] sm:$0xff]
      %v1336 = vld [vmem:[%s306 + $0x68] sm:$0xff]
      %v1337 = vld [vmem:[%s306 + $0x70] sm:$0xff]
      %v1338 = vld [vmem:[%s306 + $0x78] sm:$0xff]
      %v1339 = vld [vmem:[%s306 + $0x80] sm:$0xff]
      %v1340 = vld [vmem:[%s306 + $0x88] sm:$0xff]
      %v1341 = vld [vmem:[%s306 + $0x90] sm:$0xff]
      %v1342 = vld [vmem:[%s306 + $0x98] sm:$0xff]
      %v1343 = vld [vmem:[%s306 + $0xa0] sm:$0xff]
      %v1344 = vld [vmem:[%s306 + $0xa8] sm:$0xff]
      %v1345 = vld [vmem:[%s306 + $0xb0] sm:$0xff]
      %v1346 = vld [vmem:[%s306 + $0xb8] sm:$0xff]
      %v1347 = vld [vmem:[%s306 + $0xc0] sm:$0xff]
      %v1348 = vld [vmem:[%s306 + $0xc8] sm:$0xff]
      %v1349 = vld [vmem:[%s306 + $0xd0] sm:$0xff]
      %v1350 = vld [vmem:[%s306 + $0xd8] sm:$0xff]
      %v1351 = vld [vmem:[%s306 + $0xe0] sm:$0xff]
      %v1352 = vld [vmem:[%s306 + $0xe8] sm:$0xff]
      %v1353 = vld [vmem:[%s306 + $0xf0] sm:$0xff]
      %v1354 = vld [vmem:[%s306 + $0xf8] sm:$0xff]
      %v1355 = vld [vmem:[%s306 + $0x100] sm:$0xff]
      %v1356 = vld [vmem:[%s306 + $0x108] sm:$0xff]
      %v1357 = vld [vmem:[%s306 + $0x110] sm:$0xff]
      %v1358 = vld [vmem:[%s306 + $0x118] sm:$0xff]
      %v1359 = vld [vmem:[%s306 + $0x120] sm:$0x77]
      %v1360 = vld [vmem:[%s306 + $0x128] sm:$0x77]
      %v1399 = vunpack.c.l.b16 %v1323
      %v1400 = vunpack.c.h.b16 %v1323
      %v1401 = vunpack.c.l.b16 %v1324
      %v1402 = vunpack.c.h.b16 %v1324
      %v1403 = vunpack.c.l.b16 %v1325
      %v1404 = vunpack.c.h.b16 %v1325
      %v1405 = vunpack.c.l.b16 %v1326
      %v1406 = vunpack.c.h.b16 %v1326
      %v1407 = vunpack.c.l.b16 %v1327
      %v1408 = vunpack.c.h.b16 %v1327
      %v1409 = vunpack.c.l.b16 %v1328
      %v1410 = vunpack.c.h.b16 %v1328
      %v1411 = vunpack.c.l.b16 %v1329
      %v1412 = vunpack.c.h.b16 %v1329
      %v1413 = vunpack.c.l.b16 %v1330
      %v1414 = vunpack.c.h.b16 %v1330
      %v1415 = vunpack.c.l.b16 %v1331
      %v1416 = vunpack.c.h.b16 %v1331
      %v1417 = vunpack.c.l.b16 %v1332
      %v1418 = vunpack.c.h.b16 %v1332
      %v1419 = vunpack.c.l.b16 %v1333
      %v1420 = vunpack.c.h.b16 %v1333
      %v1421 = vunpack.c.l.b16 %v1334
      %v1422 = vunpack.c.h.b16 %v1334
      %v1423 = vunpack.c.l.b16 %v1335
      %v1424 = vunpack.c.h.b16 %v1335
      %v1425 = vunpack.c.l.b16 %v1336
      %v1426 = vunpack.c.h.b16 %v1336
      %v1427 = vunpack.c.l.b16 %v1337
      %v1428 = vunpack.c.h.b16 %v1337
      %v1429 = vunpack.c.l.b16 %v1338
      %v1430 = vunpack.c.h.b16 %v1338
      %v1431 = vunpack.c.l.b16 %v1339
      %v1432 = vunpack.c.h.b16 %v1339
      %v1433 = vunpack.c.l.b16 %v1340
      %v1434 = vunpack.c.h.b16 %v1340
      %v1435 = vunpack.c.l.b16 %v1341
      %v1436 = vunpack.c.h.b16 %v1341
      %v1437 = vunpack.c.l.b16 %v1342
      %v1438 = vunpack.c.h.b16 %v1342
      %v1439 = vunpack.c.l.b16 %v1343
      %v1440 = vunpack.c.h.b16 %v1343
      %v1441 = vunpack.c.l.b16 %v1344
      %v1442 = vunpack.c.h.b16 %v1344
      %v1443 = vunpack.c.l.b16 %v1345
      %v1444 = vunpack.c.h.b16 %v1345
      %v1445 = vunpack.c.l.b16 %v1346
      %v1446 = vunpack.c.h.b16 %v1346
      %v1447 = vunpack.c.l.b16 %v1347
      %v1448 = vunpack.c.h.b16 %v1347
      %v1449 = vunpack.c.l.b16 %v1348
      %v1450 = vunpack.c.h.b16 %v1348
      %v1451 = vunpack.c.l.b16 %v1349
      %v1452 = vunpack.c.h.b16 %v1349
      %v1453 = vunpack.c.l.b16 %v1350
      %v1454 = vunpack.c.h.b16 %v1350
      %v1455 = vunpack.c.l.b16 %v1351
      %v1456 = vunpack.c.h.b16 %v1351
      %v1457 = vunpack.c.l.b16 %v1352
      %v1458 = vunpack.c.h.b16 %v1352
      %v1459 = vunpack.c.l.b16 %v1353
      %v1460 = vunpack.c.h.b16 %v1353
      %v1461 = vunpack.c.l.b16 %v1354
      %v1462 = vunpack.c.h.b16 %v1354
      %v1463 = vunpack.c.l.b16 %v1355
      %v1464 = vunpack.c.h.b16 %v1355
      %v1465 = vunpack.c.l.b16 %v1356
      %v1466 = vunpack.c.h.b16 %v1356
      %v1467 = vunpack.c.l.b16 %v1357
      %v1468 = vunpack.c.h.b16 %v1357
      %v1469 = vunpack.c.l.b16 %v1358
      %v1470 = vunpack.c.h.b16 %v1358
      %v1471 = vunpack.c.l.b16 %v1359
      %v1472 = vunpack.c.h.b16 %v1359
      %v1473 = vunpack.c.l.b16 %v1360
      %v1474 = vunpack.c.h.b16 %v1360
      %v1475 = vpack.c.b16 %v1403, %v1399
      %v1476 = vpack.c.b16 %v1404, %v1400
      %v1477 = vpack.c.b16 %v1405, %v1401
      %v1478 = vpack.c.b16 %v1406, %v1402
      %v1479 = vpack.c.b16 %v1411, %v1407
      %v1480 = vpack.c.b16 %v1412, %v1408
      %v1481 = vpack.c.b16 %v1413, %v1409
      %v1482 = vpack.c.b16 %v1414, %v1410
      %v1483 = vpack.c.b16 %v1419, %v1415
      %v1484 = vpack.c.b16 %v1420, %v1416
      %v1485 = vpack.c.b16 %v1421, %v1417
      %v1486 = vpack.c.b16 %v1422, %v1418
      %v1487 = vpack.c.b16 %v1427, %v1423
      %v1488 = vpack.c.b16 %v1428, %v1424
      %v1489 = vpack.c.b16 %v1429, %v1425
      %v1490 = vpack.c.b16 %v1430, %v1426
      %v1491 = vpack.c.b16 %v1435, %v1431
      %v1492 = vpack.c.b16 %v1436, %v1432
      %v1493 = vpack.c.b16 %v1437, %v1433
      %v1494 = vpack.c.b16 %v1438, %v1434
      %v1495 = vpack.c.b16 %v1443, %v1439
      %v1496 = vpack.c.b16 %v1444, %v1440
      %v1497 = vpack.c.b16 %v1445, %v1441
      %v1498 = vpack.c.b16 %v1446, %v1442
      %v1499 = vpack.c.b16 %v1451, %v1447
      %v1500 = vpack.c.b16 %v1452, %v1448
      %v1501 = vpack.c.b16 %v1453, %v1449
      %v1502 = vpack.c.b16 %v1454, %v1450
      %v1503 = vpack.c.b16 %v1459, %v1455
      %v1504 = vpack.c.b16 %v1460, %v1456
      %v1505 = vpack.c.b16 %v1461, %v1457
      %v1506 = vpack.c.b16 %v1462, %v1458
      %v1507 = vpack.c.b16 %v1467, %v1463
      %v1508 = vpack.c.b16 %v1468, %v1464
      %v1509 = vpack.c.b16 %v1469, %v1465
      %v1510 = vpack.c.b16 %v1470, %v1466
      %v1511 = vpack.c.b16 %v1471, %v1471
      %v1512 = vpack.c.b16 %v1472, %v1472
      %v1513 = vpack.c.b16 %v1473, %v1473
      %v1514 = vpack.c.b16 %v1474, %v1474
      %v1552 = vsel %vm556, %v1511, 0
      %v1555 = vsel %vm556, %v1512, 0
      %v1558 = vsel %vm556, %v1513, 0
      %v1561 = vsel %vm556, %v1514, 0
      %1563 = vmatprep.subr.bf16.mxu0 %v1476
      %1564 = vmatpush1.bf16.msra.mxu0 %v1475
      %1565 = vmatprep.subr.bf16.mxu0 %v1480
      %1566 = vmatpush1.bf16.msra.mxu0 %v1479
      %1567 = vmatprep.subr.bf16.mxu0 %v1484
      %1568 = vmatpush1.bf16.msra.mxu0 %v1483
      %1569 = vmatprep.subr.bf16.mxu0 %v1488
      %1570 = vmatpush1.bf16.msra.mxu0 %v1487
      %1571 = vmatprep.subr.bf16.mxu0 %v1492
      %1572 = vmatpush1.bf16.msra.mxu0 %v1491
      %1573 = vmatprep.subr.bf16.mxu0 %v1496
      %1574 = vmatpush1.bf16.msra.mxu0 %v1495
      %1575 = vmatprep.subr.bf16.mxu0 %v1500
      %1576 = vmatpush1.bf16.msra.mxu0 %v1499
      %1577 = vmatprep.subr.bf16.mxu0 %v1504
      %1578 = vmatpush1.bf16.msra.mxu0 %v1503
      %1579 = vmatprep.subr.bf16.mxu0 %v1508
      %1580 = vmatpush1.bf16.msra.mxu0 %v1507
      %1581 = vmatprep.subr.bf16.mxu0 %v1555
      %1582 = vmatpush1.bf16.msra.mxu0 %v1552
      %1583 = vmatprep.subr.bf16.mxu0 0
      %1584 = vmatpush1.bf16.msra.mxu0 0
      %1585 = vmatprep.subr.bf16.mxu0 0
      %1586 = vmatpush1.bf16.msra.mxu0 0
      %1587 = vmatprep.subr.bf16.mxu0 0
      %1588 = vmatpush1.bf16.msra.mxu0 0
      %1589 = vmatprep.subr.bf16.mxu0 0
      %1590 = vmatpush1.bf16.msra.mxu0 0
      %1591 = vmatprep.subr.bf16.mxu0 0
      %1592 = vmatpush1.bf16.msra.mxu0 0
      %1593 = vmatprep.subr.bf16.mxu0 0
      %1594 = vmatpush1.bf16.msra.mxu0 0
      %1595 = vmatprep.mubr.bf16.mxu0 %v554
      %1596 = vmatmul.mubr.bf16.gmra.mrb[0].mxu0 %v359
      %v1597 = vpop.f32.mrb[0].mxu0
      %v1598 = vadd.f32 0.0, %v1597
      %v1599 = vpop.f32.mrb[0].mxu0
      %v1600 = vadd.f32 0.0, %v1599
      %v1601 = vpop.f32.mrb[0].mxu0
      %v1602 = vadd.f32 0.0, %v1601
      %v1603 = vpop.f32.mrb[0].mxu0
      %v1604 = vadd.f32 0.0, %v1603
      %1605 = vdwg.mxu0
      %1606 = vmatprep.subr.bf16.mxu0 %v1478
      %1607 = vmatpush1.bf16.msra.mxu0 %v1477
      %1608 = vmatprep.subr.bf16.mxu0 %v1482
      %1609 = vmatpush1.bf16.msra.mxu0 %v1481
      %1610 = vmatprep.subr.bf16.mxu0 %v1486
      %1611 = vmatpush1.bf16.msra.mxu0 %v1485
      %1612 = vmatprep.subr.bf16.mxu0 %v1490
      %1613 = vmatpush1.bf16.msra.mxu0 %v1489
      %1614 = vmatprep.subr.bf16.mxu0 %v1494
      %1615 = vmatpush1.bf16.msra.mxu0 %v1493
      %1616 = vmatprep.subr.bf16.mxu0 %v1498
      %1617 = vmatpush1.bf16.msra.mxu0 %v1497
      %1618 = vmatprep.subr.bf16.mxu0 %v1502
      %1619 = vmatpush1.bf16.msra.mxu0 %v1501
      %1620 = vmatprep.subr.bf16.mxu0 %v1506
      %1621 = vmatpush1.bf16.msra.mxu0 %v1505
      %1622 = vmatprep.subr.bf16.mxu0 %v1510
      %1623 = vmatpush1.bf16.msra.mxu0 %v1509
      %1624 = vmatprep.subr.bf16.mxu0 %v1561
      %1625 = vmatpush1.bf16.msra.mxu0 %v1558
      %1626 = vmatprep.subr.bf16.mxu0 0
      %1627 = vmatpush1.bf16.msra.mxu0 0
      %1628 = vmatprep.subr.bf16.mxu0 0
      %1629 = vmatpush1.bf16.msra.mxu0 0
      %1630 = vmatprep.subr.bf16.mxu0 0
      %1631 = vmatpush1.bf16.msra.mxu0 0
      %1632 = vmatprep.subr.bf16.mxu0 0
      %1633 = vmatpush1.bf16.msra.mxu0 0
      %1634 = vmatprep.subr.bf16.mxu0 0
      %1635 = vmatpush1.bf16.msra.mxu0 0
      %1636 = vmatprep.subr.bf16.mxu0 0
      %1637 = vmatpush1.bf16.msra.mxu0 0
      %1638 = vmatprep.mubr.bf16.mxu0 %v554
      %1639 = vmatmul.mubr.bf16.gmra.mrb[0].mxu0 %v359
      %v1640 = vpop.f32.mrb[0].mxu0
      %v1641 = vadd.f32 0.0, %v1640
      %v1642 = vpop.f32.mrb[0].mxu0
      %v1643 = vadd.f32 0.0, %v1642
      %v1644 = vpop.f32.mrb[0].mxu0
      %v1645 = vadd.f32 0.0, %v1644
      %v1646 = vpop.f32.mrb[0].mxu0
      %v1647 = vadd.f32 0.0, %v1646
      %1648 = vdwg.mxu0
      %v1649 = vmax.f32 %v1315, %v1598
      %v1650 = vmax.f32 %v1316, %v1600
      %v1651 = vmax.f32 %v1317, %v1641
      %v1652 = vmax.f32 %v1318, %v1643
      %v1653 = vmax.f32 %v1319, %v1602
      %v1654 = vmax.f32 %v1320, %v1604
      %v1655 = vmax.f32 %v1321, %v1645
      %v1656 = vmax.f32 %v1322, %v1647
      %v1657 = vld [vmem:[%s5] sm:$0xff]
      %v1658 = vld [vmem:[%s5 + $0x8] sm:$0xff]
      %1660 = vset.pattern.permute.xlu0 0
      %1661 = vperm.xlu0 %1660, %v1657
      %v1662 = vpop.permute.xlu0 %1661
      %1665 = vset.pattern.permute.xlu0 0
      %1666 = vperm.xlu0 %1665, %v1658
      %v1667 = vpop.permute.xlu0 %1666
      %v1669 = vadd.f32 %v1649, %v1662
      %v1670 = vadd.f32 %v1650, %v1662
      %v1671 = vadd.f32 %v1651, %v1662
      %v1672 = vadd.f32 %v1652, %v1662
      %v1673 = vadd.f32 %v1653, %v1667
      %v1674 = vadd.f32 %v1654, %v1667
      %v1675 = vadd.f32 %v1655, %v1667
      %v1676 = vadd.f32 %v1656, %v1667
      %vm1677 = vcmp.gt.f32.partialorder %v1669, 0.0
      %vm1678 = vcmp.gt.f32.partialorder %v1670, 0.0
      %vm1679 = vcmp.gt.f32.partialorder %v1671, 0.0
      %vm1680 = vcmp.gt.f32.partialorder %v1672, 0.0
      %vm1681 = vcmp.gt.f32.partialorder %v1673, 0.0
      %vm1682 = vcmp.gt.f32.partialorder %v1674, 0.0
      %vm1683 = vcmp.gt.f32.partialorder %v1675, 0.0
      %vm1684 = vcmp.gt.f32.partialorder %v1676, 0.0
      %v1685 = vmin.f32 %v1669, 0.0
      %v1686 = vmin.f32 %v1670, 0.0
      %v1687 = vmin.f32 %v1671, 0.0
      %v1688 = vmin.f32 %v1672, 0.0
      %v1689 = vmin.f32 %v1673, 0.0
      %v1690 = vmin.f32 %v1674, 0.0
      %v1691 = vmin.f32 %v1675, 0.0
      %v1692 = vmin.f32 %v1676, 0.0
      %v1693 = vmul.f32 %v1685, 1.442695
      %v1694 = vpow.pop %v1693
      %v1695 = vmul.f32 %v1686, 1.442695
      %v1696 = vpow.pop %v1695
      %v1697 = vmul.f32 %v1687, 1.442695
      %v1698 = vpow.pop %v1697
      %v1699 = vmul.f32 %v1688, 1.442695
      %v1700 = vpow.pop %v1699
      %v1701 = vmul.f32 %v1689, 1.442695
      %v1702 = vpow.pop %v1701
      %v1703 = vmul.f32 %v1690, 1.442695
      %v1704 = vpow.pop %v1703
      %v1705 = vmul.f32 %v1691, 1.442695
      %v1706 = vpow.pop %v1705
      %v1707 = vmul.f32 %v1692, 1.442695
      %v1708 = vpow.pop %v1707
      %v1709 = vsub.f32 %v1694, 1.0
      %v1710 = vsub.f32 %v1696, 1.0
      %v1711 = vsub.f32 %v1698, 1.0
      %v1712 = vsub.f32 %v1700, 1.0
      %v1713 = vsub.f32 %v1702, 1.0
      %v1714 = vsub.f32 %v1704, 1.0
      %v1715 = vsub.f32 %v1706, 1.0
      %v1716 = vsub.f32 %v1708, 1.0
      %v1717 = vsel %vm1677, %v1669, %v1709
      %v1718 = vsel %vm1678, %v1670, %v1710
      %v1719 = vsel %vm1679, %v1671, %v1711
      %v1720 = vsel %vm1680, %v1672, %v1712
      %v1721 = vsel %vm1681, %v1673, %v1713
      %v1722 = vsel %vm1682, %v1674, %v1714
      %v1723 = vsel %vm1683, %v1675, %v1715
      %v1724 = vsel %vm1684, %v1676, %v1716
      %v1725 = vpack.c.bf16 %v1721, %v1717
      %v1726 = vpack.c.bf16 %v1722, %v1718
      %v1727 = vpack.c.bf16 %v1723, %v1719
      %v1728 = vpack.c.bf16 %v1724, %v1720
      %v1733 = vunpack.c.l.b16 %v1725
      %v1734 = vunpack.c.l.b16 %v1726
      %v1735 = vunpack.c.l.b16 %v1727
      %v1736 = vunpack.c.l.b16 %v1728
      %v1737 = vunpack.c.h.b16 %v1725
      %v1738 = vunpack.c.h.b16 %v1726
      %v1739 = vunpack.c.h.b16 %v1727
      %v1740 = vunpack.c.h.b16 %v1728
      %v1741 = vpack.c.b16 %v1734, %v1733
      %v1742 = vpack.c.b16 %v1736, %v1735
      %v1743 = vpack.c.b16 %v1738, %v1737
      %v1744 = vpack.c.b16 %v1740, %v1739
      %1749 = vst [vmem:[%s311] sm:$0xff] %v1741
      %vm1750 = vcmask 1043456
      %vm1751 = vcmask 465924
      %vm1752 = vmor %vm1751, %vm1750
      %1753 = vst.msk [vmem:[%s311 + $0x8] sm:$0xff] %vm1752, %v1742
      %1754 = vst [vmem:[%s311 + $0x10] sm:$0xff] %v1743
      %1755 = vst.msk [vmem:[%s311 + $0x18] sm:$0xff] %vm1752, %v1744
      %p1756 = scmp.lt.s32.totalorder %s17, 1
      %s1757 = scalar_select %p1756, %s17, 1
      %s1758 = smul.addr %s1757, 8
      %s1759 = smul.addr %s1758, 4
      %s1760 = scalar_lea.vmem %s6, %s1759
      // Predicated region
      $region45: #{lenet_variant_forward.4} parent=43 // pred_check
        %p1761 = pneg %p181
      $region46: #{lenet_variant_forward.4} parent=43 // pred_check_branch
        %1763 = sbr.rel (%p1761) target = $region48
      $region47: #{lenet_variant_forward.4} parent=43 // pred_region
        _
      $region48: #{lenet_variant_forward.4} parent=43 // pred_fallthru
        _
    $region44: #{lenet_variant_forward.4} parent=5 // pred_fallthru
      _
    %p1764 = scmp.le.s32.totalorder 2, %s12
    // Predicated region
    $region49: #{lenet_variant_forward.4} parent=5 // pred_check
      %p1765 = pneg %p1764
    $region50: #{lenet_variant_forward.4} parent=5 // pred_check_branch
      %1767 = sbr.rel (%p1765) target = $region52
    $region51: #{lenet_variant_forward.4} parent=5 // pred_region
      %s1768 = ssub.s32 %s12, 2
      // Predicated region
      $region53: #{lenet_variant_forward.4} parent=51 // pred_check
        %p1769 = pneg %p187
      $region54: #{lenet_variant_forward.4} parent=51 // pred_check_branch
        %1771 = sbr.rel (%p1769) target = $region56
      $region55: #{lenet_variant_forward.4} parent=51 // pred_region
        %p1772 = scmp.lt.s32.totalorder %s18, 1
        %s1773 = scalar_select %p1772, %s18, 1
        %s1774 = smul.addr %s1773, 8
        %s1775 = smul.addr %s1774, 4
        %s1776 = scalar_lea.vmem %s6, %s1775
      $region56: #{lenet_variant_forward.4} parent=51 // pred_fallthru
        _
    $region52: #{lenet_variant_forward.4} parent=5 // pred_fallthru
      _
  $region6: #{lenet_variant_forward.4} parent=0 // loop_footer
    %s16 = sadd.s32 1, %s12
  $region7: #{lenet_variant_forward.4} parent=0 // loop_footer_branch
    %11 = sbr.rel target = $region3
  $region8: #{lenet_variant_forward.4} parent=0 // loop_exit
    _

// kernel: lenet_variant_forward.5
$region0: #{lenet_variant_forward.5}
  #allocation0 [shape = 'u32[]', space=smem, size = 0x4, offset = 0x4, fixed_abs, tag = 'smem constant byte address 0x4 - core index']
  #allocation1 [shape = 'u32[144,128]{1,0:T(1,128)}', space=vmem, size = 0x12000, scoped, tag = 'internal scratch']
  %s0 = inlined_call_operand.vmem [shape: bf16[2,7056], index: 0, kind: input, shape index: {}]
  %s1 = inlined_call_operand.vmem [shape: bf16[7056,120], index: 1, kind: input, shape index: {}]
  %s2 = inlined_call_operand.vmem [shape: f32[1,120], index: 2, kind: input, shape index: {}]
  %s3 = inlined_call_operand.vmem [shape: f32[120,84], index: 3, kind: input, shape index: {}]
  %s4 = inlined_call_operand.vmem [shape: f32[1,84], index: 4, kind: input, shape index: {}]
  %s5 = inlined_call_operand.vmem [shape: f32[84,5], index: 5, kind: input, shape index: {}]
  %s6 = inlined_call_operand.vmem [shape: f32[1,5], index: 6, kind: input, shape index: {}]
  %s7 = inlined_call_operand.hbm [shape: f32[2,5], index: 7, kind: output, shape index: {}]
  %s8 = sld [smem:[#allocation0]]
  $region38: #{lenet_variant_forward.5} parent=0
    _
  %s10 = ssub.s32 1, %s8
  %s11 = scalar_select 0, %s10, %s8
  $region1: #{lenet_variant_forward.5} parent=0
    #allocation2 [shape = 'u8[1024]{0}', space=vmem, size = 0x400, scoped, tag = 'output window, operand 0, single buffered']
    #allocation3 [shape = 's32[1]{0}', space=sflag, size = 0x4, scoped, tag = 'scoped memory for lenet_variant_forward.5']
    %12 = vsyncpa [#allocation3], 0
    // Predicated region
    $region2: #{lenet_variant_forward.5} parent=1 // pred_check
      _
    $region3: #{lenet_variant_forward.5} parent=1 // pred_check_branch
      %14 = sbr.rel (0) target = $region5
    $region4: #{lenet_variant_forward.5} parent=1 // pred_region
      _
    $region5: #{lenet_variant_forward.5} parent=1 // pred_fallthru
      _
    // Predicated region
    $region6: #{lenet_variant_forward.5} parent=1 // pred_check
      _
    $region7: #{lenet_variant_forward.5} parent=1 // pred_check_branch
      %16 = sbr.rel (0) target = $region9
    $region8: #{lenet_variant_forward.5} parent=1 // pred_region
      _
    $region9: #{lenet_variant_forward.5} parent=1 // pred_fallthru
      _
    // Predicated region
    $region10: #{lenet_variant_forward.5} parent=1 // pred_check
      _
    $region11: #{lenet_variant_forward.5} parent=1 // pred_check_branch
      %18 = sbr.rel (0) target = $region13
    $region12: #{lenet_variant_forward.5} parent=1 // pred_region
      _
    $region13: #{lenet_variant_forward.5} parent=1 // pred_fallthru
      _
    // Predicated region
    $region14: #{lenet_variant_forward.5} parent=1 // pred_check
      _
    $region15: #{lenet_variant_forward.5} parent=1 // pred_check_branch
      %20 = sbr.rel (0) target = $region17
    $region16: #{lenet_variant_forward.5} parent=1 // pred_region
      _
    $region17: #{lenet_variant_forward.5} parent=1 // pred_fallthru
      _
    // Predicated region
    $region18: #{lenet_variant_forward.5} parent=1 // pred_check
      _
    $region19: #{lenet_variant_forward.5} parent=1 // pred_check_branch
      %22 = sbr.rel (0) target = $region21
    $region20: #{lenet_variant_forward.5} parent=1 // pred_region
      _
    $region21: #{lenet_variant_forward.5} parent=1 // pred_fallthru
      _
    // Predicated region
    $region22: #{lenet_variant_forward.5} parent=1 // pred_check
      _
    $region23: #{lenet_variant_forward.5} parent=1 // pred_check_branch
      %24 = sbr.rel (0) target = $region25
    $region24: #{lenet_variant_forward.5} parent=1 // pred_region
      _
    $region25: #{lenet_variant_forward.5} parent=1 // pred_fallthru
      _
    // Predicated region
    $region26: #{lenet_variant_forward.5} parent=1 // pred_check
      _
    $region27: #{lenet_variant_forward.5} parent=1 // pred_check_branch
      %26 = sbr.rel (0) target = $region29
    $region28: #{lenet_variant_forward.5} parent=1 // pred_region
      _
    $region29: #{lenet_variant_forward.5} parent=1 // pred_fallthru
      _
    %v28 = vld [vmem:[%s0] sm:$0xff]
    %v29 = vld [vmem:[%s0 + $0x8] sm:$0xff]
    %v30 = vld [vmem:[%s0 + $0x10] sm:$0xff]
    %v31 = vld [vmem:[%s0 + $0x18] sm:$0xff]
    %v32 = vld [vmem:[%s0 + $0x20] sm:$0xff]
    %v33 = vld [vmem:[%s0 + $0x28] sm:$0xff]
    %v34 = vld [vmem:[%s0 + $0x30] sm:$0xff]
    %v35 = vld [vmem:[%s1] sm:$0xf]
    %v36 = vld [vmem:[%s1 + $0x4] sm:$0xf]
    %v37 = vld [vmem:[%s1 + $0x8] sm:$0xf]
    %v38 = vld [vmem:[%s1 + $0xc] sm:$0xf]
    %v39 = vld [vmem:[%s1 + $0x10] sm:$0xf]
    %v40 = vld [vmem:[%s1 + $0x14] sm:$0xf]
    %v41 = vld [vmem:[%s1 + $0x18] sm:$0xf]
    %v42 = vld [vmem:[%s1 + $0x1c] sm:$0xf]
    %v43 = vld [vmem:[%s1 + $0x20] sm:$0xf]
    %v44 = vld [vmem:[%s1 + $0x24] sm:$0xf]
    %v45 = vld [vmem:[%s1 + $0x28] sm:$0xf]
    %v46 = vld [vmem:[%s1 + $0x2c] sm:$0xf]
    %v47 = vld [vmem:[%s1 + $0x30] sm:$0xf]
    %v48 = vld [vmem:[%s1 + $0x34] sm:$0xf]
    %v49 = vld [vmem:[%s1 + $0x38] sm:$0xf]
    %v50 = vld [vmem:[%s1 + $0x3c] sm:$0xf]
    %v51 = vld [vmem:[%s1 + $0x40] sm:$0xf]
    %v52 = vld [vmem:[%s1 + $0x44] sm:$0xf]
    %v53 = vld [vmem:[%s1 + $0x48] sm:$0xf]
    %v54 = vld [vmem:[%s1 + $0x4c] sm:$0xf]
    %v55 = vld [vmem:[%s1 + $0x50] sm:$0xf]
    %v56 = vld [vmem:[%s1 + $0x54] sm:$0xf]
    %v57 = vld [vmem:[%s1 + $0x58] sm:$0xf]
    %v58 = vld [vmem:[%s1 + $0x5c] sm:$0xf]
    %v59 = vld [vmem:[%s1 + $0x60] sm:$0xf]
    %v60 = vld [vmem:[%s1 + $0x64] sm:$0xf]
    %v61 = vld [vmem:[%s1 + $0x68] sm:$0xf]
    %v62 = vld [vmem:[%s1 + $0x6c] sm:$0xf]
    %v63 = vld [vmem:[%s1 + $0x70] sm:$0xf]
    %v64 = vld [vmem:[%s1 + $0x74] sm:$0xf]
    %v65 = vld [vmem:[%s1 + $0x78] sm:$0xf]
    %v66 = vld [vmem:[%s1 + $0x7c] sm:$0xf]
    %v67 = vld [vmem:[%s1 + $0x80] sm:$0xf]
    %v68 = vld [vmem:[%s1 + $0x84] sm:$0xf]
    %v69 = vld [vmem:[%s1 + $0x88] sm:$0xf]
    %v70 = vld [vmem:[%s1 + $0x8c] sm:$0xf]
    %v71 = vld [vmem:[%s1 + $0x90] sm:$0xf]
    %v72 = vld [vmem:[%s1 + $0x94] sm:$0xf]
    %v73 = vld [vmem:[%s1 + $0x98] sm:$0xf]
    %v74 = vld [vmem:[%s1 + $0x9c] sm:$0xf]
    %v75 = vld [vmem:[%s1 + $0xa0] sm:$0xf]
    %v76 = vld [vmem:[%s1 + $0xa4] sm:$0xf]
    %v77 = vld [vmem:[%s1 + $0xa8] sm:$0xf]
    %v78 = vld [vmem:[%s1 + $0xac] sm:$0xf]
    %v79 = vld [vmem:[%s1 + $0xb0] sm:$0xf]
    %v80 = vld [vmem:[%s1 + $0xb4] sm:$0xf]
    %v81 = vld [vmem:[%s1 + $0xb8] sm:$0xf]
    %v82 = vld [vmem:[%s1 + $0xbc] sm:$0xf]
    %v83 = vld [vmem:[%s1 + $0xc0] sm:$0xf]
    %v84 = vld [vmem:[%s1 + $0xc4] sm:$0xf]
    %v85 = vld [vmem:[%s1 + $0xc8] sm:$0xf]
    %v86 = vld [vmem:[%s1 + $0xcc] sm:$0xf]
    %v87 = vld [vmem:[%s1 + $0xd0] sm:$0xf]
    %v88 = vld [vmem:[%s1 + $0xd4] sm:$0xf]
    %v89 = vld [vmem:[%s1 + $0xd8] sm:$0xf]
    %v90 = vld [vmem:[%s1 + $0xdc] sm:$0xf]
    %v91 = vld [vmem:[%s1 + $0xe0] sm:$0xf]
    %v92 = vld [vmem:[%s1 + $0xe4] sm:$0xf]
    %v93 = vld [vmem:[%s1 + $0xe8] sm:$0xf]
    %v94 = vld [vmem:[%s1 + $0xec] sm:$0xf]
    %v95 = vld [vmem:[%s1 + $0xf0] sm:$0xf]
    %v96 = vld [vmem:[%s1 + $0xf4] sm:$0xf]
    %v97 = vld [vmem:[%s1 + $0xf8] sm:$0xf]
    %v98 = vld [vmem:[%s1 + $0xfc] sm:$0xf]
    %v99 = vld [vmem:[%s1 + $0x100] sm:$0xf]
    %v100 = vld [vmem:[%s1 + $0x104] sm:$0xf]
    %v101 = vld [vmem:[%s1 + $0x108] sm:$0xf]
    %v102 = vld [vmem:[%s1 + $0x10c] sm:$0xf]
    %v103 = vld [vmem:[%s1 + $0x110] sm:$0xf]
    %v104 = vld [vmem:[%s1 + $0x114] sm:$0xf]
    %v105 = vld [vmem:[%s1 + $0x118] sm:$0xf]
    %v106 = vld [vmem:[%s1 + $0x11c] sm:$0xf]
    %v107 = vld [vmem:[%s1 + $0x120] sm:$0xf]
    %v108 = vld [vmem:[%s1 + $0x124] sm:$0xf]
    %v109 = vld [vmem:[%s1 + $0x128] sm:$0xf]
    %v110 = vld [vmem:[%s1 + $0x12c] sm:$0xf]
    %v111 = vld [vmem:[%s1 + $0x130] sm:$0xf]
    %v112 = vld [vmem:[%s1 + $0x134] sm:$0xf]
    %v113 = vld [vmem:[%s1 + $0x138] sm:$0xf]
    %v114 = vld [vmem:[%s1 + $0x13c] sm:$0xf]
    %v115 = vld [vmem:[%s1 + $0x140] sm:$0xf]
    %v116 = vld [vmem:[%s1 + $0x144] sm:$0xf]
    %v117 = vld [vmem:[%s1 + $0x148] sm:$0xf]
    %v118 = vld [vmem:[%s1 + $0x14c] sm:$0xf]
    %v119 = vld [vmem:[%s1 + $0x150] sm:$0xf]
    %v120 = vld [vmem:[%s1 + $0x154] sm:$0xf]
    %v121 = vld [vmem:[%s1 + $0x158] sm:$0xf]
    %v122 = vld [vmem:[%s1 + $0x15c] sm:$0xf]
    %v123 = vld [vmem:[%s1 + $0x160] sm:$0xf]
    %v124 = vld [vmem:[%s1 + $0x164] sm:$0xf]
    %v125 = vld [vmem:[%s1 + $0x168] sm:$0xf]
    %v126 = vld [vmem:[%s1 + $0x16c] sm:$0xf]
    %v127 = vld [vmem:[%s1 + $0x170] sm:$0xf]
    %v128 = vld [vmem:[%s1 + $0x174] sm:$0xf]
    %v129 = vld [vmem:[%s1 + $0x178] sm:$0xf]
    %v130 = vld [vmem:[%s1 + $0x17c] sm:$0xf]
    %v131 = vld [vmem:[%s1 + $0x180] sm:$0xf]
    %v132 = vld [vmem:[%s1 + $0x184] sm:$0xf]
    %v133 = vld [vmem:[%s1 + $0x188] sm:$0xf]
    %v134 = vld [vmem:[%s1 + $0x18c] sm:$0xf]
    %v135 = vld [vmem:[%s1 + $0x190] sm:$0xf]
    %v136 = vld [vmem:[%s1 + $0x194] sm:$0xf]
    %v137 = vld [vmem:[%s1 + $0x198] sm:$0xf]
    %v138 = vld [vmem:[%s1 + $0x19c] sm:$0xf]
    %v139 = vld [vmem:[%s1 + $0x1a0] sm:$0xf]
    %v140 = vld [vmem:[%s1 + $0x1a4] sm:$0xf]
    %v141 = vld [vmem:[%s1 + $0x1a8] sm:$0xf]
    %v142 = vld [vmem:[%s1 + $0x1ac] sm:$0xf]
    %v143 = vld [vmem:[%s1 + $0x1b0] sm:$0xf]
    %v144 = vld [vmem:[%s1 + $0x1b4] sm:$0xf]
    %v145 = vld [vmem:[%s1 + $0x1b8] sm:$0xf]
    %v146 = vld [vmem:[%s1 + $0x1bc] sm:$0xf]
    %v147 = vld [vmem:[%s1 + $0x1c0] sm:$0xf]
    %v148 = vld [vmem:[%s1 + $0x1c4] sm:$0xf]
    %v149 = vld [vmem:[%s1 + $0x1c8] sm:$0xf]
    %v150 = vld [vmem:[%s1 + $0x1cc] sm:$0xf]
    %v151 = vld [vmem:[%s1 + $0x1d0] sm:$0xf]
    %v152 = vld [vmem:[%s1 + $0x1d4] sm:$0xf]
    %v153 = vld [vmem:[%s1 + $0x1d8] sm:$0xf]
    %v154 = vld [vmem:[%s1 + $0x1dc] sm:$0xf]
    %v155 = vld [vmem:[%s1 + $0x1e0] sm:$0xf]
    %v156 = vld [vmem:[%s1 + $0x1e4] sm:$0xf]
    %v157 = vld [vmem:[%s1 + $0x1e8] sm:$0xf]
    %v158 = vld [vmem:[%s1 + $0x1ec] sm:$0xf]
    %v159 = vld [vmem:[%s1 + $0x1f0] sm:$0xf]
    %v160 = vld [vmem:[%s1 + $0x1f4] sm:$0xf]
    %v161 = vld [vmem:[%s1 + $0x1f8] sm:$0xf]
    %v162 = vld [vmem:[%s1 + $0x1fc] sm:$0xf]
    %v163 = vld [vmem:[%s1 + $0x200] sm:$0xf]
    %v164 = vld [vmem:[%s1 + $0x204] sm:$0xf]
    %v165 = vld [vmem:[%s1 + $0x208] sm:$0xf]
    %v166 = vld [vmem:[%s1 + $0x20c] sm:$0xf]
    %v167 = vld [vmem:[%s1 + $0x210] sm:$0xf]
    %v168 = vld [vmem:[%s1 + $0x214] sm:$0xf]
    %v169 = vld [vmem:[%s1 + $0x218] sm:$0xf]
    %v170 = vld [vmem:[%s1 + $0x21c] sm:$0xf]
    %v171 = vld [vmem:[%s1 + $0x220] sm:$0xf]
    %v172 = vld [vmem:[%s1 + $0x224] sm:$0xf]
    %v173 = vld [vmem:[%s1 + $0x228] sm:$0xf]
    %v174 = vld [vmem:[%s1 + $0x22c] sm:$0xf]
    %v175 = vld [vmem:[%s1 + $0x230] sm:$0xf]
    %v176 = vld [vmem:[%s1 + $0x234] sm:$0xf]
    %v177 = vld [vmem:[%s1 + $0x238] sm:$0xf]
    %v178 = vld [vmem:[%s1 + $0x23c] sm:$0xf]
    %v179 = vld [vmem:[%s1 + $0x240] sm:$0xf]
    %v180 = vld [vmem:[%s1 + $0x244] sm:$0xf]
    %v181 = vld [vmem:[%s1 + $0x248] sm:$0xf]
    %v182 = vld [vmem:[%s1 + $0x24c] sm:$0xf]
    %v183 = vld [vmem:[%s1 + $0x250] sm:$0xf]
    %v184 = vld [vmem:[%s1 + $0x254] sm:$0xf]
    %v185 = vld [vmem:[%s1 + $0x258] sm:$0xf]
    %v186 = vld [vmem:[%s1 + $0x25c] sm:$0xf]
    %v187 = vld [vmem:[%s1 + $0x260] sm:$0xf]
    %v188 = vld [vmem:[%s1 + $0x264] sm:$0xf]
    %v189 = vld [vmem:[%s1 + $0x268] sm:$0xf]
    %v190 = vld [vmem:[%s1 + $0x26c] sm:$0xf]
    %v191 = vld [vmem:[%s1 + $0x270] sm:$0xf]
    %v192 = vld [vmem:[%s1 + $0x274] sm:$0xf]
    %v193 = vld [vmem:[%s1 + $0x278] sm:$0xf]
    %v194 = vld [vmem:[%s1 + $0x27c] sm:$0xf]
    %v195 = vld [vmem:[%s1 + $0x280] sm:$0xf]
    %v196 = vld [vmem:[%s1 + $0x284] sm:$0xf]
    %v197 = vld [vmem:[%s1 + $0x288] sm:$0xf]
    %v198 = vld [vmem:[%s1 + $0x28c] sm:$0xf]
    %v199 = vld [vmem:[%s1 + $0x290] sm:$0xf]
    %v200 = vld [vmem:[%s1 + $0x294] sm:$0xf]
    %v201 = vld [vmem:[%s1 + $0x298] sm:$0xf]
    %v202 = vld [vmem:[%s1 + $0x29c] sm:$0xf]
    %v203 = vld [vmem:[%s1 + $0x2a0] sm:$0xf]
    %v204 = vld [vmem:[%s1 + $0x2a4] sm:$0xf]
    %v205 = vld [vmem:[%s1 + $0x2a8] sm:$0xf]
    %v206 = vld [vmem:[%s1 + $0x2ac] sm:$0xf]
    %v207 = vld [vmem:[%s1 + $0x2b0] sm:$0xf]
    %v208 = vld [vmem:[%s1 + $0x2b4] sm:$0xf]
    %v209 = vld [vmem:[%s1 + $0x2b8] sm:$0xf]
    %v210 = vld [vmem:[%s1 + $0x2bc] sm:$0xf]
    %v211 = vld [vmem:[%s1 + $0x2c0] sm:$0xf]
    %v212 = vld [vmem:[%s1 + $0x2c4] sm:$0xf]
    %v213 = vld [vmem:[%s1 + $0x2c8] sm:$0xf]
    %v214 = vld [vmem:[%s1 + $0x2cc] sm:$0xf]
    %v215 = vld [vmem:[%s1 + $0x2d0] sm:$0xf]
    %v216 = vld [vmem:[%s1 + $0x2d4] sm:$0xf]
    %v217 = vld [vmem:[%s1 + $0x2d8] sm:$0xf]
    %v218 = vld [vmem:[%s1 + $0x2dc] sm:$0xf]
    %v219 = vld [vmem:[%s1 + $0x2e0] sm:$0xf]
    %v220 = vld [vmem:[%s1 + $0x2e4] sm:$0xf]
    %v221 = vld [vmem:[%s1 + $0x2e8] sm:$0xf]
    %v222 = vld [vmem:[%s1 + $0x2ec] sm:$0xf]
    %v223 = vld [vmem:[%s1 + $0x2f0] sm:$0xf]
    %v224 = vld [vmem:[%s1 + $0x2f4] sm:$0xf]
    %v225 = vld [vmem:[%s1 + $0x2f8] sm:$0xf]
    %v226 = vld [vmem:[%s1 + $0x2fc] sm:$0xf]
    %v227 = vld [vmem:[%s1 + $0x300] sm:$0xf]
    %v228 = vld [vmem:[%s1 + $0x304] sm:$0xf]
    %v229 = vld [vmem:[%s1 + $0x308] sm:$0xf]
    %v230 = vld [vmem:[%s1 + $0x30c] sm:$0xf]
    %v231 = vld [vmem:[%s1 + $0x310] sm:$0xf]
    %v232 = vld [vmem:[%s1 + $0x314] sm:$0xf]
    %v233 = vld [vmem:[%s1 + $0x318] sm:$0xf]
    %v234 = vld [vmem:[%s1 + $0x31c] sm:$0xf]
    %v235 = vld [vmem:[%s1 + $0x320] sm:$0xf]
    %v236 = vld [vmem:[%s1 + $0x324] sm:$0xf]
    %v237 = vld [vmem:[%s1 + $0x328] sm:$0xf]
    %v238 = vld [vmem:[%s1 + $0x32c] sm:$0xf]
    %v239 = vld [vmem:[%s1 + $0x330] sm:$0xf]
    %v240 = vld [vmem:[%s1 + $0x334] sm:$0xf]
    %v241 = vld [vmem:[%s1 + $0x338] sm:$0xf]
    %v242 = vld [vmem:[%s1 + $0x33c] sm:$0xf]
    %v243 = vld [vmem:[%s1 + $0x340] sm:$0xf]
    %v244 = vld [vmem:[%s1 + $0x344] sm:$0xf]
    %v245 = vld [vmem:[%s1 + $0x348] sm:$0xf]
    %v246 = vld [vmem:[%s1 + $0x34c] sm:$0xf]
    %v247 = vld [vmem:[%s1 + $0x350] sm:$0xf]
    %v248 = vld [vmem:[%s1 + $0x354] sm:$0xf]
    %v249 = vld [vmem:[%s1 + $0x358] sm:$0xf]
    %v250 = vld [vmem:[%s1 + $0x35c] sm:$0xf]
    %v251 = vld [vmem:[%s1 + $0x360] sm:$0xf]
    %v252 = vld [vmem:[%s1 + $0x364] sm:$0xf]
    %v253 = vld [vmem:[%s1 + $0x368] sm:$0xf]
    %v254 = vld [vmem:[%s1 + $0x36c] sm:$0xf]
    %v255 = vld [vmem:[%s1 + $0x370] sm:$0xf]
    %v256 = vld [vmem:[%s1 + $0x374] sm:$0xf]
    %v257 = vld [vmem:[%s1 + $0x378] sm:$0xf]
    %v258 = vld [vmem:[%s1 + $0x37c] sm:$0xf]
    %v259 = vld [vmem:[%s1 + $0x380] sm:$0xf]
    %v260 = vld [vmem:[%s1 + $0x384] sm:$0xf]
    %v261 = vld [vmem:[%s1 + $0x388] sm:$0xf]
    %v262 = vld [vmem:[%s1 + $0x38c] sm:$0xf]
    %v263 = vld [vmem:[%s1 + $0x390] sm:$0xf]
    %v264 = vld [vmem:[%s1 + $0x394] sm:$0xf]
    %v265 = vld [vmem:[%s1 + $0x398] sm:$0xf]
    %v266 = vld [vmem:[%s1 + $0x39c] sm:$0xf]
    %v267 = vld [vmem:[%s1 + $0x3a0] sm:$0xf]
    %v268 = vld [vmem:[%s1 + $0x3a4] sm:$0xf]
    %v269 = vld [vmem:[%s1 + $0x3a8] sm:$0xf]
    %v270 = vld [vmem:[%s1 + $0x3ac] sm:$0xf]
    %v271 = vld [vmem:[%s1 + $0x3b0] sm:$0xf]
    %v272 = vld [vmem:[%s1 + $0x3b4] sm:$0xf]
    %v273 = vld [vmem:[%s1 + $0x3b8] sm:$0xf]
    %v274 = vld [vmem:[%s1 + $0x3bc] sm:$0xf]
    %v275 = vld [vmem:[%s1 + $0x3c0] sm:$0xf]
    %v276 = vld [vmem:[%s1 + $0x3c4] sm:$0xf]
    %v277 = vld [vmem:[%s1 + $0x3c8] sm:$0xf]
    %v278 = vld [vmem:[%s1 + $0x3cc] sm:$0xf]
    %v279 = vld [vmem:[%s1 + $0x3d0] sm:$0xf]
    %v280 = vld [vmem:[%s1 + $0x3d4] sm:$0xf]
    %v281 = vld [vmem:[%s1 + $0x3d8] sm:$0xf]
    %v282 = vld [vmem:[%s1 + $0x3dc] sm:$0xf]
    %v283 = vld [vmem:[%s1 + $0x3e0] sm:$0xf]
    %v284 = vld [vmem:[%s1 + $0x3e4] sm:$0xf]
    %v285 = vld [vmem:[%s1 + $0x3e8] sm:$0xf]
    %v286 = vld [vmem:[%s1 + $0x3ec] sm:$0xf]
    %v287 = vld [vmem:[%s1 + $0x3f0] sm:$0xf]
    %v288 = vld [vmem:[%s1 + $0x3f4] sm:$0xf]
    %v289 = vld [vmem:[%s1 + $0x3f8] sm:$0xf]
    %v290 = vld [vmem:[%s1 + $0x3fc] sm:$0xf]
    %v291 = vld [vmem:[%s1 + $0x400] sm:$0xf]
    %v292 = vld [vmem:[%s1 + $0x404] sm:$0xf]
    %v293 = vld [vmem:[%s1 + $0x408] sm:$0xf]
    %v294 = vld [vmem:[%s1 + $0x40c] sm:$0xf]
    %v295 = vld [vmem:[%s1 + $0x410] sm:$0xf]
    %v296 = vld [vmem:[%s1 + $0x414] sm:$0xf]
    %v297 = vld [vmem:[%s1 + $0x418] sm:$0xf]
    %v298 = vld [vmem:[%s1 + $0x41c] sm:$0xf]
    %v299 = vld [vmem:[%s1 + $0x420] sm:$0xf]
    %v300 = vld [vmem:[%s1 + $0x424] sm:$0xf]
    %v301 = vld [vmem:[%s1 + $0x428] sm:$0xf]
    %v302 = vld [vmem:[%s1 + $0x42c] sm:$0xf]
    %v303 = vld [vmem:[%s1 + $0x430] sm:$0xf]
    %v304 = vld [vmem:[%s1 + $0x434] sm:$0xf]
    %v305 = vld [vmem:[%s1 + $0x438] sm:$0xf]
    %v306 = vld [vmem:[%s1 + $0x43c] sm:$0xf]
    %v307 = vld [vmem:[%s1 + $0x440] sm:$0xf]
    %v308 = vld [vmem:[%s1 + $0x444] sm:$0xf]
    %v309 = vld [vmem:[%s1 + $0x448] sm:$0xf]
    %v310 = vld [vmem:[%s1 + $0x44c] sm:$0xf]
    %v311 = vld [vmem:[%s1 + $0x450] sm:$0xf]
    %v312 = vld [vmem:[%s1 + $0x454] sm:$0xf]
    %v313 = vld [vmem:[%s1 + $0x458] sm:$0xf]
    %v314 = vld [vmem:[%s1 + $0x45c] sm:$0xf]
    %v315 = vld [vmem:[%s1 + $0x460] sm:$0xf]
    %v316 = vld [vmem:[%s1 + $0x464] sm:$0xf]
    %v317 = vld [vmem:[%s1 + $0x468] sm:$0xf]
    %v318 = vld [vmem:[%s1 + $0x46c] sm:$0xf]
    %v319 = vld [vmem:[%s1 + $0x470] sm:$0xf]
    %v320 = vld [vmem:[%s1 + $0x474] sm:$0xf]
    %v321 = vld [vmem:[%s1 + $0x478] sm:$0xf]
    %v322 = vld [vmem:[%s1 + $0x47c] sm:$0xf]
    %v323 = vld [vmem:[%s1 + $0x480] sm:$0xf]
    %v324 = vld [vmem:[%s1 + $0x484] sm:$0xf]
    %v325 = vld [vmem:[%s1 + $0x488] sm:$0xf]
    %v326 = vld [vmem:[%s1 + $0x48c] sm:$0xf]
    %v327 = vld [vmem:[%s1 + $0x490] sm:$0xf]
    %v328 = vld [vmem:[%s1 + $0x494] sm:$0xf]
    %v329 = vld [vmem:[%s1 + $0x498] sm:$0xf]
    %v330 = vld [vmem:[%s1 + $0x49c] sm:$0xf]
    %v331 = vld [vmem:[%s1 + $0x4a0] sm:$0xf]
    %v332 = vld [vmem:[%s1 + $0x4a4] sm:$0xf]
    %v333 = vld [vmem:[%s1 + $0x4a8] sm:$0xf]
    %v334 = vld [vmem:[%s1 + $0x4ac] sm:$0xf]
    %v335 = vld [vmem:[%s1 + $0x4b0] sm:$0xf]
    %v336 = vld [vmem:[%s1 + $0x4b4] sm:$0xf]
    %v337 = vld [vmem:[%s1 + $0x4b8] sm:$0xf]
    %v338 = vld [vmem:[%s1 + $0x4bc] sm:$0xf]
    %v339 = vld [vmem:[%s1 + $0x4c0] sm:$0xf]
    %v340 = vld [vmem:[%s1 + $0x4c4] sm:$0xf]
    %v341 = vld [vmem:[%s1 + $0x4c8] sm:$0xf]
    %v342 = vld [vmem:[%s1 + $0x4cc] sm:$0xf]
    %v343 = vld [vmem:[%s1 + $0x4d0] sm:$0xf]
    %v344 = vld [vmem:[%s1 + $0x4d4] sm:$0xf]
    %v345 = vld [vmem:[%s1 + $0x4d8] sm:$0xf]
    %v346 = vld [vmem:[%s1 + $0x4dc] sm:$0xf]
    %v347 = vld [vmem:[%s1 + $0x4e0] sm:$0xf]
    %v348 = vld [vmem:[%s1 + $0x4e4] sm:$0xf]
    %v349 = vld [vmem:[%s1 + $0x4e8] sm:$0xf]
    %v350 = vld [vmem:[%s1 + $0x4ec] sm:$0xf]
    %v351 = vld [vmem:[%s1 + $0x4f0] sm:$0xf]
    %v352 = vld [vmem:[%s1 + $0x4f4] sm:$0xf]
    %v353 = vld [vmem:[%s1 + $0x4f8] sm:$0xf]
    %v354 = vld [vmem:[%s1 + $0x4fc] sm:$0xf]
    %v355 = vld [vmem:[%s1 + $0x500] sm:$0xf]
    %v356 = vld [vmem:[%s1 + $0x504] sm:$0xf]
    %v357 = vld [vmem:[%s1 + $0x508] sm:$0xf]
    %v358 = vld [vmem:[%s1 + $0x50c] sm:$0xf]
    %v359 = vld [vmem:[%s1 + $0x510] sm:$0xf]
    %v360 = vld [vmem:[%s1 + $0x514] sm:$0xf]
    %v361 = vld [vmem:[%s1 + $0x518] sm:$0xf]
    %v362 = vld [vmem:[%s1 + $0x51c] sm:$0xf]
    %v363 = vld [vmem:[%s1 + $0x520] sm:$0xf]
    %v364 = vld [vmem:[%s1 + $0x524] sm:$0xf]
    %v365 = vld [vmem:[%s1 + $0x528] sm:$0xf]
    %v366 = vld [vmem:[%s1 + $0x52c] sm:$0xf]
    %v367 = vld [vmem:[%s1 + $0x530] sm:$0xf]
    %v368 = vld [vmem:[%s1 + $0x534] sm:$0xf]
    %v369 = vld [vmem:[%s1 + $0x538] sm:$0xf]
    %v370 = vld [vmem:[%s1 + $0x53c] sm:$0xf]
    %v371 = vld [vmem:[%s1 + $0x540] sm:$0xf]
    %v372 = vld [vmem:[%s1 + $0x544] sm:$0xf]
    %v373 = vld [vmem:[%s1 + $0x548] sm:$0xf]
    %v374 = vld [vmem:[%s1 + $0x54c] sm:$0xf]
    %v375 = vld [vmem:[%s1 + $0x550] sm:$0xf]
    %v376 = vld [vmem:[%s1 + $0x554] sm:$0xf]
    %v377 = vld [vmem:[%s1 + $0x558] sm:$0xf]
    %v378 = vld [vmem:[%s1 + $0x55c] sm:$0xf]
    %v379 = vld [vmem:[%s1 + $0x560] sm:$0xf]
    %v380 = vld [vmem:[%s1 + $0x564] sm:$0xf]
    %v381 = vld [vmem:[%s1 + $0x568] sm:$0xf]
    %v382 = vld [vmem:[%s1 + $0x56c] sm:$0xf]
    %v383 = vld [vmem:[%s1 + $0x570] sm:$0xf]
    %v384 = vld [vmem:[%s1 + $0x574] sm:$0xf]
    %v385 = vld [vmem:[%s1 + $0x578] sm:$0xf]
    %v386 = vld [vmem:[%s1 + $0x57c] sm:$0xf]
    %v387 = vld [vmem:[%s1 + $0x580] sm:$0xf]
    %v388 = vld [vmem:[%s1 + $0x584] sm:$0xf]
    %v389 = vld [vmem:[%s1 + $0x588] sm:$0xf]
    %v390 = vld [vmem:[%s1 + $0x58c] sm:$0xf]
    %v391 = vld [vmem:[%s1 + $0x590] sm:$0xf]
    %v392 = vld [vmem:[%s1 + $0x594] sm:$0xf]
    %v393 = vld [vmem:[%s1 + $0x598] sm:$0xf]
    %v394 = vld [vmem:[%s1 + $0x59c] sm:$0xf]
    %v395 = vld [vmem:[%s1 + $0x5a0] sm:$0xf]
    %v396 = vld [vmem:[%s1 + $0x5a4] sm:$0xf]
    %v397 = vld [vmem:[%s1 + $0x5a8] sm:$0xf]
    %v398 = vld [vmem:[%s1 + $0x5ac] sm:$0xf]
    %v399 = vld [vmem:[%s1 + $0x5b0] sm:$0xf]
    %v400 = vld [vmem:[%s1 + $0x5b4] sm:$0xf]
    %v401 = vld [vmem:[%s1 + $0x5b8] sm:$0xf]
    %v402 = vld [vmem:[%s1 + $0x5bc] sm:$0xf]
    %v403 = vld [vmem:[%s1 + $0x5c0] sm:$0xf]
    %v404 = vld [vmem:[%s1 + $0x5c4] sm:$0xf]
    %v405 = vld [vmem:[%s1 + $0x5c8] sm:$0xf]
    %v406 = vld [vmem:[%s1 + $0x5cc] sm:$0xf]
    %v407 = vld [vmem:[%s1 + $0x5d0] sm:$0xf]
    %v408 = vld [vmem:[%s1 + $0x5d4] sm:$0xf]
    %v409 = vld [vmem:[%s1 + $0x5d8] sm:$0xf]
    %v410 = vld [vmem:[%s1 + $0x5dc] sm:$0xf]
    %v411 = vld [vmem:[%s1 + $0x5e0] sm:$0xf]
    %v412 = vld [vmem:[%s1 + $0x5e4] sm:$0xf]
    %v413 = vld [vmem:[%s1 + $0x5e8] sm:$0xf]
    %v414 = vld [vmem:[%s1 + $0x5ec] sm:$0xf]
    %v415 = vld [vmem:[%s1 + $0x5f0] sm:$0xf]
    %v416 = vld [vmem:[%s1 + $0x5f4] sm:$0xf]
    %v417 = vld [vmem:[%s1 + $0x5f8] sm:$0xf]
    %v418 = vld [vmem:[%s1 + $0x5fc] sm:$0xf]
    %v419 = vld [vmem:[%s1 + $0x600] sm:$0xf]
    %v420 = vld [vmem:[%s1 + $0x604] sm:$0xf]
    %v421 = vld [vmem:[%s1 + $0x608] sm:$0xf]
    %v422 = vld [vmem:[%s1 + $0x60c] sm:$0xf]
    %v423 = vld [vmem:[%s1 + $0x610] sm:$0xf]
    %v424 = vld [vmem:[%s1 + $0x614] sm:$0xf]
    %v425 = vld [vmem:[%s1 + $0x618] sm:$0xf]
    %v426 = vld [vmem:[%s1 + $0x61c] sm:$0xf]
    %v427 = vld [vmem:[%s1 + $0x620] sm:$0xf]
    %v428 = vld [vmem:[%s1 + $0x624] sm:$0xf]
    %v429 = vld [vmem:[%s1 + $0x628] sm:$0xf]
    %v430 = vld [vmem:[%s1 + $0x62c] sm:$0xf]
    %v431 = vld [vmem:[%s1 + $0x630] sm:$0xf]
    %v432 = vld [vmem:[%s1 + $0x634] sm:$0xf]
    %v433 = vld [vmem:[%s1 + $0x638] sm:$0xf]
    %v434 = vld [vmem:[%s1 + $0x63c] sm:$0xf]
    %v435 = vld [vmem:[%s1 + $0x640] sm:$0xf]
    %v436 = vld [vmem:[%s1 + $0x644] sm:$0xf]
    %v437 = vld [vmem:[%s1 + $0x648] sm:$0xf]
    %v438 = vld [vmem:[%s1 + $0x64c] sm:$0xf]
    %v439 = vld [vmem:[%s1 + $0x650] sm:$0xf]
    %v440 = vld [vmem:[%s1 + $0x654] sm:$0xf]
    %v441 = vld [vmem:[%s1 + $0x658] sm:$0xf]
    %v442 = vld [vmem:[%s1 + $0x65c] sm:$0xf]
    %v443 = vld [vmem:[%s1 + $0x660] sm:$0xf]
    %v444 = vld [vmem:[%s1 + $0x664] sm:$0xf]
    %v445 = vld [vmem:[%s1 + $0x668] sm:$0xf]
    %v446 = vld [vmem:[%s1 + $0x66c] sm:$0xf]
    %v447 = vld [vmem:[%s1 + $0x670] sm:$0xf]
    %v448 = vld [vmem:[%s1 + $0x674] sm:$0xf]
    %v449 = vld [vmem:[%s1 + $0x678] sm:$0xf]
    %v450 = vld [vmem:[%s1 + $0x67c] sm:$0xf]
    %v451 = vld [vmem:[%s1 + $0x680] sm:$0xf]
    %v452 = vld [vmem:[%s1 + $0x684] sm:$0xf]
    %v453 = vld [vmem:[%s1 + $0x688] sm:$0xf]
    %v454 = vld [vmem:[%s1 + $0x68c] sm:$0xf]
    %v455 = vld [vmem:[%s1 + $0x690] sm:$0xf]
    %v456 = vld [vmem:[%s1 + $0x694] sm:$0xf]
    %v457 = vld [vmem:[%s1 + $0x698] sm:$0xf]
    %v458 = vld [vmem:[%s1 + $0x69c] sm:$0xf]
    %v459 = vld [vmem:[%s1 + $0x6a0] sm:$0xf]
    %v460 = vld [vmem:[%s1 + $0x6a4] sm:$0xf]
    %v461 = vld [vmem:[%s1 + $0x6a8] sm:$0xf]
    %v462 = vld [vmem:[%s1 + $0x6ac] sm:$0xf]
    %v463 = vld [vmem:[%s1 + $0x6b0] sm:$0xf]
    %v464 = vld [vmem:[%s1 + $0x6b4] sm:$0xf]
    %v465 = vld [vmem:[%s1 + $0x6b8] sm:$0xf]
    %v466 = vld [vmem:[%s1 + $0x6bc] sm:$0xf]
    %v467 = vld [vmem:[%s1 + $0x6c0] sm:$0xf]
    %v468 = vld [vmem:[%s1 + $0x6c4] sm:$0xf]
    %v469 = vld [vmem:[%s1 + $0x6c8] sm:$0xf]
    %v470 = vld [vmem:[%s1 + $0x6cc] sm:$0xf]
    %v471 = vld [vmem:[%s1 + $0x6d0] sm:$0xf]
    %v472 = vld [vmem:[%s1 + $0x6d4] sm:$0xf]
    %v473 = vld [vmem:[%s1 + $0x6d8] sm:$0xf]
    %v474 = vld [vmem:[%s1 + $0x6dc] sm:$0xf]
    %v475 = vld [vmem:[%s1 + $0x6e0] sm:$0xf]
    %v476 = vld [vmem:[%s1 + $0x6e4] sm:$0xf]
    %v477 = vld [vmem:[%s1 + $0x6e8] sm:$0xf]
    %v478 = vld [vmem:[%s1 + $0x6ec] sm:$0xf]
    %v479 = vld [vmem:[%s1 + $0x6f0] sm:$0xf]
    %v480 = vld [vmem:[%s1 + $0x6f4] sm:$0xf]
    %v481 = vld [vmem:[%s1 + $0x6f8] sm:$0xf]
    %v482 = vld [vmem:[%s1 + $0x6fc] sm:$0xf]
    %v483 = vld [vmem:[%s1 + $0x700] sm:$0xf]
    %v484 = vld [vmem:[%s1 + $0x704] sm:$0xf]
    %v485 = vld [vmem:[%s1 + $0x708] sm:$0xf]
    %v486 = vld [vmem:[%s1 + $0x70c] sm:$0xf]
    %v487 = vld [vmem:[%s1 + $0x710] sm:$0xf]
    %v488 = vld [vmem:[%s1 + $0x714] sm:$0xf]
    %v489 = vld [vmem:[%s1 + $0x718] sm:$0xf]
    %v490 = vld [vmem:[%s1 + $0x71c] sm:$0xf]
    %v491 = vld [vmem:[%s1 + $0x720] sm:$0xf]
    %v492 = vld [vmem:[%s1 + $0x724] sm:$0xf]
    %v493 = vld [vmem:[%s1 + $0x728] sm:$0xf]
    %v494 = vld [vmem:[%s1 + $0x72c] sm:$0xf]
    %v495 = vld [vmem:[%s1 + $0x730] sm:$0xf]
    %v496 = vld [vmem:[%s1 + $0x734] sm:$0xf]
    %v497 = vld [vmem:[%s1 + $0x738] sm:$0xf]
    %v498 = vld [vmem:[%s1 + $0x73c] sm:$0xf]
    %v499 = vld [vmem:[%s1 + $0x740] sm:$0xf]
    %v500 = vld [vmem:[%s1 + $0x744] sm:$0xf]
    %v501 = vld [vmem:[%s1 + $0x748] sm:$0xf]
    %v502 = vld [vmem:[%s1 + $0x74c] sm:$0xf]
    %v503 = vld [vmem:[%s1 + $0x750] sm:$0xf]
    %v504 = vld [vmem:[%s1 + $0x754] sm:$0xf]
    %v505 = vld [vmem:[%s1 + $0x758] sm:$0xf]
    %v506 = vld [vmem:[%s1 + $0x75c] sm:$0xf]
    %v507 = vld [vmem:[%s1 + $0x760] sm:$0xf]
    %v508 = vld [vmem:[%s1 + $0x764] sm:$0xf]
    %v509 = vld [vmem:[%s1 + $0x768] sm:$0xf]
    %v510 = vld [vmem:[%s1 + $0x76c] sm:$0xf]
    %v511 = vld [vmem:[%s1 + $0x770] sm:$0xf]
    %v512 = vld [vmem:[%s1 + $0x774] sm:$0xf]
    %v513 = vld [vmem:[%s1 + $0x778] sm:$0xf]
    %v514 = vld [vmem:[%s1 + $0x77c] sm:$0xf]
    %v515 = vld [vmem:[%s1 + $0x780] sm:$0xf]
    %v516 = vld [vmem:[%s1 + $0x784] sm:$0xf]
    %v517 = vld [vmem:[%s1 + $0x788] sm:$0xf]
    %v518 = vld [vmem:[%s1 + $0x78c] sm:$0xf]
    %v519 = vld [vmem:[%s1 + $0x790] sm:$0xf]
    %v520 = vld [vmem:[%s1 + $0x794] sm:$0xf]
    %v521 = vld [vmem:[%s1 + $0x798] sm:$0xf]
    %v522 = vld [vmem:[%s1 + $0x79c] sm:$0xf]
    %v523 = vld [vmem:[%s1 + $0x7a0] sm:$0xf]
    %v524 = vld [vmem:[%s1 + $0x7a4] sm:$0xf]
    %v525 = vld [vmem:[%s1 + $0x7a8] sm:$0xf]
    %v526 = vld [vmem:[%s1 + $0x7ac] sm:$0xf]
    %v527 = vld [vmem:[%s1 + $0x7b0] sm:$0xf]
    %v528 = vld [vmem:[%s1 + $0x7b4] sm:$0xf]
    %v529 = vld [vmem:[%s1 + $0x7b8] sm:$0xf]
    %v530 = vld [vmem:[%s1 + $0x7bc] sm:$0xf]
    %v531 = vld [vmem:[%s1 + $0x7c0] sm:$0xf]
    %v532 = vld [vmem:[%s1 + $0x7c4] sm:$0xf]
    %v533 = vld [vmem:[%s1 + $0x7c8] sm:$0xf]
    %v534 = vld [vmem:[%s1 + $0x7cc] sm:$0xf]
    %v535 = vld [vmem:[%s1 + $0x7d0] sm:$0xf]
    %v536 = vld [vmem:[%s1 + $0x7d4] sm:$0xf]
    %v537 = vld [vmem:[%s1 + $0x7d8] sm:$0xf]
    %v538 = vld [vmem:[%s1 + $0x7dc] sm:$0xf]
    %v539 = vld [vmem:[%s1 + $0x7e0] sm:$0xf]
    %v540 = vld [vmem:[%s1 + $0x7e4] sm:$0xf]
    %v541 = vld [vmem:[%s1 + $0x7e8] sm:$0xf]
    %v542 = vld [vmem:[%s1 + $0x7ec] sm:$0xf]
    %v543 = vld [vmem:[%s1 + $0x7f0] sm:$0xf]
    %v544 = vld [vmem:[%s1 + $0x7f4] sm:$0xf]
    %v545 = vld [vmem:[%s1 + $0x7f8] sm:$0xf]
    %v546 = vld [vmem:[%s1 + $0x7fc] sm:$0xf]
    %v547 = vld [vmem:[%s1 + $0x800] sm:$0xf]
    %v548 = vld [vmem:[%s1 + $0x804] sm:$0xf]
    %v549 = vld [vmem:[%s1 + $0x808] sm:$0xf]
    %v550 = vld [vmem:[%s1 + $0x80c] sm:$0xf]
    %v551 = vld [vmem:[%s1 + $0x810] sm:$0xf]
    %v552 = vld [vmem:[%s1 + $0x814] sm:$0xf]
    %v553 = vld [vmem:[%s1 + $0x818] sm:$0xf]
    %v554 = vld [vmem:[%s1 + $0x81c] sm:$0xf]
    %v555 = vld [vmem:[%s1 + $0x820] sm:$0xf]
    %v556 = vld [vmem:[%s1 + $0x824] sm:$0xf]
    %v557 = vld [vmem:[%s1 + $0x828] sm:$0xf]
    %v558 = vld [vmem:[%s1 + $0x82c] sm:$0xf]
    %v559 = vld [vmem:[%s1 + $0x830] sm:$0xf]
    %v560 = vld [vmem:[%s1 + $0x834] sm:$0xf]
    %v561 = vld [vmem:[%s1 + $0x838] sm:$0xf]
    %v562 = vld [vmem:[%s1 + $0x83c] sm:$0xf]
    %v563 = vld [vmem:[%s1 + $0x840] sm:$0xf]
    %v564 = vld [vmem:[%s1 + $0x844] sm:$0xf]
    %v565 = vld [vmem:[%s1 + $0x848] sm:$0xf]
    %v566 = vld [vmem:[%s1 + $0x84c] sm:$0xf]
    %v567 = vld [vmem:[%s1 + $0x850] sm:$0xf]
    %v568 = vld [vmem:[%s1 + $0x854] sm:$0xf]
    %v569 = vld [vmem:[%s1 + $0x858] sm:$0xf]
    %v570 = vld [vmem:[%s1 + $0x85c] sm:$0xf]
    %v571 = vld [vmem:[%s1 + $0x860] sm:$0xf]
    %v572 = vld [vmem:[%s1 + $0x864] sm:$0xf]
    %v573 = vld [vmem:[%s1 + $0x868] sm:$0xf]
    %v574 = vld [vmem:[%s1 + $0x86c] sm:$0xf]
    %v575 = vld [vmem:[%s1 + $0x870] sm:$0xf]
    %v576 = vld [vmem:[%s1 + $0x874] sm:$0xf]
    %v577 = vld [vmem:[%s1 + $0x878] sm:$0xf]
    %v578 = vld [vmem:[%s1 + $0x87c] sm:$0xf]
    %v579 = vld [vmem:[%s1 + $0x880] sm:$0xf]
    %v580 = vld [vmem:[%s1 + $0x884] sm:$0xf]
    %v581 = vld [vmem:[%s1 + $0x888] sm:$0xf]
    %v582 = vld [vmem:[%s1 + $0x88c] sm:$0xf]
    %v583 = vld [vmem:[%s1 + $0x890] sm:$0xf]
    %v584 = vld [vmem:[%s1 + $0x894] sm:$0xf]
    %v585 = vld [vmem:[%s1 + $0x898] sm:$0xf]
    %v586 = vld [vmem:[%s1 + $0x89c] sm:$0xf]
    %v587 = vld [vmem:[%s1 + $0x8a0] sm:$0xf]
    %v588 = vld [vmem:[%s1 + $0x8a4] sm:$0xf]
    %v589 = vld [vmem:[%s1 + $0x8a8] sm:$0xf]
    %v590 = vld [vmem:[%s1 + $0x8ac] sm:$0xf]
    %v591 = vld [vmem:[%s1 + $0x8b0] sm:$0xf]
    %v592 = vld [vmem:[%s1 + $0x8b4] sm:$0xf]
    %v593 = vld [vmem:[%s1 + $0x8b8] sm:$0xf]
    %v594 = vld [vmem:[%s1 + $0x8bc] sm:$0xf]
    %v595 = vld [vmem:[%s1 + $0x8c0] sm:$0xf]
    %v596 = vld [vmem:[%s1 + $0x8c4] sm:$0xf]
    %v597 = vld [vmem:[%s1 + $0x8c8] sm:$0xf]
    %v598 = vld [vmem:[%s1 + $0x8cc] sm:$0xf]
    %v599 = vld [vmem:[%s1 + $0x8d0] sm:$0xf]
    %v600 = vld [vmem:[%s1 + $0x8d4] sm:$0xf]
    %v601 = vld [vmem:[%s1 + $0x8d8] sm:$0xf]
    %v602 = vld [vmem:[%s1 + $0x8dc] sm:$0xf]
    %v603 = vld [vmem:[%s1 + $0x8e0] sm:$0xf]
    %v604 = vld [vmem:[%s1 + $0x8e4] sm:$0xf]
    %v605 = vld [vmem:[%s1 + $0x8e8] sm:$0xf]
    %v606 = vld [vmem:[%s1 + $0x8ec] sm:$0xf]
    %v607 = vld [vmem:[%s1 + $0x8f0] sm:$0xf]
    %v608 = vld [vmem:[%s1 + $0x8f4] sm:$0xf]
    %v609 = vld [vmem:[%s1 + $0x8f8] sm:$0xf]
    %v610 = vld [vmem:[%s1 + $0x8fc] sm:$0xf]
    %v611 = vld [vmem:[%s1 + $0x900] sm:$0xf]
    %v612 = vld [vmem:[%s1 + $0x904] sm:$0xf]
    %v613 = vld [vmem:[%s1 + $0x908] sm:$0xf]
    %v614 = vld [vmem:[%s1 + $0x90c] sm:$0xf]
    %v615 = vld [vmem:[%s1 + $0x910] sm:$0xf]
    %v616 = vld [vmem:[%s1 + $0x914] sm:$0xf]
    %v617 = vld [vmem:[%s1 + $0x918] sm:$0xf]
    %v618 = vld [vmem:[%s1 + $0x91c] sm:$0xf]
    %v619 = vld [vmem:[%s1 + $0x920] sm:$0xf]
    %v620 = vld [vmem:[%s1 + $0x924] sm:$0xf]
    %v621 = vld [vmem:[%s1 + $0x928] sm:$0xf]
    %v622 = vld [vmem:[%s1 + $0x92c] sm:$0xf]
    %v623 = vld [vmem:[%s1 + $0x930] sm:$0xf]
    %v624 = vld [vmem:[%s1 + $0x934] sm:$0xf]
    %v625 = vld [vmem:[%s1 + $0x938] sm:$0xf]
    %v626 = vld [vmem:[%s1 + $0x93c] sm:$0xf]
    %v627 = vld [vmem:[%s1 + $0x940] sm:$0xf]
    %v628 = vld [vmem:[%s1 + $0x944] sm:$0xf]
    %v629 = vld [vmem:[%s1 + $0x948] sm:$0xf]
    %v630 = vld [vmem:[%s1 + $0x94c] sm:$0xf]
    %v631 = vld [vmem:[%s1 + $0x950] sm:$0xf]
    %v632 = vld [vmem:[%s1 + $0x954] sm:$0xf]
    %v633 = vld [vmem:[%s1 + $0x958] sm:$0xf]
    %v634 = vld [vmem:[%s1 + $0x95c] sm:$0xf]
    %v635 = vld [vmem:[%s1 + $0x960] sm:$0xf]
    %v636 = vld [vmem:[%s1 + $0x964] sm:$0xf]
    %v637 = vld [vmem:[%s1 + $0x968] sm:$0xf]
    %v638 = vld [vmem:[%s1 + $0x96c] sm:$0xf]
    %v639 = vld [vmem:[%s1 + $0x970] sm:$0xf]
    %v640 = vld [vmem:[%s1 + $0x974] sm:$0xf]
    %v641 = vld [vmem:[%s1 + $0x978] sm:$0xf]
    %v642 = vld [vmem:[%s1 + $0x97c] sm:$0xf]
    %v643 = vld [vmem:[%s1 + $0x980] sm:$0xf]
    %v644 = vld [vmem:[%s1 + $0x984] sm:$0xf]
    %v645 = vld [vmem:[%s1 + $0x988] sm:$0xf]
    %v646 = vld [vmem:[%s1 + $0x98c] sm:$0xf]
    %v647 = vld [vmem:[%s1 + $0x990] sm:$0xf]
    %v648 = vld [vmem:[%s1 + $0x994] sm:$0xf]
    %v649 = vld [vmem:[%s1 + $0x998] sm:$0xf]
    %v650 = vld [vmem:[%s1 + $0x99c] sm:$0xf]
    %v651 = vld [vmem:[%s1 + $0x9a0] sm:$0xf]
    %v652 = vld [vmem:[%s1 + $0x9a4] sm:$0xf]
    %v653 = vld [vmem:[%s1 + $0x9a8] sm:$0xf]
    %v654 = vld [vmem:[%s1 + $0x9ac] sm:$0xf]
    %v655 = vld [vmem:[%s1 + $0x9b0] sm:$0xf]
    %v656 = vld [vmem:[%s1 + $0x9b4] sm:$0xf]
    %v657 = vld [vmem:[%s1 + $0x9b8] sm:$0xf]
    %v658 = vld [vmem:[%s1 + $0x9bc] sm:$0xf]
    %v659 = vld [vmem:[%s1 + $0x9c0] sm:$0xf]
    %v660 = vld [vmem:[%s1 + $0x9c4] sm:$0xf]
    %v661 = vld [vmem:[%s1 + $0x9c8] sm:$0xf]
    %v662 = vld [vmem:[%s1 + $0x9cc] sm:$0xf]
    %v663 = vld [vmem:[%s1 + $0x9d0] sm:$0xf]
    %v664 = vld [vmem:[%s1 + $0x9d4] sm:$0xf]
    %v665 = vld [vmem:[%s1 + $0x9d8] sm:$0xf]
    %v666 = vld [vmem:[%s1 + $0x9dc] sm:$0xf]
    %v667 = vld [vmem:[%s1 + $0x9e0] sm:$0xf]
    %v668 = vld [vmem:[%s1 + $0x9e4] sm:$0xf]
    %v669 = vld [vmem:[%s1 + $0x9e8] sm:$0xf]
    %v670 = vld [vmem:[%s1 + $0x9ec] sm:$0xf]
    %v671 = vld [vmem:[%s1 + $0x9f0] sm:$0xf]
    %v672 = vld [vmem:[%s1 + $0x9f4] sm:$0xf]
    %v673 = vld [vmem:[%s1 + $0x9f8] sm:$0xf]
    %v674 = vld [vmem:[%s1 + $0x9fc] sm:$0xf]
    %v675 = vld [vmem:[%s1 + $0xa00] sm:$0xf]
    %v676 = vld [vmem:[%s1 + $0xa04] sm:$0xf]
    %v677 = vld [vmem:[%s1 + $0xa08] sm:$0xf]
    %v678 = vld [vmem:[%s1 + $0xa0c] sm:$0xf]
    %v679 = vld [vmem:[%s1 + $0xa10] sm:$0xf]
    %v680 = vld [vmem:[%s1 + $0xa14] sm:$0xf]
    %v681 = vld [vmem:[%s1 + $0xa18] sm:$0xf]
    %v682 = vld [vmem:[%s1 + $0xa1c] sm:$0xf]
    %v683 = vld [vmem:[%s1 + $0xa20] sm:$0xf]
    %v684 = vld [vmem:[%s1 + $0xa24] sm:$0xf]
    %v685 = vld [vmem:[%s1 + $0xa28] sm:$0xf]
    %v686 = vld [vmem:[%s1 + $0xa2c] sm:$0xf]
    %v687 = vld [vmem:[%s1 + $0xa30] sm:$0xf]
    %v688 = vld [vmem:[%s1 + $0xa34] sm:$0xf]
    %v689 = vld [vmem:[%s1 + $0xa38] sm:$0xf]
    %v690 = vld [vmem:[%s1 + $0xa3c] sm:$0xf]
    %v691 = vld [vmem:[%s1 + $0xa40] sm:$0xf]
    %v692 = vld [vmem:[%s1 + $0xa44] sm:$0xf]
    %v693 = vld [vmem:[%s1 + $0xa48] sm:$0xf]
    %v694 = vld [vmem:[%s1 + $0xa4c] sm:$0xf]
    %v695 = vld [vmem:[%s1 + $0xa50] sm:$0xf]
    %v696 = vld [vmem:[%s1 + $0xa54] sm:$0xf]
    %v697 = vld [vmem:[%s1 + $0xa58] sm:$0xf]
    %v698 = vld [vmem:[%s1 + $0xa5c] sm:$0xf]
    %v699 = vld [vmem:[%s1 + $0xa60] sm:$0xf]
    %v700 = vld [vmem:[%s1 + $0xa64] sm:$0xf]
    %v701 = vld [vmem:[%s1 + $0xa68] sm:$0xf]
    %v702 = vld [vmem:[%s1 + $0xa6c] sm:$0xf]
    %v703 = vld [vmem:[%s1 + $0xa70] sm:$0xf]
    %v704 = vld [vmem:[%s1 + $0xa74] sm:$0xf]
    %v705 = vld [vmem:[%s1 + $0xa78] sm:$0xf]
    %v706 = vld [vmem:[%s1 + $0xa7c] sm:$0xf]
    %v707 = vld [vmem:[%s1 + $0xa80] sm:$0xf]
    %v708 = vld [vmem:[%s1 + $0xa84] sm:$0xf]
    %v709 = vld [vmem:[%s1 + $0xa88] sm:$0xf]
    %v710 = vld [vmem:[%s1 + $0xa8c] sm:$0xf]
    %v711 = vld [vmem:[%s1 + $0xa90] sm:$0xf]
    %v712 = vld [vmem:[%s1 + $0xa94] sm:$0xf]
    %v713 = vld [vmem:[%s1 + $0xa98] sm:$0xf]
    %v714 = vld [vmem:[%s1 + $0xa9c] sm:$0xf]
    %v715 = vld [vmem:[%s1 + $0xaa0] sm:$0xf]
    %v716 = vld [vmem:[%s1 + $0xaa4] sm:$0xf]
    %v717 = vld [vmem:[%s1 + $0xaa8] sm:$0xf]
    %v718 = vld [vmem:[%s1 + $0xaac] sm:$0xf]
    %v719 = vld [vmem:[%s1 + $0xab0] sm:$0xf]
    %v720 = vld [vmem:[%s1 + $0xab4] sm:$0xf]
    %v721 = vld [vmem:[%s1 + $0xab8] sm:$0xf]
    %v722 = vld [vmem:[%s1 + $0xabc] sm:$0xf]
    %v723 = vld [vmem:[%s1 + $0xac0] sm:$0xf]
    %v724 = vld [vmem:[%s1 + $0xac4] sm:$0xf]
    %v725 = vld [vmem:[%s1 + $0xac8] sm:$0xf]
    %v726 = vld [vmem:[%s1 + $0xacc] sm:$0xf]
    %v727 = vld [vmem:[%s1 + $0xad0] sm:$0xf]
    %v728 = vld [vmem:[%s1 + $0xad4] sm:$0xf]
    %v729 = vld [vmem:[%s1 + $0xad8] sm:$0xf]
    %v730 = vld [vmem:[%s1 + $0xadc] sm:$0xf]
    %v731 = vld [vmem:[%s1 + $0xae0] sm:$0xf]
    %v732 = vld [vmem:[%s1 + $0xae4] sm:$0xf]
    %v733 = vld [vmem:[%s1 + $0xae8] sm:$0xf]
    %v734 = vld [vmem:[%s1 + $0xaec] sm:$0xf]
    %v735 = vld [vmem:[%s1 + $0xaf0] sm:$0xf]
    %v736 = vld [vmem:[%s1 + $0xaf4] sm:$0xf]
    %v737 = vld [vmem:[%s1 + $0xaf8] sm:$0xf]
    %v738 = vld [vmem:[%s1 + $0xafc] sm:$0xf]
    %v739 = vld [vmem:[%s1 + $0xb00] sm:$0xf]
    %v740 = vld [vmem:[%s1 + $0xb04] sm:$0xf]
    %v741 = vld [vmem:[%s1 + $0xb08] sm:$0xf]
    %v742 = vld [vmem:[%s1 + $0xb0c] sm:$0xf]
    %v743 = vld [vmem:[%s1 + $0xb10] sm:$0xf]
    %v744 = vld [vmem:[%s1 + $0xb14] sm:$0xf]
    %v745 = vld [vmem:[%s1 + $0xb18] sm:$0xf]
    %v746 = vld [vmem:[%s1 + $0xb1c] sm:$0xf]
    %v747 = vld [vmem:[%s1 + $0xb20] sm:$0xf]
    %v748 = vld [vmem:[%s1 + $0xb24] sm:$0xf]
    %v749 = vld [vmem:[%s1 + $0xb28] sm:$0xf]
    %v750 = vld [vmem:[%s1 + $0xb2c] sm:$0xf]
    %v751 = vld [vmem:[%s1 + $0xb30] sm:$0xf]
    %v752 = vld [vmem:[%s1 + $0xb34] sm:$0xf]
    %v753 = vld [vmem:[%s1 + $0xb38] sm:$0xf]
    %v754 = vld [vmem:[%s1 + $0xb3c] sm:$0xf]
    %v755 = vld [vmem:[%s1 + $0xb40] sm:$0xf]
    %v756 = vld [vmem:[%s1 + $0xb44] sm:$0xf]
    %v757 = vld [vmem:[%s1 + $0xb48] sm:$0xf]
    %v758 = vld [vmem:[%s1 + $0xb4c] sm:$0xf]
    %v759 = vld [vmem:[%s1 + $0xb50] sm:$0xf]
    %v760 = vld [vmem:[%s1 + $0xb54] sm:$0xf]
    %v761 = vld [vmem:[%s1 + $0xb58] sm:$0xf]
    %v762 = vld [vmem:[%s1 + $0xb5c] sm:$0xf]
    %v763 = vld [vmem:[%s1 + $0xb60] sm:$0xf]
    %v764 = vld [vmem:[%s1 + $0xb64] sm:$0xf]
    %v765 = vld [vmem:[%s1 + $0xb68] sm:$0xf]
    %v766 = vld [vmem:[%s1 + $0xb6c] sm:$0xf]
    %v767 = vld [vmem:[%s1 + $0xb70] sm:$0xf]
    %v768 = vld [vmem:[%s1 + $0xb74] sm:$0xf]
    %v769 = vld [vmem:[%s1 + $0xb78] sm:$0xf]
    %v770 = vld [vmem:[%s1 + $0xb7c] sm:$0xf]
    %v771 = vld [vmem:[%s1 + $0xb80] sm:$0xf]
    %v772 = vld [vmem:[%s1 + $0xb84] sm:$0xf]
    %v773 = vld [vmem:[%s1 + $0xb88] sm:$0xf]
    %v774 = vld [vmem:[%s1 + $0xb8c] sm:$0xf]
    %v775 = vld [vmem:[%s1 + $0xb90] sm:$0xf]
    %v776 = vld [vmem:[%s1 + $0xb94] sm:$0xf]
    %v777 = vld [vmem:[%s1 + $0xb98] sm:$0xf]
    %v778 = vld [vmem:[%s1 + $0xb9c] sm:$0xf]
    %v779 = vld [vmem:[%s1 + $0xba0] sm:$0xf]
    %v780 = vld [vmem:[%s1 + $0xba4] sm:$0xf]
    %v781 = vld [vmem:[%s1 + $0xba8] sm:$0xf]
    %v782 = vld [vmem:[%s1 + $0xbac] sm:$0xf]
    %v783 = vld [vmem:[%s1 + $0xbb0] sm:$0xf]
    %v784 = vld [vmem:[%s1 + $0xbb4] sm:$0xf]
    %v785 = vld [vmem:[%s1 + $0xbb8] sm:$0xf]
    %v786 = vld [vmem:[%s1 + $0xbbc] sm:$0xf]
    %v787 = vld [vmem:[%s1 + $0xbc0] sm:$0xf]
    %v788 = vld [vmem:[%s1 + $0xbc4] sm:$0xf]
    %v789 = vld [vmem:[%s1 + $0xbc8] sm:$0xf]
    %v790 = vld [vmem:[%s1 + $0xbcc] sm:$0xf]
    %v791 = vld [vmem:[%s1 + $0xbd0] sm:$0xf]
    %v792 = vld [vmem:[%s1 + $0xbd4] sm:$0xf]
    %v793 = vld [vmem:[%s1 + $0xbd8] sm:$0xf]
    %v794 = vld [vmem:[%s1 + $0xbdc] sm:$0xf]
    %v795 = vld [vmem:[%s1 + $0xbe0] sm:$0xf]
    %v796 = vld [vmem:[%s1 + $0xbe4] sm:$0xf]
    %v797 = vld [vmem:[%s1 + $0xbe8] sm:$0xf]
    %v798 = vld [vmem:[%s1 + $0xbec] sm:$0xf]
    %v799 = vld [vmem:[%s1 + $0xbf0] sm:$0xf]
    %v800 = vld [vmem:[%s1 + $0xbf4] sm:$0xf]
    %v801 = vld [vmem:[%s1 + $0xbf8] sm:$0xf]
    %v802 = vld [vmem:[%s1 + $0xbfc] sm:$0xf]
    %v803 = vld [vmem:[%s1 + $0xc00] sm:$0xf]
    %v804 = vld [vmem:[%s1 + $0xc04] sm:$0xf]
    %v805 = vld [vmem:[%s1 + $0xc08] sm:$0xf]
    %v806 = vld [vmem:[%s1 + $0xc0c] sm:$0xf]
    %v807 = vld [vmem:[%s1 + $0xc10] sm:$0xf]
    %v808 = vld [vmem:[%s1 + $0xc14] sm:$0xf]
    %v809 = vld [vmem:[%s1 + $0xc18] sm:$0xf]
    %v810 = vld [vmem:[%s1 + $0xc1c] sm:$0xf]
    %v811 = vld [vmem:[%s1 + $0xc20] sm:$0xf]
    %v812 = vld [vmem:[%s1 + $0xc24] sm:$0xf]
    %v813 = vld [vmem:[%s1 + $0xc28] sm:$0xf]
    %v814 = vld [vmem:[%s1 + $0xc2c] sm:$0xf]
    %v815 = vld [vmem:[%s1 + $0xc30] sm:$0xf]
    %v816 = vld [vmem:[%s1 + $0xc34] sm:$0xf]
    %v817 = vld [vmem:[%s1 + $0xc38] sm:$0xf]
    %v818 = vld [vmem:[%s1 + $0xc3c] sm:$0xf]
    %v819 = vld [vmem:[%s1 + $0xc40] sm:$0xf]
    %v820 = vld [vmem:[%s1 + $0xc44] sm:$0xf]
    %v821 = vld [vmem:[%s1 + $0xc48] sm:$0xf]
    %v822 = vld [vmem:[%s1 + $0xc4c] sm:$0xf]
    %v823 = vld [vmem:[%s1 + $0xc50] sm:$0xf]
    %v824 = vld [vmem:[%s1 + $0xc54] sm:$0xf]
    %v825 = vld [vmem:[%s1 + $0xc58] sm:$0xf]
    %v826 = vld [vmem:[%s1 + $0xc5c] sm:$0xf]
    %v827 = vld [vmem:[%s1 + $0xc60] sm:$0xf]
    %v828 = vld [vmem:[%s1 + $0xc64] sm:$0xf]
    %v829 = vld [vmem:[%s1 + $0xc68] sm:$0xf]
    %v830 = vld [vmem:[%s1 + $0xc6c] sm:$0xf]
    %v831 = vld [vmem:[%s1 + $0xc70] sm:$0xf]
    %v832 = vld [vmem:[%s1 + $0xc74] sm:$0xf]
    %v833 = vld [vmem:[%s1 + $0xc78] sm:$0xf]
    %v834 = vld [vmem:[%s1 + $0xc7c] sm:$0xf]
    %v835 = vld [vmem:[%s1 + $0xc80] sm:$0xf]
    %v836 = vld [vmem:[%s1 + $0xc84] sm:$0xf]
    %v837 = vld [vmem:[%s1 + $0xc88] sm:$0xf]
    %v838 = vld [vmem:[%s1 + $0xc8c] sm:$0xf]
    %v839 = vld [vmem:[%s1 + $0xc90] sm:$0xf]
    %v840 = vld [vmem:[%s1 + $0xc94] sm:$0xf]
    %v841 = vld [vmem:[%s1 + $0xc98] sm:$0xf]
    %v842 = vld [vmem:[%s1 + $0xc9c] sm:$0xf]
    %v843 = vld [vmem:[%s1 + $0xca0] sm:$0xf]
    %v844 = vld [vmem:[%s1 + $0xca4] sm:$0xf]
    %v845 = vld [vmem:[%s1 + $0xca8] sm:$0xf]
    %v846 = vld [vmem:[%s1 + $0xcac] sm:$0xf]
    %v847 = vld [vmem:[%s1 + $0xcb0] sm:$0xf]
    %v848 = vld [vmem:[%s1 + $0xcb4] sm:$0xf]
    %v849 = vld [vmem:[%s1 + $0xcb8] sm:$0xf]
    %v850 = vld [vmem:[%s1 + $0xcbc] sm:$0xf]
    %v851 = vld [vmem:[%s1 + $0xcc0] sm:$0xf]
    %v852 = vld [vmem:[%s1 + $0xcc4] sm:$0xf]
    %v853 = vld [vmem:[%s1 + $0xcc8] sm:$0xf]
    %v854 = vld [vmem:[%s1 + $0xccc] sm:$0xf]
    %v855 = vld [vmem:[%s1 + $0xcd0] sm:$0xf]
    %v856 = vld [vmem:[%s1 + $0xcd4] sm:$0xf]
    %v857 = vld [vmem:[%s1 + $0xcd8] sm:$0xf]
    %v858 = vld [vmem:[%s1 + $0xcdc] sm:$0xf]
    %v859 = vld [vmem:[%s1 + $0xce0] sm:$0xf]
    %v860 = vld [vmem:[%s1 + $0xce4] sm:$0xf]
    %v861 = vld [vmem:[%s1 + $0xce8] sm:$0xf]
    %v862 = vld [vmem:[%s1 + $0xcec] sm:$0xf]
    %v863 = vld [vmem:[%s1 + $0xcf0] sm:$0xf]
    %v864 = vld [vmem:[%s1 + $0xcf4] sm:$0xf]
    %v865 = vld [vmem:[%s1 + $0xcf8] sm:$0xf]
    %v866 = vld [vmem:[%s1 + $0xcfc] sm:$0xf]
    %v867 = vld [vmem:[%s1 + $0xd00] sm:$0xf]
    %v868 = vld [vmem:[%s1 + $0xd04] sm:$0xf]
    %v869 = vld [vmem:[%s1 + $0xd08] sm:$0xf]
    %v870 = vld [vmem:[%s1 + $0xd0c] sm:$0xf]
    %v871 = vld [vmem:[%s1 + $0xd10] sm:$0xf]
    %v872 = vld [vmem:[%s1 + $0xd14] sm:$0xf]
    %v873 = vld [vmem:[%s1 + $0xd18] sm:$0xf]
    %v874 = vld [vmem:[%s1 + $0xd1c] sm:$0xf]
    %v875 = vld [vmem:[%s1 + $0xd20] sm:$0xf]
    %v876 = vld [vmem:[%s1 + $0xd24] sm:$0xf]
    %v877 = vld [vmem:[%s1 + $0xd28] sm:$0xf]
    %v878 = vld [vmem:[%s1 + $0xd2c] sm:$0xf]
    %v879 = vld [vmem:[%s1 + $0xd30] sm:$0xf]
    %v880 = vld [vmem:[%s1 + $0xd34] sm:$0xf]
    %v881 = vld [vmem:[%s1 + $0xd38] sm:$0xf]
    %v882 = vld [vmem:[%s1 + $0xd3c] sm:$0xf]
    %v883 = vld [vmem:[%s1 + $0xd40] sm:$0xf]
    %v884 = vld [vmem:[%s1 + $0xd44] sm:$0xf]
    %v885 = vld [vmem:[%s1 + $0xd48] sm:$0xf]
    %v886 = vld [vmem:[%s1 + $0xd4c] sm:$0xf]
    %v887 = vld [vmem:[%s1 + $0xd50] sm:$0xf]
    %v888 = vld [vmem:[%s1 + $0xd54] sm:$0xf]
    %v889 = vld [vmem:[%s1 + $0xd58] sm:$0xf]
    %v890 = vld [vmem:[%s1 + $0xd5c] sm:$0xf]
    %v891 = vld [vmem:[%s1 + $0xd60] sm:$0xf]
    %v892 = vld [vmem:[%s1 + $0xd64] sm:$0xf]
    %v893 = vld [vmem:[%s1 + $0xd68] sm:$0xf]
    %v894 = vld [vmem:[%s1 + $0xd6c] sm:$0xf]
    %v895 = vld [vmem:[%s1 + $0xd70] sm:$0xf]
    %v896 = vld [vmem:[%s1 + $0xd74] sm:$0xf]
    %v897 = vld [vmem:[%s1 + $0xd78] sm:$0xf]
    %v898 = vld [vmem:[%s1 + $0xd7c] sm:$0xf]
    %v899 = vld [vmem:[%s1 + $0xd80] sm:$0xf]
    %v900 = vld [vmem:[%s1 + $0xd84] sm:$0xf]
    %v901 = vld [vmem:[%s1 + $0xd88] sm:$0xf]
    %v902 = vld [vmem:[%s1 + $0xd8c] sm:$0xf]
    %v903 = vld [vmem:[%s1 + $0xd90] sm:$0xf]
    %v904 = vld [vmem:[%s1 + $0xd94] sm:$0xf]
    %v905 = vld [vmem:[%s1 + $0xd98] sm:$0xf]
    %v906 = vld [vmem:[%s1 + $0xd9c] sm:$0xf]
    %v907 = vld [vmem:[%s1 + $0xda0] sm:$0xf]
    %v908 = vld [vmem:[%s1 + $0xda4] sm:$0xf]
    %v909 = vld [vmem:[%s1 + $0xda8] sm:$0xf]
    %v910 = vld [vmem:[%s1 + $0xdac] sm:$0xf]
    %v911 = vld [vmem:[%s1 + $0xdb0] sm:$0xf]
    %v912 = vld [vmem:[%s1 + $0xdb4] sm:$0xf]
    %v913 = vld [vmem:[%s1 + $0xdb8] sm:$0xf]
    %v914 = vld [vmem:[%s1 + $0xdbc] sm:$0xf]
    %v915 = vld [vmem:[%s1 + $0xdc0] sm:$0xf]
    %v916 = vld [vmem:[%s1 + $0xdc4] sm:$0xf]
    %v917 = vld [vmem:[%s2] sm:$0x1]
    %v919 = vlaneseq
    %v920 = vshrl.u32 %v919, 7
    %v921 = vsub.s32 0, %v920
    %v922 = vrot.slane %v917, %v921
    %v931 = vcombine.high %v28, %v28
    %v933 = vunpack.c.l.s4 1966171168
    %v934 = vunpack.c.0.s8 %v933
    %v935 = vlaneseq
    %v936 = vshrl.u32 %v935, 7
    %v937 = vsub.s32 %v934, %v936
    %v938 = vrot.slane %v28, %v937
    %v940 = vunpack.c.l.s4 1966171168
    %v941 = vunpack.c.0.s8 %v940
    %v942 = vlaneseq
    %v943 = vshrl.u32 %v942, 7
    %v944 = vsub.s32 %v941, %v943
    %v945 = vrot.slane %v931, %v944
    %v946 = vcombine.high %v938, %v938
    %v947 = vcombine.high %v945, %v945
    %v949 = vunpack.c.l.s4 1966171168
    %v950 = vunpack.c.0.s8 %v949
    %v951 = vlaneseq
    %v952 = vshrl.u32 %v951, 7
    %v953 = vsub.s32 %v950, %v952
    %v954 = vrot.slane %v938, %v953
    %v956 = vunpack.c.l.s4 1966171168
    %v957 = vunpack.c.0.s8 %v956
    %v958 = vlaneseq
    %v959 = vshrl.u32 %v958, 7
    %v960 = vsub.s32 %v957, %v959
    %v961 = vrot.slane %v945, %v960
    %v963 = vunpack.c.l.s4 1966171168
    %v964 = vunpack.c.0.s8 %v963
    %v965 = vlaneseq
    %v966 = vshrl.u32 %v965, 7
    %v967 = vsub.s32 %v964, %v966
    %v968 = vrot.slane %v946, %v967
    %v970 = vunpack.c.l.s4 1966171168
    %v971 = vunpack.c.0.s8 %v970
    %v972 = vlaneseq
    %v973 = vshrl.u32 %v972, 7
    %v974 = vsub.s32 %v971, %v973
    %v975 = vrot.slane %v947, %v974
    %v976 = vcombine.high %v954, %v954
    %v977 = vcombine.high %v961, %v961
    %v978 = vcombine.high %v968, %v968
    %v979 = vcombine.high %v975, %v975
    %v980 = vcombine.high %v29, %v29
    %v982 = vunpack.c.l.s4 1966171168
    %v983 = vunpack.c.0.s8 %v982
    %v984 = vlaneseq
    %v985 = vshrl.u32 %v984, 7
    %v986 = vsub.s32 %v983, %v985
    %v987 = vrot.slane %v29, %v986
    %v989 = vunpack.c.l.s4 1966171168
    %v990 = vunpack.c.0.s8 %v989
    %v991 = vlaneseq
    %v992 = vshrl.u32 %v991, 7
    %v993 = vsub.s32 %v990, %v992
    %v994 = vrot.slane %v980, %v993
    %v995 = vcombine.high %v987, %v987
    %v996 = vcombine.high %v994, %v994
    %v998 = vunpack.c.l.s4 1966171168
    %v999 = vunpack.c.0.s8 %v998
    %v1000 = vlaneseq
    %v1001 = vshrl.u32 %v1000, 7
    %v1002 = vsub.s32 %v999, %v1001
    %v1003 = vrot.slane %v987, %v1002
    %v1005 = vunpack.c.l.s4 1966171168
    %v1006 = vunpack.c.0.s8 %v1005
    %v1007 = vlaneseq
    %v1008 = vshrl.u32 %v1007, 7
    %v1009 = vsub.s32 %v1006, %v1008
    %v1010 = vrot.slane %v994, %v1009
    %v1012 = vunpack.c.l.s4 1966171168
    %v1013 = vunpack.c.0.s8 %v1012
    %v1014 = vlaneseq
    %v1015 = vshrl.u32 %v1014, 7
    %v1016 = vsub.s32 %v1013, %v1015
    %v1017 = vrot.slane %v995, %v1016
    %v1019 = vunpack.c.l.s4 1966171168
    %v1020 = vunpack.c.0.s8 %v1019
    %v1021 = vlaneseq
    %v1022 = vshrl.u32 %v1021, 7
    %v1023 = vsub.s32 %v1020, %v1022
    %v1024 = vrot.slane %v996, %v1023
    %v1025 = vcombine.high %v1003, %v1003
    %v1026 = vcombine.high %v1010, %v1010
    %v1027 = vcombine.high %v1017, %v1017
    %v1028 = vcombine.high %v1024, %v1024
    %v1029 = vcombine.high %v30, %v30
    %v1031 = vunpack.c.l.s4 1966171168
    %v1032 = vunpack.c.0.s8 %v1031
    %v1033 = vlaneseq
    %v1034 = vshrl.u32 %v1033, 7
    %v1035 = vsub.s32 %v1032, %v1034
    %v1036 = vrot.slane %v30, %v1035
    %v1038 = vunpack.c.l.s4 1966171168
    %v1039 = vunpack.c.0.s8 %v1038
    %v1040 = vlaneseq
    %v1041 = vshrl.u32 %v1040, 7
    %v1042 = vsub.s32 %v1039, %v1041
    %v1043 = vrot.slane %v1029, %v1042
    %v1044 = vcombine.high %v1036, %v1036
    %v1045 = vcombine.high %v1043, %v1043
    %v1047 = vunpack.c.l.s4 1966171168
    %v1048 = vunpack.c.0.s8 %v1047
    %v1049 = vlaneseq
    %v1050 = vshrl.u32 %v1049, 7
    %v1051 = vsub.s32 %v1048, %v1050
    %v1052 = vrot.slane %v1036, %v1051
    %v1054 = vunpack.c.l.s4 1966171168
    %v1055 = vunpack.c.0.s8 %v1054
    %v1056 = vlaneseq
    %v1057 = vshrl.u32 %v1056, 7
    %v1058 = vsub.s32 %v1055, %v1057
    %v1059 = vrot.slane %v1043, %v1058
    %v1061 = vunpack.c.l.s4 1966171168
    %v1062 = vunpack.c.0.s8 %v1061
    %v1063 = vlaneseq
    %v1064 = vshrl.u32 %v1063, 7
    %v1065 = vsub.s32 %v1062, %v1064
    %v1066 = vrot.slane %v1044, %v1065
    %v1068 = vunpack.c.l.s4 1966171168
    %v1069 = vunpack.c.0.s8 %v1068
    %v1070 = vlaneseq
    %v1071 = vshrl.u32 %v1070, 7
    %v1072 = vsub.s32 %v1069, %v1071
    %v1073 = vrot.slane %v1045, %v1072
    %v1074 = vcombine.high %v1052, %v1052
    %v1075 = vcombine.high %v1059, %v1059
    %v1076 = vcombine.high %v1066, %v1066
    %v1077 = vcombine.high %v1073, %v1073
    %v1078 = vcombine.high %v31, %v31
    %v1080 = vunpack.c.l.s4 1966171168
    %v1081 = vunpack.c.0.s8 %v1080
    %v1082 = vlaneseq
    %v1083 = vshrl.u32 %v1082, 7
    %v1084 = vsub.s32 %v1081, %v1083
    %v1085 = vrot.slane %v31, %v1084
    %v1087 = vunpack.c.l.s4 1966171168
    %v1088 = vunpack.c.0.s8 %v1087
    %v1089 = vlaneseq
    %v1090 = vshrl.u32 %v1089, 7
    %v1091 = vsub.s32 %v1088, %v1090
    %v1092 = vrot.slane %v1078, %v1091
    %v1093 = vcombine.high %v1085, %v1085
    %v1094 = vcombine.high %v1092, %v1092
    %v1096 = vunpack.c.l.s4 1966171168
    %v1097 = vunpack.c.0.s8 %v1096
    %v1098 = vlaneseq
    %v1099 = vshrl.u32 %v1098, 7
    %v1100 = vsub.s32 %v1097, %v1099
    %v1101 = vrot.slane %v1085, %v1100
    %v1103 = vunpack.c.l.s4 1966171168
    %v1104 = vunpack.c.0.s8 %v1103
    %v1105 = vlaneseq
    %v1106 = vshrl.u32 %v1105, 7
    %v1107 = vsub.s32 %v1104, %v1106
    %v1108 = vrot.slane %v1092, %v1107
    %v1110 = vunpack.c.l.s4 1966171168
    %v1111 = vunpack.c.0.s8 %v1110
    %v1112 = vlaneseq
    %v1113 = vshrl.u32 %v1112, 7
    %v1114 = vsub.s32 %v1111, %v1113
    %v1115 = vrot.slane %v1093, %v1114
    %v1117 = vunpack.c.l.s4 1966171168
    %v1118 = vunpack.c.0.s8 %v1117
    %v1119 = vlaneseq
    %v1120 = vshrl.u32 %v1119, 7
    %v1121 = vsub.s32 %v1118, %v1120
    %v1122 = vrot.slane %v1094, %v1121
    %v1123 = vcombine.high %v1101, %v1101
    %v1124 = vcombine.high %v1108, %v1108
    %v1125 = vcombine.high %v1115, %v1115
    %v1126 = vcombine.high %v1122, %v1122
    %v1127 = vcombine.high %v32, %v32
    %v1129 = vunpack.c.l.s4 1966171168
    %v1130 = vunpack.c.0.s8 %v1129
    %v1131 = vlaneseq
    %v1132 = vshrl.u32 %v1131, 7
    %v1133 = vsub.s32 %v1130, %v1132
    %v1134 = vrot.slane %v32, %v1133
    %v1136 = vunpack.c.l.s4 1966171168
    %v1137 = vunpack.c.0.s8 %v1136
    %v1138 = vlaneseq
    %v1139 = vshrl.u32 %v1138, 7
    %v1140 = vsub.s32 %v1137, %v1139
    %v1141 = vrot.slane %v1127, %v1140
    %v1142 = vcombine.high %v1134, %v1134
    %v1143 = vcombine.high %v1141, %v1141
    %v1145 = vunpack.c.l.s4 1966171168
    %v1146 = vunpack.c.0.s8 %v1145
    %v1147 = vlaneseq
    %v1148 = vshrl.u32 %v1147, 7
    %v1149 = vsub.s32 %v1146, %v1148
    %v1150 = vrot.slane %v1134, %v1149
    %v1152 = vunpack.c.l.s4 1966171168
    %v1153 = vunpack.c.0.s8 %v1152
    %v1154 = vlaneseq
    %v1155 = vshrl.u32 %v1154, 7
    %v1156 = vsub.s32 %v1153, %v1155
    %v1157 = vrot.slane %v1141, %v1156
    %v1159 = vunpack.c.l.s4 1966171168
    %v1160 = vunpack.c.0.s8 %v1159
    %v1161 = vlaneseq
    %v1162 = vshrl.u32 %v1161, 7
    %v1163 = vsub.s32 %v1160, %v1162
    %v1164 = vrot.slane %v1142, %v1163
    %v1166 = vunpack.c.l.s4 1966171168
    %v1167 = vunpack.c.0.s8 %v1166
    %v1168 = vlaneseq
    %v1169 = vshrl.u32 %v1168, 7
    %v1170 = vsub.s32 %v1167, %v1169
    %v1171 = vrot.slane %v1143, %v1170
    %v1172 = vcombine.high %v1150, %v1150
    %v1173 = vcombine.high %v1157, %v1157
    %v1174 = vcombine.high %v1164, %v1164
    %v1175 = vcombine.high %v1171, %v1171
    %v1176 = vcombine.high %v33, %v33
    %v1178 = vunpack.c.l.s4 1966171168
    %v1179 = vunpack.c.0.s8 %v1178
    %v1180 = vlaneseq
    %v1181 = vshrl.u32 %v1180, 7
    %v1182 = vsub.s32 %v1179, %v1181
    %v1183 = vrot.slane %v33, %v1182
    %v1185 = vunpack.c.l.s4 1966171168
    %v1186 = vunpack.c.0.s8 %v1185
    %v1187 = vlaneseq
    %v1188 = vshrl.u32 %v1187, 7
    %v1189 = vsub.s32 %v1186, %v1188
    %v1190 = vrot.slane %v1176, %v1189
    %v1191 = vcombine.high %v1183, %v1183
    %v1192 = vcombine.high %v1190, %v1190
    %v1194 = vunpack.c.l.s4 1966171168
    %v1195 = vunpack.c.0.s8 %v1194
    %v1196 = vlaneseq
    %v1197 = vshrl.u32 %v1196, 7
    %v1198 = vsub.s32 %v1195, %v1197
    %v1199 = vrot.slane %v1183, %v1198
    %v1201 = vunpack.c.l.s4 1966171168
    %v1202 = vunpack.c.0.s8 %v1201
    %v1203 = vlaneseq
    %v1204 = vshrl.u32 %v1203, 7
    %v1205 = vsub.s32 %v1202, %v1204
    %v1206 = vrot.slane %v1190, %v1205
    %v1208 = vunpack.c.l.s4 1966171168
    %v1209 = vunpack.c.0.s8 %v1208
    %v1210 = vlaneseq
    %v1211 = vshrl.u32 %v1210, 7
    %v1212 = vsub.s32 %v1209, %v1211
    %v1213 = vrot.slane %v1191, %v1212
    %v1215 = vunpack.c.l.s4 1966171168
    %v1216 = vunpack.c.0.s8 %v1215
    %v1217 = vlaneseq
    %v1218 = vshrl.u32 %v1217, 7
    %v1219 = vsub.s32 %v1216, %v1218
    %v1220 = vrot.slane %v1192, %v1219
    %v1221 = vcombine.high %v1199, %v1199
    %v1222 = vcombine.high %v1206, %v1206
    %v1223 = vcombine.high %v1213, %v1213
    %v1224 = vcombine.high %v1220, %v1220
    %v1225 = vcombine.high %v34, %v34
    %v1227 = vunpack.c.l.s4 1966171168
    %v1228 = vunpack.c.0.s8 %v1227
    %v1229 = vlaneseq
    %v1230 = vshrl.u32 %v1229, 7
    %v1231 = vsub.s32 %v1228, %v1230
    %v1232 = vrot.slane %v34, %v1231
    %v1234 = vunpack.c.l.s4 1966171168
    %v1235 = vunpack.c.0.s8 %v1234
    %v1236 = vlaneseq
    %v1237 = vshrl.u32 %v1236, 7
    %v1238 = vsub.s32 %v1235, %v1237
    %v1239 = vrot.slane %v1225, %v1238
    %v1240 = vcombine.high %v1232, %v1232
    %v1241 = vcombine.high %v1239, %v1239
    %v1243 = vunpack.c.l.s4 1966171168
    %v1244 = vunpack.c.0.s8 %v1243
    %v1245 = vlaneseq
    %v1246 = vshrl.u32 %v1245, 7
    %v1247 = vsub.s32 %v1244, %v1246
    %v1248 = vrot.slane %v1232, %v1247
    %v1250 = vunpack.c.l.s4 1966171168
    %v1251 = vunpack.c.0.s8 %v1250
    %v1252 = vlaneseq
    %v1253 = vshrl.u32 %v1252, 7
    %v1254 = vsub.s32 %v1251, %v1253
    %v1255 = vrot.slane %v1239, %v1254
    %v1257 = vunpack.c.l.s4 1966171168
    %v1258 = vunpack.c.0.s8 %v1257
    %v1259 = vlaneseq
    %v1260 = vshrl.u32 %v1259, 7
    %v1261 = vsub.s32 %v1258, %v1260
    %v1262 = vrot.slane %v1240, %v1261
    %v1264 = vunpack.c.l.s4 1966171168
    %v1265 = vunpack.c.0.s8 %v1264
    %v1266 = vlaneseq
    %v1267 = vshrl.u32 %v1266, 7
    %v1268 = vsub.s32 %v1265, %v1267
    %v1269 = vrot.slane %v1241, %v1268
    %v1270 = vcombine.high %v1248, %v1248
    %v1271 = vcombine.high %v1255, %v1255
    %v1272 = vcombine.high %v1262, %v1262
    %v1273 = vcombine.high %v1269, %v1269
    %v2211 = vunpack.c.l.b16 %v35
    %v2212 = vunpack.c.l.b16 %v36
    %v2213 = vunpack.c.l.b16 %v37
    %v2214 = vunpack.c.l.b16 %v38
    %v2215 = vunpack.c.l.b16 %v39
    %v2216 = vunpack.c.l.b16 %v40
    %v2217 = vunpack.c.l.b16 %v41
    %v2218 = vunpack.c.l.b16 %v42
    %v2219 = vunpack.c.l.b16 %v43
    %v2220 = vunpack.c.l.b16 %v44
    %v2221 = vunpack.c.l.b16 %v45
    %v2222 = vunpack.c.l.b16 %v46
    %v2223 = vunpack.c.l.b16 %v47
    %v2224 = vunpack.c.l.b16 %v48
    %v2225 = vunpack.c.l.b16 %v49
    %v2226 = vunpack.c.l.b16 %v50
    %v2227 = vunpack.c.l.b16 %v51
    %v2228 = vunpack.c.l.b16 %v52
    %v2229 = vunpack.c.l.b16 %v53
    %v2230 = vunpack.c.l.b16 %v54
    %v2231 = vunpack.c.l.b16 %v55
    %v2232 = vunpack.c.l.b16 %v56
    %v2233 = vunpack.c.l.b16 %v57
    %v2234 = vunpack.c.l.b16 %v58
    %v2235 = vunpack.c.l.b16 %v59
    %v2236 = vunpack.c.l.b16 %v60
    %v2237 = vunpack.c.l.b16 %v61
    %v2238 = vunpack.c.l.b16 %v62
    %v2239 = vunpack.c.l.b16 %v63
    %v2240 = vunpack.c.l.b16 %v64
    %v2241 = vunpack.c.l.b16 %v65
    %v2242 = vunpack.c.l.b16 %v66
    %v2243 = vunpack.c.l.b16 %v67
    %v2244 = vunpack.c.l.b16 %v68
    %v2245 = vunpack.c.l.b16 %v69
    %v2246 = vunpack.c.l.b16 %v70
    %v2247 = vunpack.c.l.b16 %v71
    %v2248 = vunpack.c.l.b16 %v72
    %v2249 = vunpack.c.l.b16 %v73
    %v2250 = vunpack.c.l.b16 %v74
    %v2251 = vunpack.c.l.b16 %v75
    %v2252 = vunpack.c.l.b16 %v76
    %v2253 = vunpack.c.l.b16 %v77
    %v2254 = vunpack.c.l.b16 %v78
    %v2255 = vunpack.c.l.b16 %v79
    %v2256 = vunpack.c.l.b16 %v80
    %v2257 = vunpack.c.l.b16 %v81
    %v2258 = vunpack.c.l.b16 %v82
    %v2259 = vunpack.c.l.b16 %v83
    %v2260 = vunpack.c.l.b16 %v84
    %v2261 = vunpack.c.l.b16 %v85
    %v2262 = vunpack.c.l.b16 %v86
    %v2263 = vunpack.c.l.b16 %v87
    %v2264 = vunpack.c.l.b16 %v88
    %v2265 = vunpack.c.l.b16 %v89
    %v2266 = vunpack.c.l.b16 %v90
    %v2267 = vunpack.c.l.b16 %v91
    %v2268 = vunpack.c.l.b16 %v92
    %v2269 = vunpack.c.l.b16 %v93
    %v2270 = vunpack.c.l.b16 %v94
    %v2271 = vunpack.c.l.b16 %v95
    %v2272 = vunpack.c.l.b16 %v96
    %v2273 = vunpack.c.l.b16 %v97
    %v2274 = vunpack.c.l.b16 %v98
    %v2275 = vunpack.c.l.b16 %v99
    %v2276 = vunpack.c.l.b16 %v100
    %v2277 = vunpack.c.l.b16 %v101
    %v2278 = vunpack.c.l.b16 %v102
    %v2279 = vunpack.c.l.b16 %v103
    %v2280 = vunpack.c.l.b16 %v104
    %v2281 = vunpack.c.l.b16 %v105
    %v2282 = vunpack.c.l.b16 %v106
    %v2283 = vunpack.c.l.b16 %v107
    %v2284 = vunpack.c.l.b16 %v108
    %v2285 = vunpack.c.l.b16 %v109
    %v2286 = vunpack.c.l.b16 %v110
    %v2287 = vunpack.c.l.b16 %v111
    %v2288 = vunpack.c.l.b16 %v112
    %v2289 = vunpack.c.l.b16 %v113
    %v2290 = vunpack.c.l.b16 %v114
    %v2291 = vunpack.c.l.b16 %v115
    %v2292 = vunpack.c.l.b16 %v116
    %v2293 = vunpack.c.l.b16 %v117
    %v2294 = vunpack.c.l.b16 %v118
    %v2295 = vunpack.c.l.b16 %v119
    %v2296 = vunpack.c.l.b16 %v120
    %v2297 = vunpack.c.l.b16 %v121
    %v2298 = vunpack.c.l.b16 %v122
    %v2299 = vunpack.c.l.b16 %v123
    %v2300 = vunpack.c.l.b16 %v124
    %v2301 = vunpack.c.l.b16 %v125
    %v2302 = vunpack.c.l.b16 %v126
    %v2303 = vunpack.c.l.b16 %v127
    %v2304 = vunpack.c.l.b16 %v128
    %v2305 = vunpack.c.l.b16 %v129
    %v2306 = vunpack.c.l.b16 %v130
    %v2307 = vunpack.c.l.b16 %v131
    %v2308 = vunpack.c.l.b16 %v132
    %v2309 = vunpack.c.l.b16 %v133
    %v2310 = vunpack.c.l.b16 %v134
    %v2311 = vunpack.c.l.b16 %v135
    %v2312 = vunpack.c.l.b16 %v136
    %v2313 = vunpack.c.l.b16 %v137
    %v2314 = vunpack.c.l.b16 %v138
    %v2315 = vunpack.c.l.b16 %v139
    %v2316 = vunpack.c.l.b16 %v140
    %v2317 = vunpack.c.l.b16 %v141
    %v2318 = vunpack.c.l.b16 %v142
    %v2319 = vunpack.c.l.b16 %v143
    %v2320 = vunpack.c.l.b16 %v144
    %v2321 = vunpack.c.l.b16 %v145
    %v2322 = vunpack.c.l.b16 %v146
    %v2323 = vunpack.c.l.b16 %v147
    %v2324 = vunpack.c.l.b16 %v148
    %v2325 = vunpack.c.l.b16 %v149
    %v2326 = vunpack.c.l.b16 %v150
    %v2327 = vunpack.c.l.b16 %v151
    %v2328 = vunpack.c.l.b16 %v152
    %v2329 = vunpack.c.l.b16 %v153
    %v2330 = vunpack.c.l.b16 %v154
    %v2331 = vunpack.c.l.b16 %v155
    %v2332 = vunpack.c.l.b16 %v156
    %v2333 = vunpack.c.l.b16 %v157
    %v2334 = vunpack.c.l.b16 %v158
    %v2335 = vunpack.c.l.b16 %v159
    %v2336 = vunpack.c.l.b16 %v160
    %v2337 = vunpack.c.l.b16 %v161
    %v2338 = vunpack.c.l.b16 %v162
    %v2339 = vunpack.c.l.b16 %v163
    %v2340 = vunpack.c.l.b16 %v164
    %v2341 = vunpack.c.l.b16 %v165
    %v2342 = vunpack.c.l.b16 %v166
    %v2343 = vunpack.c.l.b16 %v167
    %v2344 = vunpack.c.l.b16 %v168
    %v2345 = vunpack.c.l.b16 %v169
    %v2346 = vunpack.c.l.b16 %v170
    %v2347 = vunpack.c.l.b16 %v171
    %v2348 = vunpack.c.l.b16 %v172
    %v2349 = vunpack.c.l.b16 %v173
    %v2350 = vunpack.c.l.b16 %v174
    %v2351 = vunpack.c.l.b16 %v175
    %v2352 = vunpack.c.l.b16 %v176
    %v2353 = vunpack.c.l.b16 %v177
    %v2354 = vunpack.c.l.b16 %v178
    %v2355 = vunpack.c.l.b16 %v179
    %v2356 = vunpack.c.l.b16 %v180
    %v2357 = vunpack.c.l.b16 %v181
    %v2358 = vunpack.c.l.b16 %v182
    %v2359 = vunpack.c.l.b16 %v183
    %v2360 = vunpack.c.l.b16 %v184
    %v2361 = vunpack.c.l.b16 %v185
    %v2362 = vunpack.c.l.b16 %v186
    %v2363 = vunpack.c.l.b16 %v187
    %v2364 = vunpack.c.l.b16 %v188
    %v2365 = vunpack.c.l.b16 %v189
    %v2366 = vunpack.c.l.b16 %v190
    %v2367 = vunpack.c.l.b16 %v191
    %v2368 = vunpack.c.l.b16 %v192
    %v2369 = vunpack.c.l.b16 %v193
    %v2370 = vunpack.c.l.b16 %v194
    %v2371 = vunpack.c.l.b16 %v195
    %v2372 = vunpack.c.l.b16 %v196
    %v2373 = vunpack.c.l.b16 %v197
    %v2374 = vunpack.c.l.b16 %v198
    %v2375 = vunpack.c.l.b16 %v199
    %v2376 = vunpack.c.l.b16 %v200
    %v2377 = vunpack.c.l.b16 %v201
    %v2378 = vunpack.c.l.b16 %v202
    %v2379 = vunpack.c.l.b16 %v203
    %v2380 = vunpack.c.l.b16 %v204
    %v2381 = vunpack.c.l.b16 %v205
    %v2382 = vunpack.c.l.b16 %v206
    %v2383 = vunpack.c.l.b16 %v207
    %v2384 = vunpack.c.l.b16 %v208
    %v2385 = vunpack.c.l.b16 %v209
    %v2386 = vunpack.c.l.b16 %v210
    %v2387 = vunpack.c.l.b16 %v211
    %v2388 = vunpack.c.l.b16 %v212
    %v2389 = vunpack.c.l.b16 %v213
    %v2390 = vunpack.c.l.b16 %v214
    %v2391 = vunpack.c.l.b16 %v215
    %v2392 = vunpack.c.l.b16 %v216
    %v2393 = vunpack.c.l.b16 %v217
    %v2394 = vunpack.c.l.b16 %v218
    %v2395 = vunpack.c.l.b16 %v219
    %v2396 = vunpack.c.l.b16 %v220
    %v2397 = vunpack.c.l.b16 %v221
    %v2398 = vunpack.c.l.b16 %v222
    %v2399 = vunpack.c.l.b16 %v223
    %v2400 = vunpack.c.l.b16 %v224
    %v2401 = vunpack.c.l.b16 %v225
    %v2402 = vunpack.c.l.b16 %v226
    %v2403 = vunpack.c.l.b16 %v227
    %v2404 = vunpack.c.l.b16 %v228
    %v2405 = vunpack.c.l.b16 %v229
    %v2406 = vunpack.c.l.b16 %v230
    %v2407 = vunpack.c.l.b16 %v231
    %v2408 = vunpack.c.l.b16 %v232
    %v2409 = vunpack.c.l.b16 %v233
    %v2410 = vunpack.c.l.b16 %v234
    %v2411 = vunpack.c.l.b16 %v235
    %v2412 = vunpack.c.l.b16 %v236
    %v2413 = vunpack.c.l.b16 %v237
    %v2414 = vunpack.c.l.b16 %v238
    %v2415 = vunpack.c.l.b16 %v239
    %v2416 = vunpack.c.l.b16 %v240
    %v2417 = vunpack.c.l.b16 %v241
    %v2418 = vunpack.c.l.b16 %v242
    %v2419 = vunpack.c.l.b16 %v243
    %v2420 = vunpack.c.l.b16 %v244
    %v2421 = vunpack.c.l.b16 %v245
    %v2422 = vunpack.c.l.b16 %v246
    %v2423 = vunpack.c.l.b16 %v247
    %v2424 = vunpack.c.l.b16 %v248
    %v2425 = vunpack.c.l.b16 %v249
    %v2426 = vunpack.c.l.b16 %v250
    %v2427 = vunpack.c.l.b16 %v251
    %v2428 = vunpack.c.l.b16 %v252
    %v2429 = vunpack.c.l.b16 %v253
    %v2430 = vunpack.c.l.b16 %v254
    %v2431 = vunpack.c.l.b16 %v255
    %v2432 = vunpack.c.l.b16 %v256
    %v2433 = vunpack.c.l.b16 %v257
    %v2434 = vunpack.c.l.b16 %v258
    %v2435 = vunpack.c.l.b16 %v259
    %v2436 = vunpack.c.l.b16 %v260
    %v2437 = vunpack.c.l.b16 %v261
    %v2438 = vunpack.c.l.b16 %v262
    %v2439 = vunpack.c.l.b16 %v263
    %v2440 = vunpack.c.l.b16 %v264
    %v2441 = vunpack.c.l.b16 %v265
    %v2442 = vunpack.c.l.b16 %v266
    %v2443 = vunpack.c.l.b16 %v267
    %v2444 = vunpack.c.l.b16 %v268
    %v2445 = vunpack.c.l.b16 %v269
    %v2446 = vunpack.c.l.b16 %v270
    %v2447 = vunpack.c.l.b16 %v271
    %v2448 = vunpack.c.l.b16 %v272
    %v2449 = vunpack.c.l.b16 %v273
    %v2450 = vunpack.c.l.b16 %v274
    %v2451 = vunpack.c.l.b16 %v275
    %v2452 = vunpack.c.l.b16 %v276
    %v2453 = vunpack.c.l.b16 %v277
    %v2454 = vunpack.c.l.b16 %v278
    %v2455 = vunpack.c.l.b16 %v279
    %v2456 = vunpack.c.l.b16 %v280
    %v2457 = vunpack.c.l.b16 %v281
    %v2458 = vunpack.c.l.b16 %v282
    %v2459 = vunpack.c.l.b16 %v283
    %v2460 = vunpack.c.l.b16 %v284
    %v2461 = vunpack.c.l.b16 %v285
    %v2462 = vunpack.c.l.b16 %v286
    %v2463 = vunpack.c.l.b16 %v287
    %v2464 = vunpack.c.l.b16 %v288
    %v2465 = vunpack.c.l.b16 %v289
    %v2466 = vunpack.c.l.b16 %v290
    %v2467 = vunpack.c.l.b16 %v291
    %v2468 = vunpack.c.l.b16 %v292
    %v2469 = vunpack.c.l.b16 %v293
    %v2470 = vunpack.c.l.b16 %v294
    %v2471 = vunpack.c.l.b16 %v295
    %v2472 = vunpack.c.l.b16 %v296
    %v2473 = vunpack.c.l.b16 %v297
    %v2474 = vunpack.c.l.b16 %v298
    %v2475 = vunpack.c.l.b16 %v299
    %v2476 = vunpack.c.l.b16 %v300
    %v2477 = vunpack.c.l.b16 %v301
    %v2478 = vunpack.c.l.b16 %v302
    %v2479 = vunpack.c.l.b16 %v303
    %v2480 = vunpack.c.l.b16 %v304
    %v2481 = vunpack.c.l.b16 %v305
    %v2482 = vunpack.c.l.b16 %v306
    %v2483 = vunpack.c.l.b16 %v307
    %v2484 = vunpack.c.l.b16 %v308
    %v2485 = vunpack.c.l.b16 %v309
    %v2486 = vunpack.c.l.b16 %v310
    %v2487 = vunpack.c.l.b16 %v311
    %v2488 = vunpack.c.l.b16 %v312
    %v2489 = vunpack.c.l.b16 %v313
    %v2490 = vunpack.c.l.b16 %v314
    %v2491 = vunpack.c.l.b16 %v315
    %v2492 = vunpack.c.l.b16 %v316
    %v2493 = vunpack.c.l.b16 %v317
    %v2494 = vunpack.c.l.b16 %v318
    %v2495 = vunpack.c.l.b16 %v319
    %v2496 = vunpack.c.l.b16 %v320
    %v2497 = vunpack.c.l.b16 %v321
    %v2498 = vunpack.c.l.b16 %v322
    %v2499 = vunpack.c.l.b16 %v323
    %v2500 = vunpack.c.l.b16 %v324
    %v2501 = vunpack.c.l.b16 %v325
    %v2502 = vunpack.c.l.b16 %v326
    %v2503 = vunpack.c.l.b16 %v327
    %v2504 = vunpack.c.l.b16 %v328
    %v2505 = vunpack.c.l.b16 %v329
    %v2506 = vunpack.c.l.b16 %v330
    %v2507 = vunpack.c.l.b16 %v331
    %v2508 = vunpack.c.l.b16 %v332
    %v2509 = vunpack.c.l.b16 %v333
    %v2510 = vunpack.c.l.b16 %v334
    %v2511 = vunpack.c.l.b16 %v335
    %v2512 = vunpack.c.l.b16 %v336
    %v2513 = vunpack.c.l.b16 %v337
    %v2514 = vunpack.c.l.b16 %v338
    %v2515 = vunpack.c.l.b16 %v339
    %v2516 = vunpack.c.l.b16 %v340
    %v2517 = vunpack.c.l.b16 %v341
    %v2518 = vunpack.c.l.b16 %v342
    %v2519 = vunpack.c.l.b16 %v343
    %v2520 = vunpack.c.l.b16 %v344
    %v2521 = vunpack.c.l.b16 %v345
    %v2522 = vunpack.c.l.b16 %v346
    %v2523 = vunpack.c.l.b16 %v347
    %v2524 = vunpack.c.l.b16 %v348
    %v2525 = vunpack.c.l.b16 %v349
    %v2526 = vunpack.c.l.b16 %v350
    %v2527 = vunpack.c.l.b16 %v351
    %v2528 = vunpack.c.l.b16 %v352
    %v2529 = vunpack.c.l.b16 %v353
    %v2530 = vunpack.c.l.b16 %v354
    %v2531 = vunpack.c.l.b16 %v355
    %v2532 = vunpack.c.l.b16 %v356
    %v2533 = vunpack.c.l.b16 %v357
    %v2534 = vunpack.c.l.b16 %v358
    %v2535 = vunpack.c.l.b16 %v359
    %v2536 = vunpack.c.l.b16 %v360
    %v2537 = vunpack.c.l.b16 %v361
    %v2538 = vunpack.c.l.b16 %v362
    %v2539 = vunpack.c.l.b16 %v363
    %v2540 = vunpack.c.l.b16 %v364
    %v2541 = vunpack.c.l.b16 %v365
    %v2542 = vunpack.c.l.b16 %v366
    %v2543 = vunpack.c.l.b16 %v367
    %v2544 = vunpack.c.l.b16 %v368
    %v2545 = vunpack.c.l.b16 %v369
    %v2546 = vunpack.c.l.b16 %v370
    %v2547 = vunpack.c.l.b16 %v371
    %v2548 = vunpack.c.l.b16 %v372
    %v2549 = vunpack.c.l.b16 %v373
    %v2550 = vunpack.c.l.b16 %v374
    %v2551 = vunpack.c.l.b16 %v375
    %v2552 = vunpack.c.l.b16 %v376
    %v2553 = vunpack.c.l.b16 %v377
    %v2554 = vunpack.c.l.b16 %v378
    %v2555 = vunpack.c.l.b16 %v379
    %v2556 = vunpack.c.l.b16 %v380
    %v2557 = vunpack.c.l.b16 %v381
    %v2558 = vunpack.c.l.b16 %v382
    %v2559 = vunpack.c.l.b16 %v383
    %v2560 = vunpack.c.l.b16 %v384
    %v2561 = vunpack.c.l.b16 %v385
    %v2562 = vunpack.c.l.b16 %v386
    %v2563 = vunpack.c.l.b16 %v387
    %v2564 = vunpack.c.l.b16 %v388
    %v2565 = vunpack.c.l.b16 %v389
    %v2566 = vunpack.c.l.b16 %v390
    %v2567 = vunpack.c.l.b16 %v391
    %v2568 = vunpack.c.l.b16 %v392
    %v2569 = vunpack.c.l.b16 %v393
    %v2570 = vunpack.c.l.b16 %v394
    %v2571 = vunpack.c.l.b16 %v395
    %v2572 = vunpack.c.l.b16 %v396
    %v2573 = vunpack.c.l.b16 %v397
    %v2574 = vunpack.c.l.b16 %v398
    %v2575 = vunpack.c.l.b16 %v399
    %v2576 = vunpack.c.l.b16 %v400
    %v2577 = vunpack.c.l.b16 %v401
    %v2578 = vunpack.c.l.b16 %v402
    %v2579 = vunpack.c.l.b16 %v403
    %v2580 = vunpack.c.l.b16 %v404
    %v2581 = vunpack.c.l.b16 %v405
    %v2582 = vunpack.c.l.b16 %v406
    %v2583 = vunpack.c.l.b16 %v407
    %v2584 = vunpack.c.l.b16 %v408
    %v2585 = vunpack.c.l.b16 %v409
    %v2586 = vunpack.c.l.b16 %v410
    %v2587 = vunpack.c.l.b16 %v411
    %v2588 = vunpack.c.l.b16 %v412
    %v2589 = vunpack.c.l.b16 %v413
    %v2590 = vunpack.c.l.b16 %v414
    %v2591 = vunpack.c.l.b16 %v415
    %v2592 = vunpack.c.l.b16 %v416
    %v2593 = vunpack.c.l.b16 %v417
    %v2594 = vunpack.c.l.b16 %v418
    %v2595 = vunpack.c.l.b16 %v419
    %v2596 = vunpack.c.l.b16 %v420
    %v2597 = vunpack.c.l.b16 %v421
    %v2598 = vunpack.c.l.b16 %v422
    %v2599 = vunpack.c.l.b16 %v423
    %v2600 = vunpack.c.l.b16 %v424
    %v2601 = vunpack.c.l.b16 %v425
    %v2602 = vunpack.c.l.b16 %v426
    %v2603 = vunpack.c.l.b16 %v427
    %v2604 = vunpack.c.l.b16 %v428
    %v2605 = vunpack.c.l.b16 %v429
    %v2606 = vunpack.c.l.b16 %v430
    %v2607 = vunpack.c.l.b16 %v431
    %v2608 = vunpack.c.l.b16 %v432
    %v2609 = vunpack.c.l.b16 %v433
    %v2610 = vunpack.c.l.b16 %v434
    %v2611 = vunpack.c.l.b16 %v435
    %v2612 = vunpack.c.l.b16 %v436
    %v2613 = vunpack.c.l.b16 %v437
    %v2614 = vunpack.c.l.b16 %v438
    %v2615 = vunpack.c.l.b16 %v439
    %v2616 = vunpack.c.l.b16 %v440
    %v2617 = vunpack.c.l.b16 %v441
    %v2618 = vunpack.c.l.b16 %v442
    %v2619 = vunpack.c.l.b16 %v443
    %v2620 = vunpack.c.l.b16 %v444
    %v2621 = vunpack.c.l.b16 %v445
    %v2622 = vunpack.c.l.b16 %v446
    %v2623 = vunpack.c.l.b16 %v447
    %v2624 = vunpack.c.l.b16 %v448
    %v2625 = vunpack.c.l.b16 %v449
    %v2626 = vunpack.c.l.b16 %v450
    %v2627 = vunpack.c.l.b16 %v451
    %v2628 = vunpack.c.l.b16 %v452
    %v2629 = vunpack.c.l.b16 %v453
    %v2630 = vunpack.c.l.b16 %v454
    %v2631 = vunpack.c.l.b16 %v455
    %v2632 = vunpack.c.l.b16 %v456
    %v2633 = vunpack.c.l.b16 %v457
    %v2634 = vunpack.c.l.b16 %v458
    %v2635 = vunpack.c.l.b16 %v459
    %v2636 = vunpack.c.l.b16 %v460
    %v2637 = vunpack.c.l.b16 %v461
    %v2638 = vunpack.c.l.b16 %v462
    %v2639 = vunpack.c.l.b16 %v463
    %v2640 = vunpack.c.l.b16 %v464
    %v2641 = vunpack.c.l.b16 %v465
    %v2642 = vunpack.c.l.b16 %v466
    %v2643 = vunpack.c.l.b16 %v467
    %v2644 = vunpack.c.l.b16 %v468
    %v2645 = vunpack.c.l.b16 %v469
    %v2646 = vunpack.c.l.b16 %v470
    %v2647 = vunpack.c.l.b16 %v471
    %v2648 = vunpack.c.l.b16 %v472
    %v2649 = vunpack.c.l.b16 %v473
    %v2650 = vunpack.c.l.b16 %v474
    %v2651 = vunpack.c.l.b16 %v475
    %v2652 = vunpack.c.l.b16 %v476
    %v2653 = vunpack.c.l.b16 %v477
    %v2654 = vunpack.c.l.b16 %v478
    %v2655 = vunpack.c.l.b16 %v479
    %v2656 = vunpack.c.l.b16 %v480
    %v2657 = vunpack.c.l.b16 %v481
    %v2658 = vunpack.c.l.b16 %v482
    %v2659 = vunpack.c.l.b16 %v483
    %v2660 = vunpack.c.l.b16 %v484
    %v2661 = vunpack.c.l.b16 %v485
    %v2662 = vunpack.c.l.b16 %v486
    %v2663 = vunpack.c.l.b16 %v487
    %v2664 = vunpack.c.l.b16 %v488
    %v2665 = vunpack.c.l.b16 %v489
    %v2666 = vunpack.c.l.b16 %v490
    %v2667 = vunpack.c.l.b16 %v491
    %v2668 = vunpack.c.l.b16 %v492
    %v2669 = vunpack.c.l.b16 %v493
    %v2670 = vunpack.c.l.b16 %v494
    %v2671 = vunpack.c.l.b16 %v495
    %v2672 = vunpack.c.l.b16 %v496
    %v2673 = vunpack.c.l.b16 %v497
    %v2674 = vunpack.c.l.b16 %v498
    %v2675 = vunpack.c.l.b16 %v499
    %v2676 = vunpack.c.l.b16 %v500
    %v2677 = vunpack.c.l.b16 %v501
    %v2678 = vunpack.c.l.b16 %v502
    %v2679 = vunpack.c.l.b16 %v503
    %v2680 = vunpack.c.l.b16 %v504
    %v2681 = vunpack.c.l.b16 %v505
    %v2682 = vunpack.c.l.b16 %v506
    %v2683 = vunpack.c.l.b16 %v507
    %v2684 = vunpack.c.l.b16 %v508
    %v2685 = vunpack.c.l.b16 %v509
    %v2686 = vunpack.c.l.b16 %v510
    %v2687 = vunpack.c.l.b16 %v511
    %v2688 = vunpack.c.l.b16 %v512
    %v2689 = vunpack.c.l.b16 %v513
    %v2690 = vunpack.c.l.b16 %v514
    %v2691 = vunpack.c.l.b16 %v515
    %v2692 = vunpack.c.l.b16 %v516
    %v2693 = vunpack.c.l.b16 %v517
    %v2694 = vunpack.c.l.b16 %v518
    %v2695 = vunpack.c.l.b16 %v519
    %v2696 = vunpack.c.l.b16 %v520
    %v2697 = vunpack.c.l.b16 %v521
    %v2698 = vunpack.c.l.b16 %v522
    %v2699 = vunpack.c.l.b16 %v523
    %v2700 = vunpack.c.l.b16 %v524
    %v2701 = vunpack.c.l.b16 %v525
    %v2702 = vunpack.c.l.b16 %v526
    %v2703 = vunpack.c.l.b16 %v527
    %v2704 = vunpack.c.l.b16 %v528
    %v2705 = vunpack.c.l.b16 %v529
    %v2706 = vunpack.c.l.b16 %v530
    %v2707 = vunpack.c.l.b16 %v531
    %v2708 = vunpack.c.l.b16 %v532
    %v2709 = vunpack.c.l.b16 %v533
    %v2710 = vunpack.c.l.b16 %v534
    %v2711 = vunpack.c.l.b16 %v535
    %v2712 = vunpack.c.l.b16 %v536
    %v2713 = vunpack.c.l.b16 %v537
    %v2714 = vunpack.c.l.b16 %v538
    %v2715 = vunpack.c.l.b16 %v539
    %v2716 = vunpack.c.l.b16 %v540
    %v2717 = vunpack.c.l.b16 %v541
    %v2718 = vunpack.c.l.b16 %v542
    %v2719 = vunpack.c.l.b16 %v543
    %v2720 = vunpack.c.l.b16 %v544
    %v2721 = vunpack.c.l.b16 %v545
    %v2722 = vunpack.c.l.b16 %v546
    %v2723 = vunpack.c.l.b16 %v547
    %v2724 = vunpack.c.l.b16 %v548
    %v2725 = vunpack.c.l.b16 %v549
    %v2726 = vunpack.c.l.b16 %v550
    %v2727 = vunpack.c.l.b16 %v551
    %v2728 = vunpack.c.l.b16 %v552
    %v2729 = vunpack.c.l.b16 %v553
    %v2730 = vunpack.c.l.b16 %v554
    %v2731 = vunpack.c.l.b16 %v555
    %v2732 = vunpack.c.l.b16 %v556
    %v2733 = vunpack.c.l.b16 %v557
    %v2734 = vunpack.c.l.b16 %v558
    %v2735 = vunpack.c.l.b16 %v559
    %v2736 = vunpack.c.l.b16 %v560
    %v2737 = vunpack.c.l.b16 %v561
    %v2738 = vunpack.c.l.b16 %v562
    %v2739 = vunpack.c.l.b16 %v563
    %v2740 = vunpack.c.l.b16 %v564
    %v2741 = vunpack.c.l.b16 %v565
    %v2742 = vunpack.c.l.b16 %v566
    %v2743 = vunpack.c.l.b16 %v567
    %v2744 = vunpack.c.l.b16 %v568
    %v2745 = vunpack.c.l.b16 %v569
    %v2746 = vunpack.c.l.b16 %v570
    %v2747 = vunpack.c.l.b16 %v571
    %v2748 = vunpack.c.l.b16 %v572
    %v2749 = vunpack.c.l.b16 %v573
    %v2750 = vunpack.c.l.b16 %v574
    %v2751 = vunpack.c.l.b16 %v575
    %v2752 = vunpack.c.l.b16 %v576
    %v2753 = vunpack.c.l.b16 %v577
    %v2754 = vunpack.c.l.b16 %v578
    %v2755 = vunpack.c.l.b16 %v579
    %v2756 = vunpack.c.l.b16 %v580
    %v2757 = vunpack.c.l.b16 %v581
    %v2758 = vunpack.c.l.b16 %v582
    %v2759 = vunpack.c.l.b16 %v583
    %v2760 = vunpack.c.l.b16 %v584
    %v2761 = vunpack.c.l.b16 %v585
    %v2762 = vunpack.c.l.b16 %v586
    %v2763 = vunpack.c.l.b16 %v587
    %v2764 = vunpack.c.l.b16 %v588
    %v2765 = vunpack.c.l.b16 %v589
    %v2766 = vunpack.c.l.b16 %v590
    %v2767 = vunpack.c.l.b16 %v591
    %v2768 = vunpack.c.l.b16 %v592
    %v2769 = vunpack.c.l.b16 %v593
    %v2770 = vunpack.c.l.b16 %v594
    %v2771 = vunpack.c.l.b16 %v595
    %v2772 = vunpack.c.l.b16 %v596
    %v2773 = vunpack.c.l.b16 %v597
    %v2774 = vunpack.c.l.b16 %v598
    %v2775 = vunpack.c.l.b16 %v599
    %v2776 = vunpack.c.l.b16 %v600
    %v2777 = vunpack.c.l.b16 %v601
    %v2778 = vunpack.c.l.b16 %v602
    %v2779 = vunpack.c.l.b16 %v603
    %v2780 = vunpack.c.l.b16 %v604
    %v2781 = vunpack.c.l.b16 %v605
    %v2782 = vunpack.c.l.b16 %v606
    %v2783 = vunpack.c.l.b16 %v607
    %v2784 = vunpack.c.l.b16 %v608
    %v2785 = vunpack.c.l.b16 %v609
    %v2786 = vunpack.c.l.b16 %v610
    %v2787 = vunpack.c.l.b16 %v611
    %v2788 = vunpack.c.l.b16 %v612
    %v2789 = vunpack.c.l.b16 %v613
    %v2790 = vunpack.c.l.b16 %v614
    %v2791 = vunpack.c.l.b16 %v615
    %v2792 = vunpack.c.l.b16 %v616
    %v2793 = vunpack.c.l.b16 %v617
    %v2794 = vunpack.c.l.b16 %v618
    %v2795 = vunpack.c.l.b16 %v619
    %v2796 = vunpack.c.l.b16 %v620
    %v2797 = vunpack.c.l.b16 %v621
    %v2798 = vunpack.c.l.b16 %v622
    %v2799 = vunpack.c.l.b16 %v623
    %v2800 = vunpack.c.l.b16 %v624
    %v2801 = vunpack.c.l.b16 %v625
    %v2802 = vunpack.c.l.b16 %v626
    %v2803 = vunpack.c.l.b16 %v627
    %v2804 = vunpack.c.l.b16 %v628
    %v2805 = vunpack.c.l.b16 %v629
    %v2806 = vunpack.c.l.b16 %v630
    %v2807 = vunpack.c.l.b16 %v631
    %v2808 = vunpack.c.l.b16 %v632
    %v2809 = vunpack.c.l.b16 %v633
    %v2810 = vunpack.c.l.b16 %v634
    %v2811 = vunpack.c.l.b16 %v635
    %v2812 = vunpack.c.l.b16 %v636
    %v2813 = vunpack.c.l.b16 %v637
    %v2814 = vunpack.c.l.b16 %v638
    %v2815 = vunpack.c.l.b16 %v639
    %v2816 = vunpack.c.l.b16 %v640
    %v2817 = vunpack.c.l.b16 %v641
    %v2818 = vunpack.c.l.b16 %v642
    %v2819 = vunpack.c.l.b16 %v643
    %v2820 = vunpack.c.l.b16 %v644
    %v2821 = vunpack.c.l.b16 %v645
    %v2822 = vunpack.c.l.b16 %v646
    %v2823 = vunpack.c.l.b16 %v647
    %v2824 = vunpack.c.l.b16 %v648
    %v2825 = vunpack.c.l.b16 %v649
    %v2826 = vunpack.c.l.b16 %v650
    %v2827 = vunpack.c.l.b16 %v651
    %v2828 = vunpack.c.l.b16 %v652
    %v2829 = vunpack.c.l.b16 %v653
    %v2830 = vunpack.c.l.b16 %v654
    %v2831 = vunpack.c.l.b16 %v655
    %v2832 = vunpack.c.l.b16 %v656
    %v2833 = vunpack.c.l.b16 %v657
    %v2834 = vunpack.c.l.b16 %v658
    %v2835 = vunpack.c.l.b16 %v659
    %v2836 = vunpack.c.l.b16 %v660
    %v2837 = vunpack.c.l.b16 %v661
    %v2838 = vunpack.c.l.b16 %v662
    %v2839 = vunpack.c.l.b16 %v663
    %v2840 = vunpack.c.l.b16 %v664
    %v2841 = vunpack.c.l.b16 %v665
    %v2842 = vunpack.c.l.b16 %v666
    %v2843 = vunpack.c.l.b16 %v667
    %v2844 = vunpack.c.l.b16 %v668
    %v2845 = vunpack.c.l.b16 %v669
    %v2846 = vunpack.c.l.b16 %v670
    %v2847 = vunpack.c.l.b16 %v671
    %v2848 = vunpack.c.l.b16 %v672
    %v2849 = vunpack.c.l.b16 %v673
    %v2850 = vunpack.c.l.b16 %v674
    %v2851 = vunpack.c.l.b16 %v675
    %v2852 = vunpack.c.l.b16 %v676
    %v2853 = vunpack.c.l.b16 %v677
    %v2854 = vunpack.c.l.b16 %v678
    %v2855 = vunpack.c.l.b16 %v679
    %v2856 = vunpack.c.l.b16 %v680
    %v2857 = vunpack.c.l.b16 %v681
    %v2858 = vunpack.c.l.b16 %v682
    %v2859 = vunpack.c.l.b16 %v683
    %v2860 = vunpack.c.l.b16 %v684
    %v2861 = vunpack.c.l.b16 %v685
    %v2862 = vunpack.c.l.b16 %v686
    %v2863 = vunpack.c.l.b16 %v687
    %v2864 = vunpack.c.l.b16 %v688
    %v2865 = vunpack.c.l.b16 %v689
    %v2866 = vunpack.c.l.b16 %v690
    %v2867 = vunpack.c.l.b16 %v691
    %v2868 = vunpack.c.l.b16 %v692
    %v2869 = vunpack.c.l.b16 %v693
    %v2870 = vunpack.c.l.b16 %v694
    %v2871 = vunpack.c.l.b16 %v695
    %v2872 = vunpack.c.l.b16 %v696
    %v2873 = vunpack.c.l.b16 %v697
    %v2874 = vunpack.c.l.b16 %v698
    %v2875 = vunpack.c.l.b16 %v699
    %v2876 = vunpack.c.l.b16 %v700
    %v2877 = vunpack.c.l.b16 %v701
    %v2878 = vunpack.c.l.b16 %v702
    %v2879 = vunpack.c.l.b16 %v703
    %v2880 = vunpack.c.l.b16 %v704
    %v2881 = vunpack.c.l.b16 %v705
    %v2882 = vunpack.c.l.b16 %v706
    %v2883 = vunpack.c.l.b16 %v707
    %v2884 = vunpack.c.l.b16 %v708
    %v2885 = vunpack.c.l.b16 %v709
    %v2886 = vunpack.c.l.b16 %v710
    %v2887 = vunpack.c.l.b16 %v711
    %v2888 = vunpack.c.l.b16 %v712
    %v2889 = vunpack.c.l.b16 %v713
    %v2890 = vunpack.c.l.b16 %v714
    %v2891 = vunpack.c.l.b16 %v715
    %v2892 = vunpack.c.l.b16 %v716
    %v2893 = vunpack.c.l.b16 %v717
    %v2894 = vunpack.c.l.b16 %v718
    %v2895 = vunpack.c.l.b16 %v719
    %v2896 = vunpack.c.l.b16 %v720
    %v2897 = vunpack.c.l.b16 %v721
    %v2898 = vunpack.c.l.b16 %v722
    %v2899 = vunpack.c.l.b16 %v723
    %v2900 = vunpack.c.l.b16 %v724
    %v2901 = vunpack.c.l.b16 %v725
    %v2902 = vunpack.c.l.b16 %v726
    %v2903 = vunpack.c.l.b16 %v727
    %v2904 = vunpack.c.l.b16 %v728
    %v2905 = vunpack.c.l.b16 %v729
    %v2906 = vunpack.c.l.b16 %v730
    %v2907 = vunpack.c.l.b16 %v731
    %v2908 = vunpack.c.l.b16 %v732
    %v2909 = vunpack.c.l.b16 %v733
    %v2910 = vunpack.c.l.b16 %v734
    %v2911 = vunpack.c.l.b16 %v735
    %v2912 = vunpack.c.l.b16 %v736
    %v2913 = vunpack.c.l.b16 %v737
    %v2914 = vunpack.c.l.b16 %v738
    %v2915 = vunpack.c.l.b16 %v739
    %v2916 = vunpack.c.l.b16 %v740
    %v2917 = vunpack.c.l.b16 %v741
    %v2918 = vunpack.c.l.b16 %v742
    %v2919 = vunpack.c.l.b16 %v743
    %v2920 = vunpack.c.l.b16 %v744
    %v2921 = vunpack.c.l.b16 %v745
    %v2922 = vunpack.c.l.b16 %v746
    %v2923 = vunpack.c.l.b16 %v747
    %v2924 = vunpack.c.l.b16 %v748
    %v2925 = vunpack.c.l.b16 %v749
    %v2926 = vunpack.c.l.b16 %v750
    %v2927 = vunpack.c.l.b16 %v751
    %v2928 = vunpack.c.l.b16 %v752
    %v2929 = vunpack.c.l.b16 %v753
    %v2930 = vunpack.c.l.b16 %v754
    %v2931 = vunpack.c.l.b16 %v755
    %v2932 = vunpack.c.l.b16 %v756
    %v2933 = vunpack.c.l.b16 %v757
    %v2934 = vunpack.c.l.b16 %v758
    %v2935 = vunpack.c.l.b16 %v759
    %v2936 = vunpack.c.l.b16 %v760
    %v2937 = vunpack.c.l.b16 %v761
    %v2938 = vunpack.c.l.b16 %v762
    %v2939 = vunpack.c.l.b16 %v763
    %v2940 = vunpack.c.l.b16 %v764
    %v2941 = vunpack.c.l.b16 %v765
    %v2942 = vunpack.c.l.b16 %v766
    %v2943 = vunpack.c.l.b16 %v767
    %v2944 = vunpack.c.l.b16 %v768
    %v2945 = vunpack.c.l.b16 %v769
    %v2946 = vunpack.c.l.b16 %v770
    %v2947 = vunpack.c.l.b16 %v771
    %v2948 = vunpack.c.l.b16 %v772
    %v2949 = vunpack.c.l.b16 %v773
    %v2950 = vunpack.c.l.b16 %v774
    %v2951 = vunpack.c.l.b16 %v775
    %v2952 = vunpack.c.l.b16 %v776
    %v2953 = vunpack.c.l.b16 %v777
    %v2954 = vunpack.c.l.b16 %v778
    %v2955 = vunpack.c.l.b16 %v779
    %v2956 = vunpack.c.l.b16 %v780
    %v2957 = vunpack.c.l.b16 %v781
    %v2958 = vunpack.c.l.b16 %v782
    %v2959 = vunpack.c.l.b16 %v783
    %v2960 = vunpack.c.l.b16 %v784
    %v2961 = vunpack.c.l.b16 %v785
    %v2962 = vunpack.c.l.b16 %v786
    %v2963 = vunpack.c.l.b16 %v787
    %v2964 = vunpack.c.l.b16 %v788
    %v2965 = vunpack.c.l.b16 %v789
    %v2966 = vunpack.c.l.b16 %v790
    %v2967 = vunpack.c.l.b16 %v791
    %v2968 = vunpack.c.l.b16 %v792
    %v2969 = vunpack.c.l.b16 %v793
    %v2970 = vunpack.c.l.b16 %v794
    %v2971 = vunpack.c.l.b16 %v795
    %v2972 = vunpack.c.l.b16 %v796
    %v2973 = vunpack.c.l.b16 %v797
    %v2974 = vunpack.c.l.b16 %v798
    %v2975 = vunpack.c.l.b16 %v799
    %v2976 = vunpack.c.l.b16 %v800
    %v2977 = vunpack.c.l.b16 %v801
    %v2978 = vunpack.c.l.b16 %v802
    %v2979 = vunpack.c.l.b16 %v803
    %v2980 = vunpack.c.l.b16 %v804
    %v2981 = vunpack.c.l.b16 %v805
    %v2982 = vunpack.c.l.b16 %v806
    %v2983 = vunpack.c.l.b16 %v807
    %v2984 = vunpack.c.l.b16 %v808
    %v2985 = vunpack.c.l.b16 %v809
    %v2986 = vunpack.c.l.b16 %v810
    %v2987 = vunpack.c.l.b16 %v811
    %v2988 = vunpack.c.l.b16 %v812
    %v2989 = vunpack.c.l.b16 %v813
    %v2990 = vunpack.c.l.b16 %v814
    %v2991 = vunpack.c.l.b16 %v815
    %v2992 = vunpack.c.l.b16 %v816
    %v2993 = vunpack.c.l.b16 %v817
    %v2994 = vunpack.c.l.b16 %v818
    %v2995 = vunpack.c.l.b16 %v819
    %v2996 = vunpack.c.l.b16 %v820
    %v2997 = vunpack.c.l.b16 %v821
    %v2998 = vunpack.c.l.b16 %v822
    %v2999 = vunpack.c.l.b16 %v823
    %v3000 = vunpack.c.l.b16 %v824
    %v3001 = vunpack.c.l.b16 %v825
    %v3002 = vunpack.c.l.b16 %v826
    %v3003 = vunpack.c.l.b16 %v827
    %v3004 = vunpack.c.l.b16 %v828
    %v3005 = vunpack.c.l.b16 %v829
    %v3006 = vunpack.c.l.b16 %v830
    %v3007 = vunpack.c.l.b16 %v831
    %v3008 = vunpack.c.l.b16 %v832
    %v3009 = vunpack.c.l.b16 %v833
    %v3010 = vunpack.c.l.b16 %v834
    %v3011 = vunpack.c.l.b16 %v835
    %v3012 = vunpack.c.l.b16 %v836
    %v3013 = vunpack.c.l.b16 %v837
    %v3014 = vunpack.c.l.b16 %v838
    %v3015 = vunpack.c.l.b16 %v839
    %v3016 = vunpack.c.l.b16 %v840
    %v3017 = vunpack.c.l.b16 %v841
    %v3018 = vunpack.c.l.b16 %v842
    %v3019 = vunpack.c.l.b16 %v843
    %v3020 = vunpack.c.l.b16 %v844
    %v3021 = vunpack.c.l.b16 %v845
    %v3022 = vunpack.c.l.b16 %v846
    %v3023 = vunpack.c.l.b16 %v847
    %v3024 = vunpack.c.l.b16 %v848
    %v3025 = vunpack.c.l.b16 %v849
    %v3026 = vunpack.c.l.b16 %v850
    %v3027 = vunpack.c.l.b16 %v851
    %v3028 = vunpack.c.l.b16 %v852
    %v3029 = vunpack.c.l.b16 %v853
    %v3030 = vunpack.c.l.b16 %v854
    %v3031 = vunpack.c.l.b16 %v855
    %v3032 = vunpack.c.l.b16 %v856
    %v3033 = vunpack.c.l.b16 %v857
    %v3034 = vunpack.c.l.b16 %v858
    %v3035 = vunpack.c.l.b16 %v859
    %v3036 = vunpack.c.l.b16 %v860
    %v3037 = vunpack.c.l.b16 %v861
    %v3038 = vunpack.c.l.b16 %v862
    %v3039 = vunpack.c.l.b16 %v863
    %v3040 = vunpack.c.l.b16 %v864
    %v3041 = vunpack.c.l.b16 %v865
    %v3042 = vunpack.c.l.b16 %v866
    %v3043 = vunpack.c.l.b16 %v867
    %v3044 = vunpack.c.l.b16 %v868
    %v3045 = vunpack.c.l.b16 %v869
    %v3046 = vunpack.c.l.b16 %v870
    %v3047 = vunpack.c.l.b16 %v871
    %v3048 = vunpack.c.l.b16 %v872
    %v3049 = vunpack.c.l.b16 %v873
    %v3050 = vunpack.c.l.b16 %v874
    %v3051 = vunpack.c.l.b16 %v875
    %v3052 = vunpack.c.l.b16 %v876
    %v3053 = vunpack.c.l.b16 %v877
    %v3054 = vunpack.c.l.b16 %v878
    %v3055 = vunpack.c.l.b16 %v879
    %v3056 = vunpack.c.l.b16 %v880
    %v3057 = vunpack.c.l.b16 %v881
    %v3058 = vunpack.c.l.b16 %v882
    %v3059 = vunpack.c.l.b16 %v883
    %v3060 = vunpack.c.l.b16 %v884
    %v3061 = vunpack.c.l.b16 %v885
    %v3062 = vunpack.c.l.b16 %v886
    %v3063 = vunpack.c.l.b16 %v887
    %v3064 = vunpack.c.l.b16 %v888
    %v3065 = vunpack.c.l.b16 %v889
    %v3066 = vunpack.c.l.b16 %v890
    %v3067 = vunpack.c.l.b16 %v891
    %v3068 = vunpack.c.l.b16 %v892
    %v3069 = vunpack.c.l.b16 %v893
    %v3070 = vunpack.c.l.b16 %v894
    %v3071 = vunpack.c.l.b16 %v895
    %v3072 = vunpack.c.l.b16 %v896
    %v3073 = vunpack.c.l.b16 %v897
    %v3074 = vunpack.c.l.b16 %v898
    %v3075 = vunpack.c.l.b16 %v899
    %v3076 = vunpack.c.l.b16 %v900
    %v3077 = vunpack.c.l.b16 %v901
    %v3078 = vunpack.c.l.b16 %v902
    %v3079 = vunpack.c.l.b16 %v903
    %v3080 = vunpack.c.l.b16 %v904
    %v3081 = vunpack.c.l.b16 %v905
    %v3082 = vunpack.c.l.b16 %v906
    %v3083 = vunpack.c.l.b16 %v907
    %v3084 = vunpack.c.l.b16 %v908
    %v3085 = vunpack.c.l.b16 %v909
    %v3086 = vunpack.c.l.b16 %v910
    %v3087 = vunpack.c.l.b16 %v911
    %v3088 = vunpack.c.l.b16 %v912
    %v3089 = vunpack.c.l.b16 %v913
    %v3090 = vunpack.c.l.b16 %v914
    %v3091 = vunpack.c.l.b16 %v915
    %v3092 = vunpack.c.l.b16 %v916
    %v3093 = vpack.c.b16 %v2212, %v2211
    %v3094 = vpack.c.b16 %v2214, %v2213
    %v3095 = vpack.c.b16 %v2216, %v2215
    %v3096 = vpack.c.b16 %v2218, %v2217
    %v3097 = vpack.c.b16 %v2220, %v2219
    %v3098 = vpack.c.b16 %v2222, %v2221
    %v3099 = vpack.c.b16 %v2224, %v2223
    %v3100 = vpack.c.b16 %v2226, %v2225
    %v3101 = vpack.c.b16 %v2228, %v2227
    %v3102 = vpack.c.b16 %v2230, %v2229
    %v3103 = vpack.c.b16 %v2232, %v2231
    %v3104 = vpack.c.b16 %v2234, %v2233
    %v3105 = vpack.c.b16 %v2236, %v2235
    %v3106 = vpack.c.b16 %v2238, %v2237
    %v3107 = vpack.c.b16 %v2240, %v2239
    %v3108 = vpack.c.b16 %v2242, %v2241
    %v3109 = vpack.c.b16 %v2244, %v2243
    %v3110 = vpack.c.b16 %v2246, %v2245
    %v3111 = vpack.c.b16 %v2248, %v2247
    %v3112 = vpack.c.b16 %v2250, %v2249
    %v3113 = vpack.c.b16 %v2252, %v2251
    %v3114 = vpack.c.b16 %v2254, %v2253
    %v3115 = vpack.c.b16 %v2256, %v2255
    %v3116 = vpack.c.b16 %v2258, %v2257
    %v3117 = vpack.c.b16 %v2260, %v2259
    %v3118 = vpack.c.b16 %v2262, %v2261
    %v3119 = vpack.c.b16 %v2264, %v2263
    %v3120 = vpack.c.b16 %v2266, %v2265
    %v3121 = vpack.c.b16 %v2268, %v2267
    %v3122 = vpack.c.b16 %v2270, %v2269
    %v3123 = vpack.c.b16 %v2272, %v2271
    %v3124 = vpack.c.b16 %v2274, %v2273
    %v3125 = vpack.c.b16 %v2276, %v2275
    %v3126 = vpack.c.b16 %v2278, %v2277
    %v3127 = vpack.c.b16 %v2280, %v2279
    %v3128 = vpack.c.b16 %v2282, %v2281
    %v3129 = vpack.c.b16 %v2284, %v2283
    %v3130 = vpack.c.b16 %v2286, %v2285
    %v3131 = vpack.c.b16 %v2288, %v2287
    %v3132 = vpack.c.b16 %v2290, %v2289
    %v3133 = vpack.c.b16 %v2292, %v2291
    %v3134 = vpack.c.b16 %v2294, %v2293
    %v3135 = vpack.c.b16 %v2296, %v2295
    %v3136 = vpack.c.b16 %v2298, %v2297
    %v3137 = vpack.c.b16 %v2300, %v2299
    %v3138 = vpack.c.b16 %v2302, %v2301
    %v3139 = vpack.c.b16 %v2304, %v2303
    %v3140 = vpack.c.b16 %v2306, %v2305
    %v3141 = vpack.c.b16 %v2308, %v2307
    %v3142 = vpack.c.b16 %v2310, %v2309
    %v3143 = vpack.c.b16 %v2312, %v2311
    %v3144 = vpack.c.b16 %v2314, %v2313
    %v3145 = vpack.c.b16 %v2316, %v2315
    %v3146 = vpack.c.b16 %v2318, %v2317
    %v3147 = vpack.c.b16 %v2320, %v2319
    %v3148 = vpack.c.b16 %v2322, %v2321
    %v3149 = vpack.c.b16 %v2324, %v2323
    %v3150 = vpack.c.b16 %v2326, %v2325
    %v3151 = vpack.c.b16 %v2328, %v2327
    %v3152 = vpack.c.b16 %v2330, %v2329
    %v3153 = vpack.c.b16 %v2332, %v2331
    %v3154 = vpack.c.b16 %v2334, %v2333
    %v3155 = vpack.c.b16 %v2336, %v2335
    %v3156 = vpack.c.b16 %v2338, %v2337
    %v3157 = vpack.c.b16 %v2340, %v2339
    %v3158 = vpack.c.b16 %v2342, %v2341
    %v3159 = vpack.c.b16 %v2344, %v2343
    %v3160 = vpack.c.b16 %v2346, %v2345
    %v3161 = vpack.c.b16 %v2348, %v2347
    %v3162 = vpack.c.b16 %v2350, %v2349
    %v3163 = vpack.c.b16 %v2352, %v2351
    %v3164 = vpack.c.b16 %v2354, %v2353
    %v3165 = vpack.c.b16 %v2356, %v2355
    %v3166 = vpack.c.b16 %v2358, %v2357
    %v3167 = vpack.c.b16 %v2360, %v2359
    %v3168 = vpack.c.b16 %v2362, %v2361
    %v3169 = vpack.c.b16 %v2364, %v2363
    %v3170 = vpack.c.b16 %v2366, %v2365
    %v3171 = vpack.c.b16 %v2368, %v2367
    %v3172 = vpack.c.b16 %v2370, %v2369
    %v3173 = vpack.c.b16 %v2372, %v2371
    %v3174 = vpack.c.b16 %v2374, %v2373
    %v3175 = vpack.c.b16 %v2376, %v2375
    %v3176 = vpack.c.b16 %v2378, %v2377
    %v3177 = vpack.c.b16 %v2380, %v2379
    %v3178 = vpack.c.b16 %v2382, %v2381
    %v3179 = vpack.c.b16 %v2384, %v2383
    %v3180 = vpack.c.b16 %v2386, %v2385
    %v3181 = vpack.c.b16 %v2388, %v2387
    %v3182 = vpack.c.b16 %v2390, %v2389
    %v3183 = vpack.c.b16 %v2392, %v2391
    %v3184 = vpack.c.b16 %v2394, %v2393
    %v3185 = vpack.c.b16 %v2396, %v2395
    %v3186 = vpack.c.b16 %v2398, %v2397
    %v3187 = vpack.c.b16 %v2400, %v2399
    %v3188 = vpack.c.b16 %v2402, %v2401
    %v3189 = vpack.c.b16 %v2404, %v2403
    %v3190 = vpack.c.b16 %v2406, %v2405
    %v3191 = vpack.c.b16 %v2408, %v2407
    %v3192 = vpack.c.b16 %v2410, %v2409
    %v3193 = vpack.c.b16 %v2412, %v2411
    %v3194 = vpack.c.b16 %v2414, %v2413
    %v3195 = vpack.c.b16 %v2416, %v2415
    %v3196 = vpack.c.b16 %v2418, %v2417
    %v3197 = vpack.c.b16 %v2420, %v2419
    %v3198 = vpack.c.b16 %v2422, %v2421
    %v3199 = vpack.c.b16 %v2424, %v2423
    %v3200 = vpack.c.b16 %v2426, %v2425
    %v3201 = vpack.c.b16 %v2428, %v2427
    %v3202 = vpack.c.b16 %v2430, %v2429
    %v3203 = vpack.c.b16 %v2432, %v2431
    %v3204 = vpack.c.b16 %v2434, %v2433
    %v3205 = vpack.c.b16 %v2436, %v2435
    %v3206 = vpack.c.b16 %v2438, %v2437
    %v3207 = vpack.c.b16 %v2440, %v2439
    %v3208 = vpack.c.b16 %v2442, %v2441
    %v3209 = vpack.c.b16 %v2444, %v2443
    %v3210 = vpack.c.b16 %v2446, %v2445
    %v3211 = vpack.c.b16 %v2448, %v2447
    %v3212 = vpack.c.b16 %v2450, %v2449
    %v3213 = vpack.c.b16 %v2452, %v2451
    %v3214 = vpack.c.b16 %v2454, %v2453
    %v3215 = vpack.c.b16 %v2456, %v2455
    %v3216 = vpack.c.b16 %v2458, %v2457
    %v3217 = vpack.c.b16 %v2460, %v2459
    %v3218 = vpack.c.b16 %v2462, %v2461
    %v3219 = vpack.c.b16 %v2464, %v2463
    %v3220 = vpack.c.b16 %v2466, %v2465
    %v3221 = vpack.c.b16 %v2468, %v2467
    %v3222 = vpack.c.b16 %v2470, %v2469
    %v3223 = vpack.c.b16 %v2472, %v2471
    %v3224 = vpack.c.b16 %v2474, %v2473
    %v3225 = vpack.c.b16 %v2476, %v2475
    %v3226 = vpack.c.b16 %v2478, %v2477
    %v3227 = vpack.c.b16 %v2480, %v2479
    %v3228 = vpack.c.b16 %v2482, %v2481
    %v3229 = vpack.c.b16 %v2484, %v2483
    %v3230 = vpack.c.b16 %v2486, %v2485
    %v3231 = vpack.c.b16 %v2488, %v2487
    %v3232 = vpack.c.b16 %v2490, %v2489
    %v3233 = vpack.c.b16 %v2492, %v2491
    %v3234 = vpack.c.b16 %v2494, %v2493
    %v3235 = vpack.c.b16 %v2496, %v2495
    %v3236 = vpack.c.b16 %v2498, %v2497
    %v3237 = vpack.c.b16 %v2500, %v2499
    %v3238 = vpack.c.b16 %v2502, %v2501
    %v3239 = vpack.c.b16 %v2504, %v2503
    %v3240 = vpack.c.b16 %v2506, %v2505
    %v3241 = vpack.c.b16 %v2508, %v2507
    %v3242 = vpack.c.b16 %v2510, %v2509
    %v3243 = vpack.c.b16 %v2512, %v2511
    %v3244 = vpack.c.b16 %v2514, %v2513
    %v3245 = vpack.c.b16 %v2516, %v2515
    %v3246 = vpack.c.b16 %v2518, %v2517
    %v3247 = vpack.c.b16 %v2520, %v2519
    %v3248 = vpack.c.b16 %v2522, %v2521
    %v3249 = vpack.c.b16 %v2524, %v2523
    %v3250 = vpack.c.b16 %v2526, %v2525
    %v3251 = vpack.c.b16 %v2528, %v2527
    %v3252 = vpack.c.b16 %v2530, %v2529
    %v3253 = vpack.c.b16 %v2532, %v2531
    %v3254 = vpack.c.b16 %v2534, %v2533
    %v3255 = vpack.c.b16 %v2536, %v2535
    %v3256 = vpack.c.b16 %v2538, %v2537
    %v3257 = vpack.c.b16 %v2540, %v2539
    %v3258 = vpack.c.b16 %v2542, %v2541
    %v3259 = vpack.c.b16 %v2544, %v2543
    %v3260 = vpack.c.b16 %v2546, %v2545
    %v3261 = vpack.c.b16 %v2548, %v2547
    %v3262 = vpack.c.b16 %v2550, %v2549
    %v3263 = vpack.c.b16 %v2552, %v2551
    %v3264 = vpack.c.b16 %v2554, %v2553
    %v3265 = vpack.c.b16 %v2556, %v2555
    %v3266 = vpack.c.b16 %v2558, %v2557
    %v3267 = vpack.c.b16 %v2560, %v2559
    %v3268 = vpack.c.b16 %v2562, %v2561
    %v3269 = vpack.c.b16 %v2564, %v2563
    %v3270 = vpack.c.b16 %v2566, %v2565
    %v3271 = vpack.c.b16 %v2568, %v2567
    %v3272 = vpack.c.b16 %v2570, %v2569
    %v3273 = vpack.c.b16 %v2572, %v2571
    %v3274 = vpack.c.b16 %v2574, %v2573
    %v3275 = vpack.c.b16 %v2576, %v2575
    %v3276 = vpack.c.b16 %v2578, %v2577
    %v3277 = vpack.c.b16 %v2580, %v2579
    %v3278 = vpack.c.b16 %v2582, %v2581
    %v3279 = vpack.c.b16 %v2584, %v2583
    %v3280 = vpack.c.b16 %v2586, %v2585
    %v3281 = vpack.c.b16 %v2588, %v2587
    %v3282 = vpack.c.b16 %v2590, %v2589
    %v3283 = vpack.c.b16 %v2592, %v2591
    %v3284 = vpack.c.b16 %v2594, %v2593
    %v3285 = vpack.c.b16 %v2596, %v2595
    %v3286 = vpack.c.b16 %v2598, %v2597
    %v3287 = vpack.c.b16 %v2600, %v2599
    %v3288 = vpack.c.b16 %v2602, %v2601
    %v3289 = vpack.c.b16 %v2604, %v2603
    %v3290 = vpack.c.b16 %v2606, %v2605
    %v3291 = vpack.c.b16 %v2608, %v2607
    %v3292 = vpack.c.b16 %v2610, %v2609
    %v3293 = vpack.c.b16 %v2612, %v2611
    %v3294 = vpack.c.b16 %v2614, %v2613
    %v3295 = vpack.c.b16 %v2616, %v2615
    %v3296 = vpack.c.b16 %v2618, %v2617
    %v3297 = vpack.c.b16 %v2620, %v2619
    %v3298 = vpack.c.b16 %v2622, %v2621
    %v3299 = vpack.c.b16 %v2624, %v2623
    %v3300 = vpack.c.b16 %v2626, %v2625
    %v3301 = vpack.c.b16 %v2628, %v2627
    %v3302 = vpack.c.b16 %v2630, %v2629
    %v3303 = vpack.c.b16 %v2632, %v2631
    %v3304 = vpack.c.b16 %v2634, %v2633
    %v3305 = vpack.c.b16 %v2636, %v2635
    %v3306 = vpack.c.b16 %v2638, %v2637
    %v3307 = vpack.c.b16 %v2640, %v2639
    %v3308 = vpack.c.b16 %v2642, %v2641
    %v3309 = vpack.c.b16 %v2644, %v2643
    %v3310 = vpack.c.b16 %v2646, %v2645
    %v3311 = vpack.c.b16 %v2648, %v2647
    %v3312 = vpack.c.b16 %v2650, %v2649
    %v3313 = vpack.c.b16 %v2652, %v2651
    %v3314 = vpack.c.b16 %v2654, %v2653
    %v3315 = vpack.c.b16 %v2656, %v2655
    %v3316 = vpack.c.b16 %v2658, %v2657
    %v3317 = vpack.c.b16 %v2660, %v2659
    %v3318 = vpack.c.b16 %v2662, %v2661
    %v3319 = vpack.c.b16 %v2664, %v2663
    %v3320 = vpack.c.b16 %v2666, %v2665
    %v3321 = vpack.c.b16 %v2668, %v2667
    %v3322 = vpack.c.b16 %v2670, %v2669
    %v3323 = vpack.c.b16 %v2672, %v2671
    %v3324 = vpack.c.b16 %v2674, %v2673
    %v3325 = vpack.c.b16 %v2676, %v2675
    %v3326 = vpack.c.b16 %v2678, %v2677
    %v3327 = vpack.c.b16 %v2680, %v2679
    %v3328 = vpack.c.b16 %v2682, %v2681
    %v3329 = vpack.c.b16 %v2684, %v2683
    %v3330 = vpack.c.b16 %v2686, %v2685
    %v3331 = vpack.c.b16 %v2688, %v2687
    %v3332 = vpack.c.b16 %v2690, %v2689
    %v3333 = vpack.c.b16 %v2692, %v2691
    %v3334 = vpack.c.b16 %v2694, %v2693
    %v3335 = vpack.c.b16 %v2696, %v2695
    %v3336 = vpack.c.b16 %v2698, %v2697
    %v3337 = vpack.c.b16 %v2700, %v2699
    %v3338 = vpack.c.b16 %v2702, %v2701
    %v3339 = vpack.c.b16 %v2704, %v2703
    %v3340 = vpack.c.b16 %v2706, %v2705
    %v3341 = vpack.c.b16 %v2708, %v2707
    %v3342 = vpack.c.b16 %v2710, %v2709
    %v3343 = vpack.c.b16 %v2712, %v2711
    %v3344 = vpack.c.b16 %v2714, %v2713
    %v3345 = vpack.c.b16 %v2716, %v2715
    %v3346 = vpack.c.b16 %v2718, %v2717
    %v3347 = vpack.c.b16 %v2720, %v2719
    %v3348 = vpack.c.b16 %v2722, %v2721
    %v3349 = vpack.c.b16 %v2724, %v2723
    %v3350 = vpack.c.b16 %v2726, %v2725
    %v3351 = vpack.c.b16 %v2728, %v2727
    %v3352 = vpack.c.b16 %v2730, %v2729
    %v3353 = vpack.c.b16 %v2732, %v2731
    %v3354 = vpack.c.b16 %v2734, %v2733
    %v3355 = vpack.c.b16 %v2736, %v2735
    %v3356 = vpack.c.b16 %v2738, %v2737
    %v3357 = vpack.c.b16 %v2740, %v2739
    %v3358 = vpack.c.b16 %v2742, %v2741
    %v3359 = vpack.c.b16 %v2744, %v2743
    %v3360 = vpack.c.b16 %v2746, %v2745
    %v3361 = vpack.c.b16 %v2748, %v2747
    %v3362 = vpack.c.b16 %v2750, %v2749
    %v3363 = vpack.c.b16 %v2752, %v2751
    %v3364 = vpack.c.b16 %v2754, %v2753
    %v3365 = vpack.c.b16 %v2756, %v2755
    %v3366 = vpack.c.b16 %v2758, %v2757
    %v3367 = vpack.c.b16 %v2760, %v2759
    %v3368 = vpack.c.b16 %v2762, %v2761
    %v3369 = vpack.c.b16 %v2764, %v2763
    %v3370 = vpack.c.b16 %v2766, %v2765
    %v3371 = vpack.c.b16 %v2768, %v2767
    %v3372 = vpack.c.b16 %v2770, %v2769
    %v3373 = vpack.c.b16 %v2772, %v2771
    %v3374 = vpack.c.b16 %v2774, %v2773
    %v3375 = vpack.c.b16 %v2776, %v2775
    %v3376 = vpack.c.b16 %v2778, %v2777
    %v3377 = vpack.c.b16 %v2780, %v2779
    %v3378 = vpack.c.b16 %v2782, %v2781
    %v3379 = vpack.c.b16 %v2784, %v2783
    %v3380 = vpack.c.b16 %v2786, %v2785
    %v3381 = vpack.c.b16 %v2788, %v2787
    %v3382 = vpack.c.b16 %v2790, %v2789
    %v3383 = vpack.c.b16 %v2792, %v2791
    %v3384 = vpack.c.b16 %v2794, %v2793
    %v3385 = vpack.c.b16 %v2796, %v2795
    %v3386 = vpack.c.b16 %v2798, %v2797
    %v3387 = vpack.c.b16 %v2800, %v2799
    %v3388 = vpack.c.b16 %v2802, %v2801
    %v3389 = vpack.c.b16 %v2804, %v2803
    %v3390 = vpack.c.b16 %v2806, %v2805
    %v3391 = vpack.c.b16 %v2808, %v2807
    %v3392 = vpack.c.b16 %v2810, %v2809
    %v3393 = vpack.c.b16 %v2812, %v2811
    %v3394 = vpack.c.b16 %v2814, %v2813
    %v3395 = vpack.c.b16 %v2816, %v2815
    %v3396 = vpack.c.b16 %v2818, %v2817
    %v3397 = vpack.c.b16 %v2820, %v2819
    %v3398 = vpack.c.b16 %v2822, %v2821
    %v3399 = vpack.c.b16 %v2824, %v2823
    %v3400 = vpack.c.b16 %v2826, %v2825
    %v3401 = vpack.c.b16 %v2828, %v2827
    %v3402 = vpack.c.b16 %v2830, %v2829
    %v3403 = vpack.c.b16 %v2832, %v2831
    %v3404 = vpack.c.b16 %v2834, %v2833
    %v3405 = vpack.c.b16 %v2836, %v2835
    %v3406 = vpack.c.b16 %v2838, %v2837
    %v3407 = vpack.c.b16 %v2840, %v2839
    %v3408 = vpack.c.b16 %v2842, %v2841
    %v3409 = vpack.c.b16 %v2844, %v2843
    %v3410 = vpack.c.b16 %v2846, %v2845
    %v3411 = vpack.c.b16 %v2848, %v2847
    %v3412 = vpack.c.b16 %v2850, %v2849
    %v3413 = vpack.c.b16 %v2852, %v2851
    %v3414 = vpack.c.b16 %v2854, %v2853
    %v3415 = vpack.c.b16 %v2856, %v2855
    %v3416 = vpack.c.b16 %v2858, %v2857
    %v3417 = vpack.c.b16 %v2860, %v2859
    %v3418 = vpack.c.b16 %v2862, %v2861
    %v3419 = vpack.c.b16 %v2864, %v2863
    %v3420 = vpack.c.b16 %v2866, %v2865
    %v3421 = vpack.c.b16 %v2868, %v2867
    %v3422 = vpack.c.b16 %v2870, %v2869
    %v3423 = vpack.c.b16 %v2872, %v2871
    %v3424 = vpack.c.b16 %v2874, %v2873
    %v3425 = vpack.c.b16 %v2876, %v2875
    %v3426 = vpack.c.b16 %v2878, %v2877
    %v3427 = vpack.c.b16 %v2880, %v2879
    %v3428 = vpack.c.b16 %v2882, %v2881
    %v3429 = vpack.c.b16 %v2884, %v2883
    %v3430 = vpack.c.b16 %v2886, %v2885
    %v3431 = vpack.c.b16 %v2888, %v2887
    %v3432 = vpack.c.b16 %v2890, %v2889
    %v3433 = vpack.c.b16 %v2892, %v2891
    %v3434 = vpack.c.b16 %v2894, %v2893
    %v3435 = vpack.c.b16 %v2896, %v2895
    %v3436 = vpack.c.b16 %v2898, %v2897
    %v3437 = vpack.c.b16 %v2900, %v2899
    %v3438 = vpack.c.b16 %v2902, %v2901
    %v3439 = vpack.c.b16 %v2904, %v2903
    %v3440 = vpack.c.b16 %v2906, %v2905
    %v3441 = vpack.c.b16 %v2908, %v2907
    %v3442 = vpack.c.b16 %v2910, %v2909
    %v3443 = vpack.c.b16 %v2912, %v2911
    %v3444 = vpack.c.b16 %v2914, %v2913
    %v3445 = vpack.c.b16 %v2916, %v2915
    %v3446 = vpack.c.b16 %v2918, %v2917
    %v3447 = vpack.c.b16 %v2920, %v2919
    %v3448 = vpack.c.b16 %v2922, %v2921
    %v3449 = vpack.c.b16 %v2924, %v2923
    %v3450 = vpack.c.b16 %v2926, %v2925
    %v3451 = vpack.c.b16 %v2928, %v2927
    %v3452 = vpack.c.b16 %v2930, %v2929
    %v3453 = vpack.c.b16 %v2932, %v2931
    %v3454 = vpack.c.b16 %v2934, %v2933
    %v3455 = vpack.c.b16 %v2936, %v2935
    %v3456 = vpack.c.b16 %v2938, %v2937
    %v3457 = vpack.c.b16 %v2940, %v2939
    %v3458 = vpack.c.b16 %v2942, %v2941
    %v3459 = vpack.c.b16 %v2944, %v2943
    %v3460 = vpack.c.b16 %v2946, %v2945
    %v3461 = vpack.c.b16 %v2948, %v2947
    %v3462 = vpack.c.b16 %v2950, %v2949
    %v3463 = vpack.c.b16 %v2952, %v2951
    %v3464 = vpack.c.b16 %v2954, %v2953
    %v3465 = vpack.c.b16 %v2956, %v2955
    %v3466 = vpack.c.b16 %v2958, %v2957
    %v3467 = vpack.c.b16 %v2960, %v2959
    %v3468 = vpack.c.b16 %v2962, %v2961
    %v3469 = vpack.c.b16 %v2964, %v2963
    %v3470 = vpack.c.b16 %v2966, %v2965
    %v3471 = vpack.c.b16 %v2968, %v2967
    %v3472 = vpack.c.b16 %v2970, %v2969
    %v3473 = vpack.c.b16 %v2972, %v2971
    %v3474 = vpack.c.b16 %v2974, %v2973
    %v3475 = vpack.c.b16 %v2976, %v2975
    %v3476 = vpack.c.b16 %v2978, %v2977
    %v3477 = vpack.c.b16 %v2980, %v2979
    %v3478 = vpack.c.b16 %v2982, %v2981
    %v3479 = vpack.c.b16 %v2984, %v2983
    %v3480 = vpack.c.b16 %v2986, %v2985
    %v3481 = vpack.c.b16 %v2988, %v2987
    %v3482 = vpack.c.b16 %v2990, %v2989
    %v3483 = vpack.c.b16 %v2992, %v2991
    %v3484 = vpack.c.b16 %v2994, %v2993
    %v3485 = vpack.c.b16 %v2996, %v2995
    %v3486 = vpack.c.b16 %v2998, %v2997
    %v3487 = vpack.c.b16 %v3000, %v2999
    %v3488 = vpack.c.b16 %v3002, %v3001
    %v3489 = vpack.c.b16 %v3004, %v3003
    %v3490 = vpack.c.b16 %v3006, %v3005
    %v3491 = vpack.c.b16 %v3008, %v3007
    %v3492 = vpack.c.b16 %v3010, %v3009
    %v3493 = vpack.c.b16 %v3012, %v3011
    %v3494 = vpack.c.b16 %v3014, %v3013
    %v3495 = vpack.c.b16 %v3016, %v3015
    %v3496 = vpack.c.b16 %v3018, %v3017
    %v3497 = vpack.c.b16 %v3020, %v3019
    %v3498 = vpack.c.b16 %v3022, %v3021
    %v3499 = vpack.c.b16 %v3024, %v3023
    %v3500 = vpack.c.b16 %v3026, %v3025
    %v3501 = vpack.c.b16 %v3028, %v3027
    %v3502 = vpack.c.b16 %v3030, %v3029
    %v3503 = vpack.c.b16 %v3032, %v3031
    %v3504 = vpack.c.b16 %v3034, %v3033
    %v3505 = vpack.c.b16 %v3036, %v3035
    %v3506 = vpack.c.b16 %v3038, %v3037
    %v3507 = vpack.c.b16 %v3040, %v3039
    %v3508 = vpack.c.b16 %v3042, %v3041
    %v3509 = vpack.c.b16 %v3044, %v3043
    %v3510 = vpack.c.b16 %v3046, %v3045
    %v3511 = vpack.c.b16 %v3048, %v3047
    %v3512 = vpack.c.b16 %v3050, %v3049
    %v3513 = vpack.c.b16 %v3052, %v3051
    %v3514 = vpack.c.b16 %v3054, %v3053
    %v3515 = vpack.c.b16 %v3056, %v3055
    %v3516 = vpack.c.b16 %v3058, %v3057
    %v3517 = vpack.c.b16 %v3060, %v3059
    %v3518 = vpack.c.b16 %v3062, %v3061
    %v3519 = vpack.c.b16 %v3064, %v3063
    %v3520 = vpack.c.b16 %v3066, %v3065
    %v3521 = vpack.c.b16 %v3068, %v3067
    %v3522 = vpack.c.b16 %v3070, %v3069
    %v3523 = vpack.c.b16 %v3072, %v3071
    %v3524 = vpack.c.b16 %v3074, %v3073
    %v3525 = vpack.c.b16 %v3076, %v3075
    %v3526 = vpack.c.b16 %v3078, %v3077
    %v3527 = vpack.c.b16 %v3080, %v3079
    %v3528 = vpack.c.b16 %v3082, %v3081
    %v3529 = vpack.c.b16 %v3084, %v3083
    %v3530 = vpack.c.b16 %v3086, %v3085
    %v3531 = vpack.c.b16 %v3088, %v3087
    %v3532 = vpack.c.b16 %v3090, %v3089
    %v3533 = vpack.c.b16 %v3092, %v3091
    %vm3975 = vcmask 130048
    %v3977 = vsel %vm3975, %v1273, 0
    %3979 = vmatprep.subr.bf16.mxu0 0
    %3980 = vmatpush1.bf16.msra.mxu0 %v3093
    %3981 = vmatprep.subr.bf16.mxu0 0
    %3982 = vmatpush1.bf16.msra.mxu0 %v3094
    %3983 = vmatprep.subr.bf16.mxu0 0
    %3984 = vmatpush1.bf16.msra.mxu0 %v3095
    %3985 = vmatprep.subr.bf16.mxu0 0
    %3986 = vmatpush1.bf16.msra.mxu0 %v3096
    %3987 = vmatprep.subr.bf16.mxu0 0
    %3988 = vmatpush1.bf16.msra.mxu0 %v3097
    %3989 = vmatprep.subr.bf16.mxu0 0
    %3990 = vmatpush1.bf16.msra.mxu0 %v3098
    %3991 = vmatprep.subr.bf16.mxu0 0
    %3992 = vmatpush1.bf16.msra.mxu0 %v3099
    %3993 = vmatprep.subr.bf16.mxu0 0
    %3994 = vmatpush1.bf16.msra.mxu0 %v3100
    %3995 = vmatprep.subr.bf16.mxu0 0
    %3996 = vmatpush1.bf16.msra.mxu0 %v3101
    %3997 = vmatprep.subr.bf16.mxu0 0
    %3998 = vmatpush1.bf16.msra.mxu0 %v3102
    %3999 = vmatprep.subr.bf16.mxu0 0
    %4000 = vmatpush1.bf16.msra.mxu0 %v3103
    %4001 = vmatprep.subr.bf16.mxu0 0
    %4002 = vmatpush1.bf16.msra.mxu0 %v3104
    %4003 = vmatprep.subr.bf16.mxu0 0
    %4004 = vmatpush1.bf16.msra.mxu0 %v3105
    %4005 = vmatprep.subr.bf16.mxu0 0
    %4006 = vmatpush1.bf16.msra.mxu0 %v3106
    %4007 = vmatprep.subr.bf16.mxu0 0
    %4008 = vmatpush1.bf16.msra.mxu0 %v3107
    %4009 = vmatprep.subr.bf16.mxu0 0
    %4010 = vmatpush1.bf16.msra.mxu0 %v3108
    %4011 = vmatprep.mubr.bf16.mxu0 %v968
    %4012 = vmatmul.mubr.bf16.gmra.mrb[0].mxu0 %v954
    %v4013 = vpop.f32.mrb[0].mxu0
    %v4014 = vadd.f32 %v922, %v4013
    %v4015 = vpop.f32.mrb[0].mxu0
    %v4016 = vpop.f32.mrb[0].mxu0
    %v4017 = vpop.f32.mrb[0].mxu0
    %4018 = vdwg.mxu0
    %4019 = vmatprep.subr.bf16.mxu0 0
    %4020 = vmatpush1.bf16.msra.mxu0 %v3109
    %4021 = vmatprep.subr.bf16.mxu0 0
    %4022 = vmatpush1.bf16.msra.mxu0 %v3110
    %4023 = vmatprep.subr.bf16.mxu0 0
    %4024 = vmatpush1.bf16.msra.mxu0 %v3111
    %4025 = vmatprep.subr.bf16.mxu0 0
    %4026 = vmatpush1.bf16.msra.mxu0 %v3112
    %4027 = vmatprep.subr.bf16.mxu0 0
    %4028 = vmatpush1.bf16.msra.mxu0 %v3113
    %4029 = vmatprep.subr.bf16.mxu0 0
    %4030 = vmatpush1.bf16.msra.mxu0 %v3114
    %4031 = vmatprep.subr.bf16.mxu0 0
    %4032 = vmatpush1.bf16.msra.mxu0 %v3115
    %4033 = vmatprep.subr.bf16.mxu0 0
    %4034 = vmatpush1.bf16.msra.mxu0 %v3116
    %4035 = vmatprep.subr.bf16.mxu0 0
    %4036 = vmatpush1.bf16.msra.mxu0 %v3117
    %4037 = vmatprep.subr.bf16.mxu0 0
    %4038 = vmatpush1.bf16.msra.mxu0 %v3118
    %4039 = vmatprep.subr.bf16.mxu0 0
    %4040 = vmatpush1.bf16.msra.mxu0 %v3119
    %4041 = vmatprep.subr.bf16.mxu0 0
    %4042 = vmatpush1.bf16.msra.mxu0 %v3120
    %4043 = vmatprep.subr.bf16.mxu0 0
    %4044 = vmatpush1.bf16.msra.mxu0 %v3121
    %4045 = vmatprep.subr.bf16.mxu0 0
    %4046 = vmatpush1.bf16.msra.mxu0 %v3122
    %4047 = vmatprep.subr.bf16.mxu0 0
    %4048 = vmatpush1.bf16.msra.mxu0 %v3123
    %4049 = vmatprep.subr.bf16.mxu0 0
    %4050 = vmatpush1.bf16.msra.mxu0 %v3124
    %4051 = vmatprep.mubr.bf16.mxu0 %v978
    %4052 = vmatmul.mubr.bf16.gmra.mrb[0].mxu0 %v976
    %v4053 = vpop.f32.mrb[0].mxu0
    %v4054 = vadd.f32 %v4014, %v4053
    %v4055 = vpop.f32.mrb[0].mxu0
    %v4056 = vpop.f32.mrb[0].mxu0
    %v4057 = vpop.f32.mrb[0].mxu0
    %4058 = vdwg.mxu0
    %4059 = vmatprep.subr.bf16.mxu0 0
    %4060 = vmatpush1.bf16.msra.mxu0 %v3125
    %4061 = vmatprep.subr.bf16.mxu0 0
    %4062 = vmatpush1.bf16.msra.mxu0 %v3126
    %4063 = vmatprep.subr.bf16.mxu0 0
    %4064 = vmatpush1.bf16.msra.mxu0 %v3127
    %4065 = vmatprep.subr.bf16.mxu0 0
    %4066 = vmatpush1.bf16.msra.mxu0 %v3128
    %4067 = vmatprep.subr.bf16.mxu0 0
    %4068 = vmatpush1.bf16.msra.mxu0 %v3129
    %4069 = vmatprep.subr.bf16.mxu0 0
    %4070 = vmatpush1.bf16.msra.mxu0 %v3130
    %4071 = vmatprep.subr.bf16.mxu0 0
    %4072 = vmatpush1.bf16.msra.mxu0 %v3131
    %4073 = vmatprep.subr.bf16.mxu0 0
    %4074 = vmatpush1.bf16.msra.mxu0 %v3132
    %4075 = vmatprep.subr.bf16.mxu0 0
    %4076 = vmatpush1.bf16.msra.mxu0 %v3133
    %4077 = vmatprep.subr.bf16.mxu0 0
    %4078 = vmatpush1.bf16.msra.mxu0 %v3134
    %4079 = vmatprep.subr.bf16.mxu0 0
    %4080 = vmatpush1.bf16.msra.mxu0 %v3135
    %4081 = vmatprep.subr.bf16.mxu0 0
    %4082 = vmatpush1.bf16.msra.mxu0 %v3136
    %4083 = vmatprep.subr.bf16.mxu0 0
    %4084 = vmatpush1.bf16.msra.mxu0 %v3137
    %4085 = vmatprep.subr.bf16.mxu0 0
    %4086 = vmatpush1.bf16.msra.mxu0 %v3138
    %4087 = vmatprep.subr.bf16.mxu0 0
    %4088 = vmatpush1.bf16.msra.mxu0 %v3139
    %4089 = vmatprep.subr.bf16.mxu0 0
    %4090 = vmatpush1.bf16.msra.mxu0 %v3140
    %4091 = vmatprep.mubr.bf16.mxu0 %v975
    %4092 = vmatmul.mubr.bf16.gmra.mrb[0].mxu0 %v961
    %v4093 = vpop.f32.mrb[0].mxu0
    %v4094 = vadd.f32 %v4054, %v4093
    %v4095 = vpop.f32.mrb[0].mxu0
    %v4096 = vpop.f32.mrb[0].mxu0
    %v4097 = vpop.f32.mrb[0].mxu0
    %4098 = vdwg.mxu0
    %4099 = vmatprep.subr.bf16.mxu0 0
    %4100 = vmatpush1.bf16.msra.mxu0 %v3141
    %4101 = vmatprep.subr.bf16.mxu0 0
    %4102 = vmatpush1.bf16.msra.mxu0 %v3142
    %4103 = vmatprep.subr.bf16.mxu0 0
    %4104 = vmatpush1.bf16.msra.mxu0 %v3143
    %4105 = vmatprep.subr.bf16.mxu0 0
    %4106 = vmatpush1.bf16.msra.mxu0 %v3144
    %4107 = vmatprep.subr.bf16.mxu0 0
    %4108 = vmatpush1.bf16.msra.mxu0 %v3145
    %4109 = vmatprep.subr.bf16.mxu0 0
    %4110 = vmatpush1.bf16.msra.mxu0 %v3146
    %4111 = vmatprep.subr.bf16.mxu0 0
    %4112 = vmatpush1.bf16.msra.mxu0 %v3147
    %4113 = vmatprep.subr.bf16.mxu0 0
    %4114 = vmatpush1.bf16.msra.mxu0 %v3148
    %4115 = vmatprep.subr.bf16.mxu0 0
    %4116 = vmatpush1.bf16.msra.mxu0 %v3149
    %4117 = vmatprep.subr.bf16.mxu0 0
    %4118 = vmatpush1.bf16.msra.mxu0 %v3150
    %4119 = vmatprep.subr.bf16.mxu0 0
    %4120 = vmatpush1.bf16.msra.mxu0 %v3151
    %4121 = vmatprep.subr.bf16.mxu0 0
    %4122 = vmatpush1.bf16.msra.mxu0 %v3152
    %4123 = vmatprep.subr.bf16.mxu0 0
    %4124 = vmatpush1.bf16.msra.mxu0 %v3153
    %4125 = vmatprep.subr.bf16.mxu0 0
    %4126 = vmatpush1.bf16.msra.mxu0 %v3154
    %4127 = vmatprep.subr.bf16.mxu0 0
    %4128 = vmatpush1.bf16.msra.mxu0 %v3155
    %4129 = vmatprep.subr.bf16.mxu0 0
    %4130 = vmatpush1.bf16.msra.mxu0 %v3156
    %4131 = vmatprep.mubr.bf16.mxu0 %v979
    %4132 = vmatmul.mubr.bf16.gmra.mrb[0].mxu0 %v977
    %v4133 = vpop.f32.mrb[0].mxu0
    %v4134 = vadd.f32 %v4094, %v4133
    %v4135 = vpop.f32.mrb[0].mxu0
    %v4136 = vpop.f32.mrb[0].mxu0
    %v4137 = vpop.f32.mrb[0].mxu0
    %4138 = vdwg.mxu0
    %4139 = vmatprep.subr.bf16.mxu0 0
    %4140 = vmatpush1.bf16.msra.mxu0 %v3157
    %4141 = vmatprep.subr.bf16.mxu0 0
    %4142 = vmatpush1.bf16.msra.mxu0 %v3158
    %4143 = vmatprep.subr.bf16.mxu0 0
    %4144 = vmatpush1.bf16.msra.mxu0 %v3159
    %4145 = vmatprep.subr.bf16.mxu0 0
    %4146 = vmatpush1.bf16.msra.mxu0 %v3160
    %4147 = vmatprep.subr.bf16.mxu0 0
    %4148 = vmatpush1.bf16.msra.mxu0 %v3161
    %4149 = vmatprep.subr.bf16.mxu0 0
    %4150 = vmatpush1.bf16.msra.mxu0 %v3162
    %4151 = vmatprep.subr.bf16.mxu0 0
    %4152 = vmatpush1.bf16.msra.mxu0 %v3163
    %4153 = vmatprep.subr.bf16.mxu0 0
    %4154 = vmatpush1.bf16.msra.mxu0 %v3164
    %4155 = vmatprep.subr.bf16.mxu0 0
    %4156 = vmatpush1.bf16.msra.mxu0 %v3165
    %4157 = vmatprep.subr.bf16.mxu0 0
    %4158 = vmatpush1.bf16.msra.mxu0 %v3166
    %4159 = vmatprep.subr.bf16.mxu0 0
    %4160 = vmatpush1.bf16.msra.mxu0 %v3167
    %4161 = vmatprep.subr.bf16.mxu0 0
    %4162 = vmatpush1.bf16.msra.mxu0 %v3168
    %4163 = vmatprep.subr.bf16.mxu0 0
    %4164 = vmatpush1.bf16.msra.mxu0 %v3169
    %4165 = vmatprep.subr.bf16.mxu0 0
    %4166 = vmatpush1.bf16.msra.mxu0 %v3170
    %4167 = vmatprep.subr.bf16.mxu0 0
    %4168 = vmatpush1.bf16.msra.mxu0 %v3171
    %4169 = vmatprep.subr.bf16.mxu0 0
    %4170 = vmatpush1.bf16.msra.mxu0 %v3172
    %4171 = vmatprep.mubr.bf16.mxu0 %v1017
    %4172 = vmatmul.mubr.bf16.gmra.mrb[0].mxu0 %v1003
    %v4173 = vpop.f32.mrb[0].mxu0
    %v4174 = vadd.f32 %v4134, %v4173
    %v4175 = vpop.f32.mrb[0].mxu0
    %v4176 = vpop.f32.mrb[0].mxu0
    %v4177 = vpop.f32.mrb[0].mxu0
    %4178 = vdwg.mxu0
    %4179 = vmatprep.subr.bf16.mxu0 0
    %4180 = vmatpush1.bf16.msra.mxu0 %v3173
    %4181 = vmatprep.subr.bf16.mxu0 0
    %4182 = vmatpush1.bf16.msra.mxu0 %v3174
    %4183 = vmatprep.subr.bf16.mxu0 0
    %4184 = vmatpush1.bf16.msra.mxu0 %v3175
    %4185 = vmatprep.subr.bf16.mxu0 0
    %4186 = vmatpush1.bf16.msra.mxu0 %v3176
    %4187 = vmatprep.subr.bf16.mxu0 0
    %4188 = vmatpush1.bf16.msra.mxu0 %v3177
    %4189 = vmatprep.subr.bf16.mxu0 0
    %4190 = vmatpush1.bf16.msra.mxu0 %v3178
    %4191 = vmatprep.subr.bf16.mxu0 0
    %4192 = vmatpush1.bf16.msra.mxu0 %v3179
    %4193 = vmatprep.subr.bf16.mxu0 0
    %4194 = vmatpush1.bf16.msra.mxu0 %v3180
    %4195 = vmatprep.subr.bf16.mxu0 0
    %4196 = vmatpush1.bf16.msra.mxu0 %v3181
    %4197 = vmatprep.subr.bf16.mxu0 0
    %4198 = vmatpush1.bf16.msra.mxu0 %v3182
    %4199 = vmatprep.subr.bf16.mxu0 0
    %4200 = vmatpush1.bf16.msra.mxu0 %v3183
    %4201 = vmatprep.subr.bf16.mxu0 0
    %4202 = vmatpush1.bf16.msra.mxu0 %v3184
    %4203 = vmatprep.subr.bf16.mxu0 0
    %4204 = vmatpush1.bf16.msra.mxu0 %v3185
    %4205 = vmatprep.subr.bf16.mxu0 0
    %4206 = vmatpush1.bf16.msra.mxu0 %v3186
    %4207 = vmatprep.subr.bf16.mxu0 0
    %4208 = vmatpush1.bf16.msra.mxu0 %v3187
    %4209 = vmatprep.subr.bf16.mxu0 0
    %4210 = vmatpush1.bf16.msra.mxu0 %v3188
    %4211 = vmatprep.mubr.bf16.mxu0 %v1027
    %4212 = vmatmul.mubr.bf16.gmra.mrb[0].mxu0 %v1025
    %v4213 = vpop.f32.mrb[0].mxu0
    %v4214 = vadd.f32 %v4174, %v4213
    %v4215 = vpop.f32.mrb[0].mxu0
    %v4216 = vpop.f32.mrb[0].mxu0
    %v4217 = vpop.f32.mrb[0].mxu0
    %4218 = vdwg.mxu0
    %4219 = vmatprep.subr.bf16.mxu0 0
    %4220 = vmatpush1.bf16.msra.mxu0 %v3189
    %4221 = vmatprep.subr.bf16.mxu0 0
    %4222 = vmatpush1.bf16.msra.mxu0 %v3190
    %4223 = vmatprep.subr.bf16.mxu0 0
    %4224 = vmatpush1.bf16.msra.mxu0 %v3191
    %4225 = vmatprep.subr.bf16.mxu0 0
    %4226 = vmatpush1.bf16.msra.mxu0 %v3192
    %4227 = vmatprep.subr.bf16.mxu0 0
    %4228 = vmatpush1.bf16.msra.mxu0 %v3193
    %4229 = vmatprep.subr.bf16.mxu0 0
    %4230 = vmatpush1.bf16.msra.mxu0 %v3194
    %4231 = vmatprep.subr.bf16.mxu0 0
    %4232 = vmatpush1.bf16.msra.mxu0 %v3195
    %4233 = vmatprep.subr.bf16.mxu0 0
    %4234 = vmatpush1.bf16.msra.mxu0 %v3196
    %4235 = vmatprep.subr.bf16.mxu0 0
    %4236 = vmatpush1.bf16.msra.mxu0 %v3197
    %4237 = vmatprep.subr.bf16.mxu0 0
    %4238 = vmatpush1.bf16.msra.mxu0 %v3198
    %4239 = vmatprep.subr.bf16.mxu0 0
    %4240 = vmatpush1.bf16.msra.mxu0 %v3199
    %4241 = vmatprep.subr.bf16.mxu0 0
    %4242 = vmatpush1.bf16.msra.mxu0 %v3200
    %4243 = vmatprep.subr.bf16.mxu0 0
    %4244 = vmatpush1.bf16.msra.mxu0 %v3201
    %4245 = vmatprep.subr.bf16.mxu0 0
    %4246 = vmatpush1.bf16.msra.mxu0 %v3202
    %4247 = vmatprep.subr.bf16.mxu0 0
    %4248 = vmatpush1.bf16.msra.mxu0 %v3203
    %4249 = vmatprep.subr.bf16.mxu0 0
    %4250 = vmatpush1.bf16.msra.mxu0 %v3204
    %4251 = vmatprep.mubr.bf16.mxu0 %v1024
    %4252 = vmatmul.mubr.bf16.gmra.mrb[0].mxu0 %v1010
    %v4253 = vpop.f32.mrb[0].mxu0
    %v4254 = vadd.f32 %v4214, %v4253
    %v4255 = vpop.f32.mrb[0].mxu0
    %v4256 = vpop.f32.mrb[0].mxu0
    %v4257 = vpop.f32.mrb[0].mxu0
    %4258 = vdwg.mxu0
    %4259 = vmatprep.subr.bf16.mxu0 0
    %4260 = vmatpush1.bf16.msra.mxu0 %v3205
    %4261 = vmatprep.subr.bf16.mxu0 0
    %4262 = vmatpush1.bf16.msra.mxu0 %v3206
    %4263 = vmatprep.subr.bf16.mxu0 0
    %4264 = vmatpush1.bf16.msra.mxu0 %v3207
    %4265 = vmatprep.subr.bf16.mxu0 0
    %4266 = vmatpush1.bf16.msra.mxu0 %v3208
    %4267 = vmatprep.subr.bf16.mxu0 0
    %4268 = vmatpush1.bf16.msra.mxu0 %v3209
    %4269 = vmatprep.subr.bf16.mxu0 0
    %4270 = vmatpush1.bf16.msra.mxu0 %v3210
    %4271 = vmatprep.subr.bf16.mxu0 0
    %4272 = vmatpush1.bf16.msra.mxu0 %v3211
    %4273 = vmatprep.subr.bf16.mxu0 0
    %4274 = vmatpush1.bf16.msra.mxu0 %v3212
    %4275 = vmatprep.subr.bf16.mxu0 0
    %4276 = vmatpush1.bf16.msra.mxu0 %v3213
    %4277 = vmatprep.subr.bf16.mxu0 0
    %4278 = vmatpush1.bf16.msra.mxu0 %v3214
    %4279 = vmatprep.subr.bf16.mxu0 0
    %4280 = vmatpush1.bf16.msra.mxu0 %v3215
    %4281 = vmatprep.subr.bf16.mxu0 0
    %4282 = vmatpush1.bf16.msra.mxu0 %v3216
    %4283 = vmatprep.subr.bf16.mxu0 0
    %4284 = vmatpush1.bf16.msra.mxu0 %v3217
    %4285 = vmatprep.subr.bf16.mxu0 0
    %4286 = vmatpush1.bf16.msra.mxu0 %v3218
    %4287 = vmatprep.subr.bf16.mxu0 0
    %4288 = vmatpush1.bf16.msra.mxu0 %v3219
    %4289 = vmatprep.subr.bf16.mxu0 0
    %4290 = vmatpush1.bf16.msra.mxu0 %v3220
    %4291 = vmatprep.mubr.bf16.mxu0 %v1028
    %4292 = vmatmul.mubr.bf16.gmra.mrb[0].mxu0 %v1026
    %v4293 = vpop.f32.mrb[0].mxu0
    %v4294 = vadd.f32 %v4254, %v4293
    %v4295 = vpop.f32.mrb[0].mxu0
    %v4296 = vpop.f32.mrb[0].mxu0
    %v4297 = vpop.f32.mrb[0].mxu0
    %4298 = vdwg.mxu0
    %4299 = vmatprep.subr.bf16.mxu0 0
    %4300 = vmatpush1.bf16.msra.mxu0 %v3221
    %4301 = vmatprep.subr.bf16.mxu0 0
    %4302 = vmatpush1.bf16.msra.mxu0 %v3222
    %4303 = vmatprep.subr.bf16.mxu0 0
    %4304 = vmatpush1.bf16.msra.mxu0 %v3223
    %4305 = vmatprep.subr.bf16.mxu0 0
    %4306 = vmatpush1.bf16.msra.mxu0 %v3224
    %4307 = vmatprep.subr.bf16.mxu0 0
    %4308 = vmatpush1.bf16.msra.mxu0 %v3225
    %4309 = vmatprep.subr.bf16.mxu0 0
    %4310 = vmatpush1.bf16.msra.mxu0 %v3226
    %4311 = vmatprep.subr.bf16.mxu0 0
    %4312 = vmatpush1.bf16.msra.mxu0 %v3227
    %4313 = vmatprep.subr.bf16.mxu0 0
    %4314 = vmatpush1.bf16.msra.mxu0 %v3228
    %4315 = vmatprep.subr.bf16.mxu0 0
    %4316 = vmatpush1.bf16.msra.mxu0 %v3229
    %4317 = vmatprep.subr.bf16.mxu0 0
    %4318 = vmatpush1.bf16.msra.mxu0 %v3230
    %4319 = vmatprep.subr.bf16.mxu0 0
    %4320 = vmatpush1.bf16.msra.mxu0 %v3231
    %4321 = vmatprep.subr.bf16.mxu0 0
    %4322 = vmatpush1.bf16.msra.mxu0 %v3232
    %4323 = vmatprep.subr.bf16.mxu0 0
    %4324 = vmatpush1.bf16.msra.mxu0 %v3233
    %4325 = vmatprep.subr.bf16.mxu0 0
    %4326 = vmatpush1.bf16.msra.mxu0 %v3234
    %4327 = vmatprep.subr.bf16.mxu0 0
    %4328 = vmatpush1.bf16.msra.mxu0 %v3235
    %4329 = vmatprep.subr.bf16.mxu0 0
    %4330 = vmatpush1.bf16.msra.mxu0 %v3236
    %4331 = vmatprep.mubr.bf16.mxu0 %v1066
    %4332 = vmatmul.mubr.bf16.gmra.mrb[0].mxu0 %v1052
    %v4333 = vpop.f32.mrb[0].mxu0
    %v4334 = vadd.f32 %v4294, %v4333
    %v4335 = vpop.f32.mrb[0].mxu0
    %v4336 = vpop.f32.mrb[0].mxu0
    %v4337 = vpop.f32.mrb[0].mxu0
    %4338 = vdwg.mxu0
    %4339 = vmatprep.subr.bf16.mxu0 0
    %4340 = vmatpush1.bf16.msra.mxu0 %v3237
    %4341 = vmatprep.subr.bf16.mxu0 0
    %4342 = vmatpush1.bf16.msra.mxu0 %v3238
    %4343 = vmatprep.subr.bf16.mxu0 0
    %4344 = vmatpush1.bf16.msra.mxu0 %v3239
    %4345 = vmatprep.subr.bf16.mxu0 0
    %4346 = vmatpush1.bf16.msra.mxu0 %v3240
    %4347 = vmatprep.subr.bf16.mxu0 0
    %4348 = vmatpush1.bf16.msra.mxu0 %v3241
    %4349 = vmatprep.subr.bf16.mxu0 0
    %4350 = vmatpush1.bf16.msra.mxu0 %v3242
    %4351 = vmatprep.subr.bf16.mxu0 0
    %4352 = vmatpush1.bf16.msra.mxu0 %v3243
    %4353 = vmatprep.subr.bf16.mxu0 0
    %4354 = vmatpush1.bf16.msra.mxu0 %v3244
    %4355 = vmatprep.subr.bf16.mxu0 0
    %4356 = vmatpush1.bf16.msra.mxu0 %v3245
    %4357 = vmatprep.subr.bf16.mxu0 0
    %4358 = vmatpush1.bf16.msra.mxu0 %v3246
    %4359 = vmatprep.subr.bf16.mxu0 0
    %4360 = vmatpush1.bf16.msra.mxu0 %v3247
    %4361 = vmatprep.subr.bf16.mxu0 0
    %4362 = vmatpush1.bf16.msra.mxu0 %v3248
    %4363 = vmatprep.subr.bf16.mxu0 0
    %4364 = vmatpush1.bf16.msra.mxu0 %v3249
    %4365 = vmatprep.subr.bf16.mxu0 0
    %4366 = vmatpush1.bf16.msra.mxu0 %v3250
    %4367 = vmatprep.subr.bf16.mxu0 0
    %4368 = vmatpush1.bf16.msra.mxu0 %v3251
    %4369 = vmatprep.subr.bf16.mxu0 0
    %4370 = vmatpush1.bf16.msra.mxu0 %v3252
    %4371 = vmatprep.mubr.bf16.mxu0 %v1076
    %4372 = vmatmul.mubr.bf16.gmra.mrb[0].mxu0 %v1074
    %v4373 = vpop.f32.mrb[0].mxu0
    %v4374 = vadd.f32 %v4334, %v4373
    %v4375 = vpop.f32.mrb[0].mxu0
    %v4376 = vpop.f32.mrb[0].mxu0
    %v4377 = vpop.f32.mrb[0].mxu0
    %4378 = vdwg.mxu0
    %4379 = vmatprep.subr.bf16.mxu0 0
    %4380 = vmatpush1.bf16.msra.mxu0 %v3253
    %4381 = vmatprep.subr.bf16.mxu0 0
    %4382 = vmatpush1.bf16.msra.mxu0 %v3254
    %4383 = vmatprep.subr.bf16.mxu0 0
    %4384 = vmatpush1.bf16.msra.mxu0 %v3255
    %4385 = vmatprep.subr.bf16.mxu0 0
    %4386 = vmatpush1.bf16.msra.mxu0 %v3256
    %4387 = vmatprep.subr.bf16.mxu0 0
    %4388 = vmatpush1.bf16.msra.mxu0 %v3257
    %4389 = vmatprep.subr.bf16.mxu0 0
    %4390 = vmatpush1.bf16.msra.mxu0 %v3258
    %4391 = vmatprep.subr.bf16.mxu0 0
    %4392 = vmatpush1.bf16.msra.mxu0 %v3259
    %4393 = vmatprep.subr.bf16.mxu0 0
    %4394 = vmatpush1.bf16.msra.mxu0 %v3260
    %4395 = vmatprep.subr.bf16.mxu0 0
    %4396 = vmatpush1.bf16.msra.mxu0 %v3261
    %4397 = vmatprep.subr.bf16.mxu0 0
    %4398 = vmatpush1.bf16.msra.mxu0 %v3262
    %4399 = vmatprep.subr.bf16.mxu0 0
    %4400 = vmatpush1.bf16.msra.mxu0 %v3263
    %4401 = vmatprep.subr.bf16.mxu0 0
    %4402 = vmatpush1.bf16.msra.mxu0 %v3264
    %4403 = vmatprep.subr.bf16.mxu0 0
    %4404 = vmatpush1.bf16.msra.mxu0 %v3265
    %4405 = vmatprep.subr.bf16.mxu0 0
    %4406 = vmatpush1.bf16.msra.mxu0 %v3266
    %4407 = vmatprep.subr.bf16.mxu0 0
    %4408 = vmatpush1.bf16.msra.mxu0 %v3267
    %4409 = vmatprep.subr.bf16.mxu0 0
    %4410 = vmatpush1.bf16.msra.mxu0 %v3268
    %4411 = vmatprep.mubr.bf16.mxu0 %v1073
    %4412 = vmatmul.mubr.bf16.gmra.mrb[0].mxu0 %v1059
    %v4413 = vpop.f32.mrb[0].mxu0
    %v4414 = vadd.f32 %v4374, %v4413
    %v4415 = vpop.f32.mrb[0].mxu0
    %v4416 = vpop.f32.mrb[0].mxu0
    %v4417 = vpop.f32.mrb[0].mxu0
    %4418 = vdwg.mxu0
    %4419 = vmatprep.subr.bf16.mxu0 0
    %4420 = vmatpush1.bf16.msra.mxu0 %v3269
    %4421 = vmatprep.subr.bf16.mxu0 0
    %4422 = vmatpush1.bf16.msra.mxu0 %v3270
    %4423 = vmatprep.subr.bf16.mxu0 0
    %4424 = vmatpush1.bf16.msra.mxu0 %v3271
    %4425 = vmatprep.subr.bf16.mxu0 0
    %4426 = vmatpush1.bf16.msra.mxu0 %v3272
    %4427 = vmatprep.subr.bf16.mxu0 0
    %4428 = vmatpush1.bf16.msra.mxu0 %v3273
    %4429 = vmatprep.subr.bf16.mxu0 0
    %4430 = vmatpush1.bf16.msra.mxu0 %v3274
    %4431 = vmatprep.subr.bf16.mxu0 0
    %4432 = vmatpush1.bf16.msra.mxu0 %v3275
    %4433 = vmatprep.subr.bf16.mxu0 0
    %4434 = vmatpush1.bf16.msra.mxu0 %v3276
    %4435 = vmatprep.subr.bf16.mxu0 0
    %4436 = vmatpush1.bf16.msra.mxu0 %v3277
    %4437 = vmatprep.subr.bf16.mxu0 0
    %4438 = vmatpush1.bf16.msra.mxu0 %v3278
    %4439 = vmatprep.subr.bf16.mxu0 0
    %4440 = vmatpush1.bf16.msra.mxu0 %v3279
    %4441 = vmatprep.subr.bf16.mxu0 0
    %4442 = vmatpush1.bf16.msra.mxu0 %v3280
    %4443 = vmatprep.subr.bf16.mxu0 0
    %4444 = vmatpush1.bf16.msra.mxu0 %v3281
    %4445 = vmatprep.subr.bf16.mxu0 0
    %4446 = vmatpush1.bf16.msra.mxu0 %v3282
    %4447 = vmatprep.subr.bf16.mxu0 0
    %4448 = vmatpush1.bf16.msra.mxu0 %v3283
    %4449 = vmatprep.subr.bf16.mxu0 0
    %4450 = vmatpush1.bf16.msra.mxu0 %v3284
    %4451 = vmatprep.mubr.bf16.mxu0 %v1077
    %4452 = vmatmul.mubr.bf16.gmra.mrb[0].mxu0 %v1075
    %v4453 = vpop.f32.mrb[0].mxu0
    %v4454 = vadd.f32 %v4414, %v4453
    %v4455 = vpop.f32.mrb[0].mxu0
    %v4456 = vpop.f32.mrb[0].mxu0
    %v4457 = vpop.f32.mrb[0].mxu0
    %4458 = vdwg.mxu0
    %4459 = vmatprep.subr.bf16.mxu0 0
    %4460 = vmatpush1.bf16.msra.mxu0 %v3285
    %4461 = vmatprep.subr.bf16.mxu0 0
    %4462 = vmatpush1.bf16.msra.mxu0 %v3286
    %4463 = vmatprep.subr.bf16.mxu0 0
    %4464 = vmatpush1.bf16.msra.mxu0 %v3287
    %4465 = vmatprep.subr.bf16.mxu0 0
    %4466 = vmatpush1.bf16.msra.mxu0 %v3288
    %4467 = vmatprep.subr.bf16.mxu0 0
    %4468 = vmatpush1.bf16.msra.mxu0 %v3289
    %4469 = vmatprep.subr.bf16.mxu0 0
    %4470 = vmatpush1.bf16.msra.mxu0 %v3290
    %4471 = vmatprep.subr.bf16.mxu0 0
    %4472 = vmatpush1.bf16.msra.mxu0 %v3291
    %4473 = vmatprep.subr.bf16.mxu0 0
    %4474 = vmatpush1.bf16.msra.mxu0 %v3292
    %4475 = vmatprep.subr.bf16.mxu0 0
    %4476 = vmatpush1.bf16.msra.mxu0 %v3293
    %4477 = vmatprep.subr.bf16.mxu0 0
    %4478 = vmatpush1.bf16.msra.mxu0 %v3294
    %4479 = vmatprep.subr.bf16.mxu0 0
    %4480 = vmatpush1.bf16.msra.mxu0 %v3295
    %4481 = vmatprep.subr.bf16.mxu0 0
    %4482 = vmatpush1.bf16.msra.mxu0 %v3296
    %4483 = vmatprep.subr.bf16.mxu0 0
    %4484 = vmatpush1.bf16.msra.mxu0 %v3297
    %4485 = vmatprep.subr.bf16.mxu0 0
    %4486 = vmatpush1.bf16.msra.mxu0 %v3298
    %4487 = vmatprep.subr.bf16.mxu0 0
    %4488 = vmatpush1.bf16.msra.mxu0 %v3299
    %4489 = vmatprep.subr.bf16.mxu0 0
    %4490 = vmatpush1.bf16.msra.mxu0 %v3300
    %4491 = vmatprep.mubr.bf16.mxu0 %v1115
    %4492 = vmatmul.mubr.bf16.gmra.mrb[0].mxu0 %v1101
    %v4493 = vpop.f32.mrb[0].mxu0
    %v4494 = vadd.f32 %v4454, %v4493
    %v4495 = vpop.f32.mrb[0].mxu0
    %v4496 = vpop.f32.mrb[0].mxu0
    %v4497 = vpop.f32.mrb[0].mxu0
    %4498 = vdwg.mxu0
    %4499 = vmatprep.subr.bf16.mxu0 0
    %4500 = vmatpush1.bf16.msra.mxu0 %v3301
    %4501 = vmatprep.subr.bf16.mxu0 0
    %4502 = vmatpush1.bf16.msra.mxu0 %v3302
    %4503 = vmatprep.subr.bf16.mxu0 0
    %4504 = vmatpush1.bf16.msra.mxu0 %v3303
    %4505 = vmatprep.subr.bf16.mxu0 0
    %4506 = vmatpush1.bf16.msra.mxu0 %v3304
    %4507 = vmatprep.subr.bf16.mxu0 0
    %4508 = vmatpush1.bf16.msra.mxu0 %v3305
    %4509 = vmatprep.subr.bf16.mxu0 0
    %4510 = vmatpush1.bf16.msra.mxu0 %v3306
    %4511 = vmatprep.subr.bf16.mxu0 0
    %4512 = vmatpush1.bf16.msra.mxu0 %v3307
    %4513 = vmatprep.subr.bf16.mxu0 0
    %4514 = vmatpush1.bf16.msra.mxu0 %v3308
    %4515 = vmatprep.subr.bf16.mxu0 0
    %4516 = vmatpush1.bf16.msra.mxu0 %v3309
    %4517 = vmatprep.subr.bf16.mxu0 0
    %4518 = vmatpush1.bf16.msra.mxu0 %v3310
    %4519 = vmatprep.subr.bf16.mxu0 0
    %4520 = vmatpush1.bf16.msra.mxu0 %v3311
    %4521 = vmatprep.subr.bf16.mxu0 0
    %4522 = vmatpush1.bf16.msra.mxu0 %v3312
    %4523 = vmatprep.subr.bf16.mxu0 0
    %4524 = vmatpush1.bf16.msra.mxu0 %v3313
    %4525 = vmatprep.subr.bf16.mxu0 0
    %4526 = vmatpush1.bf16.msra.mxu0 %v3314
    %4527 = vmatprep.subr.bf16.mxu0 0
    %4528 = vmatpush1.bf16.msra.mxu0 %v3315
    %4529 = vmatprep.subr.bf16.mxu0 0
    %4530 = vmatpush1.bf16.msra.mxu0 %v3316
    %4531 = vmatprep.mubr.bf16.mxu0 %v1125
    %4532 = vmatmul.mubr.bf16.gmra.mrb[0].mxu0 %v1123
    %v4533 = vpop.f32.mrb[0].mxu0
    %v4534 = vadd.f32 %v4494, %v4533
    %v4535 = vpop.f32.mrb[0].mxu0
    %v4536 = vpop.f32.mrb[0].mxu0
    %v4537 = vpop.f32.mrb[0].mxu0
    %4538 = vdwg.mxu0
    %4539 = vmatprep.subr.bf16.mxu0 0
    %4540 = vmatpush1.bf16.msra.mxu0 %v3317
    %4541 = vmatprep.subr.bf16.mxu0 0
    %4542 = vmatpush1.bf16.msra.mxu0 %v3318
    %4543 = vmatprep.subr.bf16.mxu0 0
    %4544 = vmatpush1.bf16.msra.mxu0 %v3319
    %4545 = vmatprep.subr.bf16.mxu0 0
    %4546 = vmatpush1.bf16.msra.mxu0 %v3320
    %4547 = vmatprep.subr.bf16.mxu0 0
    %4548 = vmatpush1.bf16.msra.mxu0 %v3321
    %4549 = vmatprep.subr.bf16.mxu0 0
    %4550 = vmatpush1.bf16.msra.mxu0 %v3322
    %4551 = vmatprep.subr.bf16.mxu0 0
    %4552 = vmatpush1.bf16.msra.mxu0 %v3323
    %4553 = vmatprep.subr.bf16.mxu0 0
    %4554 = vmatpush1.bf16.msra.mxu0 %v3324
    %4555 = vmatprep.subr.bf16.mxu0 0
    %4556 = vmatpush1.bf16.msra.mxu0 %v3325
    %4557 = vmatprep.subr.bf16.mxu0 0
    %4558 = vmatpush1.bf16.msra.mxu0 %v3326
    %4559 = vmatprep.subr.bf16.mxu0 0
    %4560 = vmatpush1.bf16.msra.mxu0 %v3327
    %4561 = vmatprep.subr.bf16.mxu0 0
    %4562 = vmatpush1.bf16.msra.mxu0 %v3328
    %4563 = vmatprep.subr.bf16.mxu0 0
    %4564 = vmatpush1.bf16.msra.mxu0 %v3329
    %4565 = vmatprep.subr.bf16.mxu0 0
    %4566 = vmatpush1.bf16.msra.mxu0 %v3330
    %4567 = vmatprep.subr.bf16.mxu0 0
    %4568 = vmatpush1.bf16.msra.mxu0 %v3331
    %4569 = vmatprep.subr.bf16.mxu0 0
    %4570 = vmatpush1.bf16.msra.mxu0 %v3332
    %4571 = vmatprep.mubr.bf16.mxu0 %v1122
    %4572 = vmatmul.mubr.bf16.gmra.mrb[0].mxu0 %v1108
    %v4573 = vpop.f32.mrb[0].mxu0
    %v4574 = vadd.f32 %v4534, %v4573
    %v4575 = vpop.f32.mrb[0].mxu0
    %v4576 = vpop.f32.mrb[0].mxu0
    %v4577 = vpop.f32.mrb[0].mxu0
    %4578 = vdwg.mxu0
    %4579 = vmatprep.subr.bf16.mxu0 0
    %4580 = vmatpush1.bf16.msra.mxu0 %v3333
    %4581 = vmatprep.subr.bf16.mxu0 0
    %4582 = vmatpush1.bf16.msra.mxu0 %v3334
    %4583 = vmatprep.subr.bf16.mxu0 0
    %4584 = vmatpush1.bf16.msra.mxu0 %v3335
    %4585 = vmatprep.subr.bf16.mxu0 0
    %4586 = vmatpush1.bf16.msra.mxu0 %v3336
    %4587 = vmatprep.subr.bf16.mxu0 0
    %4588 = vmatpush1.bf16.msra.mxu0 %v3337
    %4589 = vmatprep.subr.bf16.mxu0 0
    %4590 = vmatpush1.bf16.msra.mxu0 %v3338
    %4591 = vmatprep.subr.bf16.mxu0 0
    %4592 = vmatpush1.bf16.msra.mxu0 %v3339
    %4593 = vmatprep.subr.bf16.mxu0 0
    %4594 = vmatpush1.bf16.msra.mxu0 %v3340
    %4595 = vmatprep.subr.bf16.mxu0 0
    %4596 = vmatpush1.bf16.msra.mxu0 %v3341
    %4597 = vmatprep.subr.bf16.mxu0 0
    %4598 = vmatpush1.bf16.msra.mxu0 %v3342
    %4599 = vmatprep.subr.bf16.mxu0 0
    %4600 = vmatpush1.bf16.msra.mxu0 %v3343
    %4601 = vmatprep.subr.bf16.mxu0 0
    %4602 = vmatpush1.bf16.msra.mxu0 %v3344
    %4603 = vmatprep.subr.bf16.mxu0 0
    %4604 = vmatpush1.bf16.msra.mxu0 %v3345
    %4605 = vmatprep.subr.bf16.mxu0 0
    %4606 = vmatpush1.bf16.msra.mxu0 %v3346
    %4607 = vmatprep.subr.bf16.mxu0 0
    %4608 = vmatpush1.bf16.msra.mxu0 %v3347
    %4609 = vmatprep.subr.bf16.mxu0 0
    %4610 = vmatpush1.bf16.msra.mxu0 %v3348
    %4611 = vmatprep.mubr.bf16.mxu0 %v1126
    %4612 = vmatmul.mubr.bf16.gmra.mrb[0].mxu0 %v1124
    %v4613 = vpop.f32.mrb[0].mxu0
    %v4614 = vadd.f32 %v4574, %v4613
    %v4615 = vpop.f32.mrb[0].mxu0
    %v4616 = vpop.f32.mrb[0].mxu0
    %v4617 = vpop.f32.mrb[0].mxu0
    %4618 = vdwg.mxu0
    %4619 = vmatprep.subr.bf16.mxu0 0
    %4620 = vmatpush1.bf16.msra.mxu0 %v3349
    %4621 = vmatprep.subr.bf16.mxu0 0
    %4622 = vmatpush1.bf16.msra.mxu0 %v3350
    %4623 = vmatprep.subr.bf16.mxu0 0
    %4624 = vmatpush1.bf16.msra.mxu0 %v3351
    %4625 = vmatprep.subr.bf16.mxu0 0
    %4626 = vmatpush1.bf16.msra.mxu0 %v3352
    %4627 = vmatprep.subr.bf16.mxu0 0
    %4628 = vmatpush1.bf16.msra.mxu0 %v3353
    %4629 = vmatprep.subr.bf16.mxu0 0
    %4630 = vmatpush1.bf16.msra.mxu0 %v3354
    %4631 = vmatprep.subr.bf16.mxu0 0
    %4632 = vmatpush1.bf16.msra.mxu0 %v3355
    %4633 = vmatprep.subr.bf16.mxu0 0
    %4634 = vmatpush1.bf16.msra.mxu0 %v3356
    %4635 = vmatprep.subr.bf16.mxu0 0
    %4636 = vmatpush1.bf16.msra.mxu0 %v3357
    %4637 = vmatprep.subr.bf16.mxu0 0
    %4638 = vmatpush1.bf16.msra.mxu0 %v3358
    %4639 = vmatprep.subr.bf16.mxu0 0
    %4640 = vmatpush1.bf16.msra.mxu0 %v3359
    %4641 = vmatprep.subr.bf16.mxu0 0
    %4642 = vmatpush1.bf16.msra.mxu0 %v3360
    %4643 = vmatprep.subr.bf16.mxu0 0
    %4644 = vmatpush1.bf16.msra.mxu0 %v3361
    %4645 = vmatprep.subr.bf16.mxu0 0
    %4646 = vmatpush1.bf16.msra.mxu0 %v3362
    %4647 = vmatprep.subr.bf16.mxu0 0
    %4648 = vmatpush1.bf16.msra.mxu0 %v3363
    %4649 = vmatprep.subr.bf16.mxu0 0
    %4650 = vmatpush1.bf16.msra.mxu0 %v3364
    %4651 = vmatprep.mubr.bf16.mxu0 %v1164
    %4652 = vmatmul.mubr.bf16.gmra.mrb[0].mxu0 %v1150
    %v4653 = vpop.f32.mrb[0].mxu0
    %v4654 = vadd.f32 %v4614, %v4653
    %v4655 = vpop.f32.mrb[0].mxu0
    %v4656 = vpop.f32.mrb[0].mxu0
    %v4657 = vpop.f32.mrb[0].mxu0
    %4658 = vdwg.mxu0
    %4659 = vmatprep.subr.bf16.mxu0 0
    %4660 = vmatpush1.bf16.msra.mxu0 %v3365
    %4661 = vmatprep.subr.bf16.mxu0 0
    %4662 = vmatpush1.bf16.msra.mxu0 %v3366
    %4663 = vmatprep.subr.bf16.mxu0 0
    %4664 = vmatpush1.bf16.msra.mxu0 %v3367
    %4665 = vmatprep.subr.bf16.mxu0 0
    %4666 = vmatpush1.bf16.msra.mxu0 %v3368
    %4667 = vmatprep.subr.bf16.mxu0 0
    %4668 = vmatpush1.bf16.msra.mxu0 %v3369
    %4669 = vmatprep.subr.bf16.mxu0 0
    %4670 = vmatpush1.bf16.msra.mxu0 %v3370
    %4671 = vmatprep.subr.bf16.mxu0 0
    %4672 = vmatpush1.bf16.msra.mxu0 %v3371
    %4673 = vmatprep.subr.bf16.mxu0 0
    %4674 = vmatpush1.bf16.msra.mxu0 %v3372
    %4675 = vmatprep.subr.bf16.mxu0 0
    %4676 = vmatpush1.bf16.msra.mxu0 %v3373
    %4677 = vmatprep.subr.bf16.mxu0 0
    %4678 = vmatpush1.bf16.msra.mxu0 %v3374
    %4679 = vmatprep.subr.bf16.mxu0 0
    %4680 = vmatpush1.bf16.msra.mxu0 %v3375
    %4681 = vmatprep.subr.bf16.mxu0 0
    %4682 = vmatpush1.bf16.msra.mxu0 %v3376
    %4683 = vmatprep.subr.bf16.mxu0 0
    %4684 = vmatpush1.bf16.msra.mxu0 %v3377
    %4685 = vmatprep.subr.bf16.mxu0 0
    %4686 = vmatpush1.bf16.msra.mxu0 %v3378
    %4687 = vmatprep.subr.bf16.mxu0 0
    %4688 = vmatpush1.bf16.msra.mxu0 %v3379
    %4689 = vmatprep.subr.bf16.mxu0 0
    %4690 = vmatpush1.bf16.msra.mxu0 %v3380
    %4691 = vmatprep.mubr.bf16.mxu0 %v1174
    %4692 = vmatmul.mubr.bf16.gmra.mrb[0].mxu0 %v1172
    %v4693 = vpop.f32.mrb[0].mxu0
    %v4694 = vadd.f32 %v4654, %v4693
    %v4695 = vpop.f32.mrb[0].mxu0
    %v4696 = vpop.f32.mrb[0].mxu0
    %v4697 = vpop.f32.mrb[0].mxu0
    %4698 = vdwg.mxu0
    %4699 = vmatprep.subr.bf16.mxu0 0
    %4700 = vmatpush1.bf16.msra.mxu0 %v3381
    %4701 = vmatprep.subr.bf16.mxu0 0
    %4702 = vmatpush1.bf16.msra.mxu0 %v3382
    %4703 = vmatprep.subr.bf16.mxu0 0
    %4704 = vmatpush1.bf16.msra.mxu0 %v3383
    %4705 = vmatprep.subr.bf16.mxu0 0
    %4706 = vmatpush1.bf16.msra.mxu0 %v3384
    %4707 = vmatprep.subr.bf16.mxu0 0
    %4708 = vmatpush1.bf16.msra.mxu0 %v3385
    %4709 = vmatprep.subr.bf16.mxu0 0
    %4710 = vmatpush1.bf16.msra.mxu0 %v3386
    %4711 = vmatprep.subr.bf16.mxu0 0
    %4712 = vmatpush1.bf16.msra.mxu0 %v3387
    %4713 = vmatprep.subr.bf16.mxu0 0
    %4714 = vmatpush1.bf16.msra.mxu0 %v3388
    %4715 = vmatprep.subr.bf16.mxu0 0
    %4716 = vmatpush1.bf16.msra.mxu0 %v3389
    %4717 = vmatprep.subr.bf16.mxu0 0
    %4718 = vmatpush1.bf16.msra.mxu0 %v3390
    %4719 = vmatprep.subr.bf16.mxu0 0
    %4720 = vmatpush1.bf16.msra.mxu0 %v3391
    %4721 = vmatprep.subr.bf16.mxu0 0
    %4722 = vmatpush1.bf16.msra.mxu0 %v3392
    %4723 = vmatprep.subr.bf16.mxu0 0
    %4724 = vmatpush1.bf16.msra.mxu0 %v3393
    %4725 = vmatprep.subr.bf16.mxu0 0
    %4726 = vmatpush1.bf16.msra.mxu0 %v3394
    %4727 = vmatprep.subr.bf16.mxu0 0
    %4728 = vmatpush1.bf16.msra.mxu0 %v3395
    %4729 = vmatprep.subr.bf16.mxu0 0
    %4730 = vmatpush1.bf16.msra.mxu0 %v3396
    %4731 = vmatprep.mubr.bf16.mxu0 %v1171
    %4732 = vmatmul.mubr.bf16.gmra.mrb[0].mxu0 %v1157
    %v4733 = vpop.f32.mrb[0].mxu0
    %v4734 = vadd.f32 %v4694, %v4733
    %v4735 = vpop.f32.mrb[0].mxu0
    %v4736 = vpop.f32.mrb[0].mxu0
    %v4737 = vpop.f32.mrb[0].mxu0
    %4738 = vdwg.mxu0
    %4739 = vmatprep.subr.bf16.mxu0 0
    %4740 = vmatpush1.bf16.msra.mxu0 %v3397
    %4741 = vmatprep.subr.bf16.mxu0 0
    %4742 = vmatpush1.bf16.msra.mxu0 %v3398
    %4743 = vmatprep.subr.bf16.mxu0 0
    %4744 = vmatpush1.bf16.msra.mxu0 %v3399
    %4745 = vmatprep.subr.bf16.mxu0 0
    %4746 = vmatpush1.bf16.msra.mxu0 %v3400
    %4747 = vmatprep.subr.bf16.mxu0 0
    %4748 = vmatpush1.bf16.msra.mxu0 %v3401
    %4749 = vmatprep.subr.bf16.mxu0 0
    %4750 = vmatpush1.bf16.msra.mxu0 %v3402
    %4751 = vmatprep.subr.bf16.mxu0 0
    %4752 = vmatpush1.bf16.msra.mxu0 %v3403
    %4753 = vmatprep.subr.bf16.mxu0 0
    %4754 = vmatpush1.bf16.msra.mxu0 %v3404
    %4755 = vmatprep.subr.bf16.mxu0 0
    %4756 = vmatpush1.bf16.msra.mxu0 %v3405
    %4757 = vmatprep.subr.bf16.mxu0 0
    %4758 = vmatpush1.bf16.msra.mxu0 %v3406
    %4759 = vmatprep.subr.bf16.mxu0 0
    %4760 = vmatpush1.bf16.msra.mxu0 %v3407
    %4761 = vmatprep.subr.bf16.mxu0 0
    %4762 = vmatpush1.bf16.msra.mxu0 %v3408
    %4763 = vmatprep.subr.bf16.mxu0 0
    %4764 = vmatpush1.bf16.msra.mxu0 %v3409
    %4765 = vmatprep.subr.bf16.mxu0 0
    %4766 = vmatpush1.bf16.msra.mxu0 %v3410
    %4767 = vmatprep.subr.bf16.mxu0 0
    %4768 = vmatpush1.bf16.msra.mxu0 %v3411
    %4769 = vmatprep.subr.bf16.mxu0 0
    %4770 = vmatpush1.bf16.msra.mxu0 %v3412
    %4771 = vmatprep.mubr.bf16.mxu0 %v1175
    %4772 = vmatmul.mubr.bf16.gmra.mrb[0].mxu0 %v1173
    %v4773 = vpop.f32.mrb[0].mxu0
    %v4774 = vadd.f32 %v4734, %v4773
    %v4775 = vpop.f32.mrb[0].mxu0
    %v4776 = vpop.f32.mrb[0].mxu0
    %v4777 = vpop.f32.mrb[0].mxu0
    %4778 = vdwg.mxu0
    %4779 = vmatprep.subr.bf16.mxu0 0
    %4780 = vmatpush1.bf16.msra.mxu0 %v3413
    %4781 = vmatprep.subr.bf16.mxu0 0
    %4782 = vmatpush1.bf16.msra.mxu0 %v3414
    %4783 = vmatprep.subr.bf16.mxu0 0
    %4784 = vmatpush1.bf16.msra.mxu0 %v3415
    %4785 = vmatprep.subr.bf16.mxu0 0
    %4786 = vmatpush1.bf16.msra.mxu0 %v3416
    %4787 = vmatprep.subr.bf16.mxu0 0
    %4788 = vmatpush1.bf16.msra.mxu0 %v3417
    %4789 = vmatprep.subr.bf16.mxu0 0
    %4790 = vmatpush1.bf16.msra.mxu0 %v3418
    %4791 = vmatprep.subr.bf16.mxu0 0
    %4792 = vmatpush1.bf16.msra.mxu0 %v3419
    %4793 = vmatprep.subr.bf16.mxu0 0
    %4794 = vmatpush1.bf16.msra.mxu0 %v3420
    %4795 = vmatprep.subr.bf16.mxu0 0
    %4796 = vmatpush1.bf16.msra.mxu0 %v3421
    %4797 = vmatprep.subr.bf16.mxu0 0
    %4798 = vmatpush1.bf16.msra.mxu0 %v3422
    %4799 = vmatprep.subr.bf16.mxu0 0
    %4800 = vmatpush1.bf16.msra.mxu0 %v3423
    %4801 = vmatprep.subr.bf16.mxu0 0
    %4802 = vmatpush1.bf16.msra.mxu0 %v3424
    %4803 = vmatprep.subr.bf16.mxu0 0
    %4804 = vmatpush1.bf16.msra.mxu0 %v3425
    %4805 = vmatprep.subr.bf16.mxu0 0
    %4806 = vmatpush1.bf16.msra.mxu0 %v3426
    %4807 = vmatprep.subr.bf16.mxu0 0
    %4808 = vmatpush1.bf16.msra.mxu0 %v3427
    %4809 = vmatprep.subr.bf16.mxu0 0
    %4810 = vmatpush1.bf16.msra.mxu0 %v3428
    %4811 = vmatprep.mubr.bf16.mxu0 %v1213
    %4812 = vmatmul.mubr.bf16.gmra.mrb[0].mxu0 %v1199
    %v4813 = vpop.f32.mrb[0].mxu0
    %v4814 = vadd.f32 %v4774, %v4813
    %v4815 = vpop.f32.mrb[0].mxu0
    %v4816 = vpop.f32.mrb[0].mxu0
    %v4817 = vpop.f32.mrb[0].mxu0
    %4818 = vdwg.mxu0
    %4819 = vmatprep.subr.bf16.mxu0 0
    %4820 = vmatpush1.bf16.msra.mxu0 %v3429
    %4821 = vmatprep.subr.bf16.mxu0 0
    %4822 = vmatpush1.bf16.msra.mxu0 %v3430
    %4823 = vmatprep.subr.bf16.mxu0 0
    %4824 = vmatpush1.bf16.msra.mxu0 %v3431
    %4825 = vmatprep.subr.bf16.mxu0 0
    %4826 = vmatpush1.bf16.msra.mxu0 %v3432
    %4827 = vmatprep.subr.bf16.mxu0 0
    %4828 = vmatpush1.bf16.msra.mxu0 %v3433
    %4829 = vmatprep.subr.bf16.mxu0 0
    %4830 = vmatpush1.bf16.msra.mxu0 %v3434
    %4831 = vmatprep.subr.bf16.mxu0 0
    %4832 = vmatpush1.bf16.msra.mxu0 %v3435
    %4833 = vmatprep.subr.bf16.mxu0 0
    %4834 = vmatpush1.bf16.msra.mxu0 %v3436
    %4835 = vmatprep.subr.bf16.mxu0 0
    %4836 = vmatpush1.bf16.msra.mxu0 %v3437
    %4837 = vmatprep.subr.bf16.mxu0 0
    %4838 = vmatpush1.bf16.msra.mxu0 %v3438
    %4839 = vmatprep.subr.bf16.mxu0 0
    %4840 = vmatpush1.bf16.msra.mxu0 %v3439
    %4841 = vmatprep.subr.bf16.mxu0 0
    %4842 = vmatpush1.bf16.msra.mxu0 %v3440
    %4843 = vmatprep.subr.bf16.mxu0 0
    %4844 = vmatpush1.bf16.msra.mxu0 %v3441
    %4845 = vmatprep.subr.bf16.mxu0 0
    %4846 = vmatpush1.bf16.msra.mxu0 %v3442
    %4847 = vmatprep.subr.bf16.mxu0 0
    %4848 = vmatpush1.bf16.msra.mxu0 %v3443
    %4849 = vmatprep.subr.bf16.mxu0 0
    %4850 = vmatpush1.bf16.msra.mxu0 %v3444
    %4851 = vmatprep.mubr.bf16.mxu0 %v1223
    %4852 = vmatmul.mubr.bf16.gmra.mrb[0].mxu0 %v1221
    %v4853 = vpop.f32.mrb[0].mxu0
    %v4854 = vadd.f32 %v4814, %v4853
    %v4855 = vpop.f32.mrb[0].mxu0
    %v4856 = vpop.f32.mrb[0].mxu0
    %v4857 = vpop.f32.mrb[0].mxu0
    %4858 = vdwg.mxu0
    %4859 = vmatprep.subr.bf16.mxu0 0
    %4860 = vmatpush1.bf16.msra.mxu0 %v3445
    %4861 = vmatprep.subr.bf16.mxu0 0
    %4862 = vmatpush1.bf16.msra.mxu0 %v3446
    %4863 = vmatprep.subr.bf16.mxu0 0
    %4864 = vmatpush1.bf16.msra.mxu0 %v3447
    %4865 = vmatprep.subr.bf16.mxu0 0
    %4866 = vmatpush1.bf16.msra.mxu0 %v3448
    %4867 = vmatprep.subr.bf16.mxu0 0
    %4868 = vmatpush1.bf16.msra.mxu0 %v3449
    %4869 = vmatprep.subr.bf16.mxu0 0
    %4870 = vmatpush1.bf16.msra.mxu0 %v3450
    %4871 = vmatprep.subr.bf16.mxu0 0
    %4872 = vmatpush1.bf16.msra.mxu0 %v3451
    %4873 = vmatprep.subr.bf16.mxu0 0
    %4874 = vmatpush1.bf16.msra.mxu0 %v3452
    %4875 = vmatprep.subr.bf16.mxu0 0
    %4876 = vmatpush1.bf16.msra.mxu0 %v3453
    %4877 = vmatprep.subr.bf16.mxu0 0
    %4878 = vmatpush1.bf16.msra.mxu0 %v3454
    %4879 = vmatprep.subr.bf16.mxu0 0
    %4880 = vmatpush1.bf16.msra.mxu0 %v3455
    %4881 = vmatprep.subr.bf16.mxu0 0
    %4882 = vmatpush1.bf16.msra.mxu0 %v3456
    %4883 = vmatprep.subr.bf16.mxu0 0
    %4884 = vmatpush1.bf16.msra.mxu0 %v3457
    %4885 = vmatprep.subr.bf16.mxu0 0
    %4886 = vmatpush1.bf16.msra.mxu0 %v3458
    %4887 = vmatprep.subr.bf16.mxu0 0
    %4888 = vmatpush1.bf16.msra.mxu0 %v3459
    %4889 = vmatprep.subr.bf16.mxu0 0
    %4890 = vmatpush1.bf16.msra.mxu0 %v3460
    %4891 = vmatprep.mubr.bf16.mxu0 %v1220
    %4892 = vmatmul.mubr.bf16.gmra.mrb[0].mxu0 %v1206
    %v4893 = vpop.f32.mrb[0].mxu0
    %v4894 = vadd.f32 %v4854, %v4893
    %v4895 = vpop.f32.mrb[0].mxu0
    %v4896 = vpop.f32.mrb[0].mxu0
    %v4897 = vpop.f32.mrb[0].mxu0
    %4898 = vdwg.mxu0
    %4899 = vmatprep.subr.bf16.mxu0 0
    %4900 = vmatpush1.bf16.msra.mxu0 %v3461
    %4901 = vmatprep.subr.bf16.mxu0 0
    %4902 = vmatpush1.bf16.msra.mxu0 %v3462
    %4903 = vmatprep.subr.bf16.mxu0 0
    %4904 = vmatpush1.bf16.msra.mxu0 %v3463
    %4905 = vmatprep.subr.bf16.mxu0 0
    %4906 = vmatpush1.bf16.msra.mxu0 %v3464
    %4907 = vmatprep.subr.bf16.mxu0 0
    %4908 = vmatpush1.bf16.msra.mxu0 %v3465
    %4909 = vmatprep.subr.bf16.mxu0 0
    %4910 = vmatpush1.bf16.msra.mxu0 %v3466
    %4911 = vmatprep.subr.bf16.mxu0 0
    %4912 = vmatpush1.bf16.msra.mxu0 %v3467
    %4913 = vmatprep.subr.bf16.mxu0 0
    %4914 = vmatpush1.bf16.msra.mxu0 %v3468
    %4915 = vmatprep.subr.bf16.mxu0 0
    %4916 = vmatpush1.bf16.msra.mxu0 %v3469
    %4917 = vmatprep.subr.bf16.mxu0 0
    %4918 = vmatpush1.bf16.msra.mxu0 %v3470
    %4919 = vmatprep.subr.bf16.mxu0 0
    %4920 = vmatpush1.bf16.msra.mxu0 %v3471
    %4921 = vmatprep.subr.bf16.mxu0 0
    %4922 = vmatpush1.bf16.msra.mxu0 %v3472
    %4923 = vmatprep.subr.bf16.mxu0 0
    %4924 = vmatpush1.bf16.msra.mxu0 %v3473
    %4925 = vmatprep.subr.bf16.mxu0 0
    %4926 = vmatpush1.bf16.msra.mxu0 %v3474
    %4927 = vmatprep.subr.bf16.mxu0 0
    %4928 = vmatpush1.bf16.msra.mxu0 %v3475
    %4929 = vmatprep.subr.bf16.mxu0 0
    %4930 = vmatpush1.bf16.msra.mxu0 %v3476
    %4931 = vmatprep.mubr.bf16.mxu0 %v1224
    %4932 = vmatmul.mubr.bf16.gmra.mrb[0].mxu0 %v1222
    %v4933 = vpop.f32.mrb[0].mxu0
    %v4934 = vadd.f32 %v4894, %v4933
    %v4935 = vpop.f32.mrb[0].mxu0
    %v4936 = vpop.f32.mrb[0].mxu0
    %v4937 = vpop.f32.mrb[0].mxu0
    %4938 = vdwg.mxu0
    %4939 = vmatprep.subr.bf16.mxu0 0
    %4940 = vmatpush1.bf16.msra.mxu0 %v3477
    %4941 = vmatprep.subr.bf16.mxu0 0
    %4942 = vmatpush1.bf16.msra.mxu0 %v3478
    %4943 = vmatprep.subr.bf16.mxu0 0
    %4944 = vmatpush1.bf16.msra.mxu0 %v3479
    %4945 = vmatprep.subr.bf16.mxu0 0
    %4946 = vmatpush1.bf16.msra.mxu0 %v3480
    %4947 = vmatprep.subr.bf16.mxu0 0
    %4948 = vmatpush1.bf16.msra.mxu0 %v3481
    %4949 = vmatprep.subr.bf16.mxu0 0
    %4950 = vmatpush1.bf16.msra.mxu0 %v3482
    %4951 = vmatprep.subr.bf16.mxu0 0
    %4952 = vmatpush1.bf16.msra.mxu0 %v3483
    %4953 = vmatprep.subr.bf16.mxu0 0
    %4954 = vmatpush1.bf16.msra.mxu0 %v3484
    %4955 = vmatprep.subr.bf16.mxu0 0
    %4956 = vmatpush1.bf16.msra.mxu0 %v3485
    %4957 = vmatprep.subr.bf16.mxu0 0
    %4958 = vmatpush1.bf16.msra.mxu0 %v3486
    %4959 = vmatprep.subr.bf16.mxu0 0
    %4960 = vmatpush1.bf16.msra.mxu0 %v3487
    %4961 = vmatprep.subr.bf16.mxu0 0
    %4962 = vmatpush1.bf16.msra.mxu0 %v3488
    %4963 = vmatprep.subr.bf16.mxu0 0
    %4964 = vmatpush1.bf16.msra.mxu0 %v3489
    %4965 = vmatprep.subr.bf16.mxu0 0
    %4966 = vmatpush1.bf16.msra.mxu0 %v3490
    %4967 = vmatprep.subr.bf16.mxu0 0
    %4968 = vmatpush1.bf16.msra.mxu0 %v3491
    %4969 = vmatprep.subr.bf16.mxu0 0
    %4970 = vmatpush1.bf16.msra.mxu0 %v3492
    %4971 = vmatprep.mubr.bf16.mxu0 %v1262
    %4972 = vmatmul.mubr.bf16.gmra.mrb[0].mxu0 %v1248
    %v4973 = vpop.f32.mrb[0].mxu0
    %v4974 = vadd.f32 %v4934, %v4973
    %v4975 = vpop.f32.mrb[0].mxu0
    %v4976 = vpop.f32.mrb[0].mxu0
    %v4977 = vpop.f32.mrb[0].mxu0
    %4978 = vdwg.mxu0
    %4979 = vmatprep.subr.bf16.mxu0 0
    %4980 = vmatpush1.bf16.msra.mxu0 %v3493
    %4981 = vmatprep.subr.bf16.mxu0 0
    %4982 = vmatpush1.bf16.msra.mxu0 %v3494
    %4983 = vmatprep.subr.bf16.mxu0 0
    %4984 = vmatpush1.bf16.msra.mxu0 %v3495
    %4985 = vmatprep.subr.bf16.mxu0 0
    %4986 = vmatpush1.bf16.msra.mxu0 %v3496
    %4987 = vmatprep.subr.bf16.mxu0 0
    %4988 = vmatpush1.bf16.msra.mxu0 %v3497
    %4989 = vmatprep.subr.bf16.mxu0 0
    %4990 = vmatpush1.bf16.msra.mxu0 %v3498
    %4991 = vmatprep.subr.bf16.mxu0 0
    %4992 = vmatpush1.bf16.msra.mxu0 %v3499
    %4993 = vmatprep.subr.bf16.mxu0 0
    %4994 = vmatpush1.bf16.msra.mxu0 %v3500
    %4995 = vmatprep.subr.bf16.mxu0 0
    %4996 = vmatpush1.bf16.msra.mxu0 %v3501
    %4997 = vmatprep.subr.bf16.mxu0 0
    %4998 = vmatpush1.bf16.msra.mxu0 %v3502
    %4999 = vmatprep.subr.bf16.mxu0 0
    %5000 = vmatpush1.bf16.msra.mxu0 %v3503
    %5001 = vmatprep.subr.bf16.mxu0 0
    %5002 = vmatpush1.bf16.msra.mxu0 %v3504
    %5003 = vmatprep.subr.bf16.mxu0 0
    %5004 = vmatpush1.bf16.msra.mxu0 %v3505
    %5005 = vmatprep.subr.bf16.mxu0 0
    %5006 = vmatpush1.bf16.msra.mxu0 %v3506
    %5007 = vmatprep.subr.bf16.mxu0 0
    %5008 = vmatpush1.bf16.msra.mxu0 %v3507
    %5009 = vmatprep.subr.bf16.mxu0 0
    %5010 = vmatpush1.bf16.msra.mxu0 %v3508
    %5011 = vmatprep.mubr.bf16.mxu0 %v1272
    %5012 = vmatmul.mubr.bf16.gmra.mrb[0].mxu0 %v1270
    %v5013 = vpop.f32.mrb[0].mxu0
    %v5014 = vadd.f32 %v4974, %v5013
    %v5015 = vpop.f32.mrb[0].mxu0
    %v5016 = vpop.f32.mrb[0].mxu0
    %v5017 = vpop.f32.mrb[0].mxu0
    %5018 = vdwg.mxu0
    %5019 = vmatprep.subr.bf16.mxu0 0
    %5020 = vmatpush1.bf16.msra.mxu0 %v3509
    %5021 = vmatprep.subr.bf16.mxu0 0
    %5022 = vmatpush1.bf16.msra.mxu0 %v3510
    %5023 = vmatprep.subr.bf16.mxu0 0
    %5024 = vmatpush1.bf16.msra.mxu0 %v3511
    %5025 = vmatprep.subr.bf16.mxu0 0
    %5026 = vmatpush1.bf16.msra.mxu0 %v3512
    %5027 = vmatprep.subr.bf16.mxu0 0
    %5028 = vmatpush1.bf16.msra.mxu0 %v3513
    %5029 = vmatprep.subr.bf16.mxu0 0
    %5030 = vmatpush1.bf16.msra.mxu0 %v3514
    %5031 = vmatprep.subr.bf16.mxu0 0
    %5032 = vmatpush1.bf16.msra.mxu0 %v3515
    %5033 = vmatprep.subr.bf16.mxu0 0
    %5034 = vmatpush1.bf16.msra.mxu0 %v3516
    %5035 = vmatprep.subr.bf16.mxu0 0
    %5036 = vmatpush1.bf16.msra.mxu0 %v3517
    %5037 = vmatprep.subr.bf16.mxu0 0
    %5038 = vmatpush1.bf16.msra.mxu0 %v3518
    %5039 = vmatprep.subr.bf16.mxu0 0
    %5040 = vmatpush1.bf16.msra.mxu0 %v3519
    %5041 = vmatprep.subr.bf16.mxu0 0
    %5042 = vmatpush1.bf16.msra.mxu0 %v3520
    %5043 = vmatprep.subr.bf16.mxu0 0
    %5044 = vmatpush1.bf16.msra.mxu0 %v3521
    %5045 = vmatprep.subr.bf16.mxu0 0
    %5046 = vmatpush1.bf16.msra.mxu0 %v3522
    %5047 = vmatprep.subr.bf16.mxu0 0
    %5048 = vmatpush1.bf16.msra.mxu0 %v3523
    %5049 = vmatprep.subr.bf16.mxu0 0
    %5050 = vmatpush1.bf16.msra.mxu0 %v3524
    %5051 = vmatprep.mubr.bf16.mxu0 %v1269
    %5052 = vmatmul.mubr.bf16.gmra.mrb[0].mxu0 %v1255
    %v5053 = vpop.f32.mrb[0].mxu0
    %v5054 = vadd.f32 %v5014, %v5053
    %v5055 = vpop.f32.mrb[0].mxu0
    %v5056 = vpop.f32.mrb[0].mxu0
    %v5057 = vpop.f32.mrb[0].mxu0
    %5058 = vdwg.mxu0
    %5059 = vmatprep.subr.bf16.mxu0 0
    %5060 = vmatpush1.bf16.msra.mxu0 %v3525
    %5061 = vmatprep.subr.bf16.mxu0 0
    %5062 = vmatpush1.bf16.msra.mxu0 %v3526
    %5063 = vmatprep.subr.bf16.mxu0 0
    %5064 = vmatpush1.bf16.msra.mxu0 %v3527
    %5065 = vmatprep.subr.bf16.mxu0 0
    %5066 = vmatpush1.bf16.msra.mxu0 %v3528
    %5067 = vmatprep.subr.bf16.mxu0 0
    %5068 = vmatpush1.bf16.msra.mxu0 %v3529
    %5069 = vmatprep.subr.bf16.mxu0 0
    %5070 = vmatpush1.bf16.msra.mxu0 %v3530
    %5071 = vmatprep.subr.bf16.mxu0 0
    %5072 = vmatpush1.bf16.msra.mxu0 %v3531
    %5073 = vmatprep.subr.bf16.mxu0 0
    %5074 = vmatpush1.bf16.msra.mxu0 %v3532
    %5075 = vmatprep.subr.bf16.mxu0 0
    %5076 = vmatpush1.bf16.msra.mxu0 %v3533
    %5077 = vmatprep.subr.bf16.mxu0 0
    %5078 = vmatpush1.bf16.msra.mxu0 0
    %5079 = vmatprep.subr.bf16.mxu0 0
    %5080 = vmatpush1.bf16.msra.mxu0 0
    %5081 = vmatprep.subr.bf16.mxu0 0
    %5082 = vmatpush1.bf16.msra.mxu0 0
    %5083 = vmatprep.subr.bf16.mxu0 0
    %5084 = vmatpush1.bf16.msra.mxu0 0
    %5085 = vmatprep.subr.bf16.mxu0 0
    %5086 = vmatpush1.bf16.msra.mxu0 0
    %5087 = vmatprep.subr.bf16.mxu0 0
    %5088 = vmatpush1.bf16.msra.mxu0 0
    %5089 = vmatprep.subr.bf16.mxu0 0
    %5090 = vmatpush1.bf16.msra.mxu0 0
    %5091 = vmatprep.mubr.bf16.mxu0 %v3977
    %5092 = vmatmul.mubr.bf16.gmra.mrb[0].mxu0 %v1271
    %v5093 = vpop.f32.mrb[0].mxu0
    %v5094 = vadd.f32 %v5054, %v5093
    %v5095 = vpop.f32.mrb[0].mxu0
    %v5096 = vpop.f32.mrb[0].mxu0
    %v5097 = vpop.f32.mrb[0].mxu0
    %5098 = vdwg.mxu0
    %vm5099 = vcmp.gt.f32.partialorder %v5094, 0.0
    %v5100 = vmin.f32 %v5094, 0.0
    %v5101 = vmul.f32 %v5100, 1.442695
    %v5102 = vpow.pop %v5101
    %v5103 = vsub.f32 %v5102, 1.0
    %v5104 = vsel %vm5099, %v5094, %v5103
    %v5105 = vld [vmem:[%s3] sm:$0xff]
    %v5106 = vld [vmem:[%s3 + $0x8] sm:$0xff]
    %v5107 = vld [vmem:[%s3 + $0x10] sm:$0xff]
    %v5108 = vld [vmem:[%s3 + $0x18] sm:$0xff]
    %v5109 = vld [vmem:[%s3 + $0x20] sm:$0xff]
    %v5110 = vld [vmem:[%s3 + $0x28] sm:$0xff]
    %v5111 = vld [vmem:[%s3 + $0x30] sm:$0xff]
    %v5112 = vld [vmem:[%s3 + $0x38] sm:$0xff]
    %v5113 = vld [vmem:[%s3 + $0x40] sm:$0xff]
    %v5114 = vld [vmem:[%s3 + $0x48] sm:$0xff]
    %v5115 = vld [vmem:[%s3 + $0x50] sm:$0xff]
    %v5116 = vld [vmem:[%s3 + $0x58] sm:$0xff]
    %v5117 = vld [vmem:[%s3 + $0x60] sm:$0xff]
    %v5118 = vld [vmem:[%s3 + $0x68] sm:$0xff]
    %v5119 = vld [vmem:[%s3 + $0x70] sm:$0xff]
    %v5120 = vld [vmem:[%s4] sm:$0x1]
    %v5122 = vlaneseq
    %v5123 = vshrl.u32 %v5122, 7
    %v5124 = vsub.s32 0, %v5123
    %v5125 = vrot.slane %v5120, %v5124
    %vm5127 = vcmask 982016
    %v5129 = vsel %vm5127, %v5104, 0
    %5131 = vmatprep.subr.mxu0 0.0
    %5132 = vmatpush1.msra.mxu0 %v5105
    %5133 = vmatprep.subr.mxu0 0.0
    %5134 = vmatpush1.msra.mxu0 %v5106
    %5135 = vmatprep.subr.mxu0 0.0
    %5136 = vmatpush1.msra.mxu0 %v5107
    %5137 = vmatprep.subr.mxu0 0.0
    %5138 = vmatpush1.msra.mxu0 %v5108
    %5139 = vmatprep.subr.mxu0 0.0
    %5140 = vmatpush1.msra.mxu0 %v5109
    %5141 = vmatprep.subr.mxu0 0.0
    %5142 = vmatpush1.msra.mxu0 %v5110
    %5143 = vmatprep.subr.mxu0 0.0
    %5144 = vmatpush1.msra.mxu0 %v5111
    %5145 = vmatprep.subr.mxu0 0.0
    %5146 = vmatpush1.msra.mxu0 %v5112
    %5147 = vmatprep.subr.mxu0 0.0
    %5148 = vmatpush1.msra.mxu0 %v5113
    %5149 = vmatprep.subr.mxu0 0.0
    %5150 = vmatpush1.msra.mxu0 %v5114
    %5151 = vmatprep.subr.mxu0 0.0
    %5152 = vmatpush1.msra.mxu0 %v5115
    %5153 = vmatprep.subr.mxu0 0.0
    %5154 = vmatpush1.msra.mxu0 %v5116
    %5155 = vmatprep.subr.mxu0 0.0
    %5156 = vmatpush1.msra.mxu0 %v5117
    %5157 = vmatprep.subr.mxu0 0.0
    %5158 = vmatpush1.msra.mxu0 %v5118
    %5159 = vmatprep.subr.mxu0 0.0
    %5160 = vmatpush1.msra.mxu0 %v5119
    %5161 = vmatprep.subr.mxu0 0.0
    %5162 = vmatpush1.msra.mxu0 0.0
    %5163 = vmatprep.subr.mxu0 0.0
    %5164 = vmatpush1.msra.mxu0 0.0
    %5165 = vmatprep.subr.mxu0 0.0
    %5166 = vmatpush1.msra.mxu0 0.0
    %5167 = vmatprep.subr.mxu0 0.0
    %5168 = vmatpush1.msra.mxu0 0.0
    %5169 = vmatprep.subr.mxu0 0.0
    %5170 = vmatpush1.msra.mxu0 0.0
    %5171 = vmatprep.subr.mxu0 0.0
    %5172 = vmatpush1.msra.mxu0 0.0
    %5173 = vmatprep.subr.mxu0 0.0
    %5174 = vmatpush1.msra.mxu0 0.0
    %5175 = vmatprep.subr.mxu0 0.0
    %5176 = vmatpush1.msra.mxu0 0.0
    %5177 = vmatprep.subr.mxu0 0.0
    %5178 = vmatpush1.msra.mxu0 0.0
    %5179 = vmatprep.subr.mxu0 0.0
    %5180 = vmatpush1.msra.mxu0 0.0
    %5181 = vmatprep.subr.mxu0 0.0
    %5182 = vmatpush1.msra.mxu0 0.0
    %5183 = vmatprep.subr.mxu0 0.0
    %5184 = vmatpush1.msra.mxu0 0.0
    %5185 = vmatprep.subr.mxu0 0.0
    %5186 = vmatpush1.msra.mxu0 0.0
    %5187 = vmatprep.subr.mxu0 0.0
    %5188 = vmatpush1.msra.mxu0 0.0
    %5189 = vmatprep.subr.mxu0 0.0
    %5190 = vmatpush1.msra.mxu0 0.0
    %5191 = vmatprep.subr.mxu0 0.0
    %5192 = vmatpush1.msra.mxu0 0.0
    %5193 = vmatprep.subr.mxu0 0.0
    %5194 = vmatpush1.msra.mxu0 0.0
    %5195 = vmatprep.mubr.f32.mxu0 0.0
    %5196 = vmatmul.mubr.f32.gmra.mrb[0].mxu0 %v5129
    %v5197 = vpop.f32.mrb[0].mxu0
    %v5198 = vadd.f32 %v5125, %v5197
    %v5199 = vpop.f32.mrb[0].mxu0
    %5200 = vdwg.mxu0
    %vm5201 = vcmp.gt.f32.partialorder %v5198, 0.0
    %v5202 = vmin.f32 %v5198, 0.0
    %v5203 = vmul.f32 %v5202, 1.442695
    %v5204 = vpow.pop %v5203
    %v5205 = vsub.f32 %v5204, 1.0
    %v5206 = vsel %vm5201, %v5198, %v5205
    %v5207 = vld [vmem:[%s5] sm:$0xff]
    %v5208 = vld [vmem:[%s5 + $0x8] sm:$0xff]
    %v5209 = vld [vmem:[%s5 + $0x10] sm:$0xff]
    %v5210 = vld [vmem:[%s5 + $0x18] sm:$0xff]
    %v5211 = vld [vmem:[%s5 + $0x20] sm:$0xff]
    %v5212 = vld [vmem:[%s5 + $0x28] sm:$0xff]
    %v5213 = vld [vmem:[%s5 + $0x30] sm:$0xff]
    %v5214 = vld [vmem:[%s5 + $0x38] sm:$0xff]
    %v5215 = vld [vmem:[%s5 + $0x40] sm:$0xff]
    %v5216 = vld [vmem:[%s5 + $0x48] sm:$0xff]
    %v5217 = vld [vmem:[%s5 + $0x50] sm:$0xf]
    %v5218 = vld [vmem:[%s6] sm:$0x1]
    %v5220 = vlaneseq
    %v5221 = vshrl.u32 %v5220, 7
    %v5222 = vsub.s32 0, %v5221
    %v5223 = vrot.slane %v5218, %v5222
    %vm5225 = vcmask 687104
    %v5227 = vsel %vm5225, %v5206, 0
    %vm5229 = vcmask 1043456
    %v5231 = vsel %vm5229, %v5217, 0
    %5233 = vmatprep.subr.mxu0 0.0
    %5234 = vmatpush1.msra.mxu0 %v5207
    %5235 = vmatprep.subr.mxu0 0.0
    %5236 = vmatpush1.msra.mxu0 %v5208
    %5237 = vmatprep.subr.mxu0 0.0
    %5238 = vmatpush1.msra.mxu0 %v5209
    %5239 = vmatprep.subr.mxu0 0.0
    %5240 = vmatpush1.msra.mxu0 %v5210
    %5241 = vmatprep.subr.mxu0 0.0
    %5242 = vmatpush1.msra.mxu0 %v5211
    %5243 = vmatprep.subr.mxu0 0.0
    %5244 = vmatpush1.msra.mxu0 %v5212
    %5245 = vmatprep.subr.mxu0 0.0
    %5246 = vmatpush1.msra.mxu0 %v5213
    %5247 = vmatprep.subr.mxu0 0.0
    %5248 = vmatpush1.msra.mxu0 %v5214
    %5249 = vmatprep.subr.mxu0 0.0
    %5250 = vmatpush1.msra.mxu0 %v5215
    %5251 = vmatprep.subr.mxu0 0.0
    %5252 = vmatpush1.msra.mxu0 %v5216
    %5253 = vmatprep.subr.mxu0 0.0
    %5254 = vmatpush1.msra.mxu0 %v5231
    %5255 = vmatprep.subr.mxu0 0.0
    %5256 = vmatpush1.msra.mxu0 0.0
    %5257 = vmatprep.subr.mxu0 0.0
    %5258 = vmatpush1.msra.mxu0 0.0
    %5259 = vmatprep.subr.mxu0 0.0
    %5260 = vmatpush1.msra.mxu0 0.0
    %5261 = vmatprep.subr.mxu0 0.0
    %5262 = vmatpush1.msra.mxu0 0.0
    %5263 = vmatprep.subr.mxu0 0.0
    %5264 = vmatpush1.msra.mxu0 0.0
    %5265 = vmatprep.subr.mxu0 0.0
    %5266 = vmatpush1.msra.mxu0 0.0
    %5267 = vmatprep.subr.mxu0 0.0
    %5268 = vmatpush1.msra.mxu0 0.0
    %5269 = vmatprep.subr.mxu0 0.0
    %5270 = vmatpush1.msra.mxu0 0.0
    %5271 = vmatprep.subr.mxu0 0.0
    %5272 = vmatpush1.msra.mxu0 0.0
    %5273 = vmatprep.subr.mxu0 0.0
    %5274 = vmatpush1.msra.mxu0 0.0
    %5275 = vmatprep.subr.mxu0 0.0
    %5276 = vmatpush1.msra.mxu0 0.0
    %5277 = vmatprep.subr.mxu0 0.0
    %5278 = vmatpush1.msra.mxu0 0.0
    %5279 = vmatprep.subr.mxu0 0.0
    %5280 = vmatpush1.msra.mxu0 0.0
    %5281 = vmatprep.subr.mxu0 0.0
    %5282 = vmatpush1.msra.mxu0 0.0
    %5283 = vmatprep.subr.mxu0 0.0
    %5284 = vmatpush1.msra.mxu0 0.0
    %5285 = vmatprep.subr.mxu0 0.0
    %5286 = vmatpush1.msra.mxu0 0.0
    %5287 = vmatprep.subr.mxu0 0.0
    %5288 = vmatpush1.msra.mxu0 0.0
    %5289 = vmatprep.subr.mxu0 0.0
    %5290 = vmatpush1.msra.mxu0 0.0
    %5291 = vmatprep.subr.mxu0 0.0
    %5292 = vmatpush1.msra.mxu0 0.0
    %5293 = vmatprep.subr.mxu0 0.0
    %5294 = vmatpush1.msra.mxu0 0.0
    %5295 = vmatprep.subr.mxu0 0.0
    %5296 = vmatpush1.msra.mxu0 0.0
    %5297 = vmatprep.mubr.f32.mxu0 0.0
    %5298 = vmatmul.mubr.f32.gmra.mrb[0].mxu0 %v5227
    %v5299 = vpop.f32.mrb[0].mxu0
    %v5300 = vadd.f32 %v5223, %v5299
    %v5301 = vpop.f32.mrb[0].mxu0
    %5302 = vdwg.mxu0
    %vm5303 = vcmask 33792
    %v5304 = vsel %vm5303, %v5300, -inf
    %5305 = vmax.xlane.f32.xlu0 %v5304
    %v5306 = vpop.xlane.xlu0 %5305
    %v5307 = vsub.f32 %v5300, %v5306
    %v5308 = vmul.f32 %v5307, 1.442695
    %v5309 = vpow.pop %v5308
    %v5310 = vsel %vm5303, %v5309, 0.0
    %5311 = vadd.xlane.f32.xlu0 %v5310
    %v5312 = vpop.xlane.xlu0 %5311
    %v5313 = vrcp.pop %v5312
    %v5314 = vmul.f32 %v5309, %v5313
    %5315 = vst.msk [vmem:[#allocation2] sm:$0x3] %vm5303, %v5314
    // Predicated region
    $region30: #{lenet_variant_forward.5} parent=1 // pred_check
      _
    $region31: #{lenet_variant_forward.5} parent=1 // pred_check_branch
      %5317 = sbr.rel (0) target = $region33
    $region32: #{lenet_variant_forward.5} parent=1 // pred_region
      %s5319 = ssub.s32 32, 32
      %5320 = vsyncadd [#allocation3], %s5319
      %s5322 = sshll.u32 [#allocation2], 4
      %s5323 = int_to_ptr.vmem [resolvable:$true] %s5322
      %5325 = dma.vmem_to_hbm [thread:$0]  %s5323, 32, %s7, [#allocation3]
    $region33: #{lenet_variant_forward.5} parent=1 // pred_fallthru
      _
    // Predicated region
    $region34: #{lenet_variant_forward.5} parent=1 // pred_check
      _
    $region35: #{lenet_variant_forward.5} parent=1 // pred_check_branch
      %5327 = sbr.rel (0) target = $region37
    $region36: #{lenet_variant_forward.5} parent=1 // pred_region
      %5328 = dma.done [#allocation3], 32
    $region37: #{lenet_variant_forward.5} parent=1 // pred_fallthru
      _
    %5329 = vsyncpa [#allocation3], 1

</llo_original>
